<compile_context>
chip_gen: v7x
topology: tpu7x:2x2x1
jax: 0.10.0
libtpu: 0.0.40
codegen_flags: <defaults>
</compile_context>

<pallas_src>
import math
import jax
import jax.numpy as jnp
from jax import lax
from jax.experimental import pallas as pl
from jax.experimental.pallas import tpu as pltpu

HP = dict(
    hidden_size=32, enc_layers=2, enc_ffn_kernel_size=3, num_heads=2,
    audio_num_mel_bins=16, timesteps=4, timescale=1,
    residual_channels=32, residual_layers=2, dilation_cycle_length=1,
    vocab_size=20, num_spk=3, num_lang=3, pad_idx=0,
)

# --------------------------------------------------------------------------
# In-kernel helpers (operate on values, usable inside Pallas kernels)
# --------------------------------------------------------------------------

def _mx(a, b):
    """MXU matmul: bf16 operands, f32 accumulation."""
    return jnp.dot(a.astype(jnp.bfloat16), b.astype(jnp.bfloat16),
                   preferred_element_type=jnp.float32)


def _ln(x, g, b):
    """LayerNorm over the last axis; statistics kept in f32."""
    mean = jnp.mean(x, axis=-1, keepdims=True)
    xc = x - mean
    var = jnp.mean(xc * xc, axis=-1, keepdims=True)
    return xc * lax.rsqrt(var + 1e-5) * g + b


def _softplus(x):
    # numerically stable softplus with only exp/log (Mosaic-friendly)
    return jnp.maximum(x, 0.0) + jnp.log(1.0 + jnp.exp(-jnp.abs(x)))


def _const_index_map(ndim):
    return lambda b: (0,) * ndim


def _full_spec(a):
    """Whole-array (weight) block, same block for every grid step."""
    return pl.BlockSpec(a.shape, _const_index_map(a.ndim))


# --------------------------------------------------------------------------
# Fused FastSpeech encoder kernel (all layers, per batch row)
# --------------------------------------------------------------------------

def _encoder_kernel(x0_ref, npcol_ref, kbias_ref,
                    ln1g_ref, ln1b_ref, wqkv_ref, bqkv_ref, wo_ref, bo_ref,
                    ln2g_ref, ln2b_ref, ffn1w_ref, ffn1b_ref,
                    ffn2w_ref, ffn2b_ref, lng_ref, lnb_ref, o_ref):
    H = HP['hidden_size']
    nh = HP['num_heads']
    dh = H // nh
    k = HP['enc_ffn_kernel_size']
    L = HP['enc_layers']
    T = x0_ref.shape[1]

    npc = npcol_ref[0]                    # (T, 1)  nonpad column mask
    kb = kbias_ref[0]                     # (1, T)  key-padding bias (0 / -1e9)
    x = x0_ref[0] * npc                   # (T, H)

    # 0/1 shift matrices for the conv-FFN taps (offsets -k//2 .. +k//2)
    row = lax.broadcasted_iota(jnp.int32, (T, T), 0)
    col = lax.broadcasted_iota(jnp.int32, (T, T), 1)
    shift_mats = {off: (col == row + off).astype(jnp.float32)
                  for off in range(-(k // 2), k // 2 + 1) if off != 0}

    for li in range(L):
        # ---- pre-norm multi-head self-attention -------------------------
        xn = _ln(x, ln1g_ref[li], ln1b_ref[li])
        qkv = _mx(xn, wqkv_ref[li]) + bqkv_ref[li]          # (T, 3H); scale folded in wq/bq
        attn = jnp.zeros((T, H), jnp.float32)
        for h in range(nh):
            q = qkv[:, h * dh:(h + 1) * dh]
            kk = qkv[:, H + h * dh:H + (h + 1) * dh]
            v = qkv[:, 2 * H + h * dh:2 * H + (h + 1) * dh]
            s = lax.dot_general(q.astype(jnp.bfloat16), kk.astype(jnp.bfloat16),
                                (((1,), (1,)), ((), ())),
                                preferred_element_type=jnp.float32)   # (T, T)
            s = s + kb
            s = s - jnp.max(s, axis=-1, keepdims=True)
            p = jnp.exp(s)
            p = p * pl.reciprocal(jnp.sum(p, axis=-1, keepdims=True), approx=True)
            o_h = _mx(p, v)                                           # (T, dh)
            # out-projection folded per head: sum_h o_h @ Wo[h*dh:(h+1)*dh]
            attn = attn + _mx(o_h, wo_ref[li, h * dh:(h + 1) * dh, :])
        attn = attn + bo_ref[li]
        x = (x + attn) * npc

        # ---- pre-norm conv FFN ------------------------------------------
        xn = _ln(x, ln2g_ref[li], ln2b_ref[li])
        hbuf = _mx(xn, ffn1w_ref[li, k // 2]) + ffn1b_ref[li]         # center tap
        for j in range(k):
            off = j - k // 2
            if off == 0:
                continue
            xs = jnp.dot(shift_mats[off], xn, preferred_element_type=jnp.float32)
            hbuf = hbuf + _mx(xs, ffn1w_ref[li, j])
        hbuf = jax.nn.relu(hbuf * (k ** -0.5))
        y = _mx(hbuf, ffn2w_ref[li]) + ffn2b_ref[li]
        x = (x + y) * npc

    x = _ln(x, lng_ref[...], lnb_ref[...]) * npc
    o_ref[0] = x


def fused_encoder(x0, npcol, kbias, params):
    B, T, H = x0.shape
    dh = H // HP['num_heads']
    scale = dh ** -0.5
    lp = params['enc_layers']
    stk = lambda f: jnp.stack([f(l) for l in lp], axis=0)

    ln1_g = stk(lambda l: l['ln1_g'][None, :]); ln1_b = stk(lambda l: l['ln1_b'][None, :])
    # fused QKV with the attention scale folded into the q weights + bias
    wqkv = stk(lambda l: jnp.concatenate(
        [l['attn']['wq'] * scale, l['attn']['wk'], l['attn']['wv']], axis=1))
    bqkv = stk(lambda l: jnp.concatenate(
        [l['attn']['bq'] * scale, l['attn']['bk'], l['attn']['bv']])[None, :])
    wo = stk(lambda l: l['attn']['wo']); bo = stk(lambda l: l['attn']['bo'][None, :])
    ln2_g = stk(lambda l: l['ln2_g'][None, :]); ln2_b = stk(lambda l: l['ln2_b'][None, :])
    ffn1_w = stk(lambda l: l['ffn1_w']); ffn1_b = stk(lambda l: l['ffn1_b'][None, :])
    ffn2_w = stk(lambda l: l['ffn2_w']); ffn2_b = stk(lambda l: l['ffn2_b'][None, :])
    enc_g = params['enc_ln_g'][None, :]; enc_b = params['enc_ln_b'][None, :]

    weights = (ln1_g, ln1_b, wqkv, bqkv, wo, bo, ln2_g, ln2_b,
               ffn1_w, ffn1_b, ffn2_w, ffn2_b, enc_g, enc_b)
    in_specs = [pl.BlockSpec((1, T, H), lambda b: (b, 0, 0)),
                pl.BlockSpec((1, T, 1), lambda b: (b, 0, 0)),
                pl.BlockSpec((1, 1, T), lambda b: (b, 0, 0))] + \
               [_full_spec(a) for a in weights]

    return pl.pallas_call(
        _encoder_kernel,
        grid=(B,),
        in_specs=in_specs,
        out_specs=pl.BlockSpec((1, T, H), lambda b: (b, 0, 0)),
        out_shape=jax.ShapeDtypeStruct((B, T, H), jnp.float32),
        compiler_params=pltpu.CompilerParams(dimension_semantics=("parallel",)),
    )(x0, npcol, kbias, *weights)


# --------------------------------------------------------------------------
# Fused DDPM sampling kernel (all timesteps + full DiffNet, per batch row)
# --------------------------------------------------------------------------

def _diffusion_kernel(sched_ref, cond_ref, xinit_ref, noise_ref, stepemb_ref,
                      mlpw1_ref, mlpb1_ref, mlpw2_ref, mlpb2_ref,
                      diffw_ref, diffb_ref,
                      inw_ref, inb_ref, condw_ref, condb_ref,
                      dilw_ref, dilb_ref, resw_ref, resb_ref,
                      skipw_ref, skipb_ref, projw_ref, projb_ref,
                      smin_ref, smax_ref, o_ref):
    R = HP['residual_channels']
    L = HP['residual_layers']
    TS = HP['timesteps']
    T = xinit_ref.shape[1]

    # ---- hoisted, x-independent work (done once per batch row) ----------
    cond = cond_ref[0]                                            # (T, H)
    cond_all = _mx(cond, condw_ref[...]) + condb_ref[...]         # (T, L*2R) lane-dense

    se = stepemb_ref[...]                                         # (TS, R)
    h1 = _mx(se, mlpw1_ref[...]) + mlpb1_ref[...]
    h1 = h1 * jnp.tanh(_softplus(h1))                             # mish
    demb = _mx(h1, mlpw2_ref[...]) + mlpb2_ref[...]               # (TS, R)
    dsteps = [_mx(demb, diffw_ref[li]) + diffb_ref[li] for li in range(L)]  # each (TS, R)

    # 0/1 shift matrices for the dilated convs (cached per offset)
    row = lax.broadcasted_iota(jnp.int32, (T, T), 0)
    col = lax.broadcasted_iota(jnp.int32, (T, T), 1)
    _sm_cache = {}

    def smat(off):
        if off not in _sm_cache:
            _sm_cache[off] = (col == row + off).astype(jnp.float32)
        return _sm_cache[off]

    inv_sqrt2 = 1.0 / math.sqrt(2.0)
    x = xinit_ref[0]                                              # (T, M)

    for i in reversed(range(TS)):
        # ---- DiffNet eps(x, t_i, cond) ----------------------------------
        hbuf = jax.nn.relu(_mx(x, inw_ref[...]) + inb_ref[...])   # (T, R)
        skip_sum = jnp.zeros((T, R), jnp.float32)
        for li in range(L):
            dil = 2 ** (li % HP['dilation_cycle_length'])
            y = hbuf + dsteps[li][i:i + 1, :]                     # (T, R)
            conv = _mx(y, dilw_ref[li, 1]) + dilb_ref[li]         # center tap -> (T, 2R)
            for j, off in ((0, -dil), (2, dil)):
                ys = jnp.dot(smat(off), y, preferred_element_type=jnp.float32)
                conv = conv + _mx(ys, dilw_ref[li, j])
            conv = conv + cond_all[:, li * 2 * R:(li + 1) * 2 * R]
            gate, filt = conv[:, :R], conv[:, R:]
            z = jax.nn.sigmoid(gate) * jnp.tanh(filt)
            z = _mx(z, resw_ref[li]) + resb_ref[li]               # (T, 2R)
            hbuf = (hbuf + z[:, :R]) * inv_sqrt2
            skip_sum = skip_sum + z[:, R:]
        sk = skip_sum * (1.0 / math.sqrt(L))
        sk = jax.nn.relu(_mx(sk, skipw_ref[...]) + skipb_ref[...])
        eps = _mx(sk, projw_ref[...]) + projb_ref[...]            # (T, M)

        # ---- DDPM ancestral update (schedule scalars from SMEM) ---------
        sr = sched_ref[0, i]
        srm1 = sched_ref[1, i]
        c1 = sched_ref[2, i]
        c2 = sched_ref[3, i]
        sg = sched_ref[4, i]
        x0 = jnp.clip(sr * x - srm1 * eps, -1.0, 1.0)
        mean = c1 * x0 + c2 * x
        if i > 0:
            x = mean + sg * noise_ref[i, 0]
        else:
            x = mean

    # denorm_spec
    o_ref[0] = (x + 1.0) * 0.5 * (smax_ref[...] - smin_ref[...]) + smin_ref[...]


def fused_diffusion(cond, params, noise_key):
    B, T, H = cond.shape
    M = HP['audio_num_mel_bins']
    R = HP['residual_channels']
    L = HP['residual_layers']
    TS = HP['timesteps']

    # diffusion schedule (deterministic buffer; tiny plain-JAX arithmetic)
    # TODO(synk): exact ProDiff schedule_type variants not reproduced; linear betas used.
    betas = params['betas']
    alphas = 1.0 - betas
    acp = jnp.cumprod(alphas)
    acp_prev = jnp.concatenate([jnp.ones((1,), jnp.float32), acp[:-1]])
    sqrt_recip = jnp.sqrt(1.0 / acp)
    sqrt_recipm1 = jnp.sqrt(1.0 / acp - 1.0)
    post_c1 = betas * jnp.sqrt(acp_prev) / (1.0 - acp)
    post_c2 = (1.0 - acp_prev) * jnp.sqrt(alphas) / (1.0 - acp)
    post_var = betas * (1.0 - acp_prev) / (1.0 - acp)
    sigma = jnp.sqrt(jnp.maximum(post_var, 1e-20))
    sched = jnp.stack([sqrt_recip, sqrt_recipm1, post_c1, post_c2, sigma],
                      axis=0).astype(jnp.float32)                       # (5, TS)

    keys = jax.random.split(noise_key, TS + 1)
    x_init = jax.random.normal(keys[0], (B, T, M), jnp.float32)
    noises = jnp.stack([jax.random.normal(keys[i + 1], (B, T, M), jnp.float32)
                        for i in range(TS)], axis=0)                    # (TS, B, T, M)

    # sinusoidal diffusion-step embeddings for every step (t = i * timescale)
    t_all = jnp.arange(TS, dtype=jnp.float32) * HP['timescale']
    step_emb = sinusoidal_step_embedding(t_all, R)                      # (TS, R)

    rl = params['res_layers']
    stk = lambda f: jnp.stack([f(l) for l in rl], axis=0)
    diff_w = stk(lambda l: l['diff_w']); diff_b = stk(lambda l: l['diff_b'][None, :])
    cond_w_all = jnp.concatenate([l['cond_w'] for l in rl], axis=1)     # (H, L*2R) = (32, 128)
    cond_b_all = jnp.concatenate([l['cond_b'] for l in rl])[None, :]
    dil_w = stk(lambda l: l['dil_w']); dil_b = stk(lambda l: l['dil_b'][None, :])
    res_w = stk(lambda l: l['out_w']); res_b = stk(lambda l: l['out_b'][None, :])

    args = (sched, cond, x_init, noises, step_emb,
            params['mlp_w1'], params['mlp_b1'][None, :],
            params['mlp_w2'], params['mlp_b2'][None, :],
            diff_w, diff_b,
            params['in_proj_w'], params['in_proj_b'][None, :],
            cond_w_all, cond_b_all,
            dil_w, dil_b, res_w, res_b,
            params['skip_w'], params['skip_b'][None, :],
            params['out_w'], params['out_b'][None, :],
            params['spec_min'][None, :], params['spec_max'][None, :])

    in_specs = [pl.BlockSpec(memory_space=pltpu.MemorySpace.SMEM),       # sched scalars
                pl.BlockSpec((1, T, H), lambda b: (b, 0, 0)),            # cond
                pl.BlockSpec((1, T, M), lambda b: (b, 0, 0)),            # x_init
                pl.BlockSpec((TS, 1, T, M), lambda b: (0, b, 0, 0))] + \
               [_full_spec(a) for a in args[4:]]

    return pl.pallas_call(
        _diffusion_kernel,
        grid=(B,),
        in_specs=in_specs,
        out_specs=pl.BlockSpec((1, T, M), lambda b: (b, 0, 0)),
        out_shape=jax.ShapeDtypeStruct((B, T, M), jnp.float32),
        compiler_params=pltpu.CompilerParams(dimension_semantics=("parallel",)),
    )(*args)


# --------------------------------------------------------------------------
# Plain-JAX glue (embeddings, positions, gathers)
# --------------------------------------------------------------------------

def sinusoidal_positions(tokens, dim, pad_idx):
    mask = (tokens != pad_idx).astype(jnp.int32)
    positions = jnp.cumsum(mask, axis=1) * mask + pad_idx   # fairseq make_positions
    half = dim // 2
    inv = jnp.exp(jnp.arange(half, dtype=jnp.float32) *
                  (-math.log(10000.0) / (half - 1)))
    ang = positions[..., None].astype(jnp.float32) * inv
    pe = jnp.concatenate([jnp.sin(ang), jnp.cos(ang)], axis=-1)
    return pe * mask[..., None].astype(jnp.float32)


def sinusoidal_step_embedding(t, dim):
    half = dim // 2
    inv = jnp.exp(jnp.arange(half, dtype=jnp.float32) *
                  (-math.log(10000.0) / (half - 1)))
    ang = t[:, None].astype(jnp.float32) * inv[None, :]
    return jnp.concatenate([jnp.sin(ang), jnp.cos(ang)], axis=-1)


def prodiff_teacher_forward(params, txt_tokens, mel2ph, f0, lang_seq,
                            spk_embed_id, noise_key):
    B, T_txt = txt_tokens.shape
    T_mel = mel2ph.shape[1]
    H = HP['hidden_size']

    # mel2ph_to_dur: frames per phoneme (1-indexed), then rank-1 dur embed
    dur = jnp.sum(mel2ph[:, :, None] == jnp.arange(1, T_txt + 1)[None, None, :],
                  axis=1).astype(jnp.float32)
    extra = dur[:, :, None] * params['dur_w'][0] + params['dur_b']
    extra = extra + jnp.take(params['lang_embed'], lang_seq, axis=0)

    emb = jnp.take(params['token_embed'], txt_tokens, axis=0) * math.sqrt(H)
    x0 = emb + extra + sinusoidal_positions(txt_tokens, H, HP['pad_idx'])
    pad_mask = (txt_tokens == HP['pad_idx'])
    npcol = (~pad_mask).astype(jnp.float32)[:, :, None]                  # (B, T, 1)
    kbias = jnp.where(pad_mask, -1e9, 0.0).astype(jnp.float32)[:, None, :]  # (B, 1, T)

    encoder_out = fused_encoder(x0, npcol, kbias, params)

    # F.pad(encoder_out, [0,0,1,0]) then gather along the sequence with mel2ph
    cond_src = jnp.pad(encoder_out, ((0, 0), (1, 0), (0, 0)))
    idx = jnp.broadcast_to(mel2ph[:, :, None], (B, T_mel, H))
    condition = jnp.take_along_axis(cond_src, idx, axis=1)
    # continuous f0 embedding (rank-1 linear)
    f0_mel = jnp.log(1.0 + f0 / 700.0)
    condition = condition + f0_mel[:, :, None] * params['pitch_w'][0] + params['pitch_b']
    # speaker embedding
    condition = condition + jnp.take(params['spk_embed'], spk_embed_id,
                                     axis=0)[:, None, :]
    nonpadding = (mel2ph > 0).astype(jnp.float32)[:, :, None]
    condition = condition * nonpadding
    # TODO(synk): training branch (infer=False / p_losses on ref_mels) and the
    # discrete f0_to_coarse / gender-embedding branches are not implemented.
    return fused_diffusion(condition, params, noise_key)


# --------------------------------------------------------------------------
# Deterministic parameter initialization (synthetic, matches module shapes)
# --------------------------------------------------------------------------

def init_params(key):
    H = HP['hidden_size']
    M = HP['audio_num_mel_bins']
    R = HP['residual_channels']
    F = 4 * H
    k = HP['enc_ffn_kernel_size']
    kit = iter(jax.random.split(key, 256))

    def W(*shape):
        return 0.02 * jax.random.normal(next(kit), shape, jnp.float32)

    def Z(*shape):
        return jnp.zeros(shape, jnp.float32)

    p = {}
    p['token_embed'] = W(HP['vocab_size'], H).at[HP['pad_idx']].set(0.0)
    p['lang_embed'] = W(HP['num_lang'], H).at[HP['pad_idx']].set(0.0)
    p['spk_embed'] = W(HP['num_spk'], H)
    p['dur_w'], p['dur_b'] = W(1, H), Z(H)
    p['pitch_w'], p['pitch_b'] = W(1, H), Z(H)
    p['enc_layers'] = []
    for _ in range(HP['enc_layers']):
        p['enc_layers'].append(dict(
            ln1_g=jnp.ones((H,), jnp.float32), ln1_b=Z(H),
            attn=dict(wq=W(H, H), bq=Z(H), wk=W(H, H), bk=Z(H),
                      wv=W(H, H), bv=Z(H), wo=W(H, H), bo=Z(H)),
            ln2_g=jnp.ones((H,), jnp.float32), ln2_b=Z(H),
            ffn1_w=W(k, H, F), ffn1_b=Z(F),      # conv weight as (tap, Cin, Cout)
            ffn2_w=W(F, H), ffn2_b=Z(H),
        ))
    p['enc_ln_g'], p['enc_ln_b'] = jnp.ones((H,), jnp.float32), Z(H)
    # DiffNet
    p['in_proj_w'], p['in_proj_b'] = W(M, R), Z(R)
    p['mlp_w1'], p['mlp_b1'] = W(R, 4 * R), Z(4 * R)
    p['mlp_w2'], p['mlp_b2'] = W(4 * R, R), Z(R)
    p['res_layers'] = []
    for _ in range(HP['residual_layers']):
        p['res_layers'].append(dict(
            dil_w=W(3, R, 2 * R), dil_b=Z(2 * R),   # (tap, Cin, Cout)
            diff_w=W(R, R), diff_b=Z(R),
            cond_w=W(H, 2 * R), cond_b=Z(2 * R),
            out_w=W(R, 2 * R), out_b=Z(2 * R),
        ))
    p['skip_w'], p['skip_b'] = W(R, R), Z(R)
    p['out_w'], p['out_b'] = Z(R, M), Z(M)   # DiffNet output_projection is zero-init
    p['betas'] = jnp.linspace(1e-2, 0.4, HP['timesteps']).astype(jnp.float32)
    p['spec_min'] = jnp.full((M,), -6.0, jnp.float32)
    p['spec_max'] = jnp.full((M,), 0.0, jnp.float32)
    return p


# --------------------------------------------------------------------------

if __name__ == "__main__":
    key = jax.random.PRNGKey(0)
    pkey, nkey, tkey, fkey = jax.random.split(key, 4)
    params = init_params(pkey)

    B, T_txt, T_mel = 2, 8, 16
    txt_tokens = jax.random.randint(tkey, (B, T_txt), 1, HP['vocab_size'])
    txt_tokens = txt_tokens.at[1, 6:].set(0)                 # batch 1 has padding
    mel2ph = jnp.tile(jnp.repeat(jnp.arange(1, T_txt + 1),
                                 T_mel // T_txt)[None, :], (B, 1))
    mel2ph = mel2ph.at[1, 12:].set(0)                        # padded mel frames
    lang_seq = jnp.where(txt_tokens > 0, 1, 0).astype(jnp.int32)
    spk_embed_id = jnp.array([0, 2], dtype=jnp.int32)
    f0 = (200.0 + 100.0 * jax.random.uniform(fkey, (B, T_mel))) * (mel2ph > 0)

    fwd = jax.jit(prodiff_teacher_forward)
    mel_out = fwd(params, txt_tokens, mel2ph, f0, lang_seq, spk_embed_id, nkey)
    jax.block_until_ready(mel_out)

    assert mel_out.shape == (B, T_mel, HP['audio_num_mel_bins'])
    assert bool(jnp.all(jnp.isfinite(mel_out)))
    print("KERNEL_OK")
</pallas_src>

<mosaic_0001>
module attributes {stable_mosaic.version = 11 : i64} {
  func.func @_encoder_kernel(%arg0: i32, %arg1: memref<1x8x32xf32, #tpu.memory_space<vmem>>, %arg2: memref<1x8x1xf32, #tpu.memory_space<vmem>>, %arg3: memref<1x1x8xf32, #tpu.memory_space<vmem>>, %arg4: memref<2x1x32xf32, #tpu.memory_space<vmem>>, %arg5: memref<2x1x32xf32, #tpu.memory_space<vmem>>, %arg6: memref<2x32x96xf32, #tpu.memory_space<vmem>>, %arg7: memref<2x1x96xf32, #tpu.memory_space<vmem>>, %arg8: memref<2x32x32xf32, #tpu.memory_space<vmem>>, %arg9: memref<2x1x32xf32, #tpu.memory_space<vmem>>, %arg10: memref<2x1x32xf32, #tpu.memory_space<vmem>>, %arg11: memref<2x1x32xf32, #tpu.memory_space<vmem>>, %arg12: memref<2x3x32x128xf32, #tpu.memory_space<vmem>>, %arg13: memref<2x1x128xf32, #tpu.memory_space<vmem>>, %arg14: memref<2x128x32xf32, #tpu.memory_space<vmem>>, %arg15: memref<2x1x32xf32, #tpu.memory_space<vmem>>, %arg16: memref<1x32xf32, #tpu.memory_space<vmem>>, %arg17: memref<1x32xf32, #tpu.memory_space<vmem>>, %arg18: memref<1x8x32xf32, #tpu.memory_space<vmem>>) attributes {dimension_semantics = [#tpu.dimension_semantics<parallel>], iteration_bounds = array<i64: 2>, scalar_prefetch = 0 : i64, scratch_operands = 0 : i64, tpu.core_type = #tpu.core_type<tc>, window_params = [{transform_indices = @transform_0, window_bounds = array<i64: 1, 8, 32>}, {transform_indices = @transform_1, window_bounds = array<i64: 1, 8, 1>}, {transform_indices = @transform_2, window_bounds = array<i64: 1, 1, 8>}, {pipeline_mode = #tpu.pipeline_mode<synchronous>, transform_indices = @transform_3, window_bounds = array<i64: 2, 1, 32>}, {pipeline_mode = #tpu.pipeline_mode<synchronous>, transform_indices = @transform_4, window_bounds = array<i64: 2, 1, 32>}, {pipeline_mode = #tpu.pipeline_mode<synchronous>, transform_indices = @transform_5, window_bounds = array<i64: 2, 32, 96>}, {pipeline_mode = #tpu.pipeline_mode<synchronous>, transform_indices = @transform_6, window_bounds = array<i64: 2, 1, 96>}, {pipeline_mode = #tpu.pipeline_mode<synchronous>, transform_indices = @transform_7, window_bounds = array<i64: 2, 32, 32>}, {pipeline_mode = #tpu.pipeline_mode<synchronous>, transform_indices = @transform_8, window_bounds = array<i64: 2, 1, 32>}, {pipeline_mode = #tpu.pipeline_mode<synchronous>, transform_indices = @transform_9, window_bounds = array<i64: 2, 1, 32>}, {pipeline_mode = #tpu.pipeline_mode<synchronous>, transform_indices = @transform_10, window_bounds = array<i64: 2, 1, 32>}, {pipeline_mode = #tpu.pipeline_mode<synchronous>, transform_indices = @transform_11, window_bounds = array<i64: 2, 3, 32, 128>}, {pipeline_mode = #tpu.pipeline_mode<synchronous>, transform_indices = @transform_12, window_bounds = array<i64: 2, 1, 128>}, {pipeline_mode = #tpu.pipeline_mode<synchronous>, transform_indices = @transform_13, window_bounds = array<i64: 2, 128, 32>}, {pipeline_mode = #tpu.pipeline_mode<synchronous>, transform_indices = @transform_14, window_bounds = array<i64: 2, 1, 32>}, {pipeline_mode = #tpu.pipeline_mode<synchronous>, transform_indices = @transform_15, window_bounds = array<i64: 1, 32>}, {pipeline_mode = #tpu.pipeline_mode<synchronous>, transform_indices = @transform_16, window_bounds = array<i64: 1, 32>}, {transform_indices = @transform_17, window_bounds = array<i64: 1, 8, 32>}]} {
    %c0 = arith.constant 0 : index
    %c0_0 = arith.constant 0 : index
    %c0_1 = arith.constant 0 : index
    %0 = vector.load %arg2[%c0, %c0_0, %c0_1] : memref<1x8x1xf32, #tpu.memory_space<vmem>>, vector<1x8x1xf32>
    %1 = vector.shape_cast %0 : vector<1x8x1xf32> to vector<8x1xf32>
    %c0_2 = arith.constant 0 : index
    %c0_3 = arith.constant 0 : index
    %c0_4 = arith.constant 0 : index
    %2 = vector.load %arg3[%c0_2, %c0_3, %c0_4] : memref<1x1x8xf32, #tpu.memory_space<vmem>>, vector<1x1x8xf32>
    %3 = vector.shape_cast %2 : vector<1x1x8xf32> to vector<1x8xf32>
    %c0_5 = arith.constant 0 : index
    %c0_6 = arith.constant 0 : index
    %c0_7 = arith.constant 0 : index
    %4 = vector.load %arg1[%c0_5, %c0_6, %c0_7] : memref<1x8x32xf32, #tpu.memory_space<vmem>>, vector<1x8x32xf32>
    %5 = vector.shape_cast %4 : vector<1x8x32xf32> to vector<8x32xf32>
    %6 = vector.broadcast %1 : vector<8x1xf32> to vector<8x32xf32>
    %7 = arith.mulf %5, %6 : vector<8x32xf32>
    %8 = tpu.iota {dimensions = array<i32: 0>} : vector<8x8xi32>
    %9 = tpu.iota {dimensions = array<i32: 1>} : vector<8x8xi32>
    %c-1_i32 = arith.constant -1 : i32
    %10 = vector.broadcast %c-1_i32 : i32 to vector<8x8xi32>
    %11 = arith.addi %8, %10 : vector<8x8xi32>
    %12 = arith.cmpi eq, %9, %11 : vector<8x8xi32>
    %13 = arith.extui %12 : vector<8x8xi1> to vector<8x8xi32>
    %14 = arith.sitofp %13 : vector<8x8xi32> to vector<8x8xf32>
    %c1_i32 = arith.constant 1 : i32
    %15 = vector.broadcast %c1_i32 : i32 to vector<8x8xi32>
    %16 = arith.addi %8, %15 : vector<8x8xi32>
    %17 = arith.cmpi eq, %9, %16 : vector<8x8xi32>
    %18 = arith.extui %17 : vector<8x8xi1> to vector<8x8xi32>
    %19 = arith.sitofp %18 : vector<8x8xi32> to vector<8x8xf32>
    %c0_8 = arith.constant 0 : index
    %c0_9 = arith.constant 0 : index
    %c0_10 = arith.constant 0 : index
    %20 = vector.load %arg4[%c0_8, %c0_9, %c0_10] : memref<2x1x32xf32, #tpu.memory_space<vmem>>, vector<1x1x32xf32>
    %21 = vector.shape_cast %20 : vector<1x1x32xf32> to vector<1x32xf32>
    %c0_11 = arith.constant 0 : index
    %c0_12 = arith.constant 0 : index
    %c0_13 = arith.constant 0 : index
    %22 = vector.load %arg5[%c0_11, %c0_12, %c0_13] : memref<2x1x32xf32, #tpu.memory_space<vmem>>, vector<1x1x32xf32>
    %23 = vector.shape_cast %22 : vector<1x1x32xf32> to vector<1x32xf32>
    %cst = arith.constant dense<0.000000e+00> : vector<8xf32>
    %24 = vector.multi_reduction <add>, %7, %cst [1] : vector<8x32xf32> to vector<8xf32>
    %25 = vector.shape_cast %24 : vector<8xf32> to vector<8x1xf32>
    %cst_14 = arith.constant 3.200000e+01 : f32
    %26 = vector.broadcast %cst_14 : f32 to vector<8x1xf32>
    %27 = arith.divf %25, %26 : vector<8x1xf32>
    %28 = vector.broadcast %27 : vector<8x1xf32> to vector<8x32xf32>
    %29 = arith.subf %7, %28 : vector<8x32xf32>
    %30 = arith.mulf %29, %29 : vector<8x32xf32>
    %cst_15 = arith.constant dense<0.000000e+00> : vector<8xf32>
    %31 = vector.multi_reduction <add>, %30, %cst_15 [1] : vector<8x32xf32> to vector<8xf32>
    %32 = vector.shape_cast %31 : vector<8xf32> to vector<8x1xf32>
    %cst_16 = arith.constant 3.200000e+01 : f32
    %33 = vector.broadcast %cst_16 : f32 to vector<8x1xf32>
    %34 = arith.divf %32, %33 : vector<8x1xf32>
    %cst_17 = arith.constant 9.99999974E-6 : f32
    %35 = vector.broadcast %cst_17 : f32 to vector<8x1xf32>
    %36 = arith.addf %34, %35 : vector<8x1xf32>
    %37 = math.rsqrt %36 : vector<8x1xf32>
    %38 = vector.broadcast %37 : vector<8x1xf32> to vector<8x32xf32>
    %39 = arith.mulf %29, %38 : vector<8x32xf32>
    %40 = vector.broadcast %21 : vector<1x32xf32> to vector<8x32xf32>
    %41 = arith.mulf %39, %40 : vector<8x32xf32>
    %42 = vector.broadcast %23 : vector<1x32xf32> to vector<8x32xf32>
    %43 = arith.addf %41, %42 : vector<8x32xf32>
    %c0_18 = arith.constant 0 : index
    %c0_19 = arith.constant 0 : index
    %c0_20 = arith.constant 0 : index
    %44 = vector.load %arg6[%c0_18, %c0_19, %c0_20] : memref<2x32x96xf32, #tpu.memory_space<vmem>>, vector<1x32x96xf32>
    %45 = vector.shape_cast %44 : vector<1x32x96xf32> to vector<32x96xf32>
    %46 = arith.truncf %43 : vector<8x32xf32> to vector<8x32xbf16>
    %47 = arith.truncf %45 : vector<32x96xf32> to vector<32x96xbf16>
    %cst_21 = arith.constant dense<0.000000e+00> : vector<8x96xf32>
    %48 = tpu.matmul %46, %47, %cst_21 {dimension_numbers = #tpu.dot_dimension_numbers<[1], [0], [0], [1], [0, 0, 1, 1], [], []>} : vector<8x32xbf16>, vector<32x96xbf16>, vector<8x96xf32> -> vector<8x96xf32>
    %c0_22 = arith.constant 0 : index
    %c0_23 = arith.constant 0 : index
    %c0_24 = arith.constant 0 : index
    %49 = vector.load %arg7[%c0_22, %c0_23, %c0_24] : memref<2x1x96xf32, #tpu.memory_space<vmem>>, vector<1x1x96xf32>
    %50 = vector.shape_cast %49 : vector<1x1x96xf32> to vector<1x96xf32>
    %51 = vector.broadcast %50 : vector<1x96xf32> to vector<8x96xf32>
    %52 = arith.addf %48, %51 : vector<8x96xf32>
    %cst_25 = arith.constant 0.000000e+00 : f32
    %53 = vector.broadcast %cst_25 : f32 to vector<8x32xf32>
    %54 = vector.extract_strided_slice %52 {offsets = [0, 0], sizes = [8, 16], strides = [1, 1]} : vector<8x96xf32> to vector<8x16xf32>
    %55 = vector.extract_strided_slice %52 {offsets = [0, 32], sizes = [8, 16], strides = [1, 1]} : vector<8x96xf32> to vector<8x16xf32>
    %56 = vector.extract_strided_slice %52 {offsets = [0, 64], sizes = [8, 16], strides = [1, 1]} : vector<8x96xf32> to vector<8x16xf32>
    %57 = arith.truncf %54 : vector<8x16xf32> to vector<8x16xbf16>
    %58 = arith.truncf %55 : vector<8x16xf32> to vector<8x16xbf16>
    %cst_26 = arith.constant dense<0.000000e+00> : vector<8x8xf32>
    %59 = tpu.matmul %57, %58, %cst_26 {dimension_numbers = #tpu.dot_dimension_numbers<[1], [1], [0], [0], [0, 0, 1, 0], [], []>} : vector<8x16xbf16>, vector<8x16xbf16>, vector<8x8xf32> -> vector<8x8xf32>
    %60 = vector.broadcast %3 : vector<1x8xf32> to vector<8x8xf32>
    %61 = arith.addf %59, %60 : vector<8x8xf32>
    %cst_27 = arith.constant dense<0xFF800000> : vector<8xf32>
    %62 = vector.multi_reduction <maximumf>, %61, %cst_27 [1] : vector<8x8xf32> to vector<8xf32>
    %63 = vector.shape_cast %62 : vector<8xf32> to vector<8x1xf32>
    %64 = vector.broadcast %63 : vector<8x1xf32> to vector<8x8xf32>
    %65 = arith.subf %61, %64 : vector<8x8xf32>
    %66 = math.exp %65 : vector<8x8xf32>
    %cst_28 = arith.constant dense<0.000000e+00> : vector<8xf32>
    %67 = vector.multi_reduction <add>, %66, %cst_28 [1] : vector<8x8xf32> to vector<8xf32>
    %68 = vector.shape_cast %67 : vector<8xf32> to vector<8x1xf32>
    %69 = tpu.reciprocal %68 {approx = true} : vector<8x1xf32> -> vector<8x1xf32>
    %70 = vector.broadcast %69 : vector<8x1xf32> to vector<8x8xf32>
    %71 = arith.mulf %66, %70 : vector<8x8xf32>
    %72 = arith.truncf %71 : vector<8x8xf32> to vector<8x8xbf16>
    %73 = arith.truncf %56 : vector<8x16xf32> to vector<8x16xbf16>
    %cst_29 = arith.constant dense<0.000000e+00> : vector<8x16xf32>
    %74 = tpu.matmul %72, %73, %cst_29 {dimension_numbers = #tpu.dot_dimension_numbers<[1], [0], [0], [1], [0, 0, 1, 1], [], []>} : vector<8x8xbf16>, vector<8x16xbf16>, vector<8x16xf32> -> vector<8x16xf32>
    %c0_30 = arith.constant 0 : index
    %c0_31 = arith.constant 0 : index
    %c0_32 = arith.constant 0 : index
    %75 = vector.load %arg8[%c0_30, %c0_31, %c0_32] : memref<2x32x32xf32, #tpu.memory_space<vmem>>, vector<1x16x32xf32>
    %76 = vector.shape_cast %75 : vector<1x16x32xf32> to vector<16x32xf32>
    %77 = arith.truncf %74 : vector<8x16xf32> to vector<8x16xbf16>
    %78 = arith.truncf %76 : vector<16x32xf32> to vector<16x32xbf16>
    %cst_33 = arith.constant dense<0.000000e+00> : vector<8x32xf32>
    %79 = tpu.matmul %77, %78, %cst_33 {dimension_numbers = #tpu.dot_dimension_numbers<[1], [0], [0], [1], [0, 0, 1, 1], [], []>} : vector<8x16xbf16>, vector<16x32xbf16>, vector<8x32xf32> -> vector<8x32xf32>
    %80 = arith.addf %53, %79 : vector<8x32xf32>
    %81 = vector.extract_strided_slice %52 {offsets = [0, 16], sizes = [8, 16], strides = [1, 1]} : vector<8x96xf32> to vector<8x16xf32>
    %82 = vector.extract_strided_slice %52 {offsets = [0, 48], sizes = [8, 16], strides = [1, 1]} : vector<8x96xf32> to vector<8x16xf32>
    %83 = vector.extract_strided_slice %52 {offsets = [0, 80], sizes = [8, 16], strides = [1, 1]} : vector<8x96xf32> to vector<8x16xf32>
    %84 = arith.truncf %81 : vector<8x16xf32> to vector<8x16xbf16>
    %85 = arith.truncf %82 : vector<8x16xf32> to vector<8x16xbf16>
    %cst_34 = arith.constant dense<0.000000e+00> : vector<8x8xf32>
    %86 = tpu.matmul %84, %85, %cst_34 {dimension_numbers = #tpu.dot_dimension_numbers<[1], [1], [0], [0], [0, 0, 1, 0], [], []>} : vector<8x16xbf16>, vector<8x16xbf16>, vector<8x8xf32> -> vector<8x8xf32>
    %87 = vector.broadcast %3 : vector<1x8xf32> to vector<8x8xf32>
    %88 = arith.addf %86, %87 : vector<8x8xf32>
    %cst_35 = arith.constant dense<0xFF800000> : vector<8xf32>
    %89 = vector.multi_reduction <maximumf>, %88, %cst_35 [1] : vector<8x8xf32> to vector<8xf32>
    %90 = vector.shape_cast %89 : vector<8xf32> to vector<8x1xf32>
    %91 = vector.broadcast %90 : vector<8x1xf32> to vector<8x8xf32>
    %92 = arith.subf %88, %91 : vector<8x8xf32>
    %93 = math.exp %92 : vector<8x8xf32>
    %cst_36 = arith.constant dense<0.000000e+00> : vector<8xf32>
    %94 = vector.multi_reduction <add>, %93, %cst_36 [1] : vector<8x8xf32> to vector<8xf32>
    %95 = vector.shape_cast %94 : vector<8xf32> to vector<8x1xf32>
    %96 = tpu.reciprocal %95 {approx = true} : vector<8x1xf32> -> vector<8x1xf32>
    %97 = vector.broadcast %96 : vector<8x1xf32> to vector<8x8xf32>
    %98 = arith.mulf %93, %97 : vector<8x8xf32>
    %99 = arith.truncf %98 : vector<8x8xf32> to vector<8x8xbf16>
    %100 = arith.truncf %83 : vector<8x16xf32> to vector<8x16xbf16>
    %cst_37 = arith.constant dense<0.000000e+00> : vector<8x16xf32>
    %101 = tpu.matmul %99, %100, %cst_37 {dimension_numbers = #tpu.dot_dimension_numbers<[1], [0], [0], [1], [0, 0, 1, 1], [], []>} : vector<8x8xbf16>, vector<8x16xbf16>, vector<8x16xf32> -> vector<8x16xf32>
    %c0_38 = arith.constant 0 : index
    %c16 = arith.constant 16 : index
    %c0_39 = arith.constant 0 : index
    %102 = vector.load %arg8[%c0_38, %c16, %c0_39] : memref<2x32x32xf32, #tpu.memory_space<vmem>>, vector<1x16x32xf32>
    %103 = vector.shape_cast %102 : vector<1x16x32xf32> to vector<16x32xf32>
    %104 = arith.truncf %101 : vector<8x16xf32> to vector<8x16xbf16>
    %105 = arith.truncf %103 : vector<16x32xf32> to vector<16x32xbf16>
    %cst_40 = arith.constant dense<0.000000e+00> : vector<8x32xf32>
    %106 = tpu.matmul %104, %105, %cst_40 {dimension_numbers = #tpu.dot_dimension_numbers<[1], [0], [0], [1], [0, 0, 1, 1], [], []>} : vector<8x16xbf16>, vector<16x32xbf16>, vector<8x32xf32> -> vector<8x32xf32>
    %107 = arith.addf %80, %106 : vector<8x32xf32>
    %c0_41 = arith.constant 0 : index
    %c0_42 = arith.constant 0 : index
    %c0_43 = arith.constant 0 : index
    %108 = vector.load %arg9[%c0_41, %c0_42, %c0_43] : memref<2x1x32xf32, #tpu.memory_space<vmem>>, vector<1x1x32xf32>
    %109 = vector.shape_cast %108 : vector<1x1x32xf32> to vector<1x32xf32>
    %110 = vector.broadcast %109 : vector<1x32xf32> to vector<8x32xf32>
    %111 = arith.addf %107, %110 : vector<8x32xf32>
    %112 = arith.addf %7, %111 : vector<8x32xf32>
    %113 = vector.broadcast %1 : vector<8x1xf32> to vector<8x32xf32>
    %114 = arith.mulf %112, %113 : vector<8x32xf32>
    %c0_44 = arith.constant 0 : index
    %c0_45 = arith.constant 0 : index
    %c0_46 = arith.constant 0 : index
    %115 = vector.load %arg10[%c0_44, %c0_45, %c0_46] : memref<2x1x32xf32, #tpu.memory_space<vmem>>, vector<1x1x32xf32>
    %116 = vector.shape_cast %115 : vector<1x1x32xf32> to vector<1x32xf32>
    %c0_47 = arith.constant 0 : index
    %c0_48 = arith.constant 0 : index
    %c0_49 = arith.constant 0 : index
    %117 = vector.load %arg11[%c0_47, %c0_48, %c0_49] : memref<2x1x32xf32, #tpu.memory_space<vmem>>, vector<1x1x32xf32>
    %118 = vector.shape_cast %117 : vector<1x1x32xf32> to vector<1x32xf32>
    %cst_50 = arith.constant dense<0.000000e+00> : vector<8xf32>
    %119 = vector.multi_reduction <add>, %114, %cst_50 [1] : vector<8x32xf32> to vector<8xf32>
    %120 = vector.shape_cast %119 : vector<8xf32> to vector<8x1xf32>
    %cst_51 = arith.constant 3.200000e+01 : f32
    %121 = vector.broadcast %cst_51 : f32 to vector<8x1xf32>
    %122 = arith.divf %120, %121 : vector<8x1xf32>
    %123 = vector.broadcast %122 : vector<8x1xf32> to vector<8x32xf32>
    %124 = arith.subf %114, %123 : vector<8x32xf32>
    %125 = arith.mulf %124, %124 : vector<8x32xf32>
    %cst_52 = arith.constant dense<0.000000e+00> : vector<8xf32>
    %126 = vector.multi_reduction <add>, %125, %cst_52 [1] : vector<8x32xf32> to vector<8xf32>
    %127 = vector.shape_cast %126 : vector<8xf32> to vector<8x1xf32>
    %cst_53 = arith.constant 3.200000e+01 : f32
    %128 = vector.broadcast %cst_53 : f32 to vector<8x1xf32>
    %129 = arith.divf %127, %128 : vector<8x1xf32>
    %cst_54 = arith.constant 9.99999974E-6 : f32
    %130 = vector.broadcast %cst_54 : f32 to vector<8x1xf32>
    %131 = arith.addf %129, %130 : vector<8x1xf32>
    %132 = math.rsqrt %131 : vector<8x1xf32>
    %133 = vector.broadcast %132 : vector<8x1xf32> to vector<8x32xf32>
    %134 = arith.mulf %124, %133 : vector<8x32xf32>
    %135 = vector.broadcast %116 : vector<1x32xf32> to vector<8x32xf32>
    %136 = arith.mulf %134, %135 : vector<8x32xf32>
    %137 = vector.broadcast %118 : vector<1x32xf32> to vector<8x32xf32>
    %138 = arith.addf %136, %137 : vector<8x32xf32>
    %c0_55 = arith.constant 0 : index
    %c1 = arith.constant 1 : index
    %c0_56 = arith.constant 0 : index
    %c0_57 = arith.constant 0 : index
    %139 = vector.load %arg12[%c0_55, %c1, %c0_56, %c0_57] : memref<2x3x32x128xf32, #tpu.memory_space<vmem>>, vector<1x1x32x128xf32>
    %140 = vector.shape_cast %139 : vector<1x1x32x128xf32> to vector<32x128xf32>
    %141 = arith.truncf %138 : vector<8x32xf32> to vector<8x32xbf16>
    %142 = arith.truncf %140 : vector<32x128xf32> to vector<32x128xbf16>
    %cst_58 = arith.constant dense<0.000000e+00> : vector<8x128xf32>
    %143 = tpu.matmul %141, %142, %cst_58 {dimension_numbers = #tpu.dot_dimension_numbers<[1], [0], [0], [1], [0, 0, 1, 1], [], []>} : vector<8x32xbf16>, vector<32x128xbf16>, vector<8x128xf32> -> vector<8x128xf32>
    %c0_59 = arith.constant 0 : index
    %c0_60 = arith.constant 0 : index
    %c0_61 = arith.constant 0 : index
    %144 = vector.load %arg13[%c0_59, %c0_60, %c0_61] : memref<2x1x128xf32, #tpu.memory_space<vmem>>, vector<1x1x128xf32>
    %145 = vector.shape_cast %144 : vector<1x1x128xf32> to vector<1x128xf32>
    %146 = vector.broadcast %145 : vector<1x128xf32> to vector<8x128xf32>
    %147 = arith.addf %143, %146 : vector<8x128xf32>
    %cst_62 = arith.constant dense<0.000000e+00> : vector<8x32xf32>
    %148 = tpu.matmul %14, %138, %cst_62 {dimension_numbers = #tpu.dot_dimension_numbers<[1], [0], [0], [1], [0, 0, 1, 1], [], []>} : vector<8x8xf32>, vector<8x32xf32>, vector<8x32xf32> -> vector<8x32xf32>
    %c0_63 = arith.constant 0 : index
    %c0_64 = arith.constant 0 : index
    %c0_65 = arith.constant 0 : index
    %c0_66 = arith.constant 0 : index
    %149 = vector.load %arg12[%c0_63, %c0_64, %c0_65, %c0_66] : memref<2x3x32x128xf32, #tpu.memory_space<vmem>>, vector<1x1x32x128xf32>
    %150 = vector.shape_cast %149 : vector<1x1x32x128xf32> to vector<32x128xf32>
    %151 = arith.truncf %148 : vector<8x32xf32> to vector<8x32xbf16>
    %152 = arith.truncf %150 : vector<32x128xf32> to vector<32x128xbf16>
    %cst_67 = arith.constant dense<0.000000e+00> : vector<8x128xf32>
    %153 = tpu.matmul %151, %152, %cst_67 {dimension_numbers = #tpu.dot_dimension_numbers<[1], [0], [0], [1], [0, 0, 1, 1], [], []>} : vector<8x32xbf16>, vector<32x128xbf16>, vector<8x128xf32> -> vector<8x128xf32>
    %154 = arith.addf %147, %153 : vector<8x128xf32>
    %cst_68 = arith.constant dense<0.000000e+00> : vector<8x32xf32>
    %155 = tpu.matmul %19, %138, %cst_68 {dimension_numbers = #tpu.dot_dimension_numbers<[1], [0], [0], [1], [0, 0, 1, 1], [], []>} : vector<8x8xf32>, vector<8x32xf32>, vector<8x32xf32> -> vector<8x32xf32>
    %c0_69 = arith.constant 0 : index
    %c2 = arith.constant 2 : index
    %c0_70 = arith.constant 0 : index
    %c0_71 = arith.constant 0 : index
    %156 = vector.load %arg12[%c0_69, %c2, %c0_70, %c0_71] : memref<2x3x32x128xf32, #tpu.memory_space<vmem>>, vector<1x1x32x128xf32>
    %157 = vector.shape_cast %156 : vector<1x1x32x128xf32> to vector<32x128xf32>
    %158 = arith.truncf %155 : vector<8x32xf32> to vector<8x32xbf16>
    %159 = arith.truncf %157 : vector<32x128xf32> to vector<32x128xbf16>
    %cst_72 = arith.constant dense<0.000000e+00> : vector<8x128xf32>
    %160 = tpu.matmul %158, %159, %cst_72 {dimension_numbers = #tpu.dot_dimension_numbers<[1], [0], [0], [1], [0, 0, 1, 1], [], []>} : vector<8x32xbf16>, vector<32x128xbf16>, vector<8x128xf32> -> vector<8x128xf32>
    %161 = arith.addf %154, %160 : vector<8x128xf32>
    %cst_73 = arith.constant 0.577350259 : f32
    %162 = vector.broadcast %cst_73 : f32 to vector<8x128xf32>
    %163 = arith.mulf %161, %162 : vector<8x128xf32>
    %cst_74 = arith.constant 0.000000e+00 : f32
    %164 = vector.broadcast %cst_74 : f32 to vector<8x128xf32>
    %165 = arith.maximumf %163, %164 : vector<8x128xf32>
    %c0_75 = arith.constant 0 : index
    %c0_76 = arith.constant 0 : index
    %c0_77 = arith.constant 0 : index
    %166 = vector.load %arg14[%c0_75, %c0_76, %c0_77] : memref<2x128x32xf32, #tpu.memory_space<vmem>>, vector<1x128x32xf32>
    %167 = vector.shape_cast %166 : vector<1x128x32xf32> to vector<128x32xf32>
    %168 = arith.truncf %165 : vector<8x128xf32> to vector<8x128xbf16>
    %169 = arith.truncf %167 : vector<128x32xf32> to vector<128x32xbf16>
    %cst_78 = arith.constant dense<0.000000e+00> : vector<8x32xf32>
    %170 = tpu.matmul %168, %169, %cst_78 {dimension_numbers = #tpu.dot_dimension_numbers<[1], [0], [0], [1], [0, 0, 1, 1], [], []>} : vector<8x128xbf16>, vector<128x32xbf16>, vector<8x32xf32> -> vector<8x32xf32>
    %c0_79 = arith.constant 0 : index
    %c0_80 = arith.constant 0 : index
    %c0_81 = arith.constant 0 : index
    %171 = vector.load %arg15[%c0_79, %c0_80, %c0_81] : memref<2x1x32xf32, #tpu.memory_space<vmem>>, vector<1x1x32xf32>
    %172 = vector.shape_cast %171 : vector<1x1x32xf32> to vector<1x32xf32>
    %173 = vector.broadcast %172 : vector<1x32xf32> to vector<8x32xf32>
    %174 = arith.addf %170, %173 : vector<8x32xf32>
    %175 = arith.addf %114, %174 : vector<8x32xf32>
    %176 = vector.broadcast %1 : vector<8x1xf32> to vector<8x32xf32>
    %177 = arith.mulf %175, %176 : vector<8x32xf32>
    %c1_82 = arith.constant 1 : index
    %c0_83 = arith.constant 0 : index
    %c0_84 = arith.constant 0 : index
    %178 = vector.load %arg4[%c1_82, %c0_83, %c0_84] : memref<2x1x32xf32, #tpu.memory_space<vmem>>, vector<1x1x32xf32>
    %179 = vector.shape_cast %178 : vector<1x1x32xf32> to vector<1x32xf32>
    %c1_85 = arith.constant 1 : index
    %c0_86 = arith.constant 0 : index
    %c0_87 = arith.constant 0 : index
    %180 = vector.load %arg5[%c1_85, %c0_86, %c0_87] : memref<2x1x32xf32, #tpu.memory_space<vmem>>, vector<1x1x32xf32>
    %181 = vector.shape_cast %180 : vector<1x1x32xf32> to vector<1x32xf32>
    %cst_88 = arith.constant dense<0.000000e+00> : vector<8xf32>
    %182 = vector.multi_reduction <add>, %177, %cst_88 [1] : vector<8x32xf32> to vector<8xf32>
    %183 = vector.shape_cast %182 : vector<8xf32> to vector<8x1xf32>
    %cst_89 = arith.constant 3.200000e+01 : f32
    %184 = vector.broadcast %cst_89 : f32 to vector<8x1xf32>
    %185 = arith.divf %183, %184 : vector<8x1xf32>
    %186 = vector.broadcast %185 : vector<8x1xf32> to vector<8x32xf32>
    %187 = arith.subf %177, %186 : vector<8x32xf32>
    %188 = arith.mulf %187, %187 : vector<8x32xf32>
    %cst_90 = arith.constant dense<0.000000e+00> : vector<8xf32>
    %189 = vector.multi_reduction <add>, %188, %cst_90 [1] : vector<8x32xf32> to vector<8xf32>
    %190 = vector.shape_cast %189 : vector<8xf32> to vector<8x1xf32>
    %cst_91 = arith.constant 3.200000e+01 : f32
    %191 = vector.broadcast %cst_91 : f32 to vector<8x1xf32>
    %192 = arith.divf %190, %191 : vector<8x1xf32>
    %cst_92 = arith.constant 9.99999974E-6 : f32
    %193 = vector.broadcast %cst_92 : f32 to vector<8x1xf32>
    %194 = arith.addf %192, %193 : vector<8x1xf32>
    %195 = math.rsqrt %194 : vector<8x1xf32>
    %196 = vector.broadcast %195 : vector<8x1xf32> to vector<8x32xf32>
    %197 = arith.mulf %187, %196 : vector<8x32xf32>
    %198 = vector.broadcast %179 : vector<1x32xf32> to vector<8x32xf32>
    %199 = arith.mulf %197, %198 : vector<8x32xf32>
    %200 = vector.broadcast %181 : vector<1x32xf32> to vector<8x32xf32>
    %201 = arith.addf %199, %200 : vector<8x32xf32>
    %c1_93 = arith.constant 1 : index
    %c0_94 = arith.constant 0 : index
    %c0_95 = arith.constant 0 : index
    %202 = vector.load %arg6[%c1_93, %c0_94, %c0_95] : memref<2x32x96xf32, #tpu.memory_space<vmem>>, vector<1x32x96xf32>
    %203 = vector.shape_cast %202 : vector<1x32x96xf32> to vector<32x96xf32>
    %204 = arith.truncf %201 : vector<8x32xf32> to vector<8x32xbf16>
    %205 = arith.truncf %203 : vector<32x96xf32> to vector<32x96xbf16>
    %cst_96 = arith.constant dense<0.000000e+00> : vector<8x96xf32>
    %206 = tpu.matmul %204, %205, %cst_96 {dimension_numbers = #tpu.dot_dimension_numbers<[1], [0], [0], [1], [0, 0, 1, 1], [], []>} : vector<8x32xbf16>, vector<32x96xbf16>, vector<8x96xf32> -> vector<8x96xf32>
    %c1_97 = arith.constant 1 : index
    %c0_98 = arith.constant 0 : index
    %c0_99 = arith.constant 0 : index
    %207 = vector.load %arg7[%c1_97, %c0_98, %c0_99] : memref<2x1x96xf32, #tpu.memory_space<vmem>>, vector<1x1x96xf32>
    %208 = vector.shape_cast %207 : vector<1x1x96xf32> to vector<1x96xf32>
    %209 = vector.broadcast %208 : vector<1x96xf32> to vector<8x96xf32>
    %210 = arith.addf %206, %209 : vector<8x96xf32>
    %cst_100 = arith.constant 0.000000e+00 : f32
    %211 = vector.broadcast %cst_100 : f32 to vector<8x32xf32>
    %212 = vector.extract_strided_slice %210 {offsets = [0, 0], sizes = [8, 16], strides = [1, 1]} : vector<8x96xf32> to vector<8x16xf32>
    %213 = vector.extract_strided_slice %210 {offsets = [0, 32], sizes = [8, 16], strides = [1, 1]} : vector<8x96xf32> to vector<8x16xf32>
    %214 = vector.extract_strided_slice %210 {offsets = [0, 64], sizes = [8, 16], strides = [1, 1]} : vector<8x96xf32> to vector<8x16xf32>
    %215 = arith.truncf %212 : vector<8x16xf32> to vector<8x16xbf16>
    %216 = arith.truncf %213 : vector<8x16xf32> to vector<8x16xbf16>
    %cst_101 = arith.constant dense<0.000000e+00> : vector<8x8xf32>
    %217 = tpu.matmul %215, %216, %cst_101 {dimension_numbers = #tpu.dot_dimension_numbers<[1], [1], [0], [0], [0, 0, 1, 0], [], []>} : vector<8x16xbf16>, vector<8x16xbf16>, vector<8x8xf32> -> vector<8x8xf32>
    %218 = vector.broadcast %3 : vector<1x8xf32> to vector<8x8xf32>
    %219 = arith.addf %217, %218 : vector<8x8xf32>
    %cst_102 = arith.constant dense<0xFF800000> : vector<8xf32>
    %220 = vector.multi_reduction <maximumf>, %219, %cst_102 [1] : vector<8x8xf32> to vector<8xf32>
    %221 = vector.shape_cast %220 : vector<8xf32> to vector<8x1xf32>
    %222 = vector.broadcast %221 : vector<8x1xf32> to vector<8x8xf32>
    %223 = arith.subf %219, %222 : vector<8x8xf32>
    %224 = math.exp %223 : vector<8x8xf32>
    %cst_103 = arith.constant dense<0.000000e+00> : vector<8xf32>
    %225 = vector.multi_reduction <add>, %224, %cst_103 [1] : vector<8x8xf32> to vector<8xf32>
    %226 = vector.shape_cast %225 : vector<8xf32> to vector<8x1xf32>
    %227 = tpu.reciprocal %226 {approx = true} : vector<8x1xf32> -> vector<8x1xf32>
    %228 = vector.broadcast %227 : vector<8x1xf32> to vector<8x8xf32>
    %229 = arith.mulf %224, %228 : vector<8x8xf32>
    %230 = arith.truncf %229 : vector<8x8xf32> to vector<8x8xbf16>
    %231 = arith.truncf %214 : vector<8x16xf32> to vector<8x16xbf16>
    %cst_104 = arith.constant dense<0.000000e+00> : vector<8x16xf32>
    %232 = tpu.matmul %230, %231, %cst_104 {dimension_numbers = #tpu.dot_dimension_numbers<[1], [0], [0], [1], [0, 0, 1, 1], [], []>} : vector<8x8xbf16>, vector<8x16xbf16>, vector<8x16xf32> -> vector<8x16xf32>
    %c1_105 = arith.constant 1 : index
    %c0_106 = arith.constant 0 : index
    %c0_107 = arith.constant 0 : index
    %233 = vector.load %arg8[%c1_105, %c0_106, %c0_107] : memref<2x32x32xf32, #tpu.memory_space<vmem>>, vector<1x16x32xf32>
    %234 = vector.shape_cast %233 : vector<1x16x32xf32> to vector<16x32xf32>
    %235 = arith.truncf %232 : vector<8x16xf32> to vector<8x16xbf16>
    %236 = arith.truncf %234 : vector<16x32xf32> to vector<16x32xbf16>
    %cst_108 = arith.constant dense<0.000000e+00> : vector<8x32xf32>
    %237 = tpu.matmul %235, %236, %cst_108 {dimension_numbers = #tpu.dot_dimension_numbers<[1], [0], [0], [1], [0, 0, 1, 1], [], []>} : vector<8x16xbf16>, vector<16x32xbf16>, vector<8x32xf32> -> vector<8x32xf32>
    %238 = arith.addf %211, %237 : vector<8x32xf32>
    %239 = vector.extract_strided_slice %210 {offsets = [0, 16], sizes = [8, 16], strides = [1, 1]} : vector<8x96xf32> to vector<8x16xf32>
    %240 = vector.extract_strided_slice %210 {offsets = [0, 48], sizes = [8, 16], strides = [1, 1]} : vector<8x96xf32> to vector<8x16xf32>
    %241 = vector.extract_strided_slice %210 {offsets = [0, 80], sizes = [8, 16], strides = [1, 1]} : vector<8x96xf32> to vector<8x16xf32>
    %242 = arith.truncf %239 : vector<8x16xf32> to vector<8x16xbf16>
    %243 = arith.truncf %240 : vector<8x16xf32> to vector<8x16xbf16>
    %cst_109 = arith.constant dense<0.000000e+00> : vector<8x8xf32>
    %244 = tpu.matmul %242, %243, %cst_109 {dimension_numbers = #tpu.dot_dimension_numbers<[1], [1], [0], [0], [0, 0, 1, 0], [], []>} : vector<8x16xbf16>, vector<8x16xbf16>, vector<8x8xf32> -> vector<8x8xf32>
    %245 = vector.broadcast %3 : vector<1x8xf32> to vector<8x8xf32>
    %246 = arith.addf %244, %245 : vector<8x8xf32>
    %cst_110 = arith.constant dense<0xFF800000> : vector<8xf32>
    %247 = vector.multi_reduction <maximumf>, %246, %cst_110 [1] : vector<8x8xf32> to vector<8xf32>
    %248 = vector.shape_cast %247 : vector<8xf32> to vector<8x1xf32>
    %249 = vector.broadcast %248 : vector<8x1xf32> to vector<8x8xf32>
    %250 = arith.subf %246, %249 : vector<8x8xf32>
    %251 = math.exp %250 : vector<8x8xf32>
    %cst_111 = arith.constant dense<0.000000e+00> : vector<8xf32>
    %252 = vector.multi_reduction <add>, %251, %cst_111 [1] : vector<8x8xf32> to vector<8xf32>
    %253 = vector.shape_cast %252 : vector<8xf32> to vector<8x1xf32>
    %254 = tpu.reciprocal %253 {approx = true} : vector<8x1xf32> -> vector<8x1xf32>
    %255 = vector.broadcast %254 : vector<8x1xf32> to vector<8x8xf32>
    %256 = arith.mulf %251, %255 : vector<8x8xf32>
    %257 = arith.truncf %256 : vector<8x8xf32> to vector<8x8xbf16>
    %258 = arith.truncf %241 : vector<8x16xf32> to vector<8x16xbf16>
    %cst_112 = arith.constant dense<0.000000e+00> : vector<8x16xf32>
    %259 = tpu.matmul %257, %258, %cst_112 {dimension_numbers = #tpu.dot_dimension_numbers<[1], [0], [0], [1], [0, 0, 1, 1], [], []>} : vector<8x8xbf16>, vector<8x16xbf16>, vector<8x16xf32> -> vector<8x16xf32>
    %c1_113 = arith.constant 1 : index
    %c16_114 = arith.constant 16 : index
    %c0_115 = arith.constant 0 : index
    %260 = vector.load %arg8[%c1_113, %c16_114, %c0_115] : memref<2x32x32xf32, #tpu.memory_space<vmem>>, vector<1x16x32xf32>
    %261 = vector.shape_cast %260 : vector<1x16x32xf32> to vector<16x32xf32>
    %262 = arith.truncf %259 : vector<8x16xf32> to vector<8x16xbf16>
    %263 = arith.truncf %261 : vector<16x32xf32> to vector<16x32xbf16>
    %cst_116 = arith.constant dense<0.000000e+00> : vector<8x32xf32>
    %264 = tpu.matmul %262, %263, %cst_116 {dimension_numbers = #tpu.dot_dimension_numbers<[1], [0], [0], [1], [0, 0, 1, 1], [], []>} : vector<8x16xbf16>, vector<16x32xbf16>, vector<8x32xf32> -> vector<8x32xf32>
    %265 = arith.addf %238, %264 : vector<8x32xf32>
    %c1_117 = arith.constant 1 : index
    %c0_118 = arith.constant 0 : index
    %c0_119 = arith.constant 0 : index
    %266 = vector.load %arg9[%c1_117, %c0_118, %c0_119] : memref<2x1x32xf32, #tpu.memory_space<vmem>>, vector<1x1x32xf32>
    %267 = vector.shape_cast %266 : vector<1x1x32xf32> to vector<1x32xf32>
    %268 = vector.broadcast %267 : vector<1x32xf32> to vector<8x32xf32>
    %269 = arith.addf %265, %268 : vector<8x32xf32>
    %270 = arith.addf %177, %269 : vector<8x32xf32>
    %271 = vector.broadcast %1 : vector<8x1xf32> to vector<8x32xf32>
    %272 = arith.mulf %270, %271 : vector<8x32xf32>
    %c1_120 = arith.constant 1 : index
    %c0_121 = arith.constant 0 : index
    %c0_122 = arith.constant 0 : index
    %273 = vector.load %arg10[%c1_120, %c0_121, %c0_122] : memref<2x1x32xf32, #tpu.memory_space<vmem>>, vector<1x1x32xf32>
    %274 = vector.shape_cast %273 : vector<1x1x32xf32> to vector<1x32xf32>
    %c1_123 = arith.constant 1 : index
    %c0_124 = arith.constant 0 : index
    %c0_125 = arith.constant 0 : index
    %275 = vector.load %arg11[%c1_123, %c0_124, %c0_125] : memref<2x1x32xf32, #tpu.memory_space<vmem>>, vector<1x1x32xf32>
    %276 = vector.shape_cast %275 : vector<1x1x32xf32> to vector<1x32xf32>
    %cst_126 = arith.constant dense<0.000000e+00> : vector<8xf32>
    %277 = vector.multi_reduction <add>, %272, %cst_126 [1] : vector<8x32xf32> to vector<8xf32>
    %278 = vector.shape_cast %277 : vector<8xf32> to vector<8x1xf32>
    %cst_127 = arith.constant 3.200000e+01 : f32
    %279 = vector.broadcast %cst_127 : f32 to vector<8x1xf32>
    %280 = arith.divf %278, %279 : vector<8x1xf32>
    %281 = vector.broadcast %280 : vector<8x1xf32> to vector<8x32xf32>
    %282 = arith.subf %272, %281 : vector<8x32xf32>
    %283 = arith.mulf %282, %282 : vector<8x32xf32>
    %cst_128 = arith.constant dense<0.000000e+00> : vector<8xf32>
    %284 = vector.multi_reduction <add>, %283, %cst_128 [1] : vector<8x32xf32> to vector<8xf32>
    %285 = vector.shape_cast %284 : vector<8xf32> to vector<8x1xf32>
    %cst_129 = arith.constant 3.200000e+01 : f32
    %286 = vector.broadcast %cst_129 : f32 to vector<8x1xf32>
    %287 = arith.divf %285, %286 : vector<8x1xf32>
    %cst_130 = arith.constant 9.99999974E-6 : f32
    %288 = vector.broadcast %cst_130 : f32 to vector<8x1xf32>
    %289 = arith.addf %287, %288 : vector<8x1xf32>
    %290 = math.rsqrt %289 : vector<8x1xf32>
    %291 = vector.broadcast %290 : vector<8x1xf32> to vector<8x32xf32>
    %292 = arith.mulf %282, %291 : vector<8x32xf32>
    %293 = vector.broadcast %274 : vector<1x32xf32> to vector<8x32xf32>
    %294 = arith.mulf %292, %293 : vector<8x32xf32>
    %295 = vector.broadcast %276 : vector<1x32xf32> to vector<8x32xf32>
    %296 = arith.addf %294, %295 : vector<8x32xf32>
    %c1_131 = arith.constant 1 : index
    %c1_132 = arith.constant 1 : index
    %c0_133 = arith.constant 0 : index
    %c0_134 = arith.constant 0 : index
    %297 = vector.load %arg12[%c1_131, %c1_132, %c0_133, %c0_134] : memref<2x3x32x128xf32, #tpu.memory_space<vmem>>, vector<1x1x32x128xf32>
    %298 = vector.shape_cast %297 : vector<1x1x32x128xf32> to vector<32x128xf32>
    %299 = arith.truncf %296 : vector<8x32xf32> to vector<8x32xbf16>
    %300 = arith.truncf %298 : vector<32x128xf32> to vector<32x128xbf16>
    %cst_135 = arith.constant dense<0.000000e+00> : vector<8x128xf32>
    %301 = tpu.matmul %299, %300, %cst_135 {dimension_numbers = #tpu.dot_dimension_numbers<[1], [0], [0], [1], [0, 0, 1, 1], [], []>} : vector<8x32xbf16>, vector<32x128xbf16>, vector<8x128xf32> -> vector<8x128xf32>
    %c1_136 = arith.constant 1 : index
    %c0_137 = arith.constant 0 : index
    %c0_138 = arith.constant 0 : index
    %302 = vector.load %arg13[%c1_136, %c0_137, %c0_138] : memref<2x1x128xf32, #tpu.memory_space<vmem>>, vector<1x1x128xf32>
    %303 = vector.shape_cast %302 : vector<1x1x128xf32> to vector<1x128xf32>
    %304 = vector.broadcast %303 : vector<1x128xf32> to vector<8x128xf32>
    %305 = arith.addf %301, %304 : vector<8x128xf32>
    %cst_139 = arith.constant dense<0.000000e+00> : vector<8x32xf32>
    %306 = tpu.matmul %14, %296, %cst_139 {dimension_numbers = #tpu.dot_dimension_numbers<[1], [0], [0], [1], [0, 0, 1, 1], [], []>} : vector<8x8xf32>, vector<8x32xf32>, vector<8x32xf32> -> vector<8x32xf32>
    %c1_140 = arith.constant 1 : index
    %c0_141 = arith.constant 0 : index
    %c0_142 = arith.constant 0 : index
    %c0_143 = arith.constant 0 : index
    %307 = vector.load %arg12[%c1_140, %c0_141, %c0_142, %c0_143] : memref<2x3x32x128xf32, #tpu.memory_space<vmem>>, vector<1x1x32x128xf32>
    %308 = vector.shape_cast %307 : vector<1x1x32x128xf32> to vector<32x128xf32>
    %309 = arith.truncf %306 : vector<8x32xf32> to vector<8x32xbf16>
    %310 = arith.truncf %308 : vector<32x128xf32> to vector<32x128xbf16>
    %cst_144 = arith.constant dense<0.000000e+00> : vector<8x128xf32>
    %311 = tpu.matmul %309, %310, %cst_144 {dimension_numbers = #tpu.dot_dimension_numbers<[1], [0], [0], [1], [0, 0, 1, 1], [], []>} : vector<8x32xbf16>, vector<32x128xbf16>, vector<8x128xf32> -> vector<8x128xf32>
    %312 = arith.addf %305, %311 : vector<8x128xf32>
    %cst_145 = arith.constant dense<0.000000e+00> : vector<8x32xf32>
    %313 = tpu.matmul %19, %296, %cst_145 {dimension_numbers = #tpu.dot_dimension_numbers<[1], [0], [0], [1], [0, 0, 1, 1], [], []>} : vector<8x8xf32>, vector<8x32xf32>, vector<8x32xf32> -> vector<8x32xf32>
    %c1_146 = arith.constant 1 : index
    %c2_147 = arith.constant 2 : index
    %c0_148 = arith.constant 0 : index
    %c0_149 = arith.constant 0 : index
    %314 = vector.load %arg12[%c1_146, %c2_147, %c0_148, %c0_149] : memref<2x3x32x128xf32, #tpu.memory_space<vmem>>, vector<1x1x32x128xf32>
    %315 = vector.shape_cast %314 : vector<1x1x32x128xf32> to vector<32x128xf32>
    %316 = arith.truncf %313 : vector<8x32xf32> to vector<8x32xbf16>
    %317 = arith.truncf %315 : vector<32x128xf32> to vector<32x128xbf16>
    %cst_150 = arith.constant dense<0.000000e+00> : vector<8x128xf32>
    %318 = tpu.matmul %316, %317, %cst_150 {dimension_numbers = #tpu.dot_dimension_numbers<[1], [0], [0], [1], [0, 0, 1, 1], [], []>} : vector<8x32xbf16>, vector<32x128xbf16>, vector<8x128xf32> -> vector<8x128xf32>
    %319 = arith.addf %312, %318 : vector<8x128xf32>
    %cst_151 = arith.constant 0.577350259 : f32
    %320 = vector.broadcast %cst_151 : f32 to vector<8x128xf32>
    %321 = arith.mulf %319, %320 : vector<8x128xf32>
    %cst_152 = arith.constant 0.000000e+00 : f32
    %322 = vector.broadcast %cst_152 : f32 to vector<8x128xf32>
    %323 = arith.maximumf %321, %322 : vector<8x128xf32>
    %c1_153 = arith.constant 1 : index
    %c0_154 = arith.constant 0 : index
    %c0_155 = arith.constant 0 : index
    %324 = vector.load %arg14[%c1_153, %c0_154, %c0_155] : memref<2x128x32xf32, #tpu.memory_space<vmem>>, vector<1x128x32xf32>
    %325 = vector.shape_cast %324 : vector<1x128x32xf32> to vector<128x32xf32>
    %326 = arith.truncf %323 : vector<8x128xf32> to vector<8x128xbf16>
    %327 = arith.truncf %325 : vector<128x32xf32> to vector<128x32xbf16>
    %cst_156 = arith.constant dense<0.000000e+00> : vector<8x32xf32>
    %328 = tpu.matmul %326, %327, %cst_156 {dimension_numbers = #tpu.dot_dimension_numbers<[1], [0], [0], [1], [0, 0, 1, 1], [], []>} : vector<8x128xbf16>, vector<128x32xbf16>, vector<8x32xf32> -> vector<8x32xf32>
    %c1_157 = arith.constant 1 : index
    %c0_158 = arith.constant 0 : index
    %c0_159 = arith.constant 0 : index
    %329 = vector.load %arg15[%c1_157, %c0_158, %c0_159] : memref<2x1x32xf32, #tpu.memory_space<vmem>>, vector<1x1x32xf32>
    %330 = vector.shape_cast %329 : vector<1x1x32xf32> to vector<1x32xf32>
    %331 = vector.broadcast %330 : vector<1x32xf32> to vector<8x32xf32>
    %332 = arith.addf %328, %331 : vector<8x32xf32>
    %333 = arith.addf %272, %332 : vector<8x32xf32>
    %334 = vector.broadcast %1 : vector<8x1xf32> to vector<8x32xf32>
    %335 = arith.mulf %333, %334 : vector<8x32xf32>
    %c0_160 = arith.constant 0 : index
    %c0_161 = arith.constant 0 : index
    %336 = vector.load %arg16[%c0_160, %c0_161] : memref<1x32xf32, #tpu.memory_space<vmem>>, vector<1x32xf32>
    %c0_162 = arith.constant 0 : index
    %c0_163 = arith.constant 0 : index
    %337 = vector.load %arg17[%c0_162, %c0_163] : memref<1x32xf32, #tpu.memory_space<vmem>>, vector<1x32xf32>
    %cst_164 = arith.constant dense<0.000000e+00> : vector<8xf32>
    %338 = vector.multi_reduction <add>, %335, %cst_164 [1] : vector<8x32xf32> to vector<8xf32>
    %339 = vector.shape_cast %338 : vector<8xf32> to vector<8x1xf32>
    %cst_165 = arith.constant 3.200000e+01 : f32
    %340 = vector.broadcast %cst_165 : f32 to vector<8x1xf32>
    %341 = arith.divf %339, %340 : vector<8x1xf32>
    %342 = vector.broadcast %341 : vector<8x1xf32> to vector<8x32xf32>
    %343 = arith.subf %335, %342 : vector<8x32xf32>
    %344 = arith.mulf %343, %343 : vector<8x32xf32>
    %cst_166 = arith.constant dense<0.000000e+00> : vector<8xf32>
    %345 = vector.multi_reduction <add>, %344, %cst_166 [1] : vector<8x32xf32> to vector<8xf32>
    %346 = vector.shape_cast %345 : vector<8xf32> to vector<8x1xf32>
    %cst_167 = arith.constant 3.200000e+01 : f32
    %347 = vector.broadcast %cst_167 : f32 to vector<8x1xf32>
    %348 = arith.divf %346, %347 : vector<8x1xf32>
    %cst_168 = arith.constant 9.99999974E-6 : f32
    %349 = vector.broadcast %cst_168 : f32 to vector<8x1xf32>
    %350 = arith.addf %348, %349 : vector<8x1xf32>
    %351 = math.rsqrt %350 : vector<8x1xf32>
    %352 = vector.broadcast %351 : vector<8x1xf32> to vector<8x32xf32>
    %353 = arith.mulf %343, %352 : vector<8x32xf32>
    %354 = vector.broadcast %336 : vector<1x32xf32> to vector<8x32xf32>
    %355 = arith.mulf %353, %354 : vector<8x32xf32>
    %356 = vector.broadcast %337 : vector<1x32xf32> to vector<8x32xf32>
    %357 = arith.addf %355, %356 : vector<8x32xf32>
    %358 = vector.broadcast %1 : vector<8x1xf32> to vector<8x32xf32>
    %359 = arith.mulf %357, %358 : vector<8x32xf32>
    %c0_169 = arith.constant 0 : index
    %c0_170 = arith.constant 0 : index
    %c0_171 = arith.constant 0 : index
    %360 = vector.load %arg18[%c0_169, %c0_170, %c0_171] : memref<1x8x32xf32, #tpu.memory_space<vmem>>, vector<1x8x32xf32>
    %361 = vector.shape_cast %360 : vector<1x8x32xf32> to vector<8x32xf32>
    %362 = vector.shape_cast %359 : vector<8x32xf32> to vector<1x8x32xf32>
    tpu.vector_store %arg18[%c0_169, %c0_170, %c0_171], %362 {strides = array<i32>} : memref<1x8x32xf32, #tpu.memory_space<vmem>>, vector<1x8x32xf32>,
    return
  }
  func.func @transform_0(%arg0: i32) -> (i32, i32, i32) {
    %c0_i32 = arith.constant 0 : i32
    %c0_i32_0 = arith.constant 0 : i32
    %c0_i32_1 = arith.constant 0 : i32
    return %arg0, %c0_i32, %c0_i32_0 : i32, i32, i32
  }
  func.func @transform_1(%arg0: i32) -> (i32, i32, i32) {
    %c0_i32 = arith.constant 0 : i32
    %c0_i32_0 = arith.constant 0 : i32
    %c0_i32_1 = arith.constant 0 : i32
    return %arg0, %c0_i32, %c0_i32_0 : i32, i32, i32
  }
  func.func @transform_2(%arg0: i32) -> (i32, i32, i32) {
    %c0_i32 = arith.constant 0 : i32
    %c0_i32_0 = arith.constant 0 : i32
    %c0_i32_1 = arith.constant 0 : i32
    return %arg0, %c0_i32, %c0_i32_0 : i32, i32, i32
  }
  func.func @transform_3(%arg0: i32) -> (i32, i32, i32) {
    %c0_i32 = arith.constant 0 : i32
    %c0_i32_0 = arith.constant 0 : i32
    %c0_i32_1 = arith.constant 0 : i32
    %c0_i32_2 = arith.constant 0 : i32
    return %c0_i32, %c0_i32_0, %c0_i32_1 : i32, i32, i32
  }
  func.func @transform_4(%arg0: i32) -> (i32, i32, i32) {
    %c0_i32 = arith.constant 0 : i32
    %c0_i32_0 = arith.constant 0 : i32
    %c0_i32_1 = arith.constant 0 : i32
    %c0_i32_2 = arith.constant 0 : i32
    return %c0_i32, %c0_i32_0, %c0_i32_1 : i32, i32, i32
  }
  func.func @transform_5(%arg0: i32) -> (i32, i32, i32) {
    %c0_i32 = arith.constant 0 : i32
    %c0_i32_0 = arith.constant 0 : i32
    %c0_i32_1 = arith.constant 0 : i32
    %c0_i32_2 = arith.constant 0 : i32
    return %c0_i32, %c0_i32_0, %c0_i32_1 : i32, i32, i32
  }
  func.func @transform_6(%arg0: i32) -> (i32, i32, i32) {
    %c0_i32 = arith.constant 0 : i32
    %c0_i32_0 = arith.constant 0 : i32
    %c0_i32_1 = arith.constant 0 : i32
    %c0_i32_2 = arith.constant 0 : i32
    return %c0_i32, %c0_i32_0, %c0_i32_1 : i32, i32, i32
  }
  func.func @transform_7(%arg0: i32) -> (i32, i32, i32) {
    %c0_i32 = arith.constant 0 : i32
    %c0_i32_0 = arith.constant 0 : i32
    %c0_i32_1 = arith.constant 0 : i32
    %c0_i32_2 = arith.constant 0 : i32
    return %c0_i32, %c0_i32_0, %c0_i32_1 : i32, i32, i32
  }
  func.func @transform_8(%arg0: i32) -> (i32, i32, i32) {
    %c0_i32 = arith.constant 0 : i32
    %c0_i32_0 = arith.constant 0 : i32
    %c0_i32_1 = arith.constant 0 : i32
    %c0_i32_2 = arith.constant 0 : i32
    return %c0_i32, %c0_i32_0, %c0_i32_1 : i32, i32, i32
  }
  func.func @transform_9(%arg0: i32) -> (i32, i32, i32) {
    %c0_i32 = arith.constant 0 : i32
    %c0_i32_0 = arith.constant 0 : i32
    %c0_i32_1 = arith.constant 0 : i32
    %c0_i32_2 = arith.constant 0 : i32
    return %c0_i32, %c0_i32_0, %c0_i32_1 : i32, i32, i32
  }
  func.func @transform_10(%arg0: i32) -> (i32, i32, i32) {
    %c0_i32 = arith.constant 0 : i32
    %c0_i32_0 = arith.constant 0 : i32
    %c0_i32_1 = arith.constant 0 : i32
    %c0_i32_2 = arith.constant 0 : i32
    return %c0_i32, %c0_i32_0, %c0_i32_1 : i32, i32, i32
  }
  func.func @transform_11(%arg0: i32) -> (i32, i32, i32, i32) {
    %c0_i32 = arith.constant 0 : i32
    %c0_i32_0 = arith.constant 0 : i32
    %c0_i32_1 = arith.constant 0 : i32
    %c0_i32_2 = arith.constant 0 : i32
    %c0_i32_3 = arith.constant 0 : i32
    return %c0_i32, %c0_i32_0, %c0_i32_1, %c0_i32_2 : i32, i32, i32, i32
  }
  func.func @transform_12(%arg0: i32) -> (i32, i32, i32) {
    %c0_i32 = arith.constant 0 : i32
    %c0_i32_0 = arith.constant 0 : i32
    %c0_i32_1 = arith.constant 0 : i32
    %c0_i32_2 = arith.constant 0 : i32
    return %c0_i32, %c0_i32_0, %c0_i32_1 : i32, i32, i32
  }
  func.func @transform_13(%arg0: i32) -> (i32, i32, i32) {
    %c0_i32 = arith.constant 0 : i32
    %c0_i32_0 = arith.constant 0 : i32
    %c0_i32_1 = arith.constant 0 : i32
    %c0_i32_2 = arith.constant 0 : i32
    return %c0_i32, %c0_i32_0, %c0_i32_1 : i32, i32, i32
  }
  func.func @transform_14(%arg0: i32) -> (i32, i32, i32) {
    %c0_i32 = arith.constant 0 : i32
    %c0_i32_0 = arith.constant 0 : i32
    %c0_i32_1 = arith.constant 0 : i32
    %c0_i32_2 = arith.constant 0 : i32
    return %c0_i32, %c0_i32_0, %c0_i32_1 : i32, i32, i32
  }
  func.func @transform_15(%arg0: i32) -> (i32, i32) {
    %c0_i32 = arith.constant 0 : i32
    %c0_i32_0 = arith.constant 0 : i32
    %c0_i32_1 = arith.constant 0 : i32
    return %c0_i32, %c0_i32_0 : i32, i32
  }
  func.func @transform_16(%arg0: i32) -> (i32, i32) {
    %c0_i32 = arith.constant 0 : i32
    %c0_i32_0 = arith.constant 0 : i32
    %c0_i32_1 = arith.constant 0 : i32
    return %c0_i32, %c0_i32_0 : i32, i32
  }
  func.func @transform_17(%arg0: i32) -> (i32, i32, i32) {
    %c0_i32 = arith.constant 0 : i32
    %c0_i32_0 = arith.constant 0 : i32
    %c0_i32_1 = arith.constant 0 : i32
    return %arg0, %c0_i32, %c0_i32_0 : i32, i32, i32
  }
}

module attributes {stable_mosaic.version = 11 : i64} {
  func.func @_diffusion_kernel(%arg0: i32, %arg1: memref<5x4xf32, #tpu.memory_space<smem>>, %arg2: memref<1x16x32xf32, #tpu.memory_space<vmem>>, %arg3: memref<1x16x16xf32, #tpu.memory_space<vmem>>, %arg4: memref<4x1x16x16xf32, #tpu.memory_space<vmem>>, %arg5: memref<4x32xf32, #tpu.memory_space<vmem>>, %arg6: memref<32x128xf32, #tpu.memory_space<vmem>>, %arg7: memref<1x128xf32, #tpu.memory_space<vmem>>, %arg8: memref<128x32xf32, #tpu.memory_space<vmem>>, %arg9: memref<1x32xf32, #tpu.memory_space<vmem>>, %arg10: memref<2x32x32xf32, #tpu.memory_space<vmem>>, %arg11: memref<2x1x32xf32, #tpu.memory_space<vmem>>, %arg12: memref<16x32xf32, #tpu.memory_space<vmem>>, %arg13: memref<1x32xf32, #tpu.memory_space<vmem>>, %arg14: memref<32x128xf32, #tpu.memory_space<vmem>>, %arg15: memref<1x128xf32, #tpu.memory_space<vmem>>, %arg16: memref<2x3x32x64xf32, #tpu.memory_space<vmem>>, %arg17: memref<2x1x64xf32, #tpu.memory_space<vmem>>, %arg18: memref<2x32x64xf32, #tpu.memory_space<vmem>>, %arg19: memref<2x1x64xf32, #tpu.memory_space<vmem>>, %arg20: memref<32x32xf32, #tpu.memory_space<vmem>>, %arg21: memref<1x32xf32, #tpu.memory_space<vmem>>, %arg22: memref<32x16xf32, #tpu.memory_space<vmem>>, %arg23: memref<1x16xf32, #tpu.memory_space<vmem>>, %arg24: memref<1x16xf32, #tpu.memory_space<vmem>>, %arg25: memref<1x16xf32, #tpu.memory_space<vmem>>, %arg26: memref<1x16x16xf32, #tpu.memory_space<vmem>>) attributes {dimension_semantics = [#tpu.dimension_semantics<parallel>], iteration_bounds = array<i64: 2>, scalar_prefetch = 0 : i64, scratch_operands = 0 : i64, tpu.core_type = #tpu.core_type<tc>, window_params = [{transform_indices = @transform_0, window_bounds = array<i64: 5, 4>}, {transform_indices = @transform_1, window_bounds = array<i64: 1, 16, 32>}, {transform_indices = @transform_2, window_bounds = array<i64: 1, 16, 16>}, {transform_indices = @transform_3, window_bounds = array<i64: 4, 1, 16, 16>}, {pipeline_mode = #tpu.pipeline_mode<synchronous>, transform_indices = @transform_4, window_bounds = array<i64: 4, 32>}, {pipeline_mode = #tpu.pipeline_mode<synchronous>, transform_indices = @transform_5, window_bounds = array<i64: 32, 128>}, {pipeline_mode = #tpu.pipeline_mode<synchronous>, transform_indices = @transform_6, window_bounds = array<i64: 1, 128>}, {pipeline_mode = #tpu.pipeline_mode<synchronous>, transform_indices = @transform_7, window_bounds = array<i64: 128, 32>}, {pipeline_mode = #tpu.pipeline_mode<synchronous>, transform_indices = @transform_8, window_bounds = array<i64: 1, 32>}, {pipeline_mode = #tpu.pipeline_mode<synchronous>, transform_indices = @transform_9, window_bounds = array<i64: 2, 32, 32>}, {pipeline_mode = #tpu.pipeline_mode<synchronous>, transform_indices = @transform_10, window_bounds = array<i64: 2, 1, 32>}, {pipeline_mode = #tpu.pipeline_mode<synchronous>, transform_indices = @transform_11, window_bounds = array<i64: 16, 32>}, {pipeline_mode = #tpu.pipeline_mode<synchronous>, transform_indices = @transform_12, window_bounds = array<i64: 1, 32>}, {pipeline_mode = #tpu.pipeline_mode<synchronous>, transform_indices = @transform_13, window_bounds = array<i64: 32, 128>}, {pipeline_mode = #tpu.pipeline_mode<synchronous>, transform_indices = @transform_14, window_bounds = array<i64: 1, 128>}, {pipeline_mode = #tpu.pipeline_mode<synchronous>, transform_indices = @transform_15, window_bounds = array<i64: 2, 3, 32, 64>}, {pipeline_mode = #tpu.pipeline_mode<synchronous>, transform_indices = @transform_16, window_bounds = array<i64: 2, 1, 64>}, {pipeline_mode = #tpu.pipeline_mode<synchronous>, transform_indices = @transform_17, window_bounds = array<i64: 2, 32, 64>}, {pipeline_mode = #tpu.pipeline_mode<synchronous>, transform_indices = @transform_18, window_bounds = array<i64: 2, 1, 64>}, {pipeline_mode = #tpu.pipeline_mode<synchronous>, transform_indices = @transform_19, window_bounds = array<i64: 32, 32>}, {pipeline_mode = #tpu.pipeline_mode<synchronous>, transform_indices = @transform_20, window_bounds = array<i64: 1, 32>}, {pipeline_mode = #tpu.pipeline_mode<synchronous>, transform_indices = @transform_21, window_bounds = array<i64: 32, 16>}, {pipeline_mode = #tpu.pipeline_mode<synchronous>, transform_indices = @transform_22, window_bounds = array<i64: 1, 16>}, {pipeline_mode = #tpu.pipeline_mode<synchronous>, transform_indices = @transform_23, window_bounds = array<i64: 1, 16>}, {pipeline_mode = #tpu.pipeline_mode<synchronous>, transform_indices = @transform_24, window_bounds = array<i64: 1, 16>}, {transform_indices = @transform_25, window_bounds = array<i64: 1, 16, 16>}]} {
    %c0 = arith.constant 0 : index
    %c0_0 = arith.constant 0 : index
    %c0_1 = arith.constant 0 : index
    %0 = vector.load %arg2[%c0, %c0_0, %c0_1] : memref<1x16x32xf32, #tpu.memory_space<vmem>>, vector<1x16x32xf32>
    %1 = vector.shape_cast %0 : vector<1x16x32xf32> to vector<16x32xf32>
    %c0_2 = arith.constant 0 : index
    %c0_3 = arith.constant 0 : index
    %2 = vector.load %arg14[%c0_2, %c0_3] : memref<32x128xf32, #tpu.memory_space<vmem>>, vector<32x128xf32>
    %3 = arith.truncf %1 : vector<16x32xf32> to vector<16x32xbf16>
    %4 = arith.truncf %2 : vector<32x128xf32> to vector<32x128xbf16>
    %cst = arith.constant dense<0.000000e+00> : vector<16x128xf32>
    %5 = tpu.matmul %3, %4, %cst {dimension_numbers = #tpu.dot_dimension_numbers<[1], [0], [0], [1], [0, 0, 1, 1], [], []>} : vector<16x32xbf16>, vector<32x128xbf16>, vector<16x128xf32> -> vector<16x128xf32>
    %c0_4 = arith.constant 0 : index
    %c0_5 = arith.constant 0 : index
    %6 = vector.load %arg15[%c0_4, %c0_5] : memref<1x128xf32, #tpu.memory_space<vmem>>, vector<1x128xf32>
    %7 = vector.broadcast %6 : vector<1x128xf32> to vector<16x128xf32>
    %8 = arith.addf %5, %7 : vector<16x128xf32>
    %c0_6 = arith.constant 0 : index
    %c0_7 = arith.constant 0 : index
    %9 = vector.load %arg5[%c0_6, %c0_7] : memref<4x32xf32, #tpu.memory_space<vmem>>, vector<4x32xf32>
    %c0_8 = arith.constant 0 : index
    %c0_9 = arith.constant 0 : index
    %10 = vector.load %arg6[%c0_8, %c0_9] : memref<32x128xf32, #tpu.memory_space<vmem>>, vector<32x128xf32>
    %11 = arith.truncf %9 : vector<4x32xf32> to vector<4x32xbf16>
    %12 = arith.truncf %10 : vector<32x128xf32> to vector<32x128xbf16>
    %cst_10 = arith.constant dense<0.000000e+00> : vector<4x128xf32>
    %13 = tpu.matmul %11, %12, %cst_10 {dimension_numbers = #tpu.dot_dimension_numbers<[1], [0], [0], [1], [0, 0, 1, 1], [], []>} : vector<4x32xbf16>, vector<32x128xbf16>, vector<4x128xf32> -> vector<4x128xf32>
    %c0_11 = arith.constant 0 : index
    %c0_12 = arith.constant 0 : index
    %14 = vector.load %arg7[%c0_11, %c0_12] : memref<1x128xf32, #tpu.memory_space<vmem>>, vector<1x128xf32>
    %15 = vector.broadcast %14 : vector<1x128xf32> to vector<4x128xf32>
    %16 = arith.addf %13, %15 : vector<4x128xf32>
    %cst_13 = arith.constant 0.000000e+00 : f32
    %17 = vector.broadcast %cst_13 : f32 to vector<4x128xf32>
    %18 = arith.maximumf %16, %17 : vector<4x128xf32>
    %19 = math.absf %16 : vector<4x128xf32>
    %cst_14 = arith.constant 0.000000e+00 : f32
    %20 = vector.broadcast %cst_14 : f32 to vector<4x128xf32>
    %21 = arith.subf %20, %19 : vector<4x128xf32>
    %22 = math.exp %21 : vector<4x128xf32>
    %cst_15 = arith.constant 1.000000e+00 : f32
    %23 = vector.broadcast %cst_15 : f32 to vector<4x128xf32>
    %24 = arith.addf %23, %22 : vector<4x128xf32>
    %25 = math.log %24 : vector<4x128xf32>
    %26 = arith.addf %18, %25 : vector<4x128xf32>
    %27 = math.tanh %26 : vector<4x128xf32>
    %28 = arith.mulf %16, %27 : vector<4x128xf32>
    %c0_16 = arith.constant 0 : index
    %c0_17 = arith.constant 0 : index
    %29 = vector.load %arg8[%c0_16, %c0_17] : memref<128x32xf32, #tpu.memory_space<vmem>>, vector<128x32xf32>
    %30 = arith.truncf %28 : vector<4x128xf32> to vector<4x128xbf16>
    %31 = arith.truncf %29 : vector<128x32xf32> to vector<128x32xbf16>
    %cst_18 = arith.constant dense<0.000000e+00> : vector<4x32xf32>
    %32 = tpu.matmul %30, %31, %cst_18 {dimension_numbers = #tpu.dot_dimension_numbers<[1], [0], [0], [1], [0, 0, 1, 1], [], []>} : vector<4x128xbf16>, vector<128x32xbf16>, vector<4x32xf32> -> vector<4x32xf32>
    %c0_19 = arith.constant 0 : index
    %c0_20 = arith.constant 0 : index
    %33 = vector.load %arg9[%c0_19, %c0_20] : memref<1x32xf32, #tpu.memory_space<vmem>>, vector<1x32xf32>
    %34 = vector.broadcast %33 : vector<1x32xf32> to vector<4x32xf32>
    %35 = arith.addf %32, %34 : vector<4x32xf32>
    %c0_21 = arith.constant 0 : index
    %c0_22 = arith.constant 0 : index
    %c0_23 = arith.constant 0 : index
    %36 = vector.load %arg10[%c0_21, %c0_22, %c0_23] : memref<2x32x32xf32, #tpu.memory_space<vmem>>, vector<1x32x32xf32>
    %37 = vector.shape_cast %36 : vector<1x32x32xf32> to vector<32x32xf32>
    %38 = arith.truncf %35 : vector<4x32xf32> to vector<4x32xbf16>
    %39 = arith.truncf %37 : vector<32x32xf32> to vector<32x32xbf16>
    %cst_24 = arith.constant dense<0.000000e+00> : vector<4x32xf32>
    %40 = tpu.matmul %38, %39, %cst_24 {dimension_numbers = #tpu.dot_dimension_numbers<[1], [0], [0], [1], [0, 0, 1, 1], [], []>} : vector<4x32xbf16>, vector<32x32xbf16>, vector<4x32xf32> -> vector<4x32xf32>
    %c0_25 = arith.constant 0 : index
    %c0_26 = arith.constant 0 : index
    %c0_27 = arith.constant 0 : index
    %41 = vector.load %arg11[%c0_25, %c0_26, %c0_27] : memref<2x1x32xf32, #tpu.memory_space<vmem>>, vector<1x1x32xf32>
    %42 = vector.shape_cast %41 : vector<1x1x32xf32> to vector<1x32xf32>
    %43 = vector.broadcast %42 : vector<1x32xf32> to vector<4x32xf32>
    %44 = arith.addf %40, %43 : vector<4x32xf32>
    %c1 = arith.constant 1 : index
    %c0_28 = arith.constant 0 : index
    %c0_29 = arith.constant 0 : index
    %45 = vector.load %arg10[%c1, %c0_28, %c0_29] : memref<2x32x32xf32, #tpu.memory_space<vmem>>, vector<1x32x32xf32>
    %46 = vector.shape_cast %45 : vector<1x32x32xf32> to vector<32x32xf32>
    %47 = arith.truncf %35 : vector<4x32xf32> to vector<4x32xbf16>
    %48 = arith.truncf %46 : vector<32x32xf32> to vector<32x32xbf16>
    %cst_30 = arith.constant dense<0.000000e+00> : vector<4x32xf32>
    %49 = tpu.matmul %47, %48, %cst_30 {dimension_numbers = #tpu.dot_dimension_numbers<[1], [0], [0], [1], [0, 0, 1, 1], [], []>} : vector<4x32xbf16>, vector<32x32xbf16>, vector<4x32xf32> -> vector<4x32xf32>
    %c1_31 = arith.constant 1 : index
    %c0_32 = arith.constant 0 : index
    %c0_33 = arith.constant 0 : index
    %50 = vector.load %arg11[%c1_31, %c0_32, %c0_33] : memref<2x1x32xf32, #tpu.memory_space<vmem>>, vector<1x1x32xf32>
    %51 = vector.shape_cast %50 : vector<1x1x32xf32> to vector<1x32xf32>
    %52 = vector.broadcast %51 : vector<1x32xf32> to vector<4x32xf32>
    %53 = arith.addf %49, %52 : vector<4x32xf32>
    %54 = tpu.iota {dimensions = array<i32: 0>} : vector<16x16xi32>
    %55 = tpu.iota {dimensions = array<i32: 1>} : vector<16x16xi32>
    %c0_34 = arith.constant 0 : index
    %c0_35 = arith.constant 0 : index
    %c0_36 = arith.constant 0 : index
    %56 = vector.load %arg3[%c0_34, %c0_35, %c0_36] : memref<1x16x16xf32, #tpu.memory_space<vmem>>, vector<1x16x16xf32>
    %57 = vector.shape_cast %56 : vector<1x16x16xf32> to vector<16x16xf32>
    %c0_37 = arith.constant 0 : index
    %c0_38 = arith.constant 0 : index
    %58 = vector.load %arg12[%c0_37, %c0_38] : memref<16x32xf32, #tpu.memory_space<vmem>>, vector<16x32xf32>
    %59 = arith.truncf %57 : vector<16x16xf32> to vector<16x16xbf16>
    %60 = arith.truncf %58 : vector<16x32xf32> to vector<16x32xbf16>
    %cst_39 = arith.constant dense<0.000000e+00> : vector<16x32xf32>
    %61 = tpu.matmul %59, %60, %cst_39 {dimension_numbers = #tpu.dot_dimension_numbers<[1], [0], [0], [1], [0, 0, 1, 1], [], []>} : vector<16x16xbf16>, vector<16x32xbf16>, vector<16x32xf32> -> vector<16x32xf32>
    %c0_40 = arith.constant 0 : index
    %c0_41 = arith.constant 0 : index
    %62 = vector.load %arg13[%c0_40, %c0_41] : memref<1x32xf32, #tpu.memory_space<vmem>>, vector<1x32xf32>
    %63 = vector.broadcast %62 : vector<1x32xf32> to vector<16x32xf32>
    %64 = arith.addf %61, %63 : vector<16x32xf32>
    %cst_42 = arith.constant 0.000000e+00 : f32
    %65 = vector.broadcast %cst_42 : f32 to vector<16x32xf32>
    %66 = arith.maximumf %64, %65 : vector<16x32xf32>
    %cst_43 = arith.constant 0.000000e+00 : f32
    %67 = vector.broadcast %cst_43 : f32 to vector<16x32xf32>
    %68 = vector.extract_strided_slice %44 {offsets = [3, 0], sizes = [1, 32], strides = [1, 1]} : vector<4x32xf32> to vector<1x32xf32>
    %69 = vector.broadcast %68 : vector<1x32xf32> to vector<16x32xf32>
    %70 = arith.addf %66, %69 : vector<16x32xf32>
    %c0_44 = arith.constant 0 : index
    %c1_45 = arith.constant 1 : index
    %c0_46 = arith.constant 0 : index
    %c0_47 = arith.constant 0 : index
    %71 = vector.load %arg16[%c0_44, %c1_45, %c0_46, %c0_47] : memref<2x3x32x64xf32, #tpu.memory_space<vmem>>, vector<1x1x32x64xf32>
    %72 = vector.shape_cast %71 : vector<1x1x32x64xf32> to vector<32x64xf32>
    %73 = arith.truncf %70 : vector<16x32xf32> to vector<16x32xbf16>
    %74 = arith.truncf %72 : vector<32x64xf32> to vector<32x64xbf16>
    %cst_48 = arith.constant dense<0.000000e+00> : vector<16x64xf32>
    %75 = tpu.matmul %73, %74, %cst_48 {dimension_numbers = #tpu.dot_dimension_numbers<[1], [0], [0], [1], [0, 0, 1, 1], [], []>} : vector<16x32xbf16>, vector<32x64xbf16>, vector<16x64xf32> -> vector<16x64xf32>
    %c0_49 = arith.constant 0 : index
    %c0_50 = arith.constant 0 : index
    %c0_51 = arith.constant 0 : index
    %76 = vector.load %arg17[%c0_49, %c0_50, %c0_51] : memref<2x1x64xf32, #tpu.memory_space<vmem>>, vector<1x1x64xf32>
    %77 = vector.shape_cast %76 : vector<1x1x64xf32> to vector<1x64xf32>
    %78 = vector.broadcast %77 : vector<1x64xf32> to vector<16x64xf32>
    %79 = arith.addf %75, %78 : vector<16x64xf32>
    %c-1_i32 = arith.constant -1 : i32
    %80 = vector.broadcast %c-1_i32 : i32 to vector<16x16xi32>
    %81 = arith.addi %54, %80 : vector<16x16xi32>
    %82 = arith.cmpi eq, %55, %81 : vector<16x16xi32>
    %83 = arith.extui %82 : vector<16x16xi1> to vector<16x16xi32>
    %84 = arith.sitofp %83 : vector<16x16xi32> to vector<16x16xf32>
    %cst_52 = arith.constant dense<0.000000e+00> : vector<16x32xf32>
    %85 = tpu.matmul %84, %70, %cst_52 {dimension_numbers = #tpu.dot_dimension_numbers<[1], [0], [0], [1], [0, 0, 1, 1], [], []>} : vector<16x16xf32>, vector<16x32xf32>, vector<16x32xf32> -> vector<16x32xf32>
    %c0_53 = arith.constant 0 : index
    %c0_54 = arith.constant 0 : index
    %c0_55 = arith.constant 0 : index
    %c0_56 = arith.constant 0 : index
    %86 = vector.load %arg16[%c0_53, %c0_54, %c0_55, %c0_56] : memref<2x3x32x64xf32, #tpu.memory_space<vmem>>, vector<1x1x32x64xf32>
    %87 = vector.shape_cast %86 : vector<1x1x32x64xf32> to vector<32x64xf32>
    %88 = arith.truncf %85 : vector<16x32xf32> to vector<16x32xbf16>
    %89 = arith.truncf %87 : vector<32x64xf32> to vector<32x64xbf16>
    %cst_57 = arith.constant dense<0.000000e+00> : vector<16x64xf32>
    %90 = tpu.matmul %88, %89, %cst_57 {dimension_numbers = #tpu.dot_dimension_numbers<[1], [0], [0], [1], [0, 0, 1, 1], [], []>} : vector<16x32xbf16>, vector<32x64xbf16>, vector<16x64xf32> -> vector<16x64xf32>
    %91 = arith.addf %79, %90 : vector<16x64xf32>
    %c1_i32 = arith.constant 1 : i32
    %92 = vector.broadcast %c1_i32 : i32 to vector<16x16xi32>
    %93 = arith.addi %54, %92 : vector<16x16xi32>
    %94 = arith.cmpi eq, %55, %93 : vector<16x16xi32>
    %95 = arith.extui %94 : vector<16x16xi1> to vector<16x16xi32>
    %96 = arith.sitofp %95 : vector<16x16xi32> to vector<16x16xf32>
    %cst_58 = arith.constant dense<0.000000e+00> : vector<16x32xf32>
    %97 = tpu.matmul %96, %70, %cst_58 {dimension_numbers = #tpu.dot_dimension_numbers<[1], [0], [0], [1], [0, 0, 1, 1], [], []>} : vector<16x16xf32>, vector<16x32xf32>, vector<16x32xf32> -> vector<16x32xf32>
    %c0_59 = arith.constant 0 : index
    %c2 = arith.constant 2 : index
    %c0_60 = arith.constant 0 : index
    %c0_61 = arith.constant 0 : index
    %98 = vector.load %arg16[%c0_59, %c2, %c0_60, %c0_61] : memref<2x3x32x64xf32, #tpu.memory_space<vmem>>, vector<1x1x32x64xf32>
    %99 = vector.shape_cast %98 : vector<1x1x32x64xf32> to vector<32x64xf32>
    %100 = arith.truncf %97 : vector<16x32xf32> to vector<16x32xbf16>
    %101 = arith.truncf %99 : vector<32x64xf32> to vector<32x64xbf16>
    %cst_62 = arith.constant dense<0.000000e+00> : vector<16x64xf32>
    %102 = tpu.matmul %100, %101, %cst_62 {dimension_numbers = #tpu.dot_dimension_numbers<[1], [0], [0], [1], [0, 0, 1, 1], [], []>} : vector<16x32xbf16>, vector<32x64xbf16>, vector<16x64xf32> -> vector<16x64xf32>
    %103 = arith.addf %91, %102 : vector<16x64xf32>
    %104 = vector.extract_strided_slice %8 {offsets = [0, 0], sizes = [16, 64], strides = [1, 1]} : vector<16x128xf32> to vector<16x64xf32>
    %105 = arith.addf %103, %104 : vector<16x64xf32>
    %106 = vector.extract_strided_slice %105 {offsets = [0, 0], sizes = [16, 32], strides = [1, 1]} : vector<16x64xf32> to vector<16x32xf32>
    %107 = vector.extract_strided_slice %105 {offsets = [0, 32], sizes = [16, 32], strides = [1, 1]} : vector<16x64xf32> to vector<16x32xf32>
    %108 = arith.negf %106 : vector<16x32xf32>
    %109 = math.exp %108 : vector<16x32xf32>
    %cst_63 = arith.constant 1.000000e+00 : f32
    %110 = vector.broadcast %cst_63 : f32 to vector<16x32xf32>
    %111 = arith.addf %110, %109 : vector<16x32xf32>
    %112 = arith.divf %110, %111 : vector<16x32xf32>
    %113 = math.tanh %107 : vector<16x32xf32>
    %114 = arith.mulf %112, %113 : vector<16x32xf32>
    %c0_64 = arith.constant 0 : index
    %c0_65 = arith.constant 0 : index
    %c0_66 = arith.constant 0 : index
    %115 = vector.load %arg18[%c0_64, %c0_65, %c0_66] : memref<2x32x64xf32, #tpu.memory_space<vmem>>, vector<1x32x64xf32>
    %116 = vector.shape_cast %115 : vector<1x32x64xf32> to vector<32x64xf32>
    %117 = arith.truncf %114 : vector<16x32xf32> to vector<16x32xbf16>
    %118 = arith.truncf %116 : vector<32x64xf32> to vector<32x64xbf16>
    %cst_67 = arith.constant dense<0.000000e+00> : vector<16x64xf32>
    %119 = tpu.matmul %117, %118, %cst_67 {dimension_numbers = #tpu.dot_dimension_numbers<[1], [0], [0], [1], [0, 0, 1, 1], [], []>} : vector<16x32xbf16>, vector<32x64xbf16>, vector<16x64xf32> -> vector<16x64xf32>
    %c0_68 = arith.constant 0 : index
    %c0_69 = arith.constant 0 : index
    %c0_70 = arith.constant 0 : index
    %120 = vector.load %arg19[%c0_68, %c0_69, %c0_70] : memref<2x1x64xf32, #tpu.memory_space<vmem>>, vector<1x1x64xf32>
    %121 = vector.shape_cast %120 : vector<1x1x64xf32> to vector<1x64xf32>
    %122 = vector.broadcast %121 : vector<1x64xf32> to vector<16x64xf32>
    %123 = arith.addf %119, %122 : vector<16x64xf32>
    %124 = vector.extract_strided_slice %123 {offsets = [0, 0], sizes = [16, 32], strides = [1, 1]} : vector<16x64xf32> to vector<16x32xf32>
    %125 = arith.addf %66, %124 : vector<16x32xf32>
    %cst_71 = arith.constant 0.707106769 : f32
    %126 = vector.broadcast %cst_71 : f32 to vector<16x32xf32>
    %127 = arith.mulf %125, %126 : vector<16x32xf32>
    %128 = vector.extract_strided_slice %123 {offsets = [0, 32], sizes = [16, 32], strides = [1, 1]} : vector<16x64xf32> to vector<16x32xf32>
    %129 = arith.addf %67, %128 : vector<16x32xf32>
    %130 = vector.extract_strided_slice %53 {offsets = [3, 0], sizes = [1, 32], strides = [1, 1]} : vector<4x32xf32> to vector<1x32xf32>
    %131 = vector.broadcast %130 : vector<1x32xf32> to vector<16x32xf32>
    %132 = arith.addf %127, %131 : vector<16x32xf32>
    %c1_72 = arith.constant 1 : index
    %c1_73 = arith.constant 1 : index
    %c0_74 = arith.constant 0 : index
    %c0_75 = arith.constant 0 : index
    %133 = vector.load %arg16[%c1_72, %c1_73, %c0_74, %c0_75] : memref<2x3x32x64xf32, #tpu.memory_space<vmem>>, vector<1x1x32x64xf32>
    %134 = vector.shape_cast %133 : vector<1x1x32x64xf32> to vector<32x64xf32>
    %135 = arith.truncf %132 : vector<16x32xf32> to vector<16x32xbf16>
    %136 = arith.truncf %134 : vector<32x64xf32> to vector<32x64xbf16>
    %cst_76 = arith.constant dense<0.000000e+00> : vector<16x64xf32>
    %137 = tpu.matmul %135, %136, %cst_76 {dimension_numbers = #tpu.dot_dimension_numbers<[1], [0], [0], [1], [0, 0, 1, 1], [], []>} : vector<16x32xbf16>, vector<32x64xbf16>, vector<16x64xf32> -> vector<16x64xf32>
    %c1_77 = arith.constant 1 : index
    %c0_78 = arith.constant 0 : index
    %c0_79 = arith.constant 0 : index
    %138 = vector.load %arg17[%c1_77, %c0_78, %c0_79] : memref<2x1x64xf32, #tpu.memory_space<vmem>>, vector<1x1x64xf32>
    %139 = vector.shape_cast %138 : vector<1x1x64xf32> to vector<1x64xf32>
    %140 = vector.broadcast %139 : vector<1x64xf32> to vector<16x64xf32>
    %141 = arith.addf %137, %140 : vector<16x64xf32>
    %cst_80 = arith.constant dense<0.000000e+00> : vector<16x32xf32>
    %142 = tpu.matmul %84, %132, %cst_80 {dimension_numbers = #tpu.dot_dimension_numbers<[1], [0], [0], [1], [0, 0, 1, 1], [], []>} : vector<16x16xf32>, vector<16x32xf32>, vector<16x32xf32> -> vector<16x32xf32>
    %c1_81 = arith.constant 1 : index
    %c0_82 = arith.constant 0 : index
    %c0_83 = arith.constant 0 : index
    %c0_84 = arith.constant 0 : index
    %143 = vector.load %arg16[%c1_81, %c0_82, %c0_83, %c0_84] : memref<2x3x32x64xf32, #tpu.memory_space<vmem>>, vector<1x1x32x64xf32>
    %144 = vector.shape_cast %143 : vector<1x1x32x64xf32> to vector<32x64xf32>
    %145 = arith.truncf %142 : vector<16x32xf32> to vector<16x32xbf16>
    %146 = arith.truncf %144 : vector<32x64xf32> to vector<32x64xbf16>
    %cst_85 = arith.constant dense<0.000000e+00> : vector<16x64xf32>
    %147 = tpu.matmul %145, %146, %cst_85 {dimension_numbers = #tpu.dot_dimension_numbers<[1], [0], [0], [1], [0, 0, 1, 1], [], []>} : vector<16x32xbf16>, vector<32x64xbf16>, vector<16x64xf32> -> vector<16x64xf32>
    %148 = arith.addf %141, %147 : vector<16x64xf32>
    %cst_86 = arith.constant dense<0.000000e+00> : vector<16x32xf32>
    %149 = tpu.matmul %96, %132, %cst_86 {dimension_numbers = #tpu.dot_dimension_numbers<[1], [0], [0], [1], [0, 0, 1, 1], [], []>} : vector<16x16xf32>, vector<16x32xf32>, vector<16x32xf32> -> vector<16x32xf32>
    %c1_87 = arith.constant 1 : index
    %c2_88 = arith.constant 2 : index
    %c0_89 = arith.constant 0 : index
    %c0_90 = arith.constant 0 : index
    %150 = vector.load %arg16[%c1_87, %c2_88, %c0_89, %c0_90] : memref<2x3x32x64xf32, #tpu.memory_space<vmem>>, vector<1x1x32x64xf32>
    %151 = vector.shape_cast %150 : vector<1x1x32x64xf32> to vector<32x64xf32>
    %152 = arith.truncf %149 : vector<16x32xf32> to vector<16x32xbf16>
    %153 = arith.truncf %151 : vector<32x64xf32> to vector<32x64xbf16>
    %cst_91 = arith.constant dense<0.000000e+00> : vector<16x64xf32>
    %154 = tpu.matmul %152, %153, %cst_91 {dimension_numbers = #tpu.dot_dimension_numbers<[1], [0], [0], [1], [0, 0, 1, 1], [], []>} : vector<16x32xbf16>, vector<32x64xbf16>, vector<16x64xf32> -> vector<16x64xf32>
    %155 = arith.addf %148, %154 : vector<16x64xf32>
    %156 = vector.extract_strided_slice %8 {offsets = [0, 64], sizes = [16, 64], strides = [1, 1]} : vector<16x128xf32> to vector<16x64xf32>
    %157 = arith.addf %155, %156 : vector<16x64xf32>
    %158 = vector.extract_strided_slice %157 {offsets = [0, 0], sizes = [16, 32], strides = [1, 1]} : vector<16x64xf32> to vector<16x32xf32>
    %159 = vector.extract_strided_slice %157 {offsets = [0, 32], sizes = [16, 32], strides = [1, 1]} : vector<16x64xf32> to vector<16x32xf32>
    %160 = arith.negf %158 : vector<16x32xf32>
    %161 = math.exp %160 : vector<16x32xf32>
    %cst_92 = arith.constant 1.000000e+00 : f32
    %162 = vector.broadcast %cst_92 : f32 to vector<16x32xf32>
    %163 = arith.addf %162, %161 : vector<16x32xf32>
    %164 = arith.divf %162, %163 : vector<16x32xf32>
    %165 = math.tanh %159 : vector<16x32xf32>
    %166 = arith.mulf %164, %165 : vector<16x32xf32>
    %c1_93 = arith.constant 1 : index
    %c0_94 = arith.constant 0 : index
    %c0_95 = arith.constant 0 : index
    %167 = vector.load %arg18[%c1_93, %c0_94, %c0_95] : memref<2x32x64xf32, #tpu.memory_space<vmem>>, vector<1x32x64xf32>
    %168 = vector.shape_cast %167 : vector<1x32x64xf32> to vector<32x64xf32>
    %169 = arith.truncf %166 : vector<16x32xf32> to vector<16x32xbf16>
    %170 = arith.truncf %168 : vector<32x64xf32> to vector<32x64xbf16>
    %cst_96 = arith.constant dense<0.000000e+00> : vector<16x64xf32>
    %171 = tpu.matmul %169, %170, %cst_96 {dimension_numbers = #tpu.dot_dimension_numbers<[1], [0], [0], [1], [0, 0, 1, 1], [], []>} : vector<16x32xbf16>, vector<32x64xbf16>, vector<16x64xf32> -> vector<16x64xf32>
    %c1_97 = arith.constant 1 : index
    %c0_98 = arith.constant 0 : index
    %c0_99 = arith.constant 0 : index
    %172 = vector.load %arg19[%c1_97, %c0_98, %c0_99] : memref<2x1x64xf32, #tpu.memory_space<vmem>>, vector<1x1x64xf32>
    %173 = vector.shape_cast %172 : vector<1x1x64xf32> to vector<1x64xf32>
    %174 = vector.broadcast %173 : vector<1x64xf32> to vector<16x64xf32>
    %175 = arith.addf %171, %174 : vector<16x64xf32>
    %176 = vector.extract_strided_slice %175 {offsets = [0, 32], sizes = [16, 32], strides = [1, 1]} : vector<16x64xf32> to vector<16x32xf32>
    %177 = arith.addf %129, %176 : vector<16x32xf32>
    %cst_100 = arith.constant 0.707106769 : f32
    %178 = vector.broadcast %cst_100 : f32 to vector<16x32xf32>
    %179 = arith.mulf %177, %178 : vector<16x32xf32>
    %c0_101 = arith.constant 0 : index
    %c0_102 = arith.constant 0 : index
    %180 = vector.load %arg20[%c0_101, %c0_102] : memref<32x32xf32, #tpu.memory_space<vmem>>, vector<32x32xf32>
    %181 = arith.truncf %179 : vector<16x32xf32> to vector<16x32xbf16>
    %182 = arith.truncf %180 : vector<32x32xf32> to vector<32x32xbf16>
    %cst_103 = arith.constant dense<0.000000e+00> : vector<16x32xf32>
    %183 = tpu.matmul %181, %182, %cst_103 {dimension_numbers = #tpu.dot_dimension_numbers<[1], [0], [0], [1], [0, 0, 1, 1], [], []>} : vector<16x32xbf16>, vector<32x32xbf16>, vector<16x32xf32> -> vector<16x32xf32>
    %c0_104 = arith.constant 0 : index
    %c0_105 = arith.constant 0 : index
    %184 = vector.load %arg21[%c0_104, %c0_105] : memref<1x32xf32, #tpu.memory_space<vmem>>, vector<1x32xf32>
    %185 = vector.broadcast %184 : vector<1x32xf32> to vector<16x32xf32>
    %186 = arith.addf %183, %185 : vector<16x32xf32>
    %cst_106 = arith.constant 0.000000e+00 : f32
    %187 = vector.broadcast %cst_106 : f32 to vector<16x32xf32>
    %188 = arith.maximumf %186, %187 : vector<16x32xf32>
    %c0_107 = arith.constant 0 : index
    %c0_108 = arith.constant 0 : index
    %189 = vector.load %arg22[%c0_107, %c0_108] : memref<32x16xf32, #tpu.memory_space<vmem>>, vector<32x16xf32>
    %190 = arith.truncf %188 : vector<16x32xf32> to vector<16x32xbf16>
    %191 = arith.truncf %189 : vector<32x16xf32> to vector<32x16xbf16>
    %cst_109 = arith.constant dense<0.000000e+00> : vector<16x16xf32>
    %192 = tpu.matmul %190, %191, %cst_109 {dimension_numbers = #tpu.dot_dimension_numbers<[1], [0], [0], [1], [0, 0, 1, 1], [], []>} : vector<16x32xbf16>, vector<32x16xbf16>, vector<16x16xf32> -> vector<16x16xf32>
    %c0_110 = arith.constant 0 : index
    %c0_111 = arith.constant 0 : index
    %193 = vector.load %arg23[%c0_110, %c0_111] : memref<1x16xf32, #tpu.memory_space<vmem>>, vector<1x16xf32>
    %194 = vector.broadcast %193 : vector<1x16xf32> to vector<16x16xf32>
    %195 = arith.addf %192, %194 : vector<16x16xf32>
    %c0_112 = arith.constant 0 : index
    %c3 = arith.constant 3 : index
    %196 = memref.load %arg1[%c0_112, %c3] : memref<5x4xf32, #tpu.memory_space<smem>>
    %c1_113 = arith.constant 1 : index
    %c3_114 = arith.constant 3 : index
    %197 = memref.load %arg1[%c1_113, %c3_114] : memref<5x4xf32, #tpu.memory_space<smem>>
    %c2_115 = arith.constant 2 : index
    %c3_116 = arith.constant 3 : index
    %198 = memref.load %arg1[%c2_115, %c3_116] : memref<5x4xf32, #tpu.memory_space<smem>>
    %c3_117 = arith.constant 3 : index
    %c3_118 = arith.constant 3 : index
    %199 = memref.load %arg1[%c3_117, %c3_118] : memref<5x4xf32, #tpu.memory_space<smem>>
    %c4 = arith.constant 4 : index
    %c3_119 = arith.constant 3 : index
    %200 = memref.load %arg1[%c4, %c3_119] : memref<5x4xf32, #tpu.memory_space<smem>>
    %201 = vector.broadcast %196 : f32 to vector<16x16xf32>
    %202 = arith.mulf %201, %57 : vector<16x16xf32>
    %203 = vector.broadcast %197 : f32 to vector<16x16xf32>
    %204 = arith.mulf %203, %195 : vector<16x16xf32>
    %205 = arith.subf %202, %204 : vector<16x16xf32>
    %cst_120 = arith.constant -1.000000e+00 : f32
    %cst_121 = arith.constant 1.000000e+00 : f32
    %206 = vector.broadcast %cst_120 : f32 to vector<16x16xf32>
    %207 = arith.maximumf %206, %205 : vector<16x16xf32>
    %208 = vector.broadcast %cst_121 : f32 to vector<16x16xf32>
    %209 = arith.minimumf %208, %207 : vector<16x16xf32>
    %210 = vector.broadcast %198 : f32 to vector<16x16xf32>
    %211 = arith.mulf %210, %209 : vector<16x16xf32>
    %212 = vector.broadcast %199 : f32 to vector<16x16xf32>
    %213 = arith.mulf %212, %57 : vector<16x16xf32>
    %214 = arith.addf %211, %213 : vector<16x16xf32>
    %c3_122 = arith.constant 3 : index
    %c0_123 = arith.constant 0 : index
    %c0_124 = arith.constant 0 : index
    %c0_125 = arith.constant 0 : index
    %215 = vector.load %arg4[%c3_122, %c0_123, %c0_124, %c0_125] : memref<4x1x16x16xf32, #tpu.memory_space<vmem>>, vector<1x1x16x16xf32>
    %216 = vector.shape_cast %215 : vector<1x1x16x16xf32> to vector<16x16xf32>
    %217 = vector.broadcast %200 : f32 to vector<16x16xf32>
    %218 = arith.mulf %217, %216 : vector<16x16xf32>
    %219 = arith.addf %214, %218 : vector<16x16xf32>
    %c0_126 = arith.constant 0 : index
    %c0_127 = arith.constant 0 : index
    %220 = vector.load %arg12[%c0_126, %c0_127] : memref<16x32xf32, #tpu.memory_space<vmem>>, vector<16x32xf32>
    %221 = arith.truncf %219 : vector<16x16xf32> to vector<16x16xbf16>
    %222 = arith.truncf %220 : vector<16x32xf32> to vector<16x32xbf16>
    %cst_128 = arith.constant dense<0.000000e+00> : vector<16x32xf32>
    %223 = tpu.matmul %221, %222, %cst_128 {dimension_numbers = #tpu.dot_dimension_numbers<[1], [0], [0], [1], [0, 0, 1, 1], [], []>} : vector<16x16xbf16>, vector<16x32xbf16>, vector<16x32xf32> -> vector<16x32xf32>
    %c0_129 = arith.constant 0 : index
    %c0_130 = arith.constant 0 : index
    %224 = vector.load %arg13[%c0_129, %c0_130] : memref<1x32xf32, #tpu.memory_space<vmem>>, vector<1x32xf32>
    %225 = vector.broadcast %224 : vector<1x32xf32> to vector<16x32xf32>
    %226 = arith.addf %223, %225 : vector<16x32xf32>
    %cst_131 = arith.constant 0.000000e+00 : f32
    %227 = vector.broadcast %cst_131 : f32 to vector<16x32xf32>
    %228 = arith.maximumf %226, %227 : vector<16x32xf32>
    %cst_132 = arith.constant 0.000000e+00 : f32
    %229 = vector.broadcast %cst_132 : f32 to vector<16x32xf32>
    %230 = vector.extract_strided_slice %44 {offsets = [2, 0], sizes = [1, 32], strides = [1, 1]} : vector<4x32xf32> to vector<1x32xf32>
    %231 = vector.broadcast %230 : vector<1x32xf32> to vector<16x32xf32>
    %232 = arith.addf %228, %231 : vector<16x32xf32>
    %c0_133 = arith.constant 0 : index
    %c1_134 = arith.constant 1 : index
    %c0_135 = arith.constant 0 : index
    %c0_136 = arith.constant 0 : index
    %233 = vector.load %arg16[%c0_133, %c1_134, %c0_135, %c0_136] : memref<2x3x32x64xf32, #tpu.memory_space<vmem>>, vector<1x1x32x64xf32>
    %234 = vector.shape_cast %233 : vector<1x1x32x64xf32> to vector<32x64xf32>
    %235 = arith.truncf %232 : vector<16x32xf32> to vector<16x32xbf16>
    %236 = arith.truncf %234 : vector<32x64xf32> to vector<32x64xbf16>
    %cst_137 = arith.constant dense<0.000000e+00> : vector<16x64xf32>
    %237 = tpu.matmul %235, %236, %cst_137 {dimension_numbers = #tpu.dot_dimension_numbers<[1], [0], [0], [1], [0, 0, 1, 1], [], []>} : vector<16x32xbf16>, vector<32x64xbf16>, vector<16x64xf32> -> vector<16x64xf32>
    %c0_138 = arith.constant 0 : index
    %c0_139 = arith.constant 0 : index
    %c0_140 = arith.constant 0 : index
    %238 = vector.load %arg17[%c0_138, %c0_139, %c0_140] : memref<2x1x64xf32, #tpu.memory_space<vmem>>, vector<1x1x64xf32>
    %239 = vector.shape_cast %238 : vector<1x1x64xf32> to vector<1x64xf32>
    %240 = vector.broadcast %239 : vector<1x64xf32> to vector<16x64xf32>
    %241 = arith.addf %237, %240 : vector<16x64xf32>
    %cst_141 = arith.constant dense<0.000000e+00> : vector<16x32xf32>
    %242 = tpu.matmul %84, %232, %cst_141 {dimension_numbers = #tpu.dot_dimension_numbers<[1], [0], [0], [1], [0, 0, 1, 1], [], []>} : vector<16x16xf32>, vector<16x32xf32>, vector<16x32xf32> -> vector<16x32xf32>
    %c0_142 = arith.constant 0 : index
    %c0_143 = arith.constant 0 : index
    %c0_144 = arith.constant 0 : index
    %c0_145 = arith.constant 0 : index
    %243 = vector.load %arg16[%c0_142, %c0_143, %c0_144, %c0_145] : memref<2x3x32x64xf32, #tpu.memory_space<vmem>>, vector<1x1x32x64xf32>
    %244 = vector.shape_cast %243 : vector<1x1x32x64xf32> to vector<32x64xf32>
    %245 = arith.truncf %242 : vector<16x32xf32> to vector<16x32xbf16>
    %246 = arith.truncf %244 : vector<32x64xf32> to vector<32x64xbf16>
    %cst_146 = arith.constant dense<0.000000e+00> : vector<16x64xf32>
    %247 = tpu.matmul %245, %246, %cst_146 {dimension_numbers = #tpu.dot_dimension_numbers<[1], [0], [0], [1], [0, 0, 1, 1], [], []>} : vector<16x32xbf16>, vector<32x64xbf16>, vector<16x64xf32> -> vector<16x64xf32>
    %248 = arith.addf %241, %247 : vector<16x64xf32>
    %cst_147 = arith.constant dense<0.000000e+00> : vector<16x32xf32>
    %249 = tpu.matmul %96, %232, %cst_147 {dimension_numbers = #tpu.dot_dimension_numbers<[1], [0], [0], [1], [0, 0, 1, 1], [], []>} : vector<16x16xf32>, vector<16x32xf32>, vector<16x32xf32> -> vector<16x32xf32>
    %c0_148 = arith.constant 0 : index
    %c2_149 = arith.constant 2 : index
    %c0_150 = arith.constant 0 : index
    %c0_151 = arith.constant 0 : index
    %250 = vector.load %arg16[%c0_148, %c2_149, %c0_150, %c0_151] : memref<2x3x32x64xf32, #tpu.memory_space<vmem>>, vector<1x1x32x64xf32>
    %251 = vector.shape_cast %250 : vector<1x1x32x64xf32> to vector<32x64xf32>
    %252 = arith.truncf %249 : vector<16x32xf32> to vector<16x32xbf16>
    %253 = arith.truncf %251 : vector<32x64xf32> to vector<32x64xbf16>
    %cst_152 = arith.constant dense<0.000000e+00> : vector<16x64xf32>
    %254 = tpu.matmul %252, %253, %cst_152 {dimension_numbers = #tpu.dot_dimension_numbers<[1], [0], [0], [1], [0, 0, 1, 1], [], []>} : vector<16x32xbf16>, vector<32x64xbf16>, vector<16x64xf32> -> vector<16x64xf32>
    %255 = arith.addf %248, %254 : vector<16x64xf32>
    %256 = vector.extract_strided_slice %8 {offsets = [0, 0], sizes = [16, 64], strides = [1, 1]} : vector<16x128xf32> to vector<16x64xf32>
    %257 = arith.addf %255, %256 : vector<16x64xf32>
    %258 = vector.extract_strided_slice %257 {offsets = [0, 0], sizes = [16, 32], strides = [1, 1]} : vector<16x64xf32> to vector<16x32xf32>
    %259 = vector.extract_strided_slice %257 {offsets = [0, 32], sizes = [16, 32], strides = [1, 1]} : vector<16x64xf32> to vector<16x32xf32>
    %260 = arith.negf %258 : vector<16x32xf32>
    %261 = math.exp %260 : vector<16x32xf32>
    %cst_153 = arith.constant 1.000000e+00 : f32
    %262 = vector.broadcast %cst_153 : f32 to vector<16x32xf32>
    %263 = arith.addf %262, %261 : vector<16x32xf32>
    %264 = arith.divf %262, %263 : vector<16x32xf32>
    %265 = math.tanh %259 : vector<16x32xf32>
    %266 = arith.mulf %264, %265 : vector<16x32xf32>
    %c0_154 = arith.constant 0 : index
    %c0_155 = arith.constant 0 : index
    %c0_156 = arith.constant 0 : index
    %267 = vector.load %arg18[%c0_154, %c0_155, %c0_156] : memref<2x32x64xf32, #tpu.memory_space<vmem>>, vector<1x32x64xf32>
    %268 = vector.shape_cast %267 : vector<1x32x64xf32> to vector<32x64xf32>
    %269 = arith.truncf %266 : vector<16x32xf32> to vector<16x32xbf16>
    %270 = arith.truncf %268 : vector<32x64xf32> to vector<32x64xbf16>
    %cst_157 = arith.constant dense<0.000000e+00> : vector<16x64xf32>
    %271 = tpu.matmul %269, %270, %cst_157 {dimension_numbers = #tpu.dot_dimension_numbers<[1], [0], [0], [1], [0, 0, 1, 1], [], []>} : vector<16x32xbf16>, vector<32x64xbf16>, vector<16x64xf32> -> vector<16x64xf32>
    %c0_158 = arith.constant 0 : index
    %c0_159 = arith.constant 0 : index
    %c0_160 = arith.constant 0 : index
    %272 = vector.load %arg19[%c0_158, %c0_159, %c0_160] : memref<2x1x64xf32, #tpu.memory_space<vmem>>, vector<1x1x64xf32>
    %273 = vector.shape_cast %272 : vector<1x1x64xf32> to vector<1x64xf32>
    %274 = vector.broadcast %273 : vector<1x64xf32> to vector<16x64xf32>
    %275 = arith.addf %271, %274 : vector<16x64xf32>
    %276 = vector.extract_strided_slice %275 {offsets = [0, 0], sizes = [16, 32], strides = [1, 1]} : vector<16x64xf32> to vector<16x32xf32>
    %277 = arith.addf %228, %276 : vector<16x32xf32>
    %cst_161 = arith.constant 0.707106769 : f32
    %278 = vector.broadcast %cst_161 : f32 to vector<16x32xf32>
    %279 = arith.mulf %277, %278 : vector<16x32xf32>
    %280 = vector.extract_strided_slice %275 {offsets = [0, 32], sizes = [16, 32], strides = [1, 1]} : vector<16x64xf32> to vector<16x32xf32>
    %281 = arith.addf %229, %280 : vector<16x32xf32>
    %282 = vector.extract_strided_slice %53 {offsets = [2, 0], sizes = [1, 32], strides = [1, 1]} : vector<4x32xf32> to vector<1x32xf32>
    %283 = vector.broadcast %282 : vector<1x32xf32> to vector<16x32xf32>
    %284 = arith.addf %279, %283 : vector<16x32xf32>
    %c1_162 = arith.constant 1 : index
    %c1_163 = arith.constant 1 : index
    %c0_164 = arith.constant 0 : index
    %c0_165 = arith.constant 0 : index
    %285 = vector.load %arg16[%c1_162, %c1_163, %c0_164, %c0_165] : memref<2x3x32x64xf32, #tpu.memory_space<vmem>>, vector<1x1x32x64xf32>
    %286 = vector.shape_cast %285 : vector<1x1x32x64xf32> to vector<32x64xf32>
    %287 = arith.truncf %284 : vector<16x32xf32> to vector<16x32xbf16>
    %288 = arith.truncf %286 : vector<32x64xf32> to vector<32x64xbf16>
    %cst_166 = arith.constant dense<0.000000e+00> : vector<16x64xf32>
    %289 = tpu.matmul %287, %288, %cst_166 {dimension_numbers = #tpu.dot_dimension_numbers<[1], [0], [0], [1], [0, 0, 1, 1], [], []>} : vector<16x32xbf16>, vector<32x64xbf16>, vector<16x64xf32> -> vector<16x64xf32>
    %c1_167 = arith.constant 1 : index
    %c0_168 = arith.constant 0 : index
    %c0_169 = arith.constant 0 : index
    %290 = vector.load %arg17[%c1_167, %c0_168, %c0_169] : memref<2x1x64xf32, #tpu.memory_space<vmem>>, vector<1x1x64xf32>
    %291 = vector.shape_cast %290 : vector<1x1x64xf32> to vector<1x64xf32>
    %292 = vector.broadcast %291 : vector<1x64xf32> to vector<16x64xf32>
    %293 = arith.addf %289, %292 : vector<16x64xf32>
    %cst_170 = arith.constant dense<0.000000e+00> : vector<16x32xf32>
    %294 = tpu.matmul %84, %284, %cst_170 {dimension_numbers = #tpu.dot_dimension_numbers<[1], [0], [0], [1], [0, 0, 1, 1], [], []>} : vector<16x16xf32>, vector<16x32xf32>, vector<16x32xf32> -> vector<16x32xf32>
    %c1_171 = arith.constant 1 : index
    %c0_172 = arith.constant 0 : index
    %c0_173 = arith.constant 0 : index
    %c0_174 = arith.constant 0 : index
    %295 = vector.load %arg16[%c1_171, %c0_172, %c0_173, %c0_174] : memref<2x3x32x64xf32, #tpu.memory_space<vmem>>, vector<1x1x32x64xf32>
    %296 = vector.shape_cast %295 : vector<1x1x32x64xf32> to vector<32x64xf32>
    %297 = arith.truncf %294 : vector<16x32xf32> to vector<16x32xbf16>
    %298 = arith.truncf %296 : vector<32x64xf32> to vector<32x64xbf16>
    %cst_175 = arith.constant dense<0.000000e+00> : vector<16x64xf32>
    %299 = tpu.matmul %297, %298, %cst_175 {dimension_numbers = #tpu.dot_dimension_numbers<[1], [0], [0], [1], [0, 0, 1, 1], [], []>} : vector<16x32xbf16>, vector<32x64xbf16>, vector<16x64xf32> -> vector<16x64xf32>
    %300 = arith.addf %293, %299 : vector<16x64xf32>
    %cst_176 = arith.constant dense<0.000000e+00> : vector<16x32xf32>
    %301 = tpu.matmul %96, %284, %cst_176 {dimension_numbers = #tpu.dot_dimension_numbers<[1], [0], [0], [1], [0, 0, 1, 1], [], []>} : vector<16x16xf32>, vector<16x32xf32>, vector<16x32xf32> -> vector<16x32xf32>
    %c1_177 = arith.constant 1 : index
    %c2_178 = arith.constant 2 : index
    %c0_179 = arith.constant 0 : index
    %c0_180 = arith.constant 0 : index
    %302 = vector.load %arg16[%c1_177, %c2_178, %c0_179, %c0_180] : memref<2x3x32x64xf32, #tpu.memory_space<vmem>>, vector<1x1x32x64xf32>
    %303 = vector.shape_cast %302 : vector<1x1x32x64xf32> to vector<32x64xf32>
    %304 = arith.truncf %301 : vector<16x32xf32> to vector<16x32xbf16>
    %305 = arith.truncf %303 : vector<32x64xf32> to vector<32x64xbf16>
    %cst_181 = arith.constant dense<0.000000e+00> : vector<16x64xf32>
    %306 = tpu.matmul %304, %305, %cst_181 {dimension_numbers = #tpu.dot_dimension_numbers<[1], [0], [0], [1], [0, 0, 1, 1], [], []>} : vector<16x32xbf16>, vector<32x64xbf16>, vector<16x64xf32> -> vector<16x64xf32>
    %307 = arith.addf %300, %306 : vector<16x64xf32>
    %308 = vector.extract_strided_slice %8 {offsets = [0, 64], sizes = [16, 64], strides = [1, 1]} : vector<16x128xf32> to vector<16x64xf32>
    %309 = arith.addf %307, %308 : vector<16x64xf32>
    %310 = vector.extract_strided_slice %309 {offsets = [0, 0], sizes = [16, 32], strides = [1, 1]} : vector<16x64xf32> to vector<16x32xf32>
    %311 = vector.extract_strided_slice %309 {offsets = [0, 32], sizes = [16, 32], strides = [1, 1]} : vector<16x64xf32> to vector<16x32xf32>
    %312 = arith.negf %310 : vector<16x32xf32>
    %313 = math.exp %312 : vector<16x32xf32>
    %cst_182 = arith.constant 1.000000e+00 : f32
    %314 = vector.broadcast %cst_182 : f32 to vector<16x32xf32>
    %315 = arith.addf %314, %313 : vector<16x32xf32>
    %316 = arith.divf %314, %315 : vector<16x32xf32>
    %317 = math.tanh %311 : vector<16x32xf32>
    %318 = arith.mulf %316, %317 : vector<16x32xf32>
    %c1_183 = arith.constant 1 : index
    %c0_184 = arith.constant 0 : index
    %c0_185 = arith.constant 0 : index
    %319 = vector.load %arg18[%c1_183, %c0_184, %c0_185] : memref<2x32x64xf32, #tpu.memory_space<vmem>>, vector<1x32x64xf32>
    %320 = vector.shape_cast %319 : vector<1x32x64xf32> to vector<32x64xf32>
    %321 = arith.truncf %318 : vector<16x32xf32> to vector<16x32xbf16>
    %322 = arith.truncf %320 : vector<32x64xf32> to vector<32x64xbf16>
    %cst_186 = arith.constant dense<0.000000e+00> : vector<16x64xf32>
    %323 = tpu.matmul %321, %322, %cst_186 {dimension_numbers = #tpu.dot_dimension_numbers<[1], [0], [0], [1], [0, 0, 1, 1], [], []>} : vector<16x32xbf16>, vector<32x64xbf16>, vector<16x64xf32> -> vector<16x64xf32>
    %c1_187 = arith.constant 1 : index
    %c0_188 = arith.constant 0 : index
    %c0_189 = arith.constant 0 : index
    %324 = vector.load %arg19[%c1_187, %c0_188, %c0_189] : memref<2x1x64xf32, #tpu.memory_space<vmem>>, vector<1x1x64xf32>
    %325 = vector.shape_cast %324 : vector<1x1x64xf32> to vector<1x64xf32>
    %326 = vector.broadcast %325 : vector<1x64xf32> to vector<16x64xf32>
    %327 = arith.addf %323, %326 : vector<16x64xf32>
    %328 = vector.extract_strided_slice %327 {offsets = [0, 32], sizes = [16, 32], strides = [1, 1]} : vector<16x64xf32> to vector<16x32xf32>
    %329 = arith.addf %281, %328 : vector<16x32xf32>
    %cst_190 = arith.constant 0.707106769 : f32
    %330 = vector.broadcast %cst_190 : f32 to vector<16x32xf32>
    %331 = arith.mulf %329, %330 : vector<16x32xf32>
    %c0_191 = arith.constant 0 : index
    %c0_192 = arith.constant 0 : index
    %332 = vector.load %arg20[%c0_191, %c0_192] : memref<32x32xf32, #tpu.memory_space<vmem>>, vector<32x32xf32>
    %333 = arith.truncf %331 : vector<16x32xf32> to vector<16x32xbf16>
    %334 = arith.truncf %332 : vector<32x32xf32> to vector<32x32xbf16>
    %cst_193 = arith.constant dense<0.000000e+00> : vector<16x32xf32>
    %335 = tpu.matmul %333, %334, %cst_193 {dimension_numbers = #tpu.dot_dimension_numbers<[1], [0], [0], [1], [0, 0, 1, 1], [], []>} : vector<16x32xbf16>, vector<32x32xbf16>, vector<16x32xf32> -> vector<16x32xf32>
    %c0_194 = arith.constant 0 : index
    %c0_195 = arith.constant 0 : index
    %336 = vector.load %arg21[%c0_194, %c0_195] : memref<1x32xf32, #tpu.memory_space<vmem>>, vector<1x32xf32>
    %337 = vector.broadcast %336 : vector<1x32xf32> to vector<16x32xf32>
    %338 = arith.addf %335, %337 : vector<16x32xf32>
    %cst_196 = arith.constant 0.000000e+00 : f32
    %339 = vector.broadcast %cst_196 : f32 to vector<16x32xf32>
    %340 = arith.maximumf %338, %339 : vector<16x32xf32>
    %c0_197 = arith.constant 0 : index
    %c0_198 = arith.constant 0 : index
    %341 = vector.load %arg22[%c0_197, %c0_198] : memref<32x16xf32, #tpu.memory_space<vmem>>, vector<32x16xf32>
    %342 = arith.truncf %340 : vector<16x32xf32> to vector<16x32xbf16>
    %343 = arith.truncf %341 : vector<32x16xf32> to vector<32x16xbf16>
    %cst_199 = arith.constant dense<0.000000e+00> : vector<16x16xf32>
    %344 = tpu.matmul %342, %343, %cst_199 {dimension_numbers = #tpu.dot_dimension_numbers<[1], [0], [0], [1], [0, 0, 1, 1], [], []>} : vector<16x32xbf16>, vector<32x16xbf16>, vector<16x16xf32> -> vector<16x16xf32>
    %c0_200 = arith.constant 0 : index
    %c0_201 = arith.constant 0 : index
    %345 = vector.load %arg23[%c0_200, %c0_201] : memref<1x16xf32, #tpu.memory_space<vmem>>, vector<1x16xf32>
    %346 = vector.broadcast %345 : vector<1x16xf32> to vector<16x16xf32>
    %347 = arith.addf %344, %346 : vector<16x16xf32>
    %c0_202 = arith.constant 0 : index
    %c2_203 = arith.constant 2 : index
    %348 = memref.load %arg1[%c0_202, %c2_203] : memref<5x4xf32, #tpu.memory_space<smem>>
    %c1_204 = arith.constant 1 : index
    %c2_205 = arith.constant 2 : index
    %349 = memref.load %arg1[%c1_204, %c2_205] : memref<5x4xf32, #tpu.memory_space<smem>>
    %c2_206 = arith.constant 2 : index
    %c2_207 = arith.constant 2 : index
    %350 = memref.load %arg1[%c2_206, %c2_207] : memref<5x4xf32, #tpu.memory_space<smem>>
    %c3_208 = arith.constant 3 : index
    %c2_209 = arith.constant 2 : index
    %351 = memref.load %arg1[%c3_208, %c2_209] : memref<5x4xf32, #tpu.memory_space<smem>>
    %c4_210 = arith.constant 4 : index
    %c2_211 = arith.constant 2 : index
    %352 = memref.load %arg1[%c4_210, %c2_211] : memref<5x4xf32, #tpu.memory_space<smem>>
    %353 = vector.broadcast %348 : f32 to vector<16x16xf32>
    %354 = arith.mulf %353, %219 : vector<16x16xf32>
    %355 = vector.broadcast %349 : f32 to vector<16x16xf32>
    %356 = arith.mulf %355, %347 : vector<16x16xf32>
    %357 = arith.subf %354, %356 : vector<16x16xf32>
    %cst_212 = arith.constant -1.000000e+00 : f32
    %cst_213 = arith.constant 1.000000e+00 : f32
    %358 = vector.broadcast %cst_212 : f32 to vector<16x16xf32>
    %359 = arith.maximumf %358, %357 : vector<16x16xf32>
    %360 = vector.broadcast %cst_213 : f32 to vector<16x16xf32>
    %361 = arith.minimumf %360, %359 : vector<16x16xf32>
    %362 = vector.broadcast %350 : f32 to vector<16x16xf32>
    %363 = arith.mulf %362, %361 : vector<16x16xf32>
    %364 = vector.broadcast %351 : f32 to vector<16x16xf32>
    %365 = arith.mulf %364, %219 : vector<16x16xf32>
    %366 = arith.addf %363, %365 : vector<16x16xf32>
    %c2_214 = arith.constant 2 : index
    %c0_215 = arith.constant 0 : index
    %c0_216 = arith.constant 0 : index
    %c0_217 = arith.constant 0 : index
    %367 = vector.load %arg4[%c2_214, %c0_215, %c0_216, %c0_217] : memref<4x1x16x16xf32, #tpu.memory_space<vmem>>, vector<1x1x16x16xf32>
    %368 = vector.shape_cast %367 : vector<1x1x16x16xf32> to vector<16x16xf32>
    %369 = vector.broadcast %352 : f32 to vector<16x16xf32>
    %370 = arith.mulf %369, %368 : vector<16x16xf32>
    %371 = arith.addf %366, %370 : vector<16x16xf32>
    %c0_218 = arith.constant 0 : index
    %c0_219 = arith.constant 0 : index
    %372 = vector.load %arg12[%c0_218, %c0_219] : memref<16x32xf32, #tpu.memory_space<vmem>>, vector<16x32xf32>
    %373 = arith.truncf %371 : vector<16x16xf32> to vector<16x16xbf16>
    %374 = arith.truncf %372 : vector<16x32xf32> to vector<16x32xbf16>
    %cst_220 = arith.constant dense<0.000000e+00> : vector<16x32xf32>
    %375 = tpu.matmul %373, %374, %cst_220 {dimension_numbers = #tpu.dot_dimension_numbers<[1], [0], [0], [1], [0, 0, 1, 1], [], []>} : vector<16x16xbf16>, vector<16x32xbf16>, vector<16x32xf32> -> vector<16x32xf32>
    %c0_221 = arith.constant 0 : index
    %c0_222 = arith.constant 0 : index
    %376 = vector.load %arg13[%c0_221, %c0_222] : memref<1x32xf32, #tpu.memory_space<vmem>>, vector<1x32xf32>
    %377 = vector.broadcast %376 : vector<1x32xf32> to vector<16x32xf32>
    %378 = arith.addf %375, %377 : vector<16x32xf32>
    %cst_223 = arith.constant 0.000000e+00 : f32
    %379 = vector.broadcast %cst_223 : f32 to vector<16x32xf32>
    %380 = arith.maximumf %378, %379 : vector<16x32xf32>
    %cst_224 = arith.constant 0.000000e+00 : f32
    %381 = vector.broadcast %cst_224 : f32 to vector<16x32xf32>
    %382 = vector.extract_strided_slice %44 {offsets = [1, 0], sizes = [1, 32], strides = [1, 1]} : vector<4x32xf32> to vector<1x32xf32>
    %383 = vector.broadcast %382 : vector<1x32xf32> to vector<16x32xf32>
    %384 = arith.addf %380, %383 : vector<16x32xf32>
    %c0_225 = arith.constant 0 : index
    %c1_226 = arith.constant 1 : index
    %c0_227 = arith.constant 0 : index
    %c0_228 = arith.constant 0 : index
    %385 = vector.load %arg16[%c0_225, %c1_226, %c0_227, %c0_228] : memref<2x3x32x64xf32, #tpu.memory_space<vmem>>, vector<1x1x32x64xf32>
    %386 = vector.shape_cast %385 : vector<1x1x32x64xf32> to vector<32x64xf32>
    %387 = arith.truncf %384 : vector<16x32xf32> to vector<16x32xbf16>
    %388 = arith.truncf %386 : vector<32x64xf32> to vector<32x64xbf16>
    %cst_229 = arith.constant dense<0.000000e+00> : vector<16x64xf32>
    %389 = tpu.matmul %387, %388, %cst_229 {dimension_numbers = #tpu.dot_dimension_numbers<[1], [0], [0], [1], [0, 0, 1, 1], [], []>} : vector<16x32xbf16>, vector<32x64xbf16>, vector<16x64xf32> -> vector<16x64xf32>
    %c0_230 = arith.constant 0 : index
    %c0_231 = arith.constant 0 : index
    %c0_232 = arith.constant 0 : index
    %390 = vector.load %arg17[%c0_230, %c0_231, %c0_232] : memref<2x1x64xf32, #tpu.memory_space<vmem>>, vector<1x1x64xf32>
    %391 = vector.shape_cast %390 : vector<1x1x64xf32> to vector<1x64xf32>
    %392 = vector.broadcast %391 : vector<1x64xf32> to vector<16x64xf32>
    %393 = arith.addf %389, %392 : vector<16x64xf32>
    %cst_233 = arith.constant dense<0.000000e+00> : vector<16x32xf32>
    %394 = tpu.matmul %84, %384, %cst_233 {dimension_numbers = #tpu.dot_dimension_numbers<[1], [0], [0], [1], [0, 0, 1, 1], [], []>} : vector<16x16xf32>, vector<16x32xf32>, vector<16x32xf32> -> vector<16x32xf32>
    %c0_234 = arith.constant 0 : index
    %c0_235 = arith.constant 0 : index
    %c0_236 = arith.constant 0 : index
    %c0_237 = arith.constant 0 : index
    %395 = vector.load %arg16[%c0_234, %c0_235, %c0_236, %c0_237] : memref<2x3x32x64xf32, #tpu.memory_space<vmem>>, vector<1x1x32x64xf32>
    %396 = vector.shape_cast %395 : vector<1x1x32x64xf32> to vector<32x64xf32>
    %397 = arith.truncf %394 : vector<16x32xf32> to vector<16x32xbf16>
    %398 = arith.truncf %396 : vector<32x64xf32> to vector<32x64xbf16>
    %cst_238 = arith.constant dense<0.000000e+00> : vector<16x64xf32>
    %399 = tpu.matmul %397, %398, %cst_238 {dimension_numbers = #tpu.dot_dimension_numbers<[1], [0], [0], [1], [0, 0, 1, 1], [], []>} : vector<16x32xbf16>, vector<32x64xbf16>, vector<16x64xf32> -> vector<16x64xf32>
    %400 = arith.addf %393, %399 : vector<16x64xf32>
    %cst_239 = arith.constant dense<0.000000e+00> : vector<16x32xf32>
    %401 = tpu.matmul %96, %384, %cst_239 {dimension_numbers = #tpu.dot_dimension_numbers<[1], [0], [0], [1], [0, 0, 1, 1], [], []>} : vector<16x16xf32>, vector<16x32xf32>, vector<16x32xf32> -> vector<16x32xf32>
    %c0_240 = arith.constant 0 : index
    %c2_241 = arith.constant 2 : index
    %c0_242 = arith.constant 0 : index
    %c0_243 = arith.constant 0 : index
    %402 = vector.load %arg16[%c0_240, %c2_241, %c0_242, %c0_243] : memref<2x3x32x64xf32, #tpu.memory_space<vmem>>, vector<1x1x32x64xf32>
    %403 = vector.shape_cast %402 : vector<1x1x32x64xf32> to vector<32x64xf32>
    %404 = arith.truncf %401 : vector<16x32xf32> to vector<16x32xbf16>
    %405 = arith.truncf %403 : vector<32x64xf32> to vector<32x64xbf16>
    %cst_244 = arith.constant dense<0.000000e+00> : vector<16x64xf32>
    %406 = tpu.matmul %404, %405, %cst_244 {dimension_numbers = #tpu.dot_dimension_numbers<[1], [0], [0], [1], [0, 0, 1, 1], [], []>} : vector<16x32xbf16>, vector<32x64xbf16>, vector<16x64xf32> -> vector<16x64xf32>
    %407 = arith.addf %400, %406 : vector<16x64xf32>
    %408 = vector.extract_strided_slice %8 {offsets = [0, 0], sizes = [16, 64], strides = [1, 1]} : vector<16x128xf32> to vector<16x64xf32>
    %409 = arith.addf %407, %408 : vector<16x64xf32>
    %410 = vector.extract_strided_slice %409 {offsets = [0, 0], sizes = [16, 32], strides = [1, 1]} : vector<16x64xf32> to vector<16x32xf32>
    %411 = vector.extract_strided_slice %409 {offsets = [0, 32], sizes = [16, 32], strides = [1, 1]} : vector<16x64xf32> to vector<16x32xf32>
    %412 = arith.negf %410 : vector<16x32xf32>
    %413 = math.exp %412 : vector<16x32xf32>
    %cst_245 = arith.constant 1.000000e+00 : f32
    %414 = vector.broadcast %cst_245 : f32 to vector<16x32xf32>
    %415 = arith.addf %414, %413 : vector<16x32xf32>
    %416 = arith.divf %414, %415 : vector<16x32xf32>
    %417 = math.tanh %411 : vector<16x32xf32>
    %418 = arith.mulf %416, %417 : vector<16x32xf32>
    %c0_246 = arith.constant 0 : index
    %c0_247 = arith.constant 0 : index
    %c0_248 = arith.constant 0 : index
    %419 = vector.load %arg18[%c0_246, %c0_247, %c0_248] : memref<2x32x64xf32, #tpu.memory_space<vmem>>, vector<1x32x64xf32>
    %420 = vector.shape_cast %419 : vector<1x32x64xf32> to vector<32x64xf32>
    %421 = arith.truncf %418 : vector<16x32xf32> to vector<16x32xbf16>
    %422 = arith.truncf %420 : vector<32x64xf32> to vector<32x64xbf16>
    %cst_249 = arith.constant dense<0.000000e+00> : vector<16x64xf32>
    %423 = tpu.matmul %421, %422, %cst_249 {dimension_numbers = #tpu.dot_dimension_numbers<[1], [0], [0], [1], [0, 0, 1, 1], [], []>} : vector<16x32xbf16>, vector<32x64xbf16>, vector<16x64xf32> -> vector<16x64xf32>
    %c0_250 = arith.constant 0 : index
    %c0_251 = arith.constant 0 : index
    %c0_252 = arith.constant 0 : index
    %424 = vector.load %arg19[%c0_250, %c0_251, %c0_252] : memref<2x1x64xf32, #tpu.memory_space<vmem>>, vector<1x1x64xf32>
    %425 = vector.shape_cast %424 : vector<1x1x64xf32> to vector<1x64xf32>
    %426 = vector.broadcast %425 : vector<1x64xf32> to vector<16x64xf32>
    %427 = arith.addf %423, %426 : vector<16x64xf32>
    %428 = vector.extract_strided_slice %427 {offsets = [0, 0], sizes = [16, 32], strides = [1, 1]} : vector<16x64xf32> to vector<16x32xf32>
    %429 = arith.addf %380, %428 : vector<16x32xf32>
    %cst_253 = arith.constant 0.707106769 : f32
    %430 = vector.broadcast %cst_253 : f32 to vector<16x32xf32>
    %431 = arith.mulf %429, %430 : vector<16x32xf32>
    %432 = vector.extract_strided_slice %427 {offsets = [0, 32], sizes = [16, 32], strides = [1, 1]} : vector<16x64xf32> to vector<16x32xf32>
    %433 = arith.addf %381, %432 : vector<16x32xf32>
    %434 = vector.extract_strided_slice %53 {offsets = [1, 0], sizes = [1, 32], strides = [1, 1]} : vector<4x32xf32> to vector<1x32xf32>
    %435 = vector.broadcast %434 : vector<1x32xf32> to vector<16x32xf32>
    %436 = arith.addf %431, %435 : vector<16x32xf32>
    %c1_254 = arith.constant 1 : index
    %c1_255 = arith.constant 1 : index
    %c0_256 = arith.constant 0 : index
    %c0_257 = arith.constant 0 : index
    %437 = vector.load %arg16[%c1_254, %c1_255, %c0_256, %c0_257] : memref<2x3x32x64xf32, #tpu.memory_space<vmem>>, vector<1x1x32x64xf32>
    %438 = vector.shape_cast %437 : vector<1x1x32x64xf32> to vector<32x64xf32>
    %439 = arith.truncf %436 : vector<16x32xf32> to vector<16x32xbf16>
    %440 = arith.truncf %438 : vector<32x64xf32> to vector<32x64xbf16>
    %cst_258 = arith.constant dense<0.000000e+00> : vector<16x64xf32>
    %441 = tpu.matmul %439, %440, %cst_258 {dimension_numbers = #tpu.dot_dimension_numbers<[1], [0], [0], [1], [0, 0, 1, 1], [], []>} : vector<16x32xbf16>, vector<32x64xbf16>, vector<16x64xf32> -> vector<16x64xf32>
    %c1_259 = arith.constant 1 : index
    %c0_260 = arith.constant 0 : index
    %c0_261 = arith.constant 0 : index
    %442 = vector.load %arg17[%c1_259, %c0_260, %c0_261] : memref<2x1x64xf32, #tpu.memory_space<vmem>>, vector<1x1x64xf32>
    %443 = vector.shape_cast %442 : vector<1x1x64xf32> to vector<1x64xf32>
    %444 = vector.broadcast %443 : vector<1x64xf32> to vector<16x64xf32>
    %445 = arith.addf %441, %444 : vector<16x64xf32>
    %cst_262 = arith.constant dense<0.000000e+00> : vector<16x32xf32>
    %446 = tpu.matmul %84, %436, %cst_262 {dimension_numbers = #tpu.dot_dimension_numbers<[1], [0], [0], [1], [0, 0, 1, 1], [], []>} : vector<16x16xf32>, vector<16x32xf32>, vector<16x32xf32> -> vector<16x32xf32>
    %c1_263 = arith.constant 1 : index
    %c0_264 = arith.constant 0 : index
    %c0_265 = arith.constant 0 : index
    %c0_266 = arith.constant 0 : index
    %447 = vector.load %arg16[%c1_263, %c0_264, %c0_265, %c0_266] : memref<2x3x32x64xf32, #tpu.memory_space<vmem>>, vector<1x1x32x64xf32>
    %448 = vector.shape_cast %447 : vector<1x1x32x64xf32> to vector<32x64xf32>
    %449 = arith.truncf %446 : vector<16x32xf32> to vector<16x32xbf16>
    %450 = arith.truncf %448 : vector<32x64xf32> to vector<32x64xbf16>
    %cst_267 = arith.constant dense<0.000000e+00> : vector<16x64xf32>
    %451 = tpu.matmul %449, %450, %cst_267 {dimension_numbers = #tpu.dot_dimension_numbers<[1], [0], [0], [1], [0, 0, 1, 1], [], []>} : vector<16x32xbf16>, vector<32x64xbf16>, vector<16x64xf32> -> vector<16x64xf32>
    %452 = arith.addf %445, %451 : vector<16x64xf32>
    %cst_268 = arith.constant dense<0.000000e+00> : vector<16x32xf32>
    %453 = tpu.matmul %96, %436, %cst_268 {dimension_numbers = #tpu.dot_dimension_numbers<[1], [0], [0], [1], [0, 0, 1, 1], [], []>} : vector<16x16xf32>, vector<16x32xf32>, vector<16x32xf32> -> vector<16x32xf32>
    %c1_269 = arith.constant 1 : index
    %c2_270 = arith.constant 2 : index
    %c0_271 = arith.constant 0 : index
    %c0_272 = arith.constant 0 : index
    %454 = vector.load %arg16[%c1_269, %c2_270, %c0_271, %c0_272] : memref<2x3x32x64xf32, #tpu.memory_space<vmem>>, vector<1x1x32x64xf32>
    %455 = vector.shape_cast %454 : vector<1x1x32x64xf32> to vector<32x64xf32>
    %456 = arith.truncf %453 : vector<16x32xf32> to vector<16x32xbf16>
    %457 = arith.truncf %455 : vector<32x64xf32> to vector<32x64xbf16>
    %cst_273 = arith.constant dense<0.000000e+00> : vector<16x64xf32>
    %458 = tpu.matmul %456, %457, %cst_273 {dimension_numbers = #tpu.dot_dimension_numbers<[1], [0], [0], [1], [0, 0, 1, 1], [], []>} : vector<16x32xbf16>, vector<32x64xbf16>, vector<16x64xf32> -> vector<16x64xf32>
    %459 = arith.addf %452, %458 : vector<16x64xf32>
    %460 = vector.extract_strided_slice %8 {offsets = [0, 64], sizes = [16, 64], strides = [1, 1]} : vector<16x128xf32> to vector<16x64xf32>
    %461 = arith.addf %459, %460 : vector<16x64xf32>
    %462 = vector.extract_strided_slice %461 {offsets = [0, 0], sizes = [16, 32], strides = [1, 1]} : vector<16x64xf32> to vector<16x32xf32>
    %463 = vector.extract_strided_slice %461 {offsets = [0, 32], sizes = [16, 32], strides = [1, 1]} : vector<16x64xf32> to vector<16x32xf32>
    %464 = arith.negf %462 : vector<16x32xf32>
    %465 = math.exp %464 : vector<16x32xf32>
    %cst_274 = arith.constant 1.000000e+00 : f32
    %466 = vector.broadcast %cst_274 : f32 to vector<16x32xf32>
    %467 = arith.addf %466, %465 : vector<16x32xf32>
    %468 = arith.divf %466, %467 : vector<16x32xf32>
    %469 = math.tanh %463 : vector<16x32xf32>
    %470 = arith.mulf %468, %469 : vector<16x32xf32>
    %c1_275 = arith.constant 1 : index
    %c0_276 = arith.constant 0 : index
    %c0_277 = arith.constant 0 : index
    %471 = vector.load %arg18[%c1_275, %c0_276, %c0_277] : memref<2x32x64xf32, #tpu.memory_space<vmem>>, vector<1x32x64xf32>
    %472 = vector.shape_cast %471 : vector<1x32x64xf32> to vector<32x64xf32>
    %473 = arith.truncf %470 : vector<16x32xf32> to vector<16x32xbf16>
    %474 = arith.truncf %472 : vector<32x64xf32> to vector<32x64xbf16>
    %cst_278 = arith.constant dense<0.000000e+00> : vector<16x64xf32>
    %475 = tpu.matmul %473, %474, %cst_278 {dimension_numbers = #tpu.dot_dimension_numbers<[1], [0], [0], [1], [0, 0, 1, 1], [], []>} : vector<16x32xbf16>, vector<32x64xbf16>, vector<16x64xf32> -> vector<16x64xf32>
    %c1_279 = arith.constant 1 : index
    %c0_280 = arith.constant 0 : index
    %c0_281 = arith.constant 0 : index
    %476 = vector.load %arg19[%c1_279, %c0_280, %c0_281] : memref<2x1x64xf32, #tpu.memory_space<vmem>>, vector<1x1x64xf32>
    %477 = vector.shape_cast %476 : vector<1x1x64xf32> to vector<1x64xf32>
    %478 = vector.broadcast %477 : vector<1x64xf32> to vector<16x64xf32>
    %479 = arith.addf %475, %478 : vector<16x64xf32>
    %480 = vector.extract_strided_slice %479 {offsets = [0, 32], sizes = [16, 32], strides = [1, 1]} : vector<16x64xf32> to vector<16x32xf32>
    %481 = arith.addf %433, %480 : vector<16x32xf32>
    %cst_282 = arith.constant 0.707106769 : f32
    %482 = vector.broadcast %cst_282 : f32 to vector<16x32xf32>
    %483 = arith.mulf %481, %482 : vector<16x32xf32>
    %c0_283 = arith.constant 0 : index
    %c0_284 = arith.constant 0 : index
    %484 = vector.load %arg20[%c0_283, %c0_284] : memref<32x32xf32, #tpu.memory_space<vmem>>, vector<32x32xf32>
    %485 = arith.truncf %483 : vector<16x32xf32> to vector<16x32xbf16>
    %486 = arith.truncf %484 : vector<32x32xf32> to vector<32x32xbf16>
    %cst_285 = arith.constant dense<0.000000e+00> : vector<16x32xf32>
    %487 = tpu.matmul %485, %486, %cst_285 {dimension_numbers = #tpu.dot_dimension_numbers<[1], [0], [0], [1], [0, 0, 1, 1], [], []>} : vector<16x32xbf16>, vector<32x32xbf16>, vector<16x32xf32> -> vector<16x32xf32>
    %c0_286 = arith.constant 0 : index
    %c0_287 = arith.constant 0 : index
    %488 = vector.load %arg21[%c0_286, %c0_287] : memref<1x32xf32, #tpu.memory_space<vmem>>, vector<1x32xf32>
    %489 = vector.broadcast %488 : vector<1x32xf32> to vector<16x32xf32>
    %490 = arith.addf %487, %489 : vector<16x32xf32>
    %cst_288 = arith.constant 0.000000e+00 : f32
    %491 = vector.broadcast %cst_288 : f32 to vector<16x32xf32>
    %492 = arith.maximumf %490, %491 : vector<16x32xf32>
    %c0_289 = arith.constant 0 : index
    %c0_290 = arith.constant 0 : index
    %493 = vector.load %arg22[%c0_289, %c0_290] : memref<32x16xf32, #tpu.memory_space<vmem>>, vector<32x16xf32>
    %494 = arith.truncf %492 : vector<16x32xf32> to vector<16x32xbf16>
    %495 = arith.truncf %493 : vector<32x16xf32> to vector<32x16xbf16>
    %cst_291 = arith.constant dense<0.000000e+00> : vector<16x16xf32>
    %496 = tpu.matmul %494, %495, %cst_291 {dimension_numbers = #tpu.dot_dimension_numbers<[1], [0], [0], [1], [0, 0, 1, 1], [], []>} : vector<16x32xbf16>, vector<32x16xbf16>, vector<16x16xf32> -> vector<16x16xf32>
    %c0_292 = arith.constant 0 : index
    %c0_293 = arith.constant 0 : index
    %497 = vector.load %arg23[%c0_292, %c0_293] : memref<1x16xf32, #tpu.memory_space<vmem>>, vector<1x16xf32>
    %498 = vector.broadcast %497 : vector<1x16xf32> to vector<16x16xf32>
    %499 = arith.addf %496, %498 : vector<16x16xf32>
    %c0_294 = arith.constant 0 : index
    %c1_295 = arith.constant 1 : index
    %500 = memref.load %arg1[%c0_294, %c1_295] : memref<5x4xf32, #tpu.memory_space<smem>>
    %c1_296 = arith.constant 1 : index
    %c1_297 = arith.constant 1 : index
    %501 = memref.load %arg1[%c1_296, %c1_297] : memref<5x4xf32, #tpu.memory_space<smem>>
    %c2_298 = arith.constant 2 : index
    %c1_299 = arith.constant 1 : index
    %502 = memref.load %arg1[%c2_298, %c1_299] : memref<5x4xf32, #tpu.memory_space<smem>>
    %c3_300 = arith.constant 3 : index
    %c1_301 = arith.constant 1 : index
    %503 = memref.load %arg1[%c3_300, %c1_301] : memref<5x4xf32, #tpu.memory_space<smem>>
    %c4_302 = arith.constant 4 : index
    %c1_303 = arith.constant 1 : index
    %504 = memref.load %arg1[%c4_302, %c1_303] : memref<5x4xf32, #tpu.memory_space<smem>>
    %505 = vector.broadcast %500 : f32 to vector<16x16xf32>
    %506 = arith.mulf %505, %371 : vector<16x16xf32>
    %507 = vector.broadcast %501 : f32 to vector<16x16xf32>
    %508 = arith.mulf %507, %499 : vector<16x16xf32>
    %509 = arith.subf %506, %508 : vector<16x16xf32>
    %cst_304 = arith.constant -1.000000e+00 : f32
    %cst_305 = arith.constant 1.000000e+00 : f32
    %510 = vector.broadcast %cst_304 : f32 to vector<16x16xf32>
    %511 = arith.maximumf %510, %509 : vector<16x16xf32>
    %512 = vector.broadcast %cst_305 : f32 to vector<16x16xf32>
    %513 = arith.minimumf %512, %511 : vector<16x16xf32>
    %514 = vector.broadcast %502 : f32 to vector<16x16xf32>
    %515 = arith.mulf %514, %513 : vector<16x16xf32>
    %516 = vector.broadcast %503 : f32 to vector<16x16xf32>
    %517 = arith.mulf %516, %371 : vector<16x16xf32>
    %518 = arith.addf %515, %517 : vector<16x16xf32>
    %c1_306 = arith.constant 1 : index
    %c0_307 = arith.constant 0 : index
    %c0_308 = arith.constant 0 : index
    %c0_309 = arith.constant 0 : index
    %519 = vector.load %arg4[%c1_306, %c0_307, %c0_308, %c0_309] : memref<4x1x16x16xf32, #tpu.memory_space<vmem>>, vector<1x1x16x16xf32>
    %520 = vector.shape_cast %519 : vector<1x1x16x16xf32> to vector<16x16xf32>
    %521 = vector.broadcast %504 : f32 to vector<16x16xf32>
    %522 = arith.mulf %521, %520 : vector<16x16xf32>
    %523 = arith.addf %518, %522 : vector<16x16xf32>
    %c0_310 = arith.constant 0 : index
    %c0_311 = arith.constant 0 : index
    %524 = vector.load %arg12[%c0_310, %c0_311] : memref<16x32xf32, #tpu.memory_space<vmem>>, vector<16x32xf32>
    %525 = arith.truncf %523 : vector<16x16xf32> to vector<16x16xbf16>
    %526 = arith.truncf %524 : vector<16x32xf32> to vector<16x32xbf16>
    %cst_312 = arith.constant dense<0.000000e+00> : vector<16x32xf32>
    %527 = tpu.matmul %525, %526, %cst_312 {dimension_numbers = #tpu.dot_dimension_numbers<[1], [0], [0], [1], [0, 0, 1, 1], [], []>} : vector<16x16xbf16>, vector<16x32xbf16>, vector<16x32xf32> -> vector<16x32xf32>
    %c0_313 = arith.constant 0 : index
    %c0_314 = arith.constant 0 : index
    %528 = vector.load %arg13[%c0_313, %c0_314] : memref<1x32xf32, #tpu.memory_space<vmem>>, vector<1x32xf32>
    %529 = vector.broadcast %528 : vector<1x32xf32> to vector<16x32xf32>
    %530 = arith.addf %527, %529 : vector<16x32xf32>
    %cst_315 = arith.constant 0.000000e+00 : f32
    %531 = vector.broadcast %cst_315 : f32 to vector<16x32xf32>
    %532 = arith.maximumf %530, %531 : vector<16x32xf32>
    %cst_316 = arith.constant 0.000000e+00 : f32
    %533 = vector.broadcast %cst_316 : f32 to vector<16x32xf32>
    %534 = vector.extract_strided_slice %44 {offsets = [0, 0], sizes = [1, 32], strides = [1, 1]} : vector<4x32xf32> to vector<1x32xf32>
    %535 = vector.broadcast %534 : vector<1x32xf32> to vector<16x32xf32>
    %536 = arith.addf %532, %535 : vector<16x32xf32>
    %c0_317 = arith.constant 0 : index
    %c1_318 = arith.constant 1 : index
    %c0_319 = arith.constant 0 : index
    %c0_320 = arith.constant 0 : index
    %537 = vector.load %arg16[%c0_317, %c1_318, %c0_319, %c0_320] : memref<2x3x32x64xf32, #tpu.memory_space<vmem>>, vector<1x1x32x64xf32>
    %538 = vector.shape_cast %537 : vector<1x1x32x64xf32> to vector<32x64xf32>
    %539 = arith.truncf %536 : vector<16x32xf32> to vector<16x32xbf16>
    %540 = arith.truncf %538 : vector<32x64xf32> to vector<32x64xbf16>
    %cst_321 = arith.constant dense<0.000000e+00> : vector<16x64xf32>
    %541 = tpu.matmul %539, %540, %cst_321 {dimension_numbers = #tpu.dot_dimension_numbers<[1], [0], [0], [1], [0, 0, 1, 1], [], []>} : vector<16x32xbf16>, vector<32x64xbf16>, vector<16x64xf32> -> vector<16x64xf32>
    %c0_322 = arith.constant 0 : index
    %c0_323 = arith.constant 0 : index
    %c0_324 = arith.constant 0 : index
    %542 = vector.load %arg17[%c0_322, %c0_323, %c0_324] : memref<2x1x64xf32, #tpu.memory_space<vmem>>, vector<1x1x64xf32>
    %543 = vector.shape_cast %542 : vector<1x1x64xf32> to vector<1x64xf32>
    %544 = vector.broadcast %543 : vector<1x64xf32> to vector<16x64xf32>
    %545 = arith.addf %541, %544 : vector<16x64xf32>
    %cst_325 = arith.constant dense<0.000000e+00> : vector<16x32xf32>
    %546 = tpu.matmul %84, %536, %cst_325 {dimension_numbers = #tpu.dot_dimension_numbers<[1], [0], [0], [1], [0, 0, 1, 1], [], []>} : vector<16x16xf32>, vector<16x32xf32>, vector<16x32xf32> -> vector<16x32xf32>
    %c0_326 = arith.constant 0 : index
    %c0_327 = arith.constant 0 : index
    %c0_328 = arith.constant 0 : index
    %c0_329 = arith.constant 0 : index
    %547 = vector.load %arg16[%c0_326, %c0_327, %c0_328, %c0_329] : memref<2x3x32x64xf32, #tpu.memory_space<vmem>>, vector<1x1x32x64xf32>
    %548 = vector.shape_cast %547 : vector<1x1x32x64xf32> to vector<32x64xf32>
    %549 = arith.truncf %546 : vector<16x32xf32> to vector<16x32xbf16>
    %550 = arith.truncf %548 : vector<32x64xf32> to vector<32x64xbf16>
    %cst_330 = arith.constant dense<0.000000e+00> : vector<16x64xf32>
    %551 = tpu.matmul %549, %550, %cst_330 {dimension_numbers = #tpu.dot_dimension_numbers<[1], [0], [0], [1], [0, 0, 1, 1], [], []>} : vector<16x32xbf16>, vector<32x64xbf16>, vector<16x64xf32> -> vector<16x64xf32>
    %552 = arith.addf %545, %551 : vector<16x64xf32>
    %cst_331 = arith.constant dense<0.000000e+00> : vector<16x32xf32>
    %553 = tpu.matmul %96, %536, %cst_331 {dimension_numbers = #tpu.dot_dimension_numbers<[1], [0], [0], [1], [0, 0, 1, 1], [], []>} : vector<16x16xf32>, vector<16x32xf32>, vector<16x32xf32> -> vector<16x32xf32>
    %c0_332 = arith.constant 0 : index
    %c2_333 = arith.constant 2 : index
    %c0_334 = arith.constant 0 : index
    %c0_335 = arith.constant 0 : index
    %554 = vector.load %arg16[%c0_332, %c2_333, %c0_334, %c0_335] : memref<2x3x32x64xf32, #tpu.memory_space<vmem>>, vector<1x1x32x64xf32>
    %555 = vector.shape_cast %554 : vector<1x1x32x64xf32> to vector<32x64xf32>
    %556 = arith.truncf %553 : vector<16x32xf32> to vector<16x32xbf16>
    %557 = arith.truncf %555 : vector<32x64xf32> to vector<32x64xbf16>
    %cst_336 = arith.constant dense<0.000000e+00> : vector<16x64xf32>
    %558 = tpu.matmul %556, %557, %cst_336 {dimension_numbers = #tpu.dot_dimension_numbers<[1], [0], [0], [1], [0, 0, 1, 1], [], []>} : vector<16x32xbf16>, vector<32x64xbf16>, vector<16x64xf32> -> vector<16x64xf32>
    %559 = arith.addf %552, %558 : vector<16x64xf32>
    %560 = vector.extract_strided_slice %8 {offsets = [0, 0], sizes = [16, 64], strides = [1, 1]} : vector<16x128xf32> to vector<16x64xf32>
    %561 = arith.addf %559, %560 : vector<16x64xf32>
    %562 = vector.extract_strided_slice %561 {offsets = [0, 0], sizes = [16, 32], strides = [1, 1]} : vector<16x64xf32> to vector<16x32xf32>
    %563 = vector.extract_strided_slice %561 {offsets = [0, 32], sizes = [16, 32], strides = [1, 1]} : vector<16x64xf32> to vector<16x32xf32>
    %564 = arith.negf %562 : vector<16x32xf32>
    %565 = math.exp %564 : vector<16x32xf32>
    %cst_337 = arith.constant 1.000000e+00 : f32
    %566 = vector.broadcast %cst_337 : f32 to vector<16x32xf32>
    %567 = arith.addf %566, %565 : vector<16x32xf32>
    %568 = arith.divf %566, %567 : vector<16x32xf32>
    %569 = math.tanh %563 : vector<16x32xf32>
    %570 = arith.mulf %568, %569 : vector<16x32xf32>
    %c0_338 = arith.constant 0 : index
    %c0_339 = arith.constant 0 : index
    %c0_340 = arith.constant 0 : index
    %571 = vector.load %arg18[%c0_338, %c0_339, %c0_340] : memref<2x32x64xf32, #tpu.memory_space<vmem>>, vector<1x32x64xf32>
    %572 = vector.shape_cast %571 : vector<1x32x64xf32> to vector<32x64xf32>
    %573 = arith.truncf %570 : vector<16x32xf32> to vector<16x32xbf16>
    %574 = arith.truncf %572 : vector<32x64xf32> to vector<32x64xbf16>
    %cst_341 = arith.constant dense<0.000000e+00> : vector<16x64xf32>
    %575 = tpu.matmul %573, %574, %cst_341 {dimension_numbers = #tpu.dot_dimension_numbers<[1], [0], [0], [1], [0, 0, 1, 1], [], []>} : vector<16x32xbf16>, vector<32x64xbf16>, vector<16x64xf32> -> vector<16x64xf32>
    %c0_342 = arith.constant 0 : index
    %c0_343 = arith.constant 0 : index
    %c0_344 = arith.constant 0 : index
    %576 = vector.load %arg19[%c0_342, %c0_343, %c0_344] : memref<2x1x64xf32, #tpu.memory_space<vmem>>, vector<1x1x64xf32>
    %577 = vector.shape_cast %576 : vector<1x1x64xf32> to vector<1x64xf32>
    %578 = vector.broadcast %577 : vector<1x64xf32> to vector<16x64xf32>
    %579 = arith.addf %575, %578 : vector<16x64xf32>
    %580 = vector.extract_strided_slice %579 {offsets = [0, 0], sizes = [16, 32], strides = [1, 1]} : vector<16x64xf32> to vector<16x32xf32>
    %581 = arith.addf %532, %580 : vector<16x32xf32>
    %cst_345 = arith.constant 0.707106769 : f32
    %582 = vector.broadcast %cst_345 : f32 to vector<16x32xf32>
    %583 = arith.mulf %581, %582 : vector<16x32xf32>
    %584 = vector.extract_strided_slice %579 {offsets = [0, 32], sizes = [16, 32], strides = [1, 1]} : vector<16x64xf32> to vector<16x32xf32>
    %585 = arith.addf %533, %584 : vector<16x32xf32>
    %586 = vector.extract_strided_slice %53 {offsets = [0, 0], sizes = [1, 32], strides = [1, 1]} : vector<4x32xf32> to vector<1x32xf32>
    %587 = vector.broadcast %586 : vector<1x32xf32> to vector<16x32xf32>
    %588 = arith.addf %583, %587 : vector<16x32xf32>
    %c1_346 = arith.constant 1 : index
    %c1_347 = arith.constant 1 : index
    %c0_348 = arith.constant 0 : index
    %c0_349 = arith.constant 0 : index
    %589 = vector.load %arg16[%c1_346, %c1_347, %c0_348, %c0_349] : memref<2x3x32x64xf32, #tpu.memory_space<vmem>>, vector<1x1x32x64xf32>
    %590 = vector.shape_cast %589 : vector<1x1x32x64xf32> to vector<32x64xf32>
    %591 = arith.truncf %588 : vector<16x32xf32> to vector<16x32xbf16>
    %592 = arith.truncf %590 : vector<32x64xf32> to vector<32x64xbf16>
    %cst_350 = arith.constant dense<0.000000e+00> : vector<16x64xf32>
    %593 = tpu.matmul %591, %592, %cst_350 {dimension_numbers = #tpu.dot_dimension_numbers<[1], [0], [0], [1], [0, 0, 1, 1], [], []>} : vector<16x32xbf16>, vector<32x64xbf16>, vector<16x64xf32> -> vector<16x64xf32>
    %c1_351 = arith.constant 1 : index
    %c0_352 = arith.constant 0 : index
    %c0_353 = arith.constant 0 : index
    %594 = vector.load %arg17[%c1_351, %c0_352, %c0_353] : memref<2x1x64xf32, #tpu.memory_space<vmem>>, vector<1x1x64xf32>
    %595 = vector.shape_cast %594 : vector<1x1x64xf32> to vector<1x64xf32>
    %596 = vector.broadcast %595 : vector<1x64xf32> to vector<16x64xf32>
    %597 = arith.addf %593, %596 : vector<16x64xf32>
    %cst_354 = arith.constant dense<0.000000e+00> : vector<16x32xf32>
    %598 = tpu.matmul %84, %588, %cst_354 {dimension_numbers = #tpu.dot_dimension_numbers<[1], [0], [0], [1], [0, 0, 1, 1], [], []>} : vector<16x16xf32>, vector<16x32xf32>, vector<16x32xf32> -> vector<16x32xf32>
    %c1_355 = arith.constant 1 : index
    %c0_356 = arith.constant 0 : index
    %c0_357 = arith.constant 0 : index
    %c0_358 = arith.constant 0 : index
    %599 = vector.load %arg16[%c1_355, %c0_356, %c0_357, %c0_358] : memref<2x3x32x64xf32, #tpu.memory_space<vmem>>, vector<1x1x32x64xf32>
    %600 = vector.shape_cast %599 : vector<1x1x32x64xf32> to vector<32x64xf32>
    %601 = arith.truncf %598 : vector<16x32xf32> to vector<16x32xbf16>
    %602 = arith.truncf %600 : vector<32x64xf32> to vector<32x64xbf16>
    %cst_359 = arith.constant dense<0.000000e+00> : vector<16x64xf32>
    %603 = tpu.matmul %601, %602, %cst_359 {dimension_numbers = #tpu.dot_dimension_numbers<[1], [0], [0], [1], [0, 0, 1, 1], [], []>} : vector<16x32xbf16>, vector<32x64xbf16>, vector<16x64xf32> -> vector<16x64xf32>
    %604 = arith.addf %597, %603 : vector<16x64xf32>
    %cst_360 = arith.constant dense<0.000000e+00> : vector<16x32xf32>
    %605 = tpu.matmul %96, %588, %cst_360 {dimension_numbers = #tpu.dot_dimension_numbers<[1], [0], [0], [1], [0, 0, 1, 1], [], []>} : vector<16x16xf32>, vector<16x32xf32>, vector<16x32xf32> -> vector<16x32xf32>
    %c1_361 = arith.constant 1 : index
    %c2_362 = arith.constant 2 : index
    %c0_363 = arith.constant 0 : index
    %c0_364 = arith.constant 0 : index
    %606 = vector.load %arg16[%c1_361, %c2_362, %c0_363, %c0_364] : memref<2x3x32x64xf32, #tpu.memory_space<vmem>>, vector<1x1x32x64xf32>
    %607 = vector.shape_cast %606 : vector<1x1x32x64xf32> to vector<32x64xf32>
    %608 = arith.truncf %605 : vector<16x32xf32> to vector<16x32xbf16>
    %609 = arith.truncf %607 : vector<32x64xf32> to vector<32x64xbf16>
    %cst_365 = arith.constant dense<0.000000e+00> : vector<16x64xf32>
    %610 = tpu.matmul %608, %609, %cst_365 {dimension_numbers = #tpu.dot_dimension_numbers<[1], [0], [0], [1], [0, 0, 1, 1], [], []>} : vector<16x32xbf16>, vector<32x64xbf16>, vector<16x64xf32> -> vector<16x64xf32>
    %611 = arith.addf %604, %610 : vector<16x64xf32>
    %612 = vector.extract_strided_slice %8 {offsets = [0, 64], sizes = [16, 64], strides = [1, 1]} : vector<16x128xf32> to vector<16x64xf32>
    %613 = arith.addf %611, %612 : vector<16x64xf32>
    %614 = vector.extract_strided_slice %613 {offsets = [0, 0], sizes = [16, 32], strides = [1, 1]} : vector<16x64xf32> to vector<16x32xf32>
    %615 = vector.extract_strided_slice %613 {offsets = [0, 32], sizes = [16, 32], strides = [1, 1]} : vector<16x64xf32> to vector<16x32xf32>
    %616 = arith.negf %614 : vector<16x32xf32>
    %617 = math.exp %616 : vector<16x32xf32>
    %cst_366 = arith.constant 1.000000e+00 : f32
    %618 = vector.broadcast %cst_366 : f32 to vector<16x32xf32>
    %619 = arith.addf %618, %617 : vector<16x32xf32>
    %620 = arith.divf %618, %619 : vector<16x32xf32>
    %621 = math.tanh %615 : vector<16x32xf32>
    %622 = arith.mulf %620, %621 : vector<16x32xf32>
    %c1_367 = arith.constant 1 : index
    %c0_368 = arith.constant 0 : index
    %c0_369 = arith.constant 0 : index
    %623 = vector.load %arg18[%c1_367, %c0_368, %c0_369] : memref<2x32x64xf32, #tpu.memory_space<vmem>>, vector<1x32x64xf32>
    %624 = vector.shape_cast %623 : vector<1x32x64xf32> to vector<32x64xf32>
    %625 = arith.truncf %622 : vector<16x32xf32> to vector<16x32xbf16>
    %626 = arith.truncf %624 : vector<32x64xf32> to vector<32x64xbf16>
    %cst_370 = arith.constant dense<0.000000e+00> : vector<16x64xf32>
    %627 = tpu.matmul %625, %626, %cst_370 {dimension_numbers = #tpu.dot_dimension_numbers<[1], [0], [0], [1], [0, 0, 1, 1], [], []>} : vector<16x32xbf16>, vector<32x64xbf16>, vector<16x64xf32> -> vector<16x64xf32>
    %c1_371 = arith.constant 1 : index
    %c0_372 = arith.constant 0 : index
    %c0_373 = arith.constant 0 : index
    %628 = vector.load %arg19[%c1_371, %c0_372, %c0_373] : memref<2x1x64xf32, #tpu.memory_space<vmem>>, vector<1x1x64xf32>
    %629 = vector.shape_cast %628 : vector<1x1x64xf32> to vector<1x64xf32>
    %630 = vector.broadcast %629 : vector<1x64xf32> to vector<16x64xf32>
    %631 = arith.addf %627, %630 : vector<16x64xf32>
    %632 = vector.extract_strided_slice %631 {offsets = [0, 32], sizes = [16, 32], strides = [1, 1]} : vector<16x64xf32> to vector<16x32xf32>
    %633 = arith.addf %585, %632 : vector<16x32xf32>
    %cst_374 = arith.constant 0.707106769 : f32
    %634 = vector.broadcast %cst_374 : f32 to vector<16x32xf32>
    %635 = arith.mulf %633, %634 : vector<16x32xf32>
    %c0_375 = arith.constant 0 : index
    %c0_376 = arith.constant 0 : index
    %636 = vector.load %arg20[%c0_375, %c0_376] : memref<32x32xf32, #tpu.memory_space<vmem>>, vector<32x32xf32>
    %637 = arith.truncf %635 : vector<16x32xf32> to vector<16x32xbf16>
    %638 = arith.truncf %636 : vector<32x32xf32> to vector<32x32xbf16>
    %cst_377 = arith.constant dense<0.000000e+00> : vector<16x32xf32>
    %639 = tpu.matmul %637, %638, %cst_377 {dimension_numbers = #tpu.dot_dimension_numbers<[1], [0], [0], [1], [0, 0, 1, 1], [], []>} : vector<16x32xbf16>, vector<32x32xbf16>, vector<16x32xf32> -> vector<16x32xf32>
    %c0_378 = arith.constant 0 : index
    %c0_379 = arith.constant 0 : index
    %640 = vector.load %arg21[%c0_378, %c0_379] : memref<1x32xf32, #tpu.memory_space<vmem>>, vector<1x32xf32>
    %641 = vector.broadcast %640 : vector<1x32xf32> to vector<16x32xf32>
    %642 = arith.addf %639, %641 : vector<16x32xf32>
    %cst_380 = arith.constant 0.000000e+00 : f32
    %643 = vector.broadcast %cst_380 : f32 to vector<16x32xf32>
    %644 = arith.maximumf %642, %643 : vector<16x32xf32>
    %c0_381 = arith.constant 0 : index
    %c0_382 = arith.constant 0 : index
    %645 = vector.load %arg22[%c0_381, %c0_382] : memref<32x16xf32, #tpu.memory_space<vmem>>, vector<32x16xf32>
    %646 = arith.truncf %644 : vector<16x32xf32> to vector<16x32xbf16>
    %647 = arith.truncf %645 : vector<32x16xf32> to vector<32x16xbf16>
    %cst_383 = arith.constant dense<0.000000e+00> : vector<16x16xf32>
    %648 = tpu.matmul %646, %647, %cst_383 {dimension_numbers = #tpu.dot_dimension_numbers<[1], [0], [0], [1], [0, 0, 1, 1], [], []>} : vector<16x32xbf16>, vector<32x16xbf16>, vector<16x16xf32> -> vector<16x16xf32>
    %c0_384 = arith.constant 0 : index
    %c0_385 = arith.constant 0 : index
    %649 = vector.load %arg23[%c0_384, %c0_385] : memref<1x16xf32, #tpu.memory_space<vmem>>, vector<1x16xf32>
    %650 = vector.broadcast %649 : vector<1x16xf32> to vector<16x16xf32>
    %651 = arith.addf %648, %650 : vector<16x16xf32>
    %c0_386 = arith.constant 0 : index
    %c0_387 = arith.constant 0 : index
    %652 = memref.load %arg1[%c0_386, %c0_387] : memref<5x4xf32, #tpu.memory_space<smem>>
    %c1_388 = arith.constant 1 : index
    %c0_389 = arith.constant 0 : index
    %653 = memref.load %arg1[%c1_388, %c0_389] : memref<5x4xf32, #tpu.memory_space<smem>>
    %c2_390 = arith.constant 2 : index
    %c0_391 = arith.constant 0 : index
    %654 = memref.load %arg1[%c2_390, %c0_391] : memref<5x4xf32, #tpu.memory_space<smem>>
    %c3_392 = arith.constant 3 : index
    %c0_393 = arith.constant 0 : index
    %655 = memref.load %arg1[%c3_392, %c0_393] : memref<5x4xf32, #tpu.memory_space<smem>>
    %656 = vector.broadcast %652 : f32 to vector<16x16xf32>
    %657 = arith.mulf %656, %523 : vector<16x16xf32>
    %658 = vector.broadcast %653 : f32 to vector<16x16xf32>
    %659 = arith.mulf %658, %651 : vector<16x16xf32>
    %660 = arith.subf %657, %659 : vector<16x16xf32>
    %cst_394 = arith.constant -1.000000e+00 : f32
    %cst_395 = arith.constant 1.000000e+00 : f32
    %661 = vector.broadcast %cst_394 : f32 to vector<16x16xf32>
    %662 = arith.maximumf %661, %660 : vector<16x16xf32>
    %663 = vector.broadcast %cst_395 : f32 to vector<16x16xf32>
    %664 = arith.minimumf %663, %662 : vector<16x16xf32>
    %665 = vector.broadcast %654 : f32 to vector<16x16xf32>
    %666 = arith.mulf %665, %664 : vector<16x16xf32>
    %667 = vector.broadcast %655 : f32 to vector<16x16xf32>
    %668 = arith.mulf %667, %523 : vector<16x16xf32>
    %669 = arith.addf %666, %668 : vector<16x16xf32>
    %cst_396 = arith.constant 1.000000e+00 : f32
    %670 = vector.broadcast %cst_396 : f32 to vector<16x16xf32>
    %671 = arith.addf %669, %670 : vector<16x16xf32>
    %cst_397 = arith.constant 5.000000e-01 : f32
    %672 = vector.broadcast %cst_397 : f32 to vector<16x16xf32>
    %673 = arith.mulf %671, %672 : vector<16x16xf32>
    %c0_398 = arith.constant 0 : index
    %c0_399 = arith.constant 0 : index
    %674 = vector.load %arg25[%c0_398, %c0_399] : memref<1x16xf32, #tpu.memory_space<vmem>>, vector<1x16xf32>
    %c0_400 = arith.constant 0 : index
    %c0_401 = arith.constant 0 : index
    %675 = vector.load %arg24[%c0_400, %c0_401] : memref<1x16xf32, #tpu.memory_space<vmem>>, vector<1x16xf32>
    %676 = arith.subf %674, %675 : vector<1x16xf32>
    %677 = vector.broadcast %676 : vector<1x16xf32> to vector<16x16xf32>
    %678 = arith.mulf %673, %677 : vector<16x16xf32>
    %c0_402 = arith.constant 0 : index
    %c0_403 = arith.constant 0 : index
    %679 = vector.load %arg24[%c0_402, %c0_403] : memref<1x16xf32, #tpu.memory_space<vmem>>, vector<1x16xf32>
    %680 = vector.broadcast %679 : vector<1x16xf32> to vector<16x16xf32>
    %681 = arith.addf %678, %680 : vector<16x16xf32>
    %c0_404 = arith.constant 0 : index
    %c0_405 = arith.constant 0 : index
    %c0_406 = arith.constant 0 : index
    %682 = vector.load %arg26[%c0_404, %c0_405, %c0_406] : memref<1x16x16xf32, #tpu.memory_space<vmem>>, vector<1x16x16xf32>
    %683 = vector.shape_cast %682 : vector<1x16x16xf32> to vector<16x16xf32>
    %684 = vector.shape_cast %681 : vector<16x16xf32> to vector<1x16x16xf32>
    tpu.vector_store %arg26[%c0_404, %c0_405, %c0_406], %684 {strides = array<i32>} : memref<1x16x16xf32, #tpu.memory_space<vmem>>, vector<1x16x16xf32>,
    return
  }
  func.func @transform_0(%arg0: i32) -> (i32, i32) {
    %c0_i32 = arith.constant 0 : i32
    %c0_i32_0 = arith.constant 0 : i32
    %c0_i32_1 = arith.constant 0 : i32
    return %c0_i32, %c0_i32_0 : i32, i32
  }
  func.func @transform_1(%arg0: i32) -> (i32, i32, i32) {
    %c0_i32 = arith.constant 0 : i32
    %c0_i32_0 = arith.constant 0 : i32
    %c0_i32_1 = arith.constant 0 : i32
    return %arg0, %c0_i32, %c0_i32_0 : i32, i32, i32
  }
  func.func @transform_2(%arg0: i32) -> (i32, i32, i32) {
    %c0_i32 = arith.constant 0 : i32
    %c0_i32_0 = arith.constant 0 : i32
    %c0_i32_1 = arith.constant 0 : i32
    return %arg0, %c0_i32, %c0_i32_0 : i32, i32, i32
  }
  func.func @transform_3(%arg0: i32) -> (i32, i32, i32, i32) {
    %c0_i32 = arith.constant 0 : i32
    %c0_i32_0 = arith.constant 0 : i32
    %c0_i32_1 = arith.constant 0 : i32
    %c0_i32_2 = arith.constant 0 : i32
    return %c0_i32, %arg0, %c0_i32_0, %c0_i32_1 : i32, i32, i32, i32
  }
  func.func @transform_4(%arg0: i32) -> (i32, i32) {
    %c0_i32 = arith.constant 0 : i32
    %c0_i32_0 = arith.constant 0 : i32
    %c0_i32_1 = arith.constant 0 : i32
    return %c0_i32, %c0_i32_0 : i32, i32
  }
  func.func @transform_5(%arg0: i32) -> (i32, i32) {
    %c0_i32 = arith.constant 0 : i32
    %c0_i32_0 = arith.constant 0 : i32
    %c0_i32_1 = arith.constant 0 : i32
    return %c0_i32, %c0_i32_0 : i32, i32
  }
  func.func @transform_6(%arg0: i32) -> (i32, i32) {
    %c0_i32 = arith.constant 0 : i32
    %c0_i32_0 = arith.constant 0 : i32
    %c0_i32_1 = arith.constant 0 : i32
    return %c0_i32, %c0_i32_0 : i32, i32
  }
  func.func @transform_7(%arg0: i32) -> (i32, i32) {
    %c0_i32 = arith.constant 0 : i32
    %c0_i32_0 = arith.constant 0 : i32
    %c0_i32_1 = arith.constant 0 : i32
    return %c0_i32, %c0_i32_0 : i32, i32
  }
  func.func @transform_8(%arg0: i32) -> (i32, i32) {
    %c0_i32 = arith.constant 0 : i32
    %c0_i32_0 = arith.constant 0 : i32
    %c0_i32_1 = arith.constant 0 : i32
    return %c0_i32, %c0_i32_0 : i32, i32
  }
  func.func @transform_9(%arg0: i32) -> (i32, i32, i32) {
    %c0_i32 = arith.constant 0 : i32
    %c0_i32_0 = arith.constant 0 : i32
    %c0_i32_1 = arith.constant 0 : i32
    %c0_i32_2 = arith.constant 0 : i32
    return %c0_i32, %c0_i32_0, %c0_i32_1 : i32, i32, i32
  }
  func.func @transform_10(%arg0: i32) -> (i32, i32, i32) {
    %c0_i32 = arith.constant 0 : i32
    %c0_i32_0 = arith.constant 0 : i32
    %c0_i32_1 = arith.constant 0 : i32
    %c0_i32_2 = arith.constant 0 : i32
    return %c0_i32, %c0_i32_0, %c0_i32_1 : i32, i32, i32
  }
  func.func @transform_11(%arg0: i32) -> (i32, i32) {
    %c0_i32 = arith.constant 0 : i32
    %c0_i32_0 = arith.constant 0 : i32
    %c0_i32_1 = arith.constant 0 : i32
    return %c0_i32, %c0_i32_0 : i32, i32
  }
  func.func @transform_12(%arg0: i32) -> (i32, i32) {
    %c0_i32 = arith.constant 0 : i32
    %c0_i32_0 = arith.constant 0 : i32
    %c0_i32_1 = arith.constant 0 : i32
    return %c0_i32, %c0_i32_0 : i32, i32
  }
  func.func @transform_13(%arg0: i32) -> (i32, i32) {
    %c0_i32 = arith.constant 0 : i32
    %c0_i32_0 = arith.constant 0 : i32
    %c0_i32_1 = arith.constant 0 : i32
    return %c0_i32, %c0_i32_0 : i32, i32
  }
  func.func @transform_14(%arg0: i32) -> (i32, i32) {
    %c0_i32 = arith.constant 0 : i32
    %c0_i32_0 = arith.constant 0 : i32
    %c0_i32_1 = arith.constant 0 : i32
    return %c0_i32, %c0_i32_0 : i32, i32
  }
  func.func @transform_15(%arg0: i32) -> (i32, i32, i32, i32) {
    %c0_i32 = arith.constant 0 : i32
    %c0_i32_0 = arith.constant 0 : i32
    %c0_i32_1 = arith.constant 0 : i32
    %c0_i32_2 = arith.constant 0 : i32
    %c0_i32_3 = arith.constant 0 : i32
    return %c0_i32, %c0_i32_0, %c0_i32_1, %c0_i32_2 : i32, i32, i32, i32
  }
  func.func @transform_16(%arg0: i32) -> (i32, i32, i32) {
    %c0_i32 = arith.constant 0 : i32
    %c0_i32_0 = arith.constant 0 : i32
    %c0_i32_1 = arith.constant 0 : i32
    %c0_i32_2 = arith.constant 0 : i32
    return %c0_i32, %c0_i32_0, %c0_i32_1 : i32, i32, i32
  }
  func.func @transform_17(%arg0: i32) -> (i32, i32, i32) {
    %c0_i32 = arith.constant 0 : i32
    %c0_i32_0 = arith.constant 0 : i32
    %c0_i32_1 = arith.constant 0 : i32
    %c0_i32_2 = arith.constant 0 : i32
    return %c0_i32, %c0_i32_0, %c0_i32_1 : i32, i32, i32
  }
  func.func @transform_18(%arg0: i32) -> (i32, i32, i32) {
    %c0_i32 = arith.constant 0 : i32
    %c0_i32_0 = arith.constant 0 : i32
    %c0_i32_1 = arith.constant 0 : i32
    %c0_i32_2 = arith.constant 0 : i32
    return %c0_i32, %c0_i32_0, %c0_i32_1 : i32, i32, i32
  }
  func.func @transform_19(%arg0: i32) -> (i32, i32) {
    %c0_i32 = arith.constant 0 : i32
    %c0_i32_0 = arith.constant 0 : i32
    %c0_i32_1 = arith.constant 0 : i32
    return %c0_i32, %c0_i32_0 : i32, i32
  }
  func.func @transform_20(%arg0: i32) -> (i32, i32) {
    %c0_i32 = arith.constant 0 : i32
    %c0_i32_0 = arith.constant 0 : i32
    %c0_i32_1 = arith.constant 0 : i32
    return %c0_i32, %c0_i32_0 : i32, i32
  }
  func.func @transform_21(%arg0: i32) -> (i32, i32) {
    %c0_i32 = arith.constant 0 : i32
    %c0_i32_0 = arith.constant 0 : i32
    %c0_i32_1 = arith.constant 0 : i32
    return %c0_i32, %c0_i32_0 : i32, i32
  }
  func.func @transform_22(%arg0: i32) -> (i32, i32) {
    %c0_i32 = arith.constant 0 : i32
    %c0_i32_0 = arith.constant 0 : i32
    %c0_i32_1 = arith.constant 0 : i32
    return %c0_i32, %c0_i32_0 : i32, i32
  }
  func.func @transform_23(%arg0: i32) -> (i32, i32) {
    %c0_i32 = arith.constant 0 : i32
    %c0_i32_0 = arith.constant 0 : i32
    %c0_i32_1 = arith.constant 0 : i32
    return %c0_i32, %c0_i32_0 : i32, i32
  }
  func.func @transform_24(%arg0: i32) -> (i32, i32) {
    %c0_i32 = arith.constant 0 : i32
    %c0_i32_0 = arith.constant 0 : i32
    %c0_i32_1 = arith.constant 0 : i32
    return %c0_i32, %c0_i32_0 : i32, i32
  }
  func.func @transform_25(%arg0: i32) -> (i32, i32, i32) {
    %c0_i32 = arith.constant 0 : i32
    %c0_i32_0 = arith.constant 0 : i32
    %c0_i32_1 = arith.constant 0 : i32
    return %arg0, %c0_i32, %c0_i32_0 : i32, i32, i32
  }
}

</mosaic_0001>

<llo_original>
// kernel: prodiff_teacher_forward.2
$region0: #{prodiff_teacher_forward.2}
  #allocation0 [shape = 'u32[]', space=smem, size = 0x4, offset = 0x4, fixed_abs, tag = 'smem constant byte address 0x4 - core index']
  #allocation1 [shape = 'u32[144,128]{1,0:T(1,128)}', space=vmem, size = 0x12000, scoped, tag = 'internal scratch']
  %s0 = inlined_call_operand.vmem [shape: f32[2,8,32], index: 0, kind: input, shape index: {}]
  %s1 = inlined_call_operand.vmem [shape: f32[2,8,1], index: 1, kind: input, shape index: {}]
  %s2 = inlined_call_operand.vmem [shape: f32[2,1,8], index: 2, kind: input, shape index: {}]
  %s3 = inlined_call_operand.vmem [shape: f32[2,1,32], index: 3, kind: input, shape index: {}]
  %s4 = inlined_call_operand.vmem [shape: f32[2,1,32], index: 4, kind: input, shape index: {}]
  %s5 = inlined_call_operand.vmem [shape: f32[2,32,96], index: 5, kind: input, shape index: {}]
  %s6 = inlined_call_operand.vmem [shape: f32[2,1,96], index: 6, kind: input, shape index: {}]
  %s7 = inlined_call_operand.vmem [shape: f32[2,32,32], index: 7, kind: input, shape index: {}]
  %s8 = inlined_call_operand.vmem [shape: f32[2,1,32], index: 8, kind: input, shape index: {}]
  %s9 = inlined_call_operand.vmem [shape: f32[2,1,32], index: 9, kind: input, shape index: {}]
  %s10 = inlined_call_operand.vmem [shape: f32[2,1,32], index: 10, kind: input, shape index: {}]
  %s11 = inlined_call_operand.vmem [shape: f32[2,3,32,128], index: 11, kind: input, shape index: {}]
  %s12 = inlined_call_operand.vmem [shape: f32[2,1,128], index: 12, kind: input, shape index: {}]
  %s13 = inlined_call_operand.vmem [shape: f32[2,128,32], index: 13, kind: input, shape index: {}]
  %s14 = inlined_call_operand.vmem [shape: f32[2,1,32], index: 14, kind: input, shape index: {}]
  %s15 = inlined_call_operand.vmem [shape: f32[1,32], index: 15, kind: input, shape index: {}]
  %s16 = inlined_call_operand.vmem [shape: f32[1,32], index: 16, kind: input, shape index: {}]
  %s17 = inlined_call_operand.vmem [shape: f32[2,8,32], index: 17, kind: output, shape index: {}]
  %s18 = sld [smem:[#allocation0]]
  $region101: #{prodiff_teacher_forward.2} parent=0
    _
  %s20 = ssub.s32 1, %s18
  %s21 = scalar_select 0, %s20, %s18
  loop: start=0, step=1, limit=4
  $region2: #{prodiff_teacher_forward.2} parent=0 // loop_pre_header
    _
  $region3: #{prodiff_teacher_forward.2} parent=0 // loop_header
    %s23 = sphi 0, %s27
    %p24 = scmp.ge.s32.totalorder %s23, 4
    %s33 = sphi 0, %s35
    %s36 = sphi 0, %s33
    %s37 = sphi 0, %s36
    %s53 = sphi 0, %s37
    %s59 = sphi 0, %s61
    %s62 = sphi 0, %s59
    %s63 = sphi 0, %s62
    %s79 = sphi 0, %s63
    %s85 = sphi 0, %s87
    %s88 = sphi 0, %s85
    %s89 = sphi 0, %s88
    %s105 = sphi 0, %s89
    %s109 = sphi 0, %s109
    %s111 = sphi 0, %s109
    %s112 = sphi 0, %s111
    %s126 = sphi 0, %s112
    %s130 = sphi 0, %s130
    %s132 = sphi 0, %s130
    %s133 = sphi 0, %s132
    %s147 = sphi 0, %s133
    %s151 = sphi 0, %s151
    %s153 = sphi 0, %s151
    %s154 = sphi 0, %s153
    %s168 = sphi 0, %s154
    %s172 = sphi 0, %s172
    %s174 = sphi 0, %s172
    %s175 = sphi 0, %s174
    %s189 = sphi 0, %s175
    %s193 = sphi 0, %s193
    %s195 = sphi 0, %s193
    %s196 = sphi 0, %s195
    %s210 = sphi 0, %s196
    %s214 = sphi 0, %s214
    %s216 = sphi 0, %s214
    %s217 = sphi 0, %s216
    %s231 = sphi 0, %s217
    %s235 = sphi 0, %s235
    %s237 = sphi 0, %s235
    %s238 = sphi 0, %s237
    %s252 = sphi 0, %s238
    %s256 = sphi 0, %s256
    %s258 = sphi 0, %s256
    %s259 = sphi 0, %s258
    %s273 = sphi 0, %s259
    %s277 = sphi 0, %s277
    %s279 = sphi 0, %s277
    %s280 = sphi 0, %s279
    %s294 = sphi 0, %s280
    %s298 = sphi 0, %s298
    %s300 = sphi 0, %s298
    %s301 = sphi 0, %s300
    %s315 = sphi 0, %s301
    %s319 = sphi 0, %s319
    %s321 = sphi 0, %s319
    %s322 = sphi 0, %s321
    %s336 = sphi 0, %s322
    %s340 = sphi 0, %s340
    %s342 = sphi 0, %s340
    %s343 = sphi 0, %s342
    %s357 = sphi 0, %s343
    %s361 = sphi 0, %s361
    %s363 = sphi 0, %s361
    %s364 = sphi 0, %s363
    %s378 = sphi 0, %s364
    %s382 = sphi 0, %s382
    %s384 = sphi 0, %s382
    %s385 = sphi 0, %s384
    %s399 = sphi 0, %s385
    %s405 = sphi 0, %s407
    %s408 = sphi 0, %s405
    %s409 = sphi 0, %s408
    %s425 = sphi 0, %s409
  $region4: #{prodiff_teacher_forward.2} parent=0 // loop_header_branch
    %26 = sbr.rel (%p24) target = $region8
  $region5: #{prodiff_teacher_forward.2} parent=0 // loop_body
    %s28 = ssub.s32 %s23, 1
    %s29 = ssub.s32 %s23, 2
    %s30 = sadd.s32 %s23, 1
    %s31 = ssub.s32 %s23, %s30
    %p32 = scmp.eq.s32.totalorder %s31, 0
    %s34 = sadd.s32 %s33, 1
    %s35 = scalar_select %p32, %s33, %s34
    %p38 = pneg %p32
    %p39 = scmp.eq.s32.totalorder %s23, 1
    %p40 = por %p38, %p39
    %p41 = scmp.ne.s32.totalorder %s33, %s36
    %p42 = scmp.eq.s32.totalorder %s23, 0
    %p43 = por %p41, %p42
    %p44 = scmp.ne.s32.totalorder %s33, %s36
    %p45 = scmp.eq.s32.totalorder %s28, 1
    %p46 = por %p44, %p45
    %p47 = scmp.ne.s32.totalorder %s36, %s37
    %p48 = scmp.eq.s32.totalorder %s28, 0
    %p49 = por %p47, %p48
    %p50 = scmp.ne.s32.totalorder %s36, %s37
    %p51 = scmp.eq.s32.totalorder %s29, 1
    %p52 = por %p50, %p51
    %p54 = scmp.ne.s32.totalorder %s37, %s53
    %p55 = scmp.eq.s32.totalorder %s29, 0
    %p56 = por %p54, %p55
    %s57 = ssub.s32 %s23, %s30
    %p58 = scmp.eq.s32.totalorder %s57, 0
    %s60 = sadd.s32 %s59, 1
    %s61 = scalar_select %p58, %s59, %s60
    %p64 = pneg %p58
    %p65 = scmp.eq.s32.totalorder %s23, 1
    %p66 = por %p64, %p65
    %p67 = scmp.ne.s32.totalorder %s59, %s62
    %p68 = scmp.eq.s32.totalorder %s23, 0
    %p69 = por %p67, %p68
    %p70 = scmp.ne.s32.totalorder %s59, %s62
    %p71 = scmp.eq.s32.totalorder %s28, 1
    %p72 = por %p70, %p71
    %p73 = scmp.ne.s32.totalorder %s62, %s63
    %p74 = scmp.eq.s32.totalorder %s28, 0
    %p75 = por %p73, %p74
    %p76 = scmp.ne.s32.totalorder %s62, %s63
    %p77 = scmp.eq.s32.totalorder %s29, 1
    %p78 = por %p76, %p77
    %p80 = scmp.ne.s32.totalorder %s63, %s79
    %p81 = scmp.eq.s32.totalorder %s29, 0
    %p82 = por %p80, %p81
    %s83 = ssub.s32 %s23, %s30
    %p84 = scmp.eq.s32.totalorder %s83, 0
    %s86 = sadd.s32 %s85, 1
    %s87 = scalar_select %p84, %s85, %s86
    %p90 = pneg %p84
    %p91 = scmp.eq.s32.totalorder %s23, 1
    %p92 = por %p90, %p91
    %p93 = scmp.ne.s32.totalorder %s85, %s88
    %p94 = scmp.eq.s32.totalorder %s23, 0
    %p95 = por %p93, %p94
    %p96 = scmp.ne.s32.totalorder %s85, %s88
    %p97 = scmp.eq.s32.totalorder %s28, 1
    %p98 = por %p96, %p97
    %p99 = scmp.ne.s32.totalorder %s88, %s89
    %p100 = scmp.eq.s32.totalorder %s28, 0
    %p101 = por %p99, %p100
    %p102 = scmp.ne.s32.totalorder %s88, %s89
    %p103 = scmp.eq.s32.totalorder %s29, 1
    %p104 = por %p102, %p103
    %p106 = scmp.ne.s32.totalorder %s89, %s105
    %p107 = scmp.eq.s32.totalorder %s29, 0
    %p108 = por %p106, %p107
    %s110 = sadd.s32 %s109, 1
    %p113 = scmp.eq.s32.totalorder %s23, 1
    %p114 = scmp.ne.s32.totalorder %s109, %s111
    %p115 = scmp.eq.s32.totalorder %s23, 0
    %p116 = por %p114, %p115
    %p117 = scmp.ne.s32.totalorder %s109, %s111
    %p118 = scmp.eq.s32.totalorder %s28, 1
    %p119 = por %p117, %p118
    %p120 = scmp.ne.s32.totalorder %s111, %s112
    %p121 = scmp.eq.s32.totalorder %s28, 0
    %p122 = por %p120, %p121
    %p123 = scmp.ne.s32.totalorder %s111, %s112
    %p124 = scmp.eq.s32.totalorder %s29, 1
    %p125 = por %p123, %p124
    %p127 = scmp.ne.s32.totalorder %s112, %s126
    %p128 = scmp.eq.s32.totalorder %s29, 0
    %p129 = por %p127, %p128
    %s131 = sadd.s32 %s130, 1
    %p134 = scmp.eq.s32.totalorder %s23, 1
    %p135 = scmp.ne.s32.totalorder %s130, %s132
    %p136 = scmp.eq.s32.totalorder %s23, 0
    %p137 = por %p135, %p136
    %p138 = scmp.ne.s32.totalorder %s130, %s132
    %p139 = scmp.eq.s32.totalorder %s28, 1
    %p140 = por %p138, %p139
    %p141 = scmp.ne.s32.totalorder %s132, %s133
    %p142 = scmp.eq.s32.totalorder %s28, 0
    %p143 = por %p141, %p142
    %p144 = scmp.ne.s32.totalorder %s132, %s133
    %p145 = scmp.eq.s32.totalorder %s29, 1
    %p146 = por %p144, %p145
    %p148 = scmp.ne.s32.totalorder %s133, %s147
    %p149 = scmp.eq.s32.totalorder %s29, 0
    %p150 = por %p148, %p149
    %s152 = sadd.s32 %s151, 1
    %p155 = scmp.eq.s32.totalorder %s23, 1
    %p156 = scmp.ne.s32.totalorder %s151, %s153
    %p157 = scmp.eq.s32.totalorder %s23, 0
    %p158 = por %p156, %p157
    %p159 = scmp.ne.s32.totalorder %s151, %s153
    %p160 = scmp.eq.s32.totalorder %s28, 1
    %p161 = por %p159, %p160
    %p162 = scmp.ne.s32.totalorder %s153, %s154
    %p163 = scmp.eq.s32.totalorder %s28, 0
    %p164 = por %p162, %p163
    %p165 = scmp.ne.s32.totalorder %s153, %s154
    %p166 = scmp.eq.s32.totalorder %s29, 1
    %p167 = por %p165, %p166
    %p169 = scmp.ne.s32.totalorder %s154, %s168
    %p170 = scmp.eq.s32.totalorder %s29, 0
    %p171 = por %p169, %p170
    %s173 = sadd.s32 %s172, 1
    %p176 = scmp.eq.s32.totalorder %s23, 1
    %p177 = scmp.ne.s32.totalorder %s172, %s174
    %p178 = scmp.eq.s32.totalorder %s23, 0
    %p179 = por %p177, %p178
    %p180 = scmp.ne.s32.totalorder %s172, %s174
    %p181 = scmp.eq.s32.totalorder %s28, 1
    %p182 = por %p180, %p181
    %p183 = scmp.ne.s32.totalorder %s174, %s175
    %p184 = scmp.eq.s32.totalorder %s28, 0
    %p185 = por %p183, %p184
    %p186 = scmp.ne.s32.totalorder %s174, %s175
    %p187 = scmp.eq.s32.totalorder %s29, 1
    %p188 = por %p186, %p187
    %p190 = scmp.ne.s32.totalorder %s175, %s189
    %p191 = scmp.eq.s32.totalorder %s29, 0
    %p192 = por %p190, %p191
    %s194 = sadd.s32 %s193, 1
    %p197 = scmp.eq.s32.totalorder %s23, 1
    %p198 = scmp.ne.s32.totalorder %s193, %s195
    %p199 = scmp.eq.s32.totalorder %s23, 0
    %p200 = por %p198, %p199
    %p201 = scmp.ne.s32.totalorder %s193, %s195
    %p202 = scmp.eq.s32.totalorder %s28, 1
    %p203 = por %p201, %p202
    %p204 = scmp.ne.s32.totalorder %s195, %s196
    %p205 = scmp.eq.s32.totalorder %s28, 0
    %p206 = por %p204, %p205
    %p207 = scmp.ne.s32.totalorder %s195, %s196
    %p208 = scmp.eq.s32.totalorder %s29, 1
    %p209 = por %p207, %p208
    %p211 = scmp.ne.s32.totalorder %s196, %s210
    %p212 = scmp.eq.s32.totalorder %s29, 0
    %p213 = por %p211, %p212
    %s215 = sadd.s32 %s214, 1
    %p218 = scmp.eq.s32.totalorder %s23, 1
    %p219 = scmp.ne.s32.totalorder %s214, %s216
    %p220 = scmp.eq.s32.totalorder %s23, 0
    %p221 = por %p219, %p220
    %p222 = scmp.ne.s32.totalorder %s214, %s216
    %p223 = scmp.eq.s32.totalorder %s28, 1
    %p224 = por %p222, %p223
    %p225 = scmp.ne.s32.totalorder %s216, %s217
    %p226 = scmp.eq.s32.totalorder %s28, 0
    %p227 = por %p225, %p226
    %p228 = scmp.ne.s32.totalorder %s216, %s217
    %p229 = scmp.eq.s32.totalorder %s29, 1
    %p230 = por %p228, %p229
    %p232 = scmp.ne.s32.totalorder %s217, %s231
    %p233 = scmp.eq.s32.totalorder %s29, 0
    %p234 = por %p232, %p233
    %s236 = sadd.s32 %s235, 1
    %p239 = scmp.eq.s32.totalorder %s23, 1
    %p240 = scmp.ne.s32.totalorder %s235, %s237
    %p241 = scmp.eq.s32.totalorder %s23, 0
    %p242 = por %p240, %p241
    %p243 = scmp.ne.s32.totalorder %s235, %s237
    %p244 = scmp.eq.s32.totalorder %s28, 1
    %p245 = por %p243, %p244
    %p246 = scmp.ne.s32.totalorder %s237, %s238
    %p247 = scmp.eq.s32.totalorder %s28, 0
    %p248 = por %p246, %p247
    %p249 = scmp.ne.s32.totalorder %s237, %s238
    %p250 = scmp.eq.s32.totalorder %s29, 1
    %p251 = por %p249, %p250
    %p253 = scmp.ne.s32.totalorder %s238, %s252
    %p254 = scmp.eq.s32.totalorder %s29, 0
    %p255 = por %p253, %p254
    %s257 = sadd.s32 %s256, 1
    %p260 = scmp.eq.s32.totalorder %s23, 1
    %p261 = scmp.ne.s32.totalorder %s256, %s258
    %p262 = scmp.eq.s32.totalorder %s23, 0
    %p263 = por %p261, %p262
    %p264 = scmp.ne.s32.totalorder %s256, %s258
    %p265 = scmp.eq.s32.totalorder %s28, 1
    %p266 = por %p264, %p265
    %p267 = scmp.ne.s32.totalorder %s258, %s259
    %p268 = scmp.eq.s32.totalorder %s28, 0
    %p269 = por %p267, %p268
    %p270 = scmp.ne.s32.totalorder %s258, %s259
    %p271 = scmp.eq.s32.totalorder %s29, 1
    %p272 = por %p270, %p271
    %p274 = scmp.ne.s32.totalorder %s259, %s273
    %p275 = scmp.eq.s32.totalorder %s29, 0
    %p276 = por %p274, %p275
    %s278 = sadd.s32 %s277, 1
    %p281 = scmp.eq.s32.totalorder %s23, 1
    %p282 = scmp.ne.s32.totalorder %s277, %s279
    %p283 = scmp.eq.s32.totalorder %s23, 0
    %p284 = por %p282, %p283
    %p285 = scmp.ne.s32.totalorder %s277, %s279
    %p286 = scmp.eq.s32.totalorder %s28, 1
    %p287 = por %p285, %p286
    %p288 = scmp.ne.s32.totalorder %s279, %s280
    %p289 = scmp.eq.s32.totalorder %s28, 0
    %p290 = por %p288, %p289
    %p291 = scmp.ne.s32.totalorder %s279, %s280
    %p292 = scmp.eq.s32.totalorder %s29, 1
    %p293 = por %p291, %p292
    %p295 = scmp.ne.s32.totalorder %s280, %s294
    %p296 = scmp.eq.s32.totalorder %s29, 0
    %p297 = por %p295, %p296
    %s299 = sadd.s32 %s298, 1
    %p302 = scmp.eq.s32.totalorder %s23, 1
    %p303 = scmp.ne.s32.totalorder %s298, %s300
    %p304 = scmp.eq.s32.totalorder %s23, 0
    %p305 = por %p303, %p304
    %p306 = scmp.ne.s32.totalorder %s298, %s300
    %p307 = scmp.eq.s32.totalorder %s28, 1
    %p308 = por %p306, %p307
    %p309 = scmp.ne.s32.totalorder %s300, %s301
    %p310 = scmp.eq.s32.totalorder %s28, 0
    %p311 = por %p309, %p310
    %p312 = scmp.ne.s32.totalorder %s300, %s301
    %p313 = scmp.eq.s32.totalorder %s29, 1
    %p314 = por %p312, %p313
    %p316 = scmp.ne.s32.totalorder %s301, %s315
    %p317 = scmp.eq.s32.totalorder %s29, 0
    %p318 = por %p316, %p317
    %s320 = sadd.s32 %s319, 1
    %p323 = scmp.eq.s32.totalorder %s23, 1
    %p324 = scmp.ne.s32.totalorder %s319, %s321
    %p325 = scmp.eq.s32.totalorder %s23, 0
    %p326 = por %p324, %p325
    %p327 = scmp.ne.s32.totalorder %s319, %s321
    %p328 = scmp.eq.s32.totalorder %s28, 1
    %p329 = por %p327, %p328
    %p330 = scmp.ne.s32.totalorder %s321, %s322
    %p331 = scmp.eq.s32.totalorder %s28, 0
    %p332 = por %p330, %p331
    %p333 = scmp.ne.s32.totalorder %s321, %s322
    %p334 = scmp.eq.s32.totalorder %s29, 1
    %p335 = por %p333, %p334
    %p337 = scmp.ne.s32.totalorder %s322, %s336
    %p338 = scmp.eq.s32.totalorder %s29, 0
    %p339 = por %p337, %p338
    %s341 = sadd.s32 %s340, 1
    %p344 = scmp.eq.s32.totalorder %s23, 1
    %p345 = scmp.ne.s32.totalorder %s340, %s342
    %p346 = scmp.eq.s32.totalorder %s23, 0
    %p347 = por %p345, %p346
    %p348 = scmp.ne.s32.totalorder %s340, %s342
    %p349 = scmp.eq.s32.totalorder %s28, 1
    %p350 = por %p348, %p349
    %p351 = scmp.ne.s32.totalorder %s342, %s343
    %p352 = scmp.eq.s32.totalorder %s28, 0
    %p353 = por %p351, %p352
    %p354 = scmp.ne.s32.totalorder %s342, %s343
    %p355 = scmp.eq.s32.totalorder %s29, 1
    %p356 = por %p354, %p355
    %p358 = scmp.ne.s32.totalorder %s343, %s357
    %p359 = scmp.eq.s32.totalorder %s29, 0
    %p360 = por %p358, %p359
    %s362 = sadd.s32 %s361, 1
    %p365 = scmp.eq.s32.totalorder %s23, 1
    %p366 = scmp.ne.s32.totalorder %s361, %s363
    %p367 = scmp.eq.s32.totalorder %s23, 0
    %p368 = por %p366, %p367
    %p369 = scmp.ne.s32.totalorder %s361, %s363
    %p370 = scmp.eq.s32.totalorder %s28, 1
    %p371 = por %p369, %p370
    %p372 = scmp.ne.s32.totalorder %s363, %s364
    %p373 = scmp.eq.s32.totalorder %s28, 0
    %p374 = por %p372, %p373
    %p375 = scmp.ne.s32.totalorder %s363, %s364
    %p376 = scmp.eq.s32.totalorder %s29, 1
    %p377 = por %p375, %p376
    %p379 = scmp.ne.s32.totalorder %s364, %s378
    %p380 = scmp.eq.s32.totalorder %s29, 0
    %p381 = por %p379, %p380
    %s383 = sadd.s32 %s382, 1
    %p386 = scmp.eq.s32.totalorder %s23, 1
    %p387 = scmp.ne.s32.totalorder %s382, %s384
    %p388 = scmp.eq.s32.totalorder %s23, 0
    %p389 = por %p387, %p388
    %p390 = scmp.ne.s32.totalorder %s382, %s384
    %p391 = scmp.eq.s32.totalorder %s28, 1
    %p392 = por %p390, %p391
    %p393 = scmp.ne.s32.totalorder %s384, %s385
    %p394 = scmp.eq.s32.totalorder %s28, 0
    %p395 = por %p393, %p394
    %p396 = scmp.ne.s32.totalorder %s384, %s385
    %p397 = scmp.eq.s32.totalorder %s29, 1
    %p398 = por %p396, %p397
    %p400 = scmp.ne.s32.totalorder %s385, %s399
    %p401 = scmp.eq.s32.totalorder %s29, 0
    %p402 = por %p400, %p401
    %s403 = ssub.s32 %s23, %s30
    %p404 = scmp.eq.s32.totalorder %s403, 0
    %s406 = sadd.s32 %s405, 1
    %s407 = scalar_select %p404, %s405, %s406
    %p410 = pneg %p404
    %p411 = scmp.eq.s32.totalorder %s23, 1
    %p412 = por %p410, %p411
    %p413 = scmp.ne.s32.totalorder %s405, %s408
    %p414 = scmp.eq.s32.totalorder %s23, 0
    %p415 = por %p413, %p414
    %p416 = scmp.ne.s32.totalorder %s405, %s408
    %p417 = scmp.eq.s32.totalorder %s28, 1
    %p418 = por %p416, %p417
    %p419 = scmp.ne.s32.totalorder %s408, %s409
    %p420 = scmp.eq.s32.totalorder %s28, 0
    %p421 = por %p419, %p420
    %p422 = scmp.ne.s32.totalorder %s408, %s409
    %p423 = scmp.eq.s32.totalorder %s29, 1
    %p424 = por %p422, %p423
    %p426 = scmp.ne.s32.totalorder %s409, %s425
    %p427 = scmp.eq.s32.totalorder %s29, 0
    %p428 = por %p426, %p427
    %p429 = scmp.le.s32.totalorder 1, %s23
    %p430 = scmp.lt.s32.totalorder %s23, 3
    %p431 = pnand %p429, %p430
    %p432 = pneg %p431
    // Predicated region
    $region9: #{prodiff_teacher_forward.2} parent=5 // pred_check
      _
    $region10: #{prodiff_teacher_forward.2} parent=5 // pred_check_branch
      %434 = sbr.rel (%p431) target = $region12
    $region11: #{prodiff_teacher_forward.2} parent=5 // pred_region
      %s435 = ssub.s32 %s23, 1
      // Predicated region
      $region13: #{prodiff_teacher_forward.2} parent=11 // pred_check
        %p436 = pneg %p122
      $region14: #{prodiff_teacher_forward.2} parent=11 // pred_check_branch
        %438 = sbr.rel (%p436) target = $region16
      $region15: #{prodiff_teacher_forward.2} parent=11 // pred_region
        _
      $region16: #{prodiff_teacher_forward.2} parent=11 // pred_fallthru
        _
      // Predicated region
      $region17: #{prodiff_teacher_forward.2} parent=11 // pred_check
        %p439 = pneg %p143
      $region18: #{prodiff_teacher_forward.2} parent=11 // pred_check_branch
        %441 = sbr.rel (%p439) target = $region20
      $region19: #{prodiff_teacher_forward.2} parent=11 // pred_region
        _
      $region20: #{prodiff_teacher_forward.2} parent=11 // pred_fallthru
        _
      // Predicated region
      $region21: #{prodiff_teacher_forward.2} parent=11 // pred_check
        %p442 = pneg %p164
      $region22: #{prodiff_teacher_forward.2} parent=11 // pred_check_branch
        %444 = sbr.rel (%p442) target = $region24
      $region23: #{prodiff_teacher_forward.2} parent=11 // pred_region
        _
      $region24: #{prodiff_teacher_forward.2} parent=11 // pred_fallthru
        _
      // Predicated region
      $region25: #{prodiff_teacher_forward.2} parent=11 // pred_check
        %p445 = pneg %p185
      $region26: #{prodiff_teacher_forward.2} parent=11 // pred_check_branch
        %447 = sbr.rel (%p445) target = $region28
      $region27: #{prodiff_teacher_forward.2} parent=11 // pred_region
        _
      $region28: #{prodiff_teacher_forward.2} parent=11 // pred_fallthru
        _
      // Predicated region
      $region29: #{prodiff_teacher_forward.2} parent=11 // pred_check
        %p448 = pneg %p206
      $region30: #{prodiff_teacher_forward.2} parent=11 // pred_check_branch
        %450 = sbr.rel (%p448) target = $region32
      $region31: #{prodiff_teacher_forward.2} parent=11 // pred_region
        _
      $region32: #{prodiff_teacher_forward.2} parent=11 // pred_fallthru
        _
      // Predicated region
      $region33: #{prodiff_teacher_forward.2} parent=11 // pred_check
        %p451 = pneg %p227
      $region34: #{prodiff_teacher_forward.2} parent=11 // pred_check_branch
        %453 = sbr.rel (%p451) target = $region36
      $region35: #{prodiff_teacher_forward.2} parent=11 // pred_region
        _
      $region36: #{prodiff_teacher_forward.2} parent=11 // pred_fallthru
        _
      // Predicated region
      $region37: #{prodiff_teacher_forward.2} parent=11 // pred_check
        %p454 = pneg %p248
      $region38: #{prodiff_teacher_forward.2} parent=11 // pred_check_branch
        %456 = sbr.rel (%p454) target = $region40
      $region39: #{prodiff_teacher_forward.2} parent=11 // pred_region
        _
      $region40: #{prodiff_teacher_forward.2} parent=11 // pred_fallthru
        _
      // Predicated region
      $region41: #{prodiff_teacher_forward.2} parent=11 // pred_check
        %p457 = pneg %p269
      $region42: #{prodiff_teacher_forward.2} parent=11 // pred_check_branch
        %459 = sbr.rel (%p457) target = $region44
      $region43: #{prodiff_teacher_forward.2} parent=11 // pred_region
        _
      $region44: #{prodiff_teacher_forward.2} parent=11 // pred_fallthru
        _
      // Predicated region
      $region45: #{prodiff_teacher_forward.2} parent=11 // pred_check
        %p460 = pneg %p290
      $region46: #{prodiff_teacher_forward.2} parent=11 // pred_check_branch
        %462 = sbr.rel (%p460) target = $region48
      $region47: #{prodiff_teacher_forward.2} parent=11 // pred_region
        _
      $region48: #{prodiff_teacher_forward.2} parent=11 // pred_fallthru
        _
      // Predicated region
      $region49: #{prodiff_teacher_forward.2} parent=11 // pred_check
        %p463 = pneg %p311
      $region50: #{prodiff_teacher_forward.2} parent=11 // pred_check_branch
        %465 = sbr.rel (%p463) target = $region52
      $region51: #{prodiff_teacher_forward.2} parent=11 // pred_region
        _
      $region52: #{prodiff_teacher_forward.2} parent=11 // pred_fallthru
        _
      // Predicated region
      $region53: #{prodiff_teacher_forward.2} parent=11 // pred_check
        %p466 = pneg %p332
      $region54: #{prodiff_teacher_forward.2} parent=11 // pred_check_branch
        %468 = sbr.rel (%p466) target = $region56
      $region55: #{prodiff_teacher_forward.2} parent=11 // pred_region
        _
      $region56: #{prodiff_teacher_forward.2} parent=11 // pred_fallthru
        _
      // Predicated region
      $region57: #{prodiff_teacher_forward.2} parent=11 // pred_check
        %p469 = pneg %p353
      $region58: #{prodiff_teacher_forward.2} parent=11 // pred_check_branch
        %471 = sbr.rel (%p469) target = $region60
      $region59: #{prodiff_teacher_forward.2} parent=11 // pred_region
        _
      $region60: #{prodiff_teacher_forward.2} parent=11 // pred_fallthru
        _
      // Predicated region
      $region61: #{prodiff_teacher_forward.2} parent=11 // pred_check
        %p472 = pneg %p374
      $region62: #{prodiff_teacher_forward.2} parent=11 // pred_check_branch
        %474 = sbr.rel (%p472) target = $region64
      $region63: #{prodiff_teacher_forward.2} parent=11 // pred_region
        _
      $region64: #{prodiff_teacher_forward.2} parent=11 // pred_fallthru
        _
      // Predicated region
      $region65: #{prodiff_teacher_forward.2} parent=11 // pred_check
        %p475 = pneg %p395
      $region66: #{prodiff_teacher_forward.2} parent=11 // pred_check_branch
        %477 = sbr.rel (%p475) target = $region68
      $region67: #{prodiff_teacher_forward.2} parent=11 // pred_region
        _
      $region68: #{prodiff_teacher_forward.2} parent=11 // pred_fallthru
        _
    $region12: #{prodiff_teacher_forward.2} parent=5 // pred_fallthru
      _
    %p478 = scmp.lt.s32.totalorder %s23, 2
    // Predicated region
    $region69: #{prodiff_teacher_forward.2} parent=5 // pred_check
      %p479 = pneg %p478
    $region70: #{prodiff_teacher_forward.2} parent=5 // pred_check_branch
      %481 = sbr.rel (%p479) target = $region72
    $region71: #{prodiff_teacher_forward.2} parent=5 // pred_region
      // Predicated region
      $region73: #{prodiff_teacher_forward.2} parent=71 // pred_check
        %p482 = pneg %p43
      $region74: #{prodiff_teacher_forward.2} parent=71 // pred_check_branch
        %484 = sbr.rel (%p482) target = $region76
      $region75: #{prodiff_teacher_forward.2} parent=71 // pred_region
        %p485 = scmp.lt.s32.totalorder %s23, 1
        %s486 = scalar_select %p485, %s23, 1
        %s487 = smul.addr %s486, 8
        %s488 = scalar_lea.vmem %s0, %s487
      $region76: #{prodiff_teacher_forward.2} parent=71 // pred_fallthru
        _
      // Predicated region
      $region77: #{prodiff_teacher_forward.2} parent=71 // pred_check
        %p489 = pneg %p69
      $region78: #{prodiff_teacher_forward.2} parent=71 // pred_check_branch
        %491 = sbr.rel (%p489) target = $region80
      $region79: #{prodiff_teacher_forward.2} parent=71 // pred_region
        %p492 = scmp.lt.s32.totalorder %s23, 1
        %s493 = scalar_select %p492, %s23, 1
        %s494 = smul.addr %s493, 8
        %s495 = scalar_lea.vmem %s1, %s494
      $region80: #{prodiff_teacher_forward.2} parent=71 // pred_fallthru
        _
      // Predicated region
      $region81: #{prodiff_teacher_forward.2} parent=71 // pred_check
        %p496 = pneg %p95
      $region82: #{prodiff_teacher_forward.2} parent=71 // pred_check_branch
        %498 = sbr.rel (%p496) target = $region84
      $region83: #{prodiff_teacher_forward.2} parent=71 // pred_region
        %p499 = scmp.lt.s32.totalorder %s23, 1
        %s500 = scalar_select %p499, %s23, 1
        %s501 = scalar_lea.vmem %s2, %s500
      $region84: #{prodiff_teacher_forward.2} parent=71 // pred_fallthru
        _
    $region72: #{prodiff_teacher_forward.2} parent=5 // pred_fallthru
      _
    %p502 = scmp.le.s32.totalorder 1, %s23
    %p503 = scmp.lt.s32.totalorder %s23, 3
    %p504 = pnand %p502, %p503
    %p505 = pneg %p504
    // Predicated region
    $region85: #{prodiff_teacher_forward.2} parent=5 // pred_check
      _
    $region86: #{prodiff_teacher_forward.2} parent=5 // pred_check_branch
      %507 = sbr.rel (%p504) target = $region88
    $region87: #{prodiff_teacher_forward.2} parent=5 // pred_region
      %s508 = ssub.s32 %s23, 1
      %p509 = scmp.lt.s32.totalorder %s28, 1
      %s510 = scalar_select %p509, %s28, 1
      %s511 = smul.addr %s510, 8
      %s512 = scalar_lea.vmem %s0, %s511
      %p513 = pneg %p49
      %p514 = pneg %p46
      %p515 = scmp.lt.s32.totalorder %s28, 1
      %s516 = scalar_select %p515, %s28, 1
      %s517 = smul.addr %s516, 8
      %s518 = scalar_lea.vmem %s1, %s517
      %p519 = pneg %p75
      %p520 = pneg %p72
      %p521 = scmp.lt.s32.totalorder %s28, 1
      %s522 = scalar_select %p521, %s28, 1
      %s523 = scalar_lea.vmem %s2, %s522
      %p524 = pneg %p101
      %p525 = pneg %p98
      %p526 = pneg %p122
      %p527 = pneg %p119
      %p528 = pneg %p143
      %p529 = pneg %p140
      %p530 = pneg %p164
      %p531 = pneg %p161
      %p532 = pneg %p185
      %p533 = pneg %p182
      %p534 = pneg %p206
      %p535 = pneg %p203
      %p536 = pneg %p227
      %p537 = pneg %p224
      %p538 = pneg %p248
      %p539 = pneg %p245
      %p540 = pneg %p269
      %p541 = pneg %p266
      %p542 = pneg %p290
      %p543 = pneg %p287
      %p544 = pneg %p311
      %p545 = pneg %p308
      %p546 = pneg %p332
      %p547 = pneg %p329
      %p548 = pneg %p353
      %p549 = pneg %p350
      %p550 = pneg %p374
      %p551 = pneg %p371
      %p552 = pneg %p395
      %p553 = pneg %p392
      %p554 = pneg %p421
      %p555 = pneg %p418
      %p556 = scmp.lt.s32.totalorder %s28, 1
      %s557 = scalar_select %p556, %s28, 1
      %s558 = smul.addr %s557, 8
      %s559 = scalar_lea.vmem %s17, %s558
      %p560 = scmp.lt.s32.totalorder %s28, 1
      %s561 = scalar_select %p560, %s28, 1
      %s562 = smul.addr %s561, 8
      %s563 = scalar_lea.vmem %s0, %s562
      %p564 = scmp.lt.s32.totalorder %s28, 1
      %s565 = scalar_select %p564, %s28, 1
      %s566 = smul.addr %s565, 8
      %s567 = scalar_lea.vmem %s1, %s566
      %p568 = scmp.lt.s32.totalorder %s28, 1
      %s569 = scalar_select %p568, %s28, 1
      %s570 = scalar_lea.vmem %s2, %s569
      %p571 = scmp.lt.s32.totalorder %s28, 1
      %s572 = scalar_select %p571, %s28, 1
      %s573 = smul.addr %s572, 8
      %s574 = scalar_lea.vmem %s17, %s573
      %v576 = vld [vmem:[%s567] sm:$0xff]
      %v577 = vld [vmem:[%s570] sm:$0x1]
      %v578 = vld [vmem:[%s563] sm:$0xff]
      %580 = vset.pattern.permute.xlu0 0
      %581 = vperm.xlu0 %580, %v576
      %v582 = vpop.permute.xlu0 %581
      %v584 = vmul.f32 %v578, %v582
      %v585 = vlaneseq
      %v586 = vshrl.u32 %v585, 7
      %v587 = vlaneseq
      %v588 = vand.u32 %v587, 127
      %v589 = vadd.s32 %v586, 4294967295
      %vm590 = vcmp.eq.s32.totalorder %v588, %v589
      %v591 = vsel %vm590, 1, 0
      %v592 = vcvt.s32.f32 %v591
      %v593 = vadd.s32 %v586, 1
      %vm594 = vcmp.eq.s32.totalorder %v588, %v593
      %v595 = vsel %vm594, 1, 0
      %v596 = vcvt.s32.f32 %v595
      %v597 = vld [vmem:[%s3] sm:$0x1]
      %v598 = vld [vmem:[%s4] sm:$0x1]
      %vm599 = vcmask 261120
      %v600 = vsel %vm599, %v584, 0.0
      %601 = vadd.xlane.f32.xlu0 %v600
      %v602 = vpop.xlane.xlu0 %601
      %v603 = vrcp.pop 32.0
      %v604 = vmul.f32 %v602, %v603
      %v605 = vsub.f32 %v584, %v604
      %v606 = vmul.f32 %v605, %v605
      %v607 = vsel %vm599, %v606, 0.0
      %608 = vadd.xlane.f32.xlu0 %v607
      %v609 = vpop.xlane.xlu0 %608
      %v610 = vmul.f32 %v609, %v603
      %v611 = vadd.f32 %v610, 1e-05
      %v612 = vrsqrt.pop %v611
      %v613 = vmul.f32 %v605, %v612
      %v615 = vlaneseq
      %v616 = vshrl.u32 %v615, 7
      %v617 = vsub.s32 0, %v616
      %v618 = vrot.slane %v597, %v617
      %v620 = vmul.f32 %v613, %v618
      %v622 = vlaneseq
      %v623 = vshrl.u32 %v622, 7
      %v624 = vsub.s32 0, %v623
      %v625 = vrot.slane %v598, %v624
      %v627 = vadd.f32 %v620, %v625
      %v628 = vld [vmem:[%s5] sm:$0xff]
      %v629 = vld [vmem:[%s5 + $0x8] sm:$0xff]
      %v630 = vld [vmem:[%s5 + $0x10] sm:$0xff]
      %v631 = vld [vmem:[%s5 + $0x18] sm:$0xff]
      %v632 = vpack.c.bf16 %v627, %v627
      %v633 = vpack.c.bf16 %v629, %v628
      %v634 = vpack.c.bf16 %v631, %v630
      %v635 = vld [vmem:[%s6] sm:$0x1]
      %v637 = vlaneseq
      %v638 = vshrl.u32 %v637, 7
      %v639 = vsub.s32 0, %v638
      %v640 = vrot.slane %v635, %v639
      %v643 = vsel %vm599, %v632, 0
      %645 = vmatprep.subr.bf16.mxu0 0
      %646 = vmatpush1.bf16.msra.mxu0 %v633
      %647 = vmatprep.subr.bf16.mxu0 0
      %648 = vmatpush1.bf16.msra.mxu0 %v634
      %649 = vmatprep.subr.bf16.mxu0 0
      %650 = vmatpush1.bf16.msra.mxu0 0
      %651 = vmatprep.subr.bf16.mxu0 0
      %652 = vmatpush1.bf16.msra.mxu0 0
      %653 = vmatprep.subr.bf16.mxu0 0
      %654 = vmatpush1.bf16.msra.mxu0 0
      %655 = vmatprep.subr.bf16.mxu0 0
      %656 = vmatpush1.bf16.msra.mxu0 0
      %657 = vmatprep.subr.bf16.mxu0 0
      %658 = vmatpush1.bf16.msra.mxu0 0
      %659 = vmatprep.subr.bf16.mxu0 0
      %660 = vmatpush1.bf16.msra.mxu0 0
      %661 = vmatprep.subr.bf16.mxu0 0
      %662 = vmatpush1.bf16.msra.mxu0 0
      %663 = vmatprep.subr.bf16.mxu0 0
      %664 = vmatpush1.bf16.msra.mxu0 0
      %665 = vmatprep.subr.bf16.mxu0 0
      %666 = vmatpush1.bf16.msra.mxu0 0
      %667 = vmatprep.subr.bf16.mxu0 0
      %668 = vmatpush1.bf16.msra.mxu0 0
      %669 = vmatprep.subr.bf16.mxu0 0
      %670 = vmatpush1.bf16.msra.mxu0 0
      %671 = vmatprep.subr.bf16.mxu0 0
      %672 = vmatpush1.bf16.msra.mxu0 0
      %673 = vmatprep.subr.bf16.mxu0 0
      %674 = vmatpush1.bf16.msra.mxu0 0
      %675 = vmatprep.subr.bf16.mxu0 0
      %676 = vmatpush1.bf16.msra.mxu0 0
      %677 = vmatprep.mubr.bf16.mxu0 0
      %678 = vmatmul.mubr.bf16.gmra.mrb[0].mxu0 %v643
      %v679 = vpop.f32.mrb[0].mxu0
      %v680 = vadd.f32 %v640, %v679
      %v681 = vpop.f32.mrb[0].mxu0
      %v682 = vpop.f32.mrb[0].mxu0
      %v683 = vpop.f32.mrb[0].mxu0
      %684 = vdwg.mxu0
      %v685 = vpack.c.bf16 %v680, %v680
      %v687 = vlaneseq
      %v688 = vshrl.u32 %v687, 7
      %v689 = vsub.s32 0, %v688
      %v690 = vrot.slane %v577, %v689
      %693 = vrot.lane.b32.xlu0 %v685, 96
      %v694 = vpop.permute.xlu0 %693
      %vm695 = vcmask 130048
      %v697 = vsel %vm695, %v685, 0
      %v700 = vsel %vm695, %v694, 0
      %702 = vmatprep.subr.bf16.mxu0 0
      %703 = vmatpush1.bf16.xpose.msra.mxu0 %v700
      %704 = vmatprep.subr.bf16.mxu0 0
      %705 = vmatpush1.bf16.xpose.msra.mxu0 0
      %706 = vmatprep.subr.bf16.mxu0 0
      %707 = vmatpush1.bf16.xpose.msra.mxu0 0
      %708 = vmatprep.subr.bf16.mxu0 0
      %709 = vmatpush1.bf16.xpose.msra.mxu0 0
      %710 = vmatprep.subr.bf16.mxu0 0
      %711 = vmatpush1.bf16.xpose.msra.mxu0 0
      %712 = vmatprep.subr.bf16.mxu0 0
      %713 = vmatpush1.bf16.xpose.msra.mxu0 0
      %714 = vmatprep.subr.bf16.mxu0 0
      %715 = vmatpush1.bf16.xpose.msra.mxu0 0
      %716 = vmatprep.subr.bf16.mxu0 0
      %717 = vmatpush1.bf16.xpose.msra.mxu0 0
      %718 = vmatprep.subr.bf16.mxu0 0
      %719 = vmatpush1.bf16.xpose.msra.mxu0 0
      %720 = vmatprep.subr.bf16.mxu0 0
      %721 = vmatpush1.bf16.xpose.msra.mxu0 0
      %722 = vmatprep.subr.bf16.mxu0 0
      %723 = vmatpush1.bf16.xpose.msra.mxu0 0
      %724 = vmatprep.subr.bf16.mxu0 0
      %725 = vmatpush1.bf16.xpose.msra.mxu0 0
      %726 = vmatprep.subr.bf16.mxu0 0
      %727 = vmatpush1.bf16.xpose.msra.mxu0 0
      %728 = vmatprep.subr.bf16.mxu0 0
      %729 = vmatpush1.bf16.xpose.msra.mxu0 0
      %730 = vmatprep.subr.bf16.mxu0 0
      %731 = vmatpush1.bf16.xpose.msra.mxu0 0
      %732 = vmatprep.subr.bf16.mxu0 0
      %733 = vmatpush1.bf16.xpose.msra.mxu0 0
      %734 = vmatprep.mubr.bf16.mxu0 0
      %735 = vmatmul.mubr.bf16.gmra.mrb[0].mxu0 %v697
      %v736 = vpop.f32.mrb[0].mxu0
      %v737 = vadd.f32 %v690, %v736
      %v738 = vpop.f32.mrb[0].mxu0
      %v739 = vpop.f32.mrb[0].mxu0
      %v740 = vpop.f32.mrb[0].mxu0
      %741 = vdwg.mxu0
      %vm742 = vcmask 64512
      %v743 = vsel %vm742, %v737, -inf
      %744 = vmax.xlane.f32.xlu0 %v743
      %v745 = vpop.xlane.xlu0 %744
      %v746 = vsub.f32 %v737, %v745
      %v747 = vmul.f32 %v746, 1.442695
      %v748 = vpow.pop %v747
      %v749 = vsel %vm742, %v748, 0.0
      %750 = vadd.xlane.f32.xlu0 %v749
      %v751 = vpop.xlane.xlu0 %750
      %v752 = vrcp.pop %v751
      %v753 = vmul.f32 %v748, %v752
      %v754 = vpack.c.bf16 %v753, %v753
      %755 = vrot.lane.b32.xlu0 %v685, 64
      %v756 = vpop.permute.xlu0 %755
      %v758 = vsel %vm742, %v754, 0
      %vm760 = vcmask 1043456
      %v762 = vsel %vm760, %v756, 0
      %764 = vmatprep.subr.bf16.mxu0 0
      %765 = vmatpush1.bf16.msra.mxu0 %v762
      %766 = vmatprep.subr.bf16.mxu0 0
      %767 = vmatpush1.bf16.msra.mxu0 0
      %768 = vmatprep.subr.bf16.mxu0 0
      %769 = vmatpush1.bf16.msra.mxu0 0
      %770 = vmatprep.subr.bf16.mxu0 0
      %771 = vmatpush1.bf16.msra.mxu0 0
      %772 = vmatprep.subr.bf16.mxu0 0
      %773 = vmatpush1.bf16.msra.mxu0 0
      %774 = vmatprep.subr.bf16.mxu0 0
      %775 = vmatpush1.bf16.msra.mxu0 0
      %776 = vmatprep.subr.bf16.mxu0 0
      %777 = vmatpush1.bf16.msra.mxu0 0
      %778 = vmatprep.subr.bf16.mxu0 0
      %779 = vmatpush1.bf16.msra.mxu0 0
      %780 = vmatprep.subr.bf16.mxu0 0
      %781 = vmatpush1.bf16.msra.mxu0 0
      %782 = vmatprep.subr.bf16.mxu0 0
      %783 = vmatpush1.bf16.msra.mxu0 0
      %784 = vmatprep.subr.bf16.mxu0 0
      %785 = vmatpush1.bf16.msra.mxu0 0
      %786 = vmatprep.subr.bf16.mxu0 0
      %787 = vmatpush1.bf16.msra.mxu0 0
      %788 = vmatprep.subr.bf16.mxu0 0
      %789 = vmatpush1.bf16.msra.mxu0 0
      %790 = vmatprep.subr.bf16.mxu0 0
      %791 = vmatpush1.bf16.msra.mxu0 0
      %792 = vmatprep.subr.bf16.mxu0 0
      %793 = vmatpush1.bf16.msra.mxu0 0
      %794 = vmatprep.subr.bf16.mxu0 0
      %795 = vmatpush1.bf16.msra.mxu0 0
      %796 = vmatprep.mubr.bf16.mxu0 0
      %797 = vmatmul.mubr.bf16.gmra.mrb[0].mxu0 %v758
      %v798 = vpop.f32.mrb[0].mxu0
      %v799 = vadd.f32 0.0, %v798
      %v800 = vpop.f32.mrb[0].mxu0
      %v801 = vpop.f32.mrb[0].mxu0
      %v802 = vpop.f32.mrb[0].mxu0
      %803 = vdwg.mxu0
      %v804 = vld [vmem:[%s7] sm:$0xff]
      %v805 = vld [vmem:[%s7 + $0x8] sm:$0xff]
      %v806 = vpack.c.bf16 %v799, %v799
      %v807 = vpack.c.bf16 %v805, %v804
      %808 = vrot.lane.b32.xlu0 %v685, 112
      %v809 = vpop.permute.xlu0 %808
      %810 = vrot.lane.b32.xlu0 %v685, 80
      %v811 = vpop.permute.xlu0 %810
      %v813 = vsel %vm695, %v809, 0
      %v816 = vsel %vm695, %v811, 0
      %818 = vmatprep.subr.bf16.mxu0 0
      %819 = vmatpush1.bf16.xpose.msra.mxu0 %v816
      %820 = vmatprep.subr.bf16.mxu0 0
      %821 = vmatpush1.bf16.xpose.msra.mxu0 0
      %822 = vmatprep.subr.bf16.mxu0 0
      %823 = vmatpush1.bf16.xpose.msra.mxu0 0
      %824 = vmatprep.subr.bf16.mxu0 0
      %825 = vmatpush1.bf16.xpose.msra.mxu0 0
      %826 = vmatprep.subr.bf16.mxu0 0
      %827 = vmatpush1.bf16.xpose.msra.mxu0 0
      %828 = vmatprep.subr.bf16.mxu0 0
      %829 = vmatpush1.bf16.xpose.msra.mxu0 0
      %830 = vmatprep.subr.bf16.mxu0 0
      %831 = vmatpush1.bf16.xpose.msra.mxu0 0
      %832 = vmatprep.subr.bf16.mxu0 0
      %833 = vmatpush1.bf16.xpose.msra.mxu0 0
      %834 = vmatprep.subr.bf16.mxu0 0
      %835 = vmatpush1.bf16.xpose.msra.mxu0 0
      %836 = vmatprep.subr.bf16.mxu0 0
      %837 = vmatpush1.bf16.xpose.msra.mxu0 0
      %838 = vmatprep.subr.bf16.mxu0 0
      %839 = vmatpush1.bf16.xpose.msra.mxu0 0
      %840 = vmatprep.subr.bf16.mxu0 0
      %841 = vmatpush1.bf16.xpose.msra.mxu0 0
      %842 = vmatprep.subr.bf16.mxu0 0
      %843 = vmatpush1.bf16.xpose.msra.mxu0 0
      %844 = vmatprep.subr.bf16.mxu0 0
      %845 = vmatpush1.bf16.xpose.msra.mxu0 0
      %846 = vmatprep.subr.bf16.mxu0 0
      %847 = vmatpush1.bf16.xpose.msra.mxu0 0
      %848 = vmatprep.subr.bf16.mxu0 0
      %849 = vmatpush1.bf16.xpose.msra.mxu0 0
      %850 = vmatprep.mubr.bf16.mxu0 0
      %851 = vmatmul.mubr.bf16.gmra.mrb[0].mxu0 %v813
      %v852 = vpop.f32.mrb[0].mxu0
      %v853 = vadd.f32 %v690, %v852
      %v854 = vpop.f32.mrb[0].mxu0
      %v855 = vpop.f32.mrb[0].mxu0
      %v856 = vpop.f32.mrb[0].mxu0
      %857 = vdwg.mxu0
      %v858 = vsel %vm742, %v853, -inf
      %859 = vmax.xlane.f32.xlu0 %v858
      %v860 = vpop.xlane.xlu0 %859
      %v861 = vsub.f32 %v853, %v860
      %v862 = vmul.f32 %v861, 1.442695
      %v863 = vpow.pop %v862
      %v864 = vsel %vm742, %v863, 0.0
      %865 = vadd.xlane.f32.xlu0 %v864
      %v866 = vpop.xlane.xlu0 %865
      %v867 = vrcp.pop %v866
      %v868 = vmul.f32 %v863, %v867
      %v869 = vpack.c.bf16 %v868, %v868
      %870 = vrot.lane.b32.xlu0 %v685, 48
      %v871 = vpop.permute.xlu0 %870
      %v873 = vsel %vm742, %v869, 0
      %v876 = vsel %vm760, %v871, 0
      %878 = vmatprep.subr.bf16.mxu0 0
      %879 = vmatpush1.bf16.msra.mxu0 %v876
      %880 = vmatprep.subr.bf16.mxu0 0
      %881 = vmatpush1.bf16.msra.mxu0 0
      %882 = vmatprep.subr.bf16.mxu0 0
      %883 = vmatpush1.bf16.msra.mxu0 0
      %884 = vmatprep.subr.bf16.mxu0 0
      %885 = vmatpush1.bf16.msra.mxu0 0
      %886 = vmatprep.subr.bf16.mxu0 0
      %887 = vmatpush1.bf16.msra.mxu0 0
      %888 = vmatprep.subr.bf16.mxu0 0
      %889 = vmatpush1.bf16.msra.mxu0 0
      %890 = vmatprep.subr.bf16.mxu0 0
      %891 = vmatpush1.bf16.msra.mxu0 0
      %892 = vmatprep.subr.bf16.mxu0 0
      %893 = vmatpush1.bf16.msra.mxu0 0
      %894 = vmatprep.subr.bf16.mxu0 0
      %895 = vmatpush1.bf16.msra.mxu0 0
      %896 = vmatprep.subr.bf16.mxu0 0
      %897 = vmatpush1.bf16.msra.mxu0 0
      %898 = vmatprep.subr.bf16.mxu0 0
      %899 = vmatpush1.bf16.msra.mxu0 0
      %900 = vmatprep.subr.bf16.mxu0 0
      %901 = vmatpush1.bf16.msra.mxu0 0
      %902 = vmatprep.subr.bf16.mxu0 0
      %903 = vmatpush1.bf16.msra.mxu0 0
      %904 = vmatprep.subr.bf16.mxu0 0
      %905 = vmatpush1.bf16.msra.mxu0 0
      %906 = vmatprep.subr.bf16.mxu0 0
      %907 = vmatpush1.bf16.msra.mxu0 0
      %908 = vmatprep.subr.bf16.mxu0 0
      %909 = vmatpush1.bf16.msra.mxu0 0
      %910 = vmatprep.mubr.bf16.mxu0 0
      %911 = vmatmul.mubr.bf16.gmra.mrb[0].mxu0 %v873
      %v912 = vpop.f32.mrb[0].mxu0
      %v913 = vadd.f32 0.0, %v912
      %v914 = vpop.f32.mrb[0].mxu0
      %v915 = vpop.f32.mrb[0].mxu0
      %v916 = vpop.f32.mrb[0].mxu0
      %917 = vdwg.mxu0
      %v918 = vld [vmem:[%s7 + $0x10] sm:$0xff]
      %v919 = vld [vmem:[%s7 + $0x18] sm:$0xff]
      %v920 = vpack.c.bf16 %v913, %v913
      %v921 = vpack.c.bf16 %v919, %v918
      %v923 = vsel %vm695, %v920, 0
      %925 = vmatprep.subr.bf16.mxu0 0
      %926 = vmatpush1.bf16.msra.mxu0 %v921
      %927 = vmatprep.subr.bf16.mxu0 0
      %928 = vmatpush1.bf16.msra.mxu0 0
      %929 = vmatprep.subr.bf16.mxu0 0
      %930 = vmatpush1.bf16.msra.mxu0 0
      %931 = vmatprep.subr.bf16.mxu0 0
      %932 = vmatpush1.bf16.msra.mxu0 0
      %933 = vmatprep.subr.bf16.mxu0 0
      %934 = vmatpush1.bf16.msra.mxu0 0
      %935 = vmatprep.subr.bf16.mxu0 0
      %936 = vmatpush1.bf16.msra.mxu0 0
      %937 = vmatprep.subr.bf16.mxu0 0
      %938 = vmatpush1.bf16.msra.mxu0 0
      %939 = vmatprep.subr.bf16.mxu0 0
      %940 = vmatpush1.bf16.msra.mxu0 0
      %941 = vmatprep.subr.bf16.mxu0 0
      %942 = vmatpush1.bf16.msra.mxu0 0
      %943 = vmatprep.subr.bf16.mxu0 0
      %944 = vmatpush1.bf16.msra.mxu0 0
      %945 = vmatprep.subr.bf16.mxu0 0
      %946 = vmatpush1.bf16.msra.mxu0 0
      %947 = vmatprep.subr.bf16.mxu0 0
      %948 = vmatpush1.bf16.msra.mxu0 0
      %949 = vmatprep.subr.bf16.mxu0 0
      %950 = vmatpush1.bf16.msra.mxu0 0
      %951 = vmatprep.subr.bf16.mxu0 0
      %952 = vmatpush1.bf16.msra.mxu0 0
      %953 = vmatprep.subr.bf16.mxu0 0
      %954 = vmatpush1.bf16.msra.mxu0 0
      %955 = vmatprep.subr.bf16.mxu0 0
      %956 = vmatpush1.bf16.msra.mxu0 0
      %957 = vmatprep.mubr.bf16.mxu0 0
      %958 = vmatmul.mubr.bf16.gmra.mrb[0].mxu0 %v923
      %v959 = vpop.f32.mrb[0].mxu0
      %v960 = vadd.f32 0.0, %v959
      %v961 = vpop.f32.mrb[0].mxu0
      %v962 = vpop.f32.mrb[0].mxu0
      %v963 = vpop.f32.mrb[0].mxu0
      %964 = vdwg.mxu0
      %v966 = vsel %vm695, %v806, 0
      %968 = vmatprep.subr.bf16.mxu0 0
      %969 = vmatpush1.bf16.msra.mxu0 %v807
      %970 = vmatprep.subr.bf16.mxu0 0
      %971 = vmatpush1.bf16.msra.mxu0 0
      %972 = vmatprep.subr.bf16.mxu0 0
      %973 = vmatpush1.bf16.msra.mxu0 0
      %974 = vmatprep.subr.bf16.mxu0 0
      %975 = vmatpush1.bf16.msra.mxu0 0
      %976 = vmatprep.subr.bf16.mxu0 0
      %977 = vmatpush1.bf16.msra.mxu0 0
      %978 = vmatprep.subr.bf16.mxu0 0
      %979 = vmatpush1.bf16.msra.mxu0 0
      %980 = vmatprep.subr.bf16.mxu0 0
      %981 = vmatpush1.bf16.msra.mxu0 0
      %982 = vmatprep.subr.bf16.mxu0 0
      %983 = vmatpush1.bf16.msra.mxu0 0
      %984 = vmatprep.subr.bf16.mxu0 0
      %985 = vmatpush1.bf16.msra.mxu0 0
      %986 = vmatprep.subr.bf16.mxu0 0
      %987 = vmatpush1.bf16.msra.mxu0 0
      %988 = vmatprep.subr.bf16.mxu0 0
      %989 = vmatpush1.bf16.msra.mxu0 0
      %990 = vmatprep.subr.bf16.mxu0 0
      %991 = vmatpush1.bf16.msra.mxu0 0
      %992 = vmatprep.subr.bf16.mxu0 0
      %993 = vmatpush1.bf16.msra.mxu0 0
      %994 = vmatprep.subr.bf16.mxu0 0
      %995 = vmatpush1.bf16.msra.mxu0 0
      %996 = vmatprep.subr.bf16.mxu0 0
      %997 = vmatpush1.bf16.msra.mxu0 0
      %998 = vmatprep.subr.bf16.mxu0 0
      %999 = vmatpush1.bf16.msra.mxu0 0
      %1000 = vmatprep.mubr.bf16.mxu0 0
      %1001 = vmatmul.mubr.bf16.gmra.mrb[0].mxu0 %v966
      %v1002 = vpop.f32.mrb[0].mxu0
      %v1003 = vadd.f32 %v960, %v1002
      %v1004 = vpop.f32.mrb[0].mxu0
      %v1005 = vpop.f32.mrb[0].mxu0
      %v1006 = vpop.f32.mrb[0].mxu0
      %1007 = vdwg.mxu0
      %v1008 = vld [vmem:[%s8] sm:$0x1]
      %v1010 = vlaneseq
      %v1011 = vshrl.u32 %v1010, 7
      %v1012 = vsub.s32 0, %v1011
      %v1013 = vrot.slane %v1008, %v1012
      %v1015 = vadd.f32 %v1003, %v1013
      %v1016 = vadd.f32 %v584, %v1015
      %v1017 = vmul.f32 %v1016, %v582
      %v1018 = vld [vmem:[%s9] sm:$0x1]
      %v1019 = vld [vmem:[%s10] sm:$0x1]
      %v1020 = vsel %vm599, %v1017, 0.0
      %1021 = vadd.xlane.f32.xlu0 %v1020
      %v1022 = vpop.xlane.xlu0 %1021
      %v1023 = vmul.f32 %v1022, %v603
      %v1024 = vsub.f32 %v1017, %v1023
      %v1025 = vmul.f32 %v1024, %v1024
      %v1026 = vsel %vm599, %v1025, 0.0
      %1027 = vadd.xlane.f32.xlu0 %v1026
      %v1028 = vpop.xlane.xlu0 %1027
      %v1029 = vmul.f32 %v1028, %v603
      %v1030 = vadd.f32 %v1029, 1e-05
      %v1031 = vrsqrt.pop %v1030
      %v1032 = vmul.f32 %v1024, %v1031
      %v1034 = vlaneseq
      %v1035 = vshrl.u32 %v1034, 7
      %v1036 = vsub.s32 0, %v1035
      %v1037 = vrot.slane %v1018, %v1036
      %v1039 = vmul.f32 %v1032, %v1037
      %v1041 = vlaneseq
      %v1042 = vshrl.u32 %v1041, 7
      %v1043 = vsub.s32 0, %v1042
      %v1044 = vrot.slane %v1019, %v1043
      %v1046 = vadd.f32 %v1039, %v1044
      %s1047 = scalar_lea.vmem %s11, 32
      %v1048 = vld [vmem:[%s1047] sm:$0xff]
      %v1049 = vld [vmem:[%s1047 + $0x8] sm:$0xff]
      %v1050 = vld [vmem:[%s1047 + $0x10] sm:$0xff]
      %v1051 = vld [vmem:[%s1047 + $0x18] sm:$0xff]
      %v1052 = vpack.c.bf16 %v1046, %v1046
      %v1053 = vpack.c.bf16 %v1049, %v1048
      %v1054 = vpack.c.bf16 %v1051, %v1050
      %v1055 = vld [vmem:[%s12] sm:$0x1]
      %v1057 = vlaneseq
      %v1058 = vshrl.u32 %v1057, 7
      %v1059 = vsub.s32 0, %v1058
      %v1060 = vrot.slane %v1055, %v1059
      %v1063 = vsel %vm599, %v1052, 0
      %1065 = vmatprep.subr.bf16.mxu0 0
      %1066 = vmatpush1.bf16.msra.mxu0 %v1053
      %1067 = vmatprep.subr.bf16.mxu0 0
      %1068 = vmatpush1.bf16.msra.mxu0 %v1054
      %1069 = vmatprep.subr.bf16.mxu0 0
      %1070 = vmatpush1.bf16.msra.mxu0 0
      %1071 = vmatprep.subr.bf16.mxu0 0
      %1072 = vmatpush1.bf16.msra.mxu0 0
      %1073 = vmatprep.subr.bf16.mxu0 0
      %1074 = vmatpush1.bf16.msra.mxu0 0
      %1075 = vmatprep.subr.bf16.mxu0 0
      %1076 = vmatpush1.bf16.msra.mxu0 0
      %1077 = vmatprep.subr.bf16.mxu0 0
      %1078 = vmatpush1.bf16.msra.mxu0 0
      %1079 = vmatprep.subr.bf16.mxu0 0
      %1080 = vmatpush1.bf16.msra.mxu0 0
      %1081 = vmatprep.subr.bf16.mxu0 0
      %1082 = vmatpush1.bf16.msra.mxu0 0
      %1083 = vmatprep.subr.bf16.mxu0 0
      %1084 = vmatpush1.bf16.msra.mxu0 0
      %1085 = vmatprep.subr.bf16.mxu0 0
      %1086 = vmatpush1.bf16.msra.mxu0 0
      %1087 = vmatprep.subr.bf16.mxu0 0
      %1088 = vmatpush1.bf16.msra.mxu0 0
      %1089 = vmatprep.subr.bf16.mxu0 0
      %1090 = vmatpush1.bf16.msra.mxu0 0
      %1091 = vmatprep.subr.bf16.mxu0 0
      %1092 = vmatpush1.bf16.msra.mxu0 0
      %1093 = vmatprep.subr.bf16.mxu0 0
      %1094 = vmatpush1.bf16.msra.mxu0 0
      %1095 = vmatprep.subr.bf16.mxu0 0
      %1096 = vmatpush1.bf16.msra.mxu0 0
      %1097 = vmatprep.mubr.bf16.mxu0 0
      %1098 = vmatmul.mubr.bf16.gmra.mrb[0].mxu0 %v1063
      %v1099 = vpop.f32.mrb[0].mxu0
      %v1100 = vadd.f32 %v1060, %v1099
      %v1101 = vpop.f32.mrb[0].mxu0
      %v1102 = vpop.f32.mrb[0].mxu0
      %v1103 = vpop.f32.mrb[0].mxu0
      %1104 = vdwg.mxu0
      %v1106 = vsel %vm742, %v592, 0
      %1108 = vmatprep.subr.mxu0 0.0
      %1109 = vmatpush1.msra.mxu0 %v1046
      %1110 = vmatprep.subr.mxu0 0.0
      %1111 = vmatpush1.msra.mxu0 0.0
      %1112 = vmatprep.subr.mxu0 0.0
      %1113 = vmatpush1.msra.mxu0 0.0
      %1114 = vmatprep.subr.mxu0 0.0
      %1115 = vmatpush1.msra.mxu0 0.0
      %1116 = vmatprep.subr.mxu0 0.0
      %1117 = vmatpush1.msra.mxu0 0.0
      %1118 = vmatprep.subr.mxu0 0.0
      %1119 = vmatpush1.msra.mxu0 0.0
      %1120 = vmatprep.subr.mxu0 0.0
      %1121 = vmatpush1.msra.mxu0 0.0
      %1122 = vmatprep.subr.mxu0 0.0
      %1123 = vmatpush1.msra.mxu0 0.0
      %1124 = vmatprep.subr.mxu0 0.0
      %1125 = vmatpush1.msra.mxu0 0.0
      %1126 = vmatprep.subr.mxu0 0.0
      %1127 = vmatpush1.msra.mxu0 0.0
      %1128 = vmatprep.subr.mxu0 0.0
      %1129 = vmatpush1.msra.mxu0 0.0
      %1130 = vmatprep.subr.mxu0 0.0
      %1131 = vmatpush1.msra.mxu0 0.0
      %1132 = vmatprep.subr.mxu0 0.0
      %1133 = vmatpush1.msra.mxu0 0.0
      %1134 = vmatprep.subr.mxu0 0.0
      %1135 = vmatpush1.msra.mxu0 0.0
      %1136 = vmatprep.subr.mxu0 0.0
      %1137 = vmatpush1.msra.mxu0 0.0
      %1138 = vmatprep.subr.mxu0 0.0
      %1139 = vmatpush1.msra.mxu0 0.0
      %1140 = vmatprep.subr.mxu0 0.0
      %1141 = vmatpush1.msra.mxu0 0.0
      %1142 = vmatprep.subr.mxu0 0.0
      %1143 = vmatpush1.msra.mxu0 0.0
      %1144 = vmatprep.subr.mxu0 0.0
      %1145 = vmatpush1.msra.mxu0 0.0
      %1146 = vmatprep.subr.mxu0 0.0
      %1147 = vmatpush1.msra.mxu0 0.0
      %1148 = vmatprep.subr.mxu0 0.0
      %1149 = vmatpush1.msra.mxu0 0.0
      %1150 = vmatprep.subr.mxu0 0.0
      %1151 = vmatpush1.msra.mxu0 0.0
      %1152 = vmatprep.subr.mxu0 0.0
      %1153 = vmatpush1.msra.mxu0 0.0
      %1154 = vmatprep.subr.mxu0 0.0
      %1155 = vmatpush1.msra.mxu0 0.0
      %1156 = vmatprep.subr.mxu0 0.0
      %1157 = vmatpush1.msra.mxu0 0.0
      %1158 = vmatprep.subr.mxu0 0.0
      %1159 = vmatpush1.msra.mxu0 0.0
      %1160 = vmatprep.subr.mxu0 0.0
      %1161 = vmatpush1.msra.mxu0 0.0
      %1162 = vmatprep.subr.mxu0 0.0
      %1163 = vmatpush1.msra.mxu0 0.0
      %1164 = vmatprep.subr.mxu0 0.0
      %1165 = vmatpush1.msra.mxu0 0.0
      %1166 = vmatprep.subr.mxu0 0.0
      %1167 = vmatpush1.msra.mxu0 0.0
      %1168 = vmatprep.subr.mxu0 0.0
      %1169 = vmatpush1.msra.mxu0 0.0
      %1170 = vmatprep.subr.mxu0 0.0
      %1171 = vmatpush1.msra.mxu0 0.0
      %1172 = vmatprep.mubr.f32.mxu0 0.0
      %1173 = vmatmul.mubr.f32.gmra.mrb[0].mxu0 %v1106
      %v1174 = vpop.f32.mrb[0].mxu0
      %v1175 = vadd.f32 0.0, %v1174
      %v1176 = vpop.f32.mrb[0].mxu0
      %1177 = vdwg.mxu0
      %v1178 = vld [vmem:[%s11] sm:$0xff]
      %v1179 = vld [vmem:[%s11 + $0x8] sm:$0xff]
      %v1180 = vld [vmem:[%s11 + $0x10] sm:$0xff]
      %v1181 = vld [vmem:[%s11 + $0x18] sm:$0xff]
      %v1182 = vpack.c.bf16 %v1175, %v1175
      %v1183 = vpack.c.bf16 %v1179, %v1178
      %v1184 = vpack.c.bf16 %v1181, %v1180
      %v1186 = vsel %vm599, %v1182, 0
      %1188 = vmatprep.subr.bf16.mxu0 0
      %1189 = vmatpush1.bf16.msra.mxu0 %v1183
      %1190 = vmatprep.subr.bf16.mxu0 0
      %1191 = vmatpush1.bf16.msra.mxu0 %v1184
      %1192 = vmatprep.subr.bf16.mxu0 0
      %1193 = vmatpush1.bf16.msra.mxu0 0
      %1194 = vmatprep.subr.bf16.mxu0 0
      %1195 = vmatpush1.bf16.msra.mxu0 0
      %1196 = vmatprep.subr.bf16.mxu0 0
      %1197 = vmatpush1.bf16.msra.mxu0 0
      %1198 = vmatprep.subr.bf16.mxu0 0
      %1199 = vmatpush1.bf16.msra.mxu0 0
      %1200 = vmatprep.subr.bf16.mxu0 0
      %1201 = vmatpush1.bf16.msra.mxu0 0
      %1202 = vmatprep.subr.bf16.mxu0 0
      %1203 = vmatpush1.bf16.msra.mxu0 0
      %1204 = vmatprep.subr.bf16.mxu0 0
      %1205 = vmatpush1.bf16.msra.mxu0 0
      %1206 = vmatprep.subr.bf16.mxu0 0
      %1207 = vmatpush1.bf16.msra.mxu0 0
      %1208 = vmatprep.subr.bf16.mxu0 0
      %1209 = vmatpush1.bf16.msra.mxu0 0
      %1210 = vmatprep.subr.bf16.mxu0 0
      %1211 = vmatpush1.bf16.msra.mxu0 0
      %1212 = vmatprep.subr.bf16.mxu0 0
      %1213 = vmatpush1.bf16.msra.mxu0 0
      %1214 = vmatprep.subr.bf16.mxu0 0
      %1215 = vmatpush1.bf16.msra.mxu0 0
      %1216 = vmatprep.subr.bf16.mxu0 0
      %1217 = vmatpush1.bf16.msra.mxu0 0
      %1218 = vmatprep.subr.bf16.mxu0 0
      %1219 = vmatpush1.bf16.msra.mxu0 0
      %1220 = vmatprep.mubr.bf16.mxu0 0
      %1221 = vmatmul.mubr.bf16.gmra.mrb[0].mxu0 %v1186
      %v1222 = vpop.f32.mrb[0].mxu0
      %v1223 = vadd.f32 0.0, %v1222
      %v1224 = vpop.f32.mrb[0].mxu0
      %v1225 = vpop.f32.mrb[0].mxu0
      %v1226 = vpop.f32.mrb[0].mxu0
      %1227 = vdwg.mxu0
      %v1228 = vadd.f32 %v1100, %v1223
      %v1230 = vsel %vm742, %v596, 0
      %1232 = vmatprep.subr.mxu0 0.0
      %1233 = vmatpush1.msra.mxu0 %v1046
      %1234 = vmatprep.subr.mxu0 0.0
      %1235 = vmatpush1.msra.mxu0 0.0
      %1236 = vmatprep.subr.mxu0 0.0
      %1237 = vmatpush1.msra.mxu0 0.0
      %1238 = vmatprep.subr.mxu0 0.0
      %1239 = vmatpush1.msra.mxu0 0.0
      %1240 = vmatprep.subr.mxu0 0.0
      %1241 = vmatpush1.msra.mxu0 0.0
      %1242 = vmatprep.subr.mxu0 0.0
      %1243 = vmatpush1.msra.mxu0 0.0
      %1244 = vmatprep.subr.mxu0 0.0
      %1245 = vmatpush1.msra.mxu0 0.0
      %1246 = vmatprep.subr.mxu0 0.0
      %1247 = vmatpush1.msra.mxu0 0.0
      %1248 = vmatprep.subr.mxu0 0.0
      %1249 = vmatpush1.msra.mxu0 0.0
      %1250 = vmatprep.subr.mxu0 0.0
      %1251 = vmatpush1.msra.mxu0 0.0
      %1252 = vmatprep.subr.mxu0 0.0
      %1253 = vmatpush1.msra.mxu0 0.0
      %1254 = vmatprep.subr.mxu0 0.0
      %1255 = vmatpush1.msra.mxu0 0.0
      %1256 = vmatprep.subr.mxu0 0.0
      %1257 = vmatpush1.msra.mxu0 0.0
      %1258 = vmatprep.subr.mxu0 0.0
      %1259 = vmatpush1.msra.mxu0 0.0
      %1260 = vmatprep.subr.mxu0 0.0
      %1261 = vmatpush1.msra.mxu0 0.0
      %1262 = vmatprep.subr.mxu0 0.0
      %1263 = vmatpush1.msra.mxu0 0.0
      %1264 = vmatprep.subr.mxu0 0.0
      %1265 = vmatpush1.msra.mxu0 0.0
      %1266 = vmatprep.subr.mxu0 0.0
      %1267 = vmatpush1.msra.mxu0 0.0
      %1268 = vmatprep.subr.mxu0 0.0
      %1269 = vmatpush1.msra.mxu0 0.0
      %1270 = vmatprep.subr.mxu0 0.0
      %1271 = vmatpush1.msra.mxu0 0.0
      %1272 = vmatprep.subr.mxu0 0.0
      %1273 = vmatpush1.msra.mxu0 0.0
      %1274 = vmatprep.subr.mxu0 0.0
      %1275 = vmatpush1.msra.mxu0 0.0
      %1276 = vmatprep.subr.mxu0 0.0
      %1277 = vmatpush1.msra.mxu0 0.0
      %1278 = vmatprep.subr.mxu0 0.0
      %1279 = vmatpush1.msra.mxu0 0.0
      %1280 = vmatprep.subr.mxu0 0.0
      %1281 = vmatpush1.msra.mxu0 0.0
      %1282 = vmatprep.subr.mxu0 0.0
      %1283 = vmatpush1.msra.mxu0 0.0
      %1284 = vmatprep.subr.mxu0 0.0
      %1285 = vmatpush1.msra.mxu0 0.0
      %1286 = vmatprep.subr.mxu0 0.0
      %1287 = vmatpush1.msra.mxu0 0.0
      %1288 = vmatprep.subr.mxu0 0.0
      %1289 = vmatpush1.msra.mxu0 0.0
      %1290 = vmatprep.subr.mxu0 0.0
      %1291 = vmatpush1.msra.mxu0 0.0
      %1292 = vmatprep.subr.mxu0 0.0
      %1293 = vmatpush1.msra.mxu0 0.0
      %1294 = vmatprep.subr.mxu0 0.0
      %1295 = vmatpush1.msra.mxu0 0.0
      %1296 = vmatprep.mubr.f32.mxu0 0.0
      %1297 = vmatmul.mubr.f32.gmra.mrb[0].mxu0 %v1230
      %v1298 = vpop.f32.mrb[0].mxu0
      %v1299 = vadd.f32 0.0, %v1298
      %v1300 = vpop.f32.mrb[0].mxu0
      %1301 = vdwg.mxu0
      %s1302 = scalar_lea.vmem %s11, 64
      %v1303 = vld [vmem:[%s1302] sm:$0xff]
      %v1304 = vld [vmem:[%s1302 + $0x8] sm:$0xff]
      %v1305 = vld [vmem:[%s1302 + $0x10] sm:$0xff]
      %v1306 = vld [vmem:[%s1302 + $0x18] sm:$0xff]
      %v1307 = vpack.c.bf16 %v1299, %v1299
      %v1308 = vpack.c.bf16 %v1304, %v1303
      %v1309 = vpack.c.bf16 %v1306, %v1305
      %v1311 = vsel %vm599, %v1307, 0
      %1313 = vmatprep.subr.bf16.mxu0 0
      %1314 = vmatpush1.bf16.msra.mxu0 %v1308
      %1315 = vmatprep.subr.bf16.mxu0 0
      %1316 = vmatpush1.bf16.msra.mxu0 %v1309
      %1317 = vmatprep.subr.bf16.mxu0 0
      %1318 = vmatpush1.bf16.msra.mxu0 0
      %1319 = vmatprep.subr.bf16.mxu0 0
      %1320 = vmatpush1.bf16.msra.mxu0 0
      %1321 = vmatprep.subr.bf16.mxu0 0
      %1322 = vmatpush1.bf16.msra.mxu0 0
      %1323 = vmatprep.subr.bf16.mxu0 0
      %1324 = vmatpush1.bf16.msra.mxu0 0
      %1325 = vmatprep.subr.bf16.mxu0 0
      %1326 = vmatpush1.bf16.msra.mxu0 0
      %1327 = vmatprep.subr.bf16.mxu0 0
      %1328 = vmatpush1.bf16.msra.mxu0 0
      %1329 = vmatprep.subr.bf16.mxu0 0
      %1330 = vmatpush1.bf16.msra.mxu0 0
      %1331 = vmatprep.subr.bf16.mxu0 0
      %1332 = vmatpush1.bf16.msra.mxu0 0
      %1333 = vmatprep.subr.bf16.mxu0 0
      %1334 = vmatpush1.bf16.msra.mxu0 0
      %1335 = vmatprep.subr.bf16.mxu0 0
      %1336 = vmatpush1.bf16.msra.mxu0 0
      %1337 = vmatprep.subr.bf16.mxu0 0
      %1338 = vmatpush1.bf16.msra.mxu0 0
      %1339 = vmatprep.subr.bf16.mxu0 0
      %1340 = vmatpush1.bf16.msra.mxu0 0
      %1341 = vmatprep.subr.bf16.mxu0 0
      %1342 = vmatpush1.bf16.msra.mxu0 0
      %1343 = vmatprep.subr.bf16.mxu0 0
      %1344 = vmatpush1.bf16.msra.mxu0 0
      %1345 = vmatprep.mubr.bf16.mxu0 0
      %1346 = vmatmul.mubr.bf16.gmra.mrb[0].mxu0 %v1311
      %v1347 = vpop.f32.mrb[0].mxu0
      %v1348 = vadd.f32 0.0, %v1347
      %v1349 = vpop.f32.mrb[0].mxu0
      %v1350 = vpop.f32.mrb[0].mxu0
      %v1351 = vpop.f32.mrb[0].mxu0
      %1352 = vdwg.mxu0
      %v1353 = vadd.f32 %v1228, %v1348
      %v1354 = vmul.f32 %v1353, 0.57735026
      %v1355 = vmax.f32 %v1354, 0.0
      %v1356 = vld [vmem:[%s13] sm:$0xff]
      %v1357 = vld [vmem:[%s13 + $0x8] sm:$0xff]
      %v1358 = vld [vmem:[%s13 + $0x10] sm:$0xff]
      %v1359 = vld [vmem:[%s13 + $0x18] sm:$0xff]
      %v1360 = vld [vmem:[%s13 + $0x20] sm:$0xff]
      %v1361 = vld [vmem:[%s13 + $0x28] sm:$0xff]
      %v1362 = vld [vmem:[%s13 + $0x30] sm:$0xff]
      %v1363 = vld [vmem:[%s13 + $0x38] sm:$0xff]
      %v1364 = vld [vmem:[%s13 + $0x40] sm:$0xff]
      %v1365 = vld [vmem:[%s13 + $0x48] sm:$0xff]
      %v1366 = vld [vmem:[%s13 + $0x50] sm:$0xff]
      %v1367 = vld [vmem:[%s13 + $0x58] sm:$0xff]
      %v1368 = vld [vmem:[%s13 + $0x60] sm:$0xff]
      %v1369 = vld [vmem:[%s13 + $0x68] sm:$0xff]
      %v1370 = vld [vmem:[%s13 + $0x70] sm:$0xff]
      %v1371 = vld [vmem:[%s13 + $0x78] sm:$0xff]
      %v1372 = vpack.c.bf16 %v1355, %v1355
      %v1373 = vpack.c.bf16 %v1357, %v1356
      %v1374 = vpack.c.bf16 %v1359, %v1358
      %v1375 = vpack.c.bf16 %v1361, %v1360
      %v1376 = vpack.c.bf16 %v1363, %v1362
      %v1377 = vpack.c.bf16 %v1365, %v1364
      %v1378 = vpack.c.bf16 %v1367, %v1366
      %v1379 = vpack.c.bf16 %v1369, %v1368
      %v1380 = vpack.c.bf16 %v1371, %v1370
      %v1381 = vld [vmem:[%s14] sm:$0x1]
      %v1383 = vlaneseq
      %v1384 = vshrl.u32 %v1383, 7
      %v1385 = vsub.s32 0, %v1384
      %v1386 = vrot.slane %v1381, %v1385
      %1388 = vmatprep.subr.bf16.mxu0 0
      %1389 = vmatpush1.bf16.msra.mxu0 %v1373
      %1390 = vmatprep.subr.bf16.mxu0 0
      %1391 = vmatpush1.bf16.msra.mxu0 %v1374
      %1392 = vmatprep.subr.bf16.mxu0 0
      %1393 = vmatpush1.bf16.msra.mxu0 %v1375
      %1394 = vmatprep.subr.bf16.mxu0 0
      %1395 = vmatpush1.bf16.msra.mxu0 %v1376
      %1396 = vmatprep.subr.bf16.mxu0 0
      %1397 = vmatpush1.bf16.msra.mxu0 %v1377
      %1398 = vmatprep.subr.bf16.mxu0 0
      %1399 = vmatpush1.bf16.msra.mxu0 %v1378
      %1400 = vmatprep.subr.bf16.mxu0 0
      %1401 = vmatpush1.bf16.msra.mxu0 %v1379
      %1402 = vmatprep.subr.bf16.mxu0 0
      %1403 = vmatpush1.bf16.msra.mxu0 %v1380
      %1404 = vmatprep.subr.bf16.mxu0 0
      %1405 = vmatpush1.bf16.msra.mxu0 0
      %1406 = vmatprep.subr.bf16.mxu0 0
      %1407 = vmatpush1.bf16.msra.mxu0 0
      %1408 = vmatprep.subr.bf16.mxu0 0
      %1409 = vmatpush1.bf16.msra.mxu0 0
      %1410 = vmatprep.subr.bf16.mxu0 0
      %1411 = vmatpush1.bf16.msra.mxu0 0
      %1412 = vmatprep.subr.bf16.mxu0 0
      %1413 = vmatpush1.bf16.msra.mxu0 0
      %1414 = vmatprep.subr.bf16.mxu0 0
      %1415 = vmatpush1.bf16.msra.mxu0 0
      %1416 = vmatprep.subr.bf16.mxu0 0
      %1417 = vmatpush1.bf16.msra.mxu0 0
      %1418 = vmatprep.subr.bf16.mxu0 0
      %1419 = vmatpush1.bf16.msra.mxu0 0
      %1420 = vmatprep.mubr.bf16.mxu0 0
      %1421 = vmatmul.mubr.bf16.gmra.mrb[0].mxu0 %v1372
      %v1422 = vpop.f32.mrb[0].mxu0
      %v1423 = vadd.f32 %v1386, %v1422
      %v1424 = vpop.f32.mrb[0].mxu0
      %v1425 = vpop.f32.mrb[0].mxu0
      %v1426 = vpop.f32.mrb[0].mxu0
      %1427 = vdwg.mxu0
      %v1428 = vadd.f32 %v1017, %v1423
      %v1429 = vmul.f32 %v1428, %v582
      %s1430 = scalar_lea.vmem %s3, 1
      %v1431 = vld [vmem:[%s1430] sm:$0x1]
      %s1432 = scalar_lea.vmem %s4, 1
      %v1433 = vld [vmem:[%s1432] sm:$0x1]
      %v1434 = vsel %vm599, %v1429, 0.0
      %1435 = vadd.xlane.f32.xlu0 %v1434
      %v1436 = vpop.xlane.xlu0 %1435
      %v1437 = vmul.f32 %v1436, %v603
      %v1438 = vsub.f32 %v1429, %v1437
      %v1439 = vmul.f32 %v1438, %v1438
      %v1440 = vsel %vm599, %v1439, 0.0
      %1441 = vadd.xlane.f32.xlu0 %v1440
      %v1442 = vpop.xlane.xlu0 %1441
      %v1443 = vmul.f32 %v1442, %v603
      %v1444 = vadd.f32 %v1443, 1e-05
      %v1445 = vrsqrt.pop %v1444
      %v1446 = vmul.f32 %v1438, %v1445
      %v1448 = vlaneseq
      %v1449 = vshrl.u32 %v1448, 7
      %v1450 = vsub.s32 0, %v1449
      %v1451 = vrot.slane %v1431, %v1450
      %v1453 = vmul.f32 %v1446, %v1451
      %v1455 = vlaneseq
      %v1456 = vshrl.u32 %v1455, 7
      %v1457 = vsub.s32 0, %v1456
      %v1458 = vrot.slane %v1433, %v1457
      %v1460 = vadd.f32 %v1453, %v1458
      %s1461 = scalar_lea.vmem %s5, 32
      %v1462 = vld [vmem:[%s1461] sm:$0xff]
      %v1463 = vld [vmem:[%s1461 + $0x8] sm:$0xff]
      %v1464 = vld [vmem:[%s1461 + $0x10] sm:$0xff]
      %v1465 = vld [vmem:[%s1461 + $0x18] sm:$0xff]
      %v1466 = vpack.c.bf16 %v1460, %v1460
      %v1467 = vpack.c.bf16 %v1463, %v1462
      %v1468 = vpack.c.bf16 %v1465, %v1464
      %s1469 = scalar_lea.vmem %s6, 1
      %v1470 = vld [vmem:[%s1469] sm:$0x1]
      %v1472 = vlaneseq
      %v1473 = vshrl.u32 %v1472, 7
      %v1474 = vsub.s32 0, %v1473
      %v1475 = vrot.slane %v1470, %v1474
      %v1478 = vsel %vm599, %v1466, 0
      %1480 = vmatprep.subr.bf16.mxu0 0
      %1481 = vmatpush1.bf16.msra.mxu0 %v1467
      %1482 = vmatprep.subr.bf16.mxu0 0
      %1483 = vmatpush1.bf16.msra.mxu0 %v1468
      %1484 = vmatprep.subr.bf16.mxu0 0
      %1485 = vmatpush1.bf16.msra.mxu0 0
      %1486 = vmatprep.subr.bf16.mxu0 0
      %1487 = vmatpush1.bf16.msra.mxu0 0
      %1488 = vmatprep.subr.bf16.mxu0 0
      %1489 = vmatpush1.bf16.msra.mxu0 0
      %1490 = vmatprep.subr.bf16.mxu0 0
      %1491 = vmatpush1.bf16.msra.mxu0 0
      %1492 = vmatprep.subr.bf16.mxu0 0
      %1493 = vmatpush1.bf16.msra.mxu0 0
      %1494 = vmatprep.subr.bf16.mxu0 0
      %1495 = vmatpush1.bf16.msra.mxu0 0
      %1496 = vmatprep.subr.bf16.mxu0 0
      %1497 = vmatpush1.bf16.msra.mxu0 0
      %1498 = vmatprep.subr.bf16.mxu0 0
      %1499 = vmatpush1.bf16.msra.mxu0 0
      %1500 = vmatprep.subr.bf16.mxu0 0
      %1501 = vmatpush1.bf16.msra.mxu0 0
      %1502 = vmatprep.subr.bf16.mxu0 0
      %1503 = vmatpush1.bf16.msra.mxu0 0
      %1504 = vmatprep.subr.bf16.mxu0 0
      %1505 = vmatpush1.bf16.msra.mxu0 0
      %1506 = vmatprep.subr.bf16.mxu0 0
      %1507 = vmatpush1.bf16.msra.mxu0 0
      %1508 = vmatprep.subr.bf16.mxu0 0
      %1509 = vmatpush1.bf16.msra.mxu0 0
      %1510 = vmatprep.subr.bf16.mxu0 0
      %1511 = vmatpush1.bf16.msra.mxu0 0
      %1512 = vmatprep.mubr.bf16.mxu0 0
      %1513 = vmatmul.mubr.bf16.gmra.mrb[0].mxu0 %v1478
      %v1514 = vpop.f32.mrb[0].mxu0
      %v1515 = vadd.f32 %v1475, %v1514
      %v1516 = vpop.f32.mrb[0].mxu0
      %v1517 = vpop.f32.mrb[0].mxu0
      %v1518 = vpop.f32.mrb[0].mxu0
      %1519 = vdwg.mxu0
      %v1520 = vpack.c.bf16 %v1515, %v1515
      %1522 = vrot.lane.b32.xlu0 %v1520, 96
      %v1523 = vpop.permute.xlu0 %1522
      %v1525 = vsel %vm695, %v1520, 0
      %v1528 = vsel %vm695, %v1523, 0
      %1530 = vmatprep.subr.bf16.mxu0 0
      %1531 = vmatpush1.bf16.xpose.msra.mxu0 %v1528
      %1532 = vmatprep.subr.bf16.mxu0 0
      %1533 = vmatpush1.bf16.xpose.msra.mxu0 0
      %1534 = vmatprep.subr.bf16.mxu0 0
      %1535 = vmatpush1.bf16.xpose.msra.mxu0 0
      %1536 = vmatprep.subr.bf16.mxu0 0
      %1537 = vmatpush1.bf16.xpose.msra.mxu0 0
      %1538 = vmatprep.subr.bf16.mxu0 0
      %1539 = vmatpush1.bf16.xpose.msra.mxu0 0
      %1540 = vmatprep.subr.bf16.mxu0 0
      %1541 = vmatpush1.bf16.xpose.msra.mxu0 0
      %1542 = vmatprep.subr.bf16.mxu0 0
      %1543 = vmatpush1.bf16.xpose.msra.mxu0 0
      %1544 = vmatprep.subr.bf16.mxu0 0
      %1545 = vmatpush1.bf16.xpose.msra.mxu0 0
      %1546 = vmatprep.subr.bf16.mxu0 0
      %1547 = vmatpush1.bf16.xpose.msra.mxu0 0
      %1548 = vmatprep.subr.bf16.mxu0 0
      %1549 = vmatpush1.bf16.xpose.msra.mxu0 0
      %1550 = vmatprep.subr.bf16.mxu0 0
      %1551 = vmatpush1.bf16.xpose.msra.mxu0 0
      %1552 = vmatprep.subr.bf16.mxu0 0
      %1553 = vmatpush1.bf16.xpose.msra.mxu0 0
      %1554 = vmatprep.subr.bf16.mxu0 0
      %1555 = vmatpush1.bf16.xpose.msra.mxu0 0
      %1556 = vmatprep.subr.bf16.mxu0 0
      %1557 = vmatpush1.bf16.xpose.msra.mxu0 0
      %1558 = vmatprep.subr.bf16.mxu0 0
      %1559 = vmatpush1.bf16.xpose.msra.mxu0 0
      %1560 = vmatprep.subr.bf16.mxu0 0
      %1561 = vmatpush1.bf16.xpose.msra.mxu0 0
      %1562 = vmatprep.mubr.bf16.mxu0 0
      %1563 = vmatmul.mubr.bf16.gmra.mrb[0].mxu0 %v1525
      %v1564 = vpop.f32.mrb[0].mxu0
      %v1565 = vadd.f32 %v690, %v1564
      %v1566 = vpop.f32.mrb[0].mxu0
      %v1567 = vpop.f32.mrb[0].mxu0
      %v1568 = vpop.f32.mrb[0].mxu0
      %1569 = vdwg.mxu0
      %v1570 = vsel %vm742, %v1565, -inf
      %1571 = vmax.xlane.f32.xlu0 %v1570
      %v1572 = vpop.xlane.xlu0 %1571
      %v1573 = vsub.f32 %v1565, %v1572
      %v1574 = vmul.f32 %v1573, 1.442695
      %v1575 = vpow.pop %v1574
      %v1576 = vsel %vm742, %v1575, 0.0
      %1577 = vadd.xlane.f32.xlu0 %v1576
      %v1578 = vpop.xlane.xlu0 %1577
      %v1579 = vrcp.pop %v1578
      %v1580 = vmul.f32 %v1575, %v1579
      %v1581 = vpack.c.bf16 %v1580, %v1580
      %1582 = vrot.lane.b32.xlu0 %v1520, 64
      %v1583 = vpop.permute.xlu0 %1582
      %v1585 = vsel %vm742, %v1581, 0
      %v1588 = vsel %vm760, %v1583, 0
      %1590 = vmatprep.subr.bf16.mxu0 0
      %1591 = vmatpush1.bf16.msra.mxu0 %v1588
      %1592 = vmatprep.subr.bf16.mxu0 0
      %1593 = vmatpush1.bf16.msra.mxu0 0
      %1594 = vmatprep.subr.bf16.mxu0 0
      %1595 = vmatpush1.bf16.msra.mxu0 0
      %1596 = vmatprep.subr.bf16.mxu0 0
      %1597 = vmatpush1.bf16.msra.mxu0 0
      %1598 = vmatprep.subr.bf16.mxu0 0
      %1599 = vmatpush1.bf16.msra.mxu0 0
      %1600 = vmatprep.subr.bf16.mxu0 0
      %1601 = vmatpush1.bf16.msra.mxu0 0
      %1602 = vmatprep.subr.bf16.mxu0 0
      %1603 = vmatpush1.bf16.msra.mxu0 0
      %1604 = vmatprep.subr.bf16.mxu0 0
      %1605 = vmatpush1.bf16.msra.mxu0 0
      %1606 = vmatprep.subr.bf16.mxu0 0
      %1607 = vmatpush1.bf16.msra.mxu0 0
      %1608 = vmatprep.subr.bf16.mxu0 0
      %1609 = vmatpush1.bf16.msra.mxu0 0
      %1610 = vmatprep.subr.bf16.mxu0 0
      %1611 = vmatpush1.bf16.msra.mxu0 0
      %1612 = vmatprep.subr.bf16.mxu0 0
      %1613 = vmatpush1.bf16.msra.mxu0 0
      %1614 = vmatprep.subr.bf16.mxu0 0
      %1615 = vmatpush1.bf16.msra.mxu0 0
      %1616 = vmatprep.subr.bf16.mxu0 0
      %1617 = vmatpush1.bf16.msra.mxu0 0
      %1618 = vmatprep.subr.bf16.mxu0 0
      %1619 = vmatpush1.bf16.msra.mxu0 0
      %1620 = vmatprep.subr.bf16.mxu0 0
      %1621 = vmatpush1.bf16.msra.mxu0 0
      %1622 = vmatprep.mubr.bf16.mxu0 0
      %1623 = vmatmul.mubr.bf16.gmra.mrb[0].mxu0 %v1585
      %v1624 = vpop.f32.mrb[0].mxu0
      %v1625 = vadd.f32 0.0, %v1624
      %v1626 = vpop.f32.mrb[0].mxu0
      %v1627 = vpop.f32.mrb[0].mxu0
      %v1628 = vpop.f32.mrb[0].mxu0
      %1629 = vdwg.mxu0
      %s1630 = scalar_lea.vmem %s7, 32
      %v1631 = vld [vmem:[%s1630] sm:$0xff]
      %v1632 = vld [vmem:[%s1630 + $0x8] sm:$0xff]
      %v1633 = vpack.c.bf16 %v1625, %v1625
      %v1634 = vpack.c.bf16 %v1632, %v1631
      %1635 = vrot.lane.b32.xlu0 %v1520, 112
      %v1636 = vpop.permute.xlu0 %1635
      %1637 = vrot.lane.b32.xlu0 %v1520, 80
      %v1638 = vpop.permute.xlu0 %1637
      %v1640 = vsel %vm695, %v1636, 0
      %v1643 = vsel %vm695, %v1638, 0
      %1645 = vmatprep.subr.bf16.mxu0 0
      %1646 = vmatpush1.bf16.xpose.msra.mxu0 %v1643
      %1647 = vmatprep.subr.bf16.mxu0 0
      %1648 = vmatpush1.bf16.xpose.msra.mxu0 0
      %1649 = vmatprep.subr.bf16.mxu0 0
      %1650 = vmatpush1.bf16.xpose.msra.mxu0 0
      %1651 = vmatprep.subr.bf16.mxu0 0
      %1652 = vmatpush1.bf16.xpose.msra.mxu0 0
      %1653 = vmatprep.subr.bf16.mxu0 0
      %1654 = vmatpush1.bf16.xpose.msra.mxu0 0
      %1655 = vmatprep.subr.bf16.mxu0 0
      %1656 = vmatpush1.bf16.xpose.msra.mxu0 0
      %1657 = vmatprep.subr.bf16.mxu0 0
      %1658 = vmatpush1.bf16.xpose.msra.mxu0 0
      %1659 = vmatprep.subr.bf16.mxu0 0
      %1660 = vmatpush1.bf16.xpose.msra.mxu0 0
      %1661 = vmatprep.subr.bf16.mxu0 0
      %1662 = vmatpush1.bf16.xpose.msra.mxu0 0
      %1663 = vmatprep.subr.bf16.mxu0 0
      %1664 = vmatpush1.bf16.xpose.msra.mxu0 0
      %1665 = vmatprep.subr.bf16.mxu0 0
      %1666 = vmatpush1.bf16.xpose.msra.mxu0 0
      %1667 = vmatprep.subr.bf16.mxu0 0
      %1668 = vmatpush1.bf16.xpose.msra.mxu0 0
      %1669 = vmatprep.subr.bf16.mxu0 0
      %1670 = vmatpush1.bf16.xpose.msra.mxu0 0
      %1671 = vmatprep.subr.bf16.mxu0 0
      %1672 = vmatpush1.bf16.xpose.msra.mxu0 0
      %1673 = vmatprep.subr.bf16.mxu0 0
      %1674 = vmatpush1.bf16.xpose.msra.mxu0 0
      %1675 = vmatprep.subr.bf16.mxu0 0
      %1676 = vmatpush1.bf16.xpose.msra.mxu0 0
      %1677 = vmatprep.mubr.bf16.mxu0 0
      %1678 = vmatmul.mubr.bf16.gmra.mrb[0].mxu0 %v1640
      %v1679 = vpop.f32.mrb[0].mxu0
      %v1680 = vadd.f32 %v690, %v1679
      %v1681 = vpop.f32.mrb[0].mxu0
      %v1682 = vpop.f32.mrb[0].mxu0
      %v1683 = vpop.f32.mrb[0].mxu0
      %1684 = vdwg.mxu0
      %v1685 = vsel %vm742, %v1680, -inf
      %1686 = vmax.xlane.f32.xlu0 %v1685
      %v1687 = vpop.xlane.xlu0 %1686
      %v1688 = vsub.f32 %v1680, %v1687
      %v1689 = vmul.f32 %v1688, 1.442695
      %v1690 = vpow.pop %v1689
      %v1691 = vsel %vm742, %v1690, 0.0
      %1692 = vadd.xlane.f32.xlu0 %v1691
      %v1693 = vpop.xlane.xlu0 %1692
      %v1694 = vrcp.pop %v1693
      %v1695 = vmul.f32 %v1690, %v1694
      %v1696 = vpack.c.bf16 %v1695, %v1695
      %1697 = vrot.lane.b32.xlu0 %v1520, 48
      %v1698 = vpop.permute.xlu0 %1697
      %v1700 = vsel %vm742, %v1696, 0
      %v1703 = vsel %vm760, %v1698, 0
      %1705 = vmatprep.subr.bf16.mxu0 0
      %1706 = vmatpush1.bf16.msra.mxu0 %v1703
      %1707 = vmatprep.subr.bf16.mxu0 0
      %1708 = vmatpush1.bf16.msra.mxu0 0
      %1709 = vmatprep.subr.bf16.mxu0 0
      %1710 = vmatpush1.bf16.msra.mxu0 0
      %1711 = vmatprep.subr.bf16.mxu0 0
      %1712 = vmatpush1.bf16.msra.mxu0 0
      %1713 = vmatprep.subr.bf16.mxu0 0
      %1714 = vmatpush1.bf16.msra.mxu0 0
      %1715 = vmatprep.subr.bf16.mxu0 0
      %1716 = vmatpush1.bf16.msra.mxu0 0
      %1717 = vmatprep.subr.bf16.mxu0 0
      %1718 = vmatpush1.bf16.msra.mxu0 0
      %1719 = vmatprep.subr.bf16.mxu0 0
      %1720 = vmatpush1.bf16.msra.mxu0 0
      %1721 = vmatprep.subr.bf16.mxu0 0
      %1722 = vmatpush1.bf16.msra.mxu0 0
      %1723 = vmatprep.subr.bf16.mxu0 0
      %1724 = vmatpush1.bf16.msra.mxu0 0
      %1725 = vmatprep.subr.bf16.mxu0 0
      %1726 = vmatpush1.bf16.msra.mxu0 0
      %1727 = vmatprep.subr.bf16.mxu0 0
      %1728 = vmatpush1.bf16.msra.mxu0 0
      %1729 = vmatprep.subr.bf16.mxu0 0
      %1730 = vmatpush1.bf16.msra.mxu0 0
      %1731 = vmatprep.subr.bf16.mxu0 0
      %1732 = vmatpush1.bf16.msra.mxu0 0
      %1733 = vmatprep.subr.bf16.mxu0 0
      %1734 = vmatpush1.bf16.msra.mxu0 0
      %1735 = vmatprep.subr.bf16.mxu0 0
      %1736 = vmatpush1.bf16.msra.mxu0 0
      %1737 = vmatprep.mubr.bf16.mxu0 0
      %1738 = vmatmul.mubr.bf16.gmra.mrb[0].mxu0 %v1700
      %v1739 = vpop.f32.mrb[0].mxu0
      %v1740 = vadd.f32 0.0, %v1739
      %v1741 = vpop.f32.mrb[0].mxu0
      %v1742 = vpop.f32.mrb[0].mxu0
      %v1743 = vpop.f32.mrb[0].mxu0
      %1744 = vdwg.mxu0
      %v1745 = vld [vmem:[%s1630 + $0x10] sm:$0xff]
      %v1746 = vld [vmem:[%s1630 + $0x18] sm:$0xff]
      %v1747 = vpack.c.bf16 %v1740, %v1740
      %v1748 = vpack.c.bf16 %v1746, %v1745
      %v1750 = vsel %vm695, %v1747, 0
      %1752 = vmatprep.subr.bf16.mxu0 0
      %1753 = vmatpush1.bf16.msra.mxu0 %v1748
      %1754 = vmatprep.subr.bf16.mxu0 0
      %1755 = vmatpush1.bf16.msra.mxu0 0
      %1756 = vmatprep.subr.bf16.mxu0 0
      %1757 = vmatpush1.bf16.msra.mxu0 0
      %1758 = vmatprep.subr.bf16.mxu0 0
      %1759 = vmatpush1.bf16.msra.mxu0 0
      %1760 = vmatprep.subr.bf16.mxu0 0
      %1761 = vmatpush1.bf16.msra.mxu0 0
      %1762 = vmatprep.subr.bf16.mxu0 0
      %1763 = vmatpush1.bf16.msra.mxu0 0
      %1764 = vmatprep.subr.bf16.mxu0 0
      %1765 = vmatpush1.bf16.msra.mxu0 0
      %1766 = vmatprep.subr.bf16.mxu0 0
      %1767 = vmatpush1.bf16.msra.mxu0 0
      %1768 = vmatprep.subr.bf16.mxu0 0
      %1769 = vmatpush1.bf16.msra.mxu0 0
      %1770 = vmatprep.subr.bf16.mxu0 0
      %1771 = vmatpush1.bf16.msra.mxu0 0
      %1772 = vmatprep.subr.bf16.mxu0 0
      %1773 = vmatpush1.bf16.msra.mxu0 0
      %1774 = vmatprep.subr.bf16.mxu0 0
      %1775 = vmatpush1.bf16.msra.mxu0 0
      %1776 = vmatprep.subr.bf16.mxu0 0
      %1777 = vmatpush1.bf16.msra.mxu0 0
      %1778 = vmatprep.subr.bf16.mxu0 0
      %1779 = vmatpush1.bf16.msra.mxu0 0
      %1780 = vmatprep.subr.bf16.mxu0 0
      %1781 = vmatpush1.bf16.msra.mxu0 0
      %1782 = vmatprep.subr.bf16.mxu0 0
      %1783 = vmatpush1.bf16.msra.mxu0 0
      %1784 = vmatprep.mubr.bf16.mxu0 0
      %1785 = vmatmul.mubr.bf16.gmra.mrb[0].mxu0 %v1750
      %v1786 = vpop.f32.mrb[0].mxu0
      %v1787 = vadd.f32 0.0, %v1786
      %v1788 = vpop.f32.mrb[0].mxu0
      %v1789 = vpop.f32.mrb[0].mxu0
      %v1790 = vpop.f32.mrb[0].mxu0
      %1791 = vdwg.mxu0
      %v1793 = vsel %vm695, %v1633, 0
      %1795 = vmatprep.subr.bf16.mxu0 0
      %1796 = vmatpush1.bf16.msra.mxu0 %v1634
      %1797 = vmatprep.subr.bf16.mxu0 0
      %1798 = vmatpush1.bf16.msra.mxu0 0
      %1799 = vmatprep.subr.bf16.mxu0 0
      %1800 = vmatpush1.bf16.msra.mxu0 0
      %1801 = vmatprep.subr.bf16.mxu0 0
      %1802 = vmatpush1.bf16.msra.mxu0 0
      %1803 = vmatprep.subr.bf16.mxu0 0
      %1804 = vmatpush1.bf16.msra.mxu0 0
      %1805 = vmatprep.subr.bf16.mxu0 0
      %1806 = vmatpush1.bf16.msra.mxu0 0
      %1807 = vmatprep.subr.bf16.mxu0 0
      %1808 = vmatpush1.bf16.msra.mxu0 0
      %1809 = vmatprep.subr.bf16.mxu0 0
      %1810 = vmatpush1.bf16.msra.mxu0 0
      %1811 = vmatprep.subr.bf16.mxu0 0
      %1812 = vmatpush1.bf16.msra.mxu0 0
      %1813 = vmatprep.subr.bf16.mxu0 0
      %1814 = vmatpush1.bf16.msra.mxu0 0
      %1815 = vmatprep.subr.bf16.mxu0 0
      %1816 = vmatpush1.bf16.msra.mxu0 0
      %1817 = vmatprep.subr.bf16.mxu0 0
      %1818 = vmatpush1.bf16.msra.mxu0 0
      %1819 = vmatprep.subr.bf16.mxu0 0
      %1820 = vmatpush1.bf16.msra.mxu0 0
      %1821 = vmatprep.subr.bf16.mxu0 0
      %1822 = vmatpush1.bf16.msra.mxu0 0
      %1823 = vmatprep.subr.bf16.mxu0 0
      %1824 = vmatpush1.bf16.msra.mxu0 0
      %1825 = vmatprep.subr.bf16.mxu0 0
      %1826 = vmatpush1.bf16.msra.mxu0 0
      %1827 = vmatprep.mubr.bf16.mxu0 0
      %1828 = vmatmul.mubr.bf16.gmra.mrb[0].mxu0 %v1793
      %v1829 = vpop.f32.mrb[0].mxu0
      %v1830 = vadd.f32 %v1787, %v1829
      %v1831 = vpop.f32.mrb[0].mxu0
      %v1832 = vpop.f32.mrb[0].mxu0
      %v1833 = vpop.f32.mrb[0].mxu0
      %1834 = vdwg.mxu0
      %s1835 = scalar_lea.vmem %s8, 1
      %v1836 = vld [vmem:[%s1835] sm:$0x1]
      %v1838 = vlaneseq
      %v1839 = vshrl.u32 %v1838, 7
      %v1840 = vsub.s32 0, %v1839
      %v1841 = vrot.slane %v1836, %v1840
      %v1843 = vadd.f32 %v1830, %v1841
      %v1844 = vadd.f32 %v1429, %v1843
      %v1845 = vmul.f32 %v1844, %v582
      %s1846 = scalar_lea.vmem %s9, 1
      %v1847 = vld [vmem:[%s1846] sm:$0x1]
      %s1848 = scalar_lea.vmem %s10, 1
      %v1849 = vld [vmem:[%s1848] sm:$0x1]
      %v1850 = vsel %vm599, %v1845, 0.0
      %1851 = vadd.xlane.f32.xlu0 %v1850
      %v1852 = vpop.xlane.xlu0 %1851
      %v1853 = vmul.f32 %v1852, %v603
      %v1854 = vsub.f32 %v1845, %v1853
      %v1855 = vmul.f32 %v1854, %v1854
      %v1856 = vsel %vm599, %v1855, 0.0
      %1857 = vadd.xlane.f32.xlu0 %v1856
      %v1858 = vpop.xlane.xlu0 %1857
      %v1859 = vmul.f32 %v1858, %v603
      %v1860 = vadd.f32 %v1859, 1e-05
      %v1861 = vrsqrt.pop %v1860
      %v1862 = vmul.f32 %v1854, %v1861
      %v1864 = vlaneseq
      %v1865 = vshrl.u32 %v1864, 7
      %v1866 = vsub.s32 0, %v1865
      %v1867 = vrot.slane %v1847, %v1866
      %v1869 = vmul.f32 %v1862, %v1867
      %v1871 = vlaneseq
      %v1872 = vshrl.u32 %v1871, 7
      %v1873 = vsub.s32 0, %v1872
      %v1874 = vrot.slane %v1849, %v1873
      %v1876 = vadd.f32 %v1869, %v1874
      %s1877 = scalar_lea.vmem %s11, 128
      %v1878 = vld [vmem:[%s1877] sm:$0xff]
      %v1879 = vld [vmem:[%s1877 + $0x8] sm:$0xff]
      %v1880 = vld [vmem:[%s1877 + $0x10] sm:$0xff]
      %v1881 = vld [vmem:[%s1877 + $0x18] sm:$0xff]
      %v1882 = vpack.c.bf16 %v1876, %v1876
      %v1883 = vpack.c.bf16 %v1879, %v1878
      %v1884 = vpack.c.bf16 %v1881, %v1880
      %s1885 = scalar_lea.vmem %s12, 1
      %v1886 = vld [vmem:[%s1885] sm:$0x1]
      %v1888 = vlaneseq
      %v1889 = vshrl.u32 %v1888, 7
      %v1890 = vsub.s32 0, %v1889
      %v1891 = vrot.slane %v1886, %v1890
      %v1894 = vsel %vm599, %v1882, 0
      %1896 = vmatprep.subr.bf16.mxu0 0
      %1897 = vmatpush1.bf16.msra.mxu0 %v1883
      %1898 = vmatprep.subr.bf16.mxu0 0
      %1899 = vmatpush1.bf16.msra.mxu0 %v1884
      %1900 = vmatprep.subr.bf16.mxu0 0
      %1901 = vmatpush1.bf16.msra.mxu0 0
      %1902 = vmatprep.subr.bf16.mxu0 0
      %1903 = vmatpush1.bf16.msra.mxu0 0
      %1904 = vmatprep.subr.bf16.mxu0 0
      %1905 = vmatpush1.bf16.msra.mxu0 0
      %1906 = vmatprep.subr.bf16.mxu0 0
      %1907 = vmatpush1.bf16.msra.mxu0 0
      %1908 = vmatprep.subr.bf16.mxu0 0
      %1909 = vmatpush1.bf16.msra.mxu0 0
      %1910 = vmatprep.subr.bf16.mxu0 0
      %1911 = vmatpush1.bf16.msra.mxu0 0
      %1912 = vmatprep.subr.bf16.mxu0 0
      %1913 = vmatpush1.bf16.msra.mxu0 0
      %1914 = vmatprep.subr.bf16.mxu0 0
      %1915 = vmatpush1.bf16.msra.mxu0 0
      %1916 = vmatprep.subr.bf16.mxu0 0
      %1917 = vmatpush1.bf16.msra.mxu0 0
      %1918 = vmatprep.subr.bf16.mxu0 0
      %1919 = vmatpush1.bf16.msra.mxu0 0
      %1920 = vmatprep.subr.bf16.mxu0 0
      %1921 = vmatpush1.bf16.msra.mxu0 0
      %1922 = vmatprep.subr.bf16.mxu0 0
      %1923 = vmatpush1.bf16.msra.mxu0 0
      %1924 = vmatprep.subr.bf16.mxu0 0
      %1925 = vmatpush1.bf16.msra.mxu0 0
      %1926 = vmatprep.subr.bf16.mxu0 0
      %1927 = vmatpush1.bf16.msra.mxu0 0
      %1928 = vmatprep.mubr.bf16.mxu0 0
      %1929 = vmatmul.mubr.bf16.gmra.mrb[0].mxu0 %v1894
      %v1930 = vpop.f32.mrb[0].mxu0
      %v1931 = vadd.f32 %v1891, %v1930
      %v1932 = vpop.f32.mrb[0].mxu0
      %v1933 = vpop.f32.mrb[0].mxu0
      %v1934 = vpop.f32.mrb[0].mxu0
      %1935 = vdwg.mxu0
      %1936 = vmatprep.subr.mxu0 0.0
      %1937 = vmatpush1.msra.mxu0 %v1876
      %1938 = vmatprep.subr.mxu0 0.0
      %1939 = vmatpush1.msra.mxu0 0.0
      %1940 = vmatprep.subr.mxu0 0.0
      %1941 = vmatpush1.msra.mxu0 0.0
      %1942 = vmatprep.subr.mxu0 0.0
      %1943 = vmatpush1.msra.mxu0 0.0
      %1944 = vmatprep.subr.mxu0 0.0
      %1945 = vmatpush1.msra.mxu0 0.0
      %1946 = vmatprep.subr.mxu0 0.0
      %1947 = vmatpush1.msra.mxu0 0.0
      %1948 = vmatprep.subr.mxu0 0.0
      %1949 = vmatpush1.msra.mxu0 0.0
      %1950 = vmatprep.subr.mxu0 0.0
      %1951 = vmatpush1.msra.mxu0 0.0
      %1952 = vmatprep.subr.mxu0 0.0
      %1953 = vmatpush1.msra.mxu0 0.0
      %1954 = vmatprep.subr.mxu0 0.0
      %1955 = vmatpush1.msra.mxu0 0.0
      %1956 = vmatprep.subr.mxu0 0.0
      %1957 = vmatpush1.msra.mxu0 0.0
      %1958 = vmatprep.subr.mxu0 0.0
      %1959 = vmatpush1.msra.mxu0 0.0
      %1960 = vmatprep.subr.mxu0 0.0
      %1961 = vmatpush1.msra.mxu0 0.0
      %1962 = vmatprep.subr.mxu0 0.0
      %1963 = vmatpush1.msra.mxu0 0.0
      %1964 = vmatprep.subr.mxu0 0.0
      %1965 = vmatpush1.msra.mxu0 0.0
      %1966 = vmatprep.subr.mxu0 0.0
      %1967 = vmatpush1.msra.mxu0 0.0
      %1968 = vmatprep.subr.mxu0 0.0
      %1969 = vmatpush1.msra.mxu0 0.0
      %1970 = vmatprep.subr.mxu0 0.0
      %1971 = vmatpush1.msra.mxu0 0.0
      %1972 = vmatprep.subr.mxu0 0.0
      %1973 = vmatpush1.msra.mxu0 0.0
      %1974 = vmatprep.subr.mxu0 0.0
      %1975 = vmatpush1.msra.mxu0 0.0
      %1976 = vmatprep.subr.mxu0 0.0
      %1977 = vmatpush1.msra.mxu0 0.0
      %1978 = vmatprep.subr.mxu0 0.0
      %1979 = vmatpush1.msra.mxu0 0.0
      %1980 = vmatprep.subr.mxu0 0.0
      %1981 = vmatpush1.msra.mxu0 0.0
      %1982 = vmatprep.subr.mxu0 0.0
      %1983 = vmatpush1.msra.mxu0 0.0
      %1984 = vmatprep.subr.mxu0 0.0
      %1985 = vmatpush1.msra.mxu0 0.0
      %1986 = vmatprep.subr.mxu0 0.0
      %1987 = vmatpush1.msra.mxu0 0.0
      %1988 = vmatprep.subr.mxu0 0.0
      %1989 = vmatpush1.msra.mxu0 0.0
      %1990 = vmatprep.subr.mxu0 0.0
      %1991 = vmatpush1.msra.mxu0 0.0
      %1992 = vmatprep.subr.mxu0 0.0
      %1993 = vmatpush1.msra.mxu0 0.0
      %1994 = vmatprep.subr.mxu0 0.0
      %1995 = vmatpush1.msra.mxu0 0.0
      %1996 = vmatprep.subr.mxu0 0.0
      %1997 = vmatpush1.msra.mxu0 0.0
      %1998 = vmatprep.subr.mxu0 0.0
      %1999 = vmatpush1.msra.mxu0 0.0
      %2000 = vmatprep.mubr.f32.mxu0 0.0
      %2001 = vmatmul.mubr.f32.gmra.mrb[0].mxu0 %v1106
      %v2002 = vpop.f32.mrb[0].mxu0
      %v2003 = vadd.f32 0.0, %v2002
      %v2004 = vpop.f32.mrb[0].mxu0
      %2005 = vdwg.mxu0
      %s2006 = scalar_lea.vmem %s11, 96
      %v2007 = vld [vmem:[%s2006] sm:$0xff]
      %v2008 = vld [vmem:[%s2006 + $0x8] sm:$0xff]
      %v2009 = vld [vmem:[%s2006 + $0x10] sm:$0xff]
      %v2010 = vld [vmem:[%s2006 + $0x18] sm:$0xff]
      %v2011 = vpack.c.bf16 %v2003, %v2003
      %v2012 = vpack.c.bf16 %v2008, %v2007
      %v2013 = vpack.c.bf16 %v2010, %v2009
      %v2015 = vsel %vm599, %v2011, 0
      %2017 = vmatprep.subr.bf16.mxu0 0
      %2018 = vmatpush1.bf16.msra.mxu0 %v2012
      %2019 = vmatprep.subr.bf16.mxu0 0
      %2020 = vmatpush1.bf16.msra.mxu0 %v2013
      %2021 = vmatprep.subr.bf16.mxu0 0
      %2022 = vmatpush1.bf16.msra.mxu0 0
      %2023 = vmatprep.subr.bf16.mxu0 0
      %2024 = vmatpush1.bf16.msra.mxu0 0
      %2025 = vmatprep.subr.bf16.mxu0 0
      %2026 = vmatpush1.bf16.msra.mxu0 0
      %2027 = vmatprep.subr.bf16.mxu0 0
      %2028 = vmatpush1.bf16.msra.mxu0 0
      %2029 = vmatprep.subr.bf16.mxu0 0
      %2030 = vmatpush1.bf16.msra.mxu0 0
      %2031 = vmatprep.subr.bf16.mxu0 0
      %2032 = vmatpush1.bf16.msra.mxu0 0
      %2033 = vmatprep.subr.bf16.mxu0 0
      %2034 = vmatpush1.bf16.msra.mxu0 0
      %2035 = vmatprep.subr.bf16.mxu0 0
      %2036 = vmatpush1.bf16.msra.mxu0 0
      %2037 = vmatprep.subr.bf16.mxu0 0
      %2038 = vmatpush1.bf16.msra.mxu0 0
      %2039 = vmatprep.subr.bf16.mxu0 0
      %2040 = vmatpush1.bf16.msra.mxu0 0
      %2041 = vmatprep.subr.bf16.mxu0 0
      %2042 = vmatpush1.bf16.msra.mxu0 0
      %2043 = vmatprep.subr.bf16.mxu0 0
      %2044 = vmatpush1.bf16.msra.mxu0 0
      %2045 = vmatprep.subr.bf16.mxu0 0
      %2046 = vmatpush1.bf16.msra.mxu0 0
      %2047 = vmatprep.subr.bf16.mxu0 0
      %2048 = vmatpush1.bf16.msra.mxu0 0
      %2049 = vmatprep.mubr.bf16.mxu0 0
      %2050 = vmatmul.mubr.bf16.gmra.mrb[0].mxu0 %v2015
      %v2051 = vpop.f32.mrb[0].mxu0
      %v2052 = vadd.f32 0.0, %v2051
      %v2053 = vpop.f32.mrb[0].mxu0
      %v2054 = vpop.f32.mrb[0].mxu0
      %v2055 = vpop.f32.mrb[0].mxu0
      %2056 = vdwg.mxu0
      %v2057 = vadd.f32 %v1931, %v2052
      %2058 = vmatprep.subr.mxu0 0.0
      %2059 = vmatpush1.msra.mxu0 %v1876
      %2060 = vmatprep.subr.mxu0 0.0
      %2061 = vmatpush1.msra.mxu0 0.0
      %2062 = vmatprep.subr.mxu0 0.0
      %2063 = vmatpush1.msra.mxu0 0.0
      %2064 = vmatprep.subr.mxu0 0.0
      %2065 = vmatpush1.msra.mxu0 0.0
      %2066 = vmatprep.subr.mxu0 0.0
      %2067 = vmatpush1.msra.mxu0 0.0
      %2068 = vmatprep.subr.mxu0 0.0
      %2069 = vmatpush1.msra.mxu0 0.0
      %2070 = vmatprep.subr.mxu0 0.0
      %2071 = vmatpush1.msra.mxu0 0.0
      %2072 = vmatprep.subr.mxu0 0.0
      %2073 = vmatpush1.msra.mxu0 0.0
      %2074 = vmatprep.subr.mxu0 0.0
      %2075 = vmatpush1.msra.mxu0 0.0
      %2076 = vmatprep.subr.mxu0 0.0
      %2077 = vmatpush1.msra.mxu0 0.0
      %2078 = vmatprep.subr.mxu0 0.0
      %2079 = vmatpush1.msra.mxu0 0.0
      %2080 = vmatprep.subr.mxu0 0.0
      %2081 = vmatpush1.msra.mxu0 0.0
      %2082 = vmatprep.subr.mxu0 0.0
      %2083 = vmatpush1.msra.mxu0 0.0
      %2084 = vmatprep.subr.mxu0 0.0
      %2085 = vmatpush1.msra.mxu0 0.0
      %2086 = vmatprep.subr.mxu0 0.0
      %2087 = vmatpush1.msra.mxu0 0.0
      %2088 = vmatprep.subr.mxu0 0.0
      %2089 = vmatpush1.msra.mxu0 0.0
      %2090 = vmatprep.subr.mxu0 0.0
      %2091 = vmatpush1.msra.mxu0 0.0
      %2092 = vmatprep.subr.mxu0 0.0
      %2093 = vmatpush1.msra.mxu0 0.0
      %2094 = vmatprep.subr.mxu0 0.0
      %2095 = vmatpush1.msra.mxu0 0.0
      %2096 = vmatprep.subr.mxu0 0.0
      %2097 = vmatpush1.msra.mxu0 0.0
      %2098 = vmatprep.subr.mxu0 0.0
      %2099 = vmatpush1.msra.mxu0 0.0
      %2100 = vmatprep.subr.mxu0 0.0
      %2101 = vmatpush1.msra.mxu0 0.0
      %2102 = vmatprep.subr.mxu0 0.0
      %2103 = vmatpush1.msra.mxu0 0.0
      %2104 = vmatprep.subr.mxu0 0.0
      %2105 = vmatpush1.msra.mxu0 0.0
      %2106 = vmatprep.subr.mxu0 0.0
      %2107 = vmatpush1.msra.mxu0 0.0
      %2108 = vmatprep.subr.mxu0 0.0
      %2109 = vmatpush1.msra.mxu0 0.0
      %2110 = vmatprep.subr.mxu0 0.0
      %2111 = vmatpush1.msra.mxu0 0.0
      %2112 = vmatprep.subr.mxu0 0.0
      %2113 = vmatpush1.msra.mxu0 0.0
      %2114 = vmatprep.subr.mxu0 0.0
      %2115 = vmatpush1.msra.mxu0 0.0
      %2116 = vmatprep.subr.mxu0 0.0
      %2117 = vmatpush1.msra.mxu0 0.0
      %2118 = vmatprep.subr.mxu0 0.0
      %2119 = vmatpush1.msra.mxu0 0.0
      %2120 = vmatprep.subr.mxu0 0.0
      %2121 = vmatpush1.msra.mxu0 0.0
      %2122 = vmatprep.mubr.f32.mxu0 0.0
      %2123 = vmatmul.mubr.f32.gmra.mrb[0].mxu0 %v1230
      %v2124 = vpop.f32.mrb[0].mxu0
      %v2125 = vadd.f32 0.0, %v2124
      %v2126 = vpop.f32.mrb[0].mxu0
      %2127 = vdwg.mxu0
      %s2128 = scalar_lea.vmem %s11, 160
      %v2129 = vld [vmem:[%s2128] sm:$0xff]
      %v2130 = vld [vmem:[%s2128 + $0x8] sm:$0xff]
      %v2131 = vld [vmem:[%s2128 + $0x10] sm:$0xff]
      %v2132 = vld [vmem:[%s2128 + $0x18] sm:$0xff]
      %v2133 = vpack.c.bf16 %v2125, %v2125
      %v2134 = vpack.c.bf16 %v2130, %v2129
      %v2135 = vpack.c.bf16 %v2132, %v2131
      %v2137 = vsel %vm599, %v2133, 0
      %2139 = vmatprep.subr.bf16.mxu0 0
      %2140 = vmatpush1.bf16.msra.mxu0 %v2134
      %2141 = vmatprep.subr.bf16.mxu0 0
      %2142 = vmatpush1.bf16.msra.mxu0 %v2135
      %2143 = vmatprep.subr.bf16.mxu0 0
      %2144 = vmatpush1.bf16.msra.mxu0 0
      %2145 = vmatprep.subr.bf16.mxu0 0
      %2146 = vmatpush1.bf16.msra.mxu0 0
      %2147 = vmatprep.subr.bf16.mxu0 0
      %2148 = vmatpush1.bf16.msra.mxu0 0
      %2149 = vmatprep.subr.bf16.mxu0 0
      %2150 = vmatpush1.bf16.msra.mxu0 0
      %2151 = vmatprep.subr.bf16.mxu0 0
      %2152 = vmatpush1.bf16.msra.mxu0 0
      %2153 = vmatprep.subr.bf16.mxu0 0
      %2154 = vmatpush1.bf16.msra.mxu0 0
      %2155 = vmatprep.subr.bf16.mxu0 0
      %2156 = vmatpush1.bf16.msra.mxu0 0
      %2157 = vmatprep.subr.bf16.mxu0 0
      %2158 = vmatpush1.bf16.msra.mxu0 0
      %2159 = vmatprep.subr.bf16.mxu0 0
      %2160 = vmatpush1.bf16.msra.mxu0 0
      %2161 = vmatprep.subr.bf16.mxu0 0
      %2162 = vmatpush1.bf16.msra.mxu0 0
      %2163 = vmatprep.subr.bf16.mxu0 0
      %2164 = vmatpush1.bf16.msra.mxu0 0
      %2165 = vmatprep.subr.bf16.mxu0 0
      %2166 = vmatpush1.bf16.msra.mxu0 0
      %2167 = vmatprep.subr.bf16.mxu0 0
      %2168 = vmatpush1.bf16.msra.mxu0 0
      %2169 = vmatprep.subr.bf16.mxu0 0
      %2170 = vmatpush1.bf16.msra.mxu0 0
      %2171 = vmatprep.mubr.bf16.mxu0 0
      %2172 = vmatmul.mubr.bf16.gmra.mrb[0].mxu0 %v2137
      %v2173 = vpop.f32.mrb[0].mxu0
      %v2174 = vadd.f32 0.0, %v2173
      %v2175 = vpop.f32.mrb[0].mxu0
      %v2176 = vpop.f32.mrb[0].mxu0
      %v2177 = vpop.f32.mrb[0].mxu0
      %2178 = vdwg.mxu0
      %v2179 = vadd.f32 %v2057, %v2174
      %v2180 = vmul.f32 %v2179, 0.57735026
      %v2181 = vmax.f32 %v2180, 0.0
      %s2182 = scalar_lea.vmem %s13, 128
      %v2183 = vld [vmem:[%s2182] sm:$0xff]
      %v2184 = vld [vmem:[%s2182 + $0x8] sm:$0xff]
      %v2185 = vld [vmem:[%s2182 + $0x10] sm:$0xff]
      %v2186 = vld [vmem:[%s2182 + $0x18] sm:$0xff]
      %v2187 = vld [vmem:[%s2182 + $0x20] sm:$0xff]
      %v2188 = vld [vmem:[%s2182 + $0x28] sm:$0xff]
      %v2189 = vld [vmem:[%s2182 + $0x30] sm:$0xff]
      %v2190 = vld [vmem:[%s2182 + $0x38] sm:$0xff]
      %v2191 = vld [vmem:[%s2182 + $0x40] sm:$0xff]
      %v2192 = vld [vmem:[%s2182 + $0x48] sm:$0xff]
      %v2193 = vld [vmem:[%s2182 + $0x50] sm:$0xff]
      %v2194 = vld [vmem:[%s2182 + $0x58] sm:$0xff]
      %v2195 = vld [vmem:[%s2182 + $0x60] sm:$0xff]
      %v2196 = vld [vmem:[%s2182 + $0x68] sm:$0xff]
      %v2197 = vld [vmem:[%s2182 + $0x70] sm:$0xff]
      %v2198 = vld [vmem:[%s2182 + $0x78] sm:$0xff]
      %v2199 = vpack.c.bf16 %v2181, %v2181
      %v2200 = vpack.c.bf16 %v2184, %v2183
      %v2201 = vpack.c.bf16 %v2186, %v2185
      %v2202 = vpack.c.bf16 %v2188, %v2187
      %v2203 = vpack.c.bf16 %v2190, %v2189
      %v2204 = vpack.c.bf16 %v2192, %v2191
      %v2205 = vpack.c.bf16 %v2194, %v2193
      %v2206 = vpack.c.bf16 %v2196, %v2195
      %v2207 = vpack.c.bf16 %v2198, %v2197
      %s2208 = scalar_lea.vmem %s14, 1
      %v2209 = vld [vmem:[%s2208] sm:$0x1]
      %v2211 = vlaneseq
      %v2212 = vshrl.u32 %v2211, 7
      %v2213 = vsub.s32 0, %v2212
      %v2214 = vrot.slane %v2209, %v2213
      %2216 = vmatprep.subr.bf16.mxu0 0
      %2217 = vmatpush1.bf16.msra.mxu0 %v2200
      %2218 = vmatprep.subr.bf16.mxu0 0
      %2219 = vmatpush1.bf16.msra.mxu0 %v2201
      %2220 = vmatprep.subr.bf16.mxu0 0
      %2221 = vmatpush1.bf16.msra.mxu0 %v2202
      %2222 = vmatprep.subr.bf16.mxu0 0
      %2223 = vmatpush1.bf16.msra.mxu0 %v2203
      %2224 = vmatprep.subr.bf16.mxu0 0
      %2225 = vmatpush1.bf16.msra.mxu0 %v2204
      %2226 = vmatprep.subr.bf16.mxu0 0
      %2227 = vmatpush1.bf16.msra.mxu0 %v2205
      %2228 = vmatprep.subr.bf16.mxu0 0
      %2229 = vmatpush1.bf16.msra.mxu0 %v2206
      %2230 = vmatprep.subr.bf16.mxu0 0
      %2231 = vmatpush1.bf16.msra.mxu0 %v2207
      %2232 = vmatprep.subr.bf16.mxu0 0
      %2233 = vmatpush1.bf16.msra.mxu0 0
      %2234 = vmatprep.subr.bf16.mxu0 0
      %2235 = vmatpush1.bf16.msra.mxu0 0
      %2236 = vmatprep.subr.bf16.mxu0 0
      %2237 = vmatpush1.bf16.msra.mxu0 0
      %2238 = vmatprep.subr.bf16.mxu0 0
      %2239 = vmatpush1.bf16.msra.mxu0 0
      %2240 = vmatprep.subr.bf16.mxu0 0
      %2241 = vmatpush1.bf16.msra.mxu0 0
      %2242 = vmatprep.subr.bf16.mxu0 0
      %2243 = vmatpush1.bf16.msra.mxu0 0
      %2244 = vmatprep.subr.bf16.mxu0 0
      %2245 = vmatpush1.bf16.msra.mxu0 0
      %2246 = vmatprep.subr.bf16.mxu0 0
      %2247 = vmatpush1.bf16.msra.mxu0 0
      %2248 = vmatprep.mubr.bf16.mxu0 0
      %2249 = vmatmul.mubr.bf16.gmra.mrb[0].mxu0 %v2199
      %v2250 = vpop.f32.mrb[0].mxu0
      %v2251 = vadd.f32 %v2214, %v2250
      %v2252 = vpop.f32.mrb[0].mxu0
      %v2253 = vpop.f32.mrb[0].mxu0
      %v2254 = vpop.f32.mrb[0].mxu0
      %2255 = vdwg.mxu0
      %v2256 = vadd.f32 %v1845, %v2251
      %v2257 = vmul.f32 %v2256, %v582
      %v2258 = vld [vmem:[%s15] sm:$0x1]
      %v2259 = vld [vmem:[%s16] sm:$0x1]
      %v2260 = vsel %vm599, %v2257, 0.0
      %2261 = vadd.xlane.f32.xlu0 %v2260
      %v2262 = vpop.xlane.xlu0 %2261
      %v2263 = vmul.f32 %v2262, %v603
      %v2264 = vsub.f32 %v2257, %v2263
      %v2265 = vmul.f32 %v2264, %v2264
      %v2266 = vsel %vm599, %v2265, 0.0
      %2267 = vadd.xlane.f32.xlu0 %v2266
      %v2268 = vpop.xlane.xlu0 %2267
      %v2269 = vmul.f32 %v2268, %v603
      %v2270 = vadd.f32 %v2269, 1e-05
      %v2271 = vrsqrt.pop %v2270
      %v2272 = vmul.f32 %v2264, %v2271
      %v2274 = vlaneseq
      %v2275 = vshrl.u32 %v2274, 7
      %v2276 = vsub.s32 0, %v2275
      %v2277 = vrot.slane %v2258, %v2276
      %v2279 = vmul.f32 %v2272, %v2277
      %v2281 = vlaneseq
      %v2282 = vshrl.u32 %v2281, 7
      %v2283 = vsub.s32 0, %v2282
      %v2284 = vrot.slane %v2259, %v2283
      %v2286 = vadd.f32 %v2279, %v2284
      %v2287 = vmul.f32 %v2286, %v582
      %2288 = vst.msk [vmem:[%s574] sm:$0xff] %vm599, %v2287
      %p2289 = scmp.lt.s32.totalorder %s28, 1
      %s2290 = scalar_select %p2289, %s28, 1
      %s2291 = smul.addr %s2290, 8
      %s2292 = scalar_lea.vmem %s17, %s2291
      // Predicated region
      $region89: #{prodiff_teacher_forward.2} parent=87 // pred_check
        %p2293 = pneg %p418
      $region90: #{prodiff_teacher_forward.2} parent=87 // pred_check_branch
        %2295 = sbr.rel (%p2293) target = $region92
      $region91: #{prodiff_teacher_forward.2} parent=87 // pred_region
        _
      $region92: #{prodiff_teacher_forward.2} parent=87 // pred_fallthru
        _
    $region88: #{prodiff_teacher_forward.2} parent=5 // pred_fallthru
      _
    %p2296 = scmp.le.s32.totalorder 2, %s23
    // Predicated region
    $region93: #{prodiff_teacher_forward.2} parent=5 // pred_check
      %p2297 = pneg %p2296
    $region94: #{prodiff_teacher_forward.2} parent=5 // pred_check_branch
      %2299 = sbr.rel (%p2297) target = $region96
    $region95: #{prodiff_teacher_forward.2} parent=5 // pred_region
      %s2300 = ssub.s32 %s23, 2
      // Predicated region
      $region97: #{prodiff_teacher_forward.2} parent=95 // pred_check
        %p2301 = pneg %p424
      $region98: #{prodiff_teacher_forward.2} parent=95 // pred_check_branch
        %2303 = sbr.rel (%p2301) target = $region100
      $region99: #{prodiff_teacher_forward.2} parent=95 // pred_region
        %p2304 = scmp.lt.s32.totalorder %s29, 1
        %s2305 = scalar_select %p2304, %s29, 1
        %s2306 = smul.addr %s2305, 8
        %s2307 = scalar_lea.vmem %s17, %s2306
      $region100: #{prodiff_teacher_forward.2} parent=95 // pred_fallthru
        _
    $region96: #{prodiff_teacher_forward.2} parent=5 // pred_fallthru
      _
  $region6: #{prodiff_teacher_forward.2} parent=0 // loop_footer
    %s27 = sadd.s32 1, %s23
  $region7: #{prodiff_teacher_forward.2} parent=0 // loop_footer_branch
    %22 = sbr.rel target = $region3
  $region8: #{prodiff_teacher_forward.2} parent=0 // loop_exit
    _

// kernel: prodiff_teacher_forward.3
$region0: #{prodiff_teacher_forward.3}
  #allocation0 [shape = 'u32[]', space=smem, size = 0x4, offset = 0x4, fixed_abs, tag = 'smem constant byte address 0x4 - core index']
  #allocation1 [shape = 'u32[144,128]{1,0:T(1,128)}', space=vmem, size = 0x12000, scoped, tag = 'internal scratch']
  %s0 = inlined_call_operand.vmem [shape: f32[5,4], index: 0, kind: input, shape index: {}]
  %s1 = inlined_call_operand.vmem [shape: f32[2,16,32], index: 1, kind: input, shape index: {}]
  %s2 = inlined_call_operand.vmem [shape: f32[2,16,16], index: 2, kind: input, shape index: {}]
  %s3 = inlined_call_operand.vmem [shape: f32[4,2,16,16], index: 3, kind: input, shape index: {}]
  %s4 = inlined_call_operand.vmem [shape: f32[4,32], index: 4, kind: input, shape index: {}]
  %s5 = inlined_call_operand.vmem [shape: f32[32,128], index: 5, kind: input, shape index: {}]
  %s6 = inlined_call_operand.vmem [shape: f32[1,128], index: 6, kind: input, shape index: {}]
  %s7 = inlined_call_operand.vmem [shape: f32[128,32], index: 7, kind: input, shape index: {}]
  %s8 = inlined_call_operand.vmem [shape: f32[1,32], index: 8, kind: input, shape index: {}]
  %s9 = inlined_call_operand.vmem [shape: f32[2,32,32], index: 9, kind: input, shape index: {}]
  %s10 = inlined_call_operand.vmem [shape: f32[2,1,32], index: 10, kind: input, shape index: {}]
  %s11 = inlined_call_operand.vmem [shape: f32[16,32], index: 11, kind: input, shape index: {}]
  %s12 = inlined_call_operand.vmem [shape: f32[1,32], index: 12, kind: input, shape index: {}]
  %s13 = inlined_call_operand.vmem [shape: f32[32,128], index: 13, kind: input, shape index: {}]
  %s14 = inlined_call_operand.vmem [shape: f32[1,128], index: 14, kind: input, shape index: {}]
  %s15 = inlined_call_operand.vmem [shape: f32[2,3,32,64], index: 15, kind: input, shape index: {}]
  %s16 = inlined_call_operand.vmem [shape: f32[2,1,64], index: 16, kind: input, shape index: {}]
  %s17 = inlined_call_operand.vmem [shape: f32[2,32,64], index: 17, kind: input, shape index: {}]
  %s18 = inlined_call_operand.vmem [shape: f32[2,1,64], index: 18, kind: input, shape index: {}]
  %s19 = inlined_call_operand.vmem [shape: f32[32,32], index: 19, kind: input, shape index: {}]
  %s20 = inlined_call_operand.vmem [shape: f32[1,32], index: 20, kind: input, shape index: {}]
  %s21 = inlined_call_operand.vmem [shape: f32[32,16], index: 21, kind: input, shape index: {}]
  %s22 = inlined_call_operand.vmem [shape: f32[1,16], index: 22, kind: input, shape index: {}]
  %s23 = inlined_call_operand.vmem [shape: f32[1,16], index: 23, kind: input, shape index: {}]
  %s24 = inlined_call_operand.vmem [shape: f32[1,16], index: 24, kind: input, shape index: {}]
  %s25 = inlined_call_operand.hbm [shape: f32[2,16,16], index: 25, kind: output, shape index: {}]
  %s26 = sld [smem:[#allocation0]]
  $region175: #{prodiff_teacher_forward.3} parent=0
    _
  %s28 = ssub.s32 1, %s26
  %s29 = scalar_select 0, %s28, %s26
  $region1: #{prodiff_teacher_forward.3} parent=0
    #allocation2 [shape = 'u8[4096]{0}', space=smem, size = 0x1000, scoped, tag = 'input window, operand 0, single buffered']
    #allocation3 [shape = 's32[2]{0}', space=sflag, size = 0x8, scoped, tag = 'scoped memory for prodiff_teacher_forward.3']
    #allocation4 [shape = 's32[2]{0}', space=sflag, size = 0x8, scoped, tag = 'scoped memory for prodiff_teacher_forward.3']
    #allocation5 [shape = 'u8[65536]{0}', space=vmem, size = 0x10000, scoped, tag = 'input window, operand 3']
    #allocation6 [shape = 'u8[16384]{0}', space=vmem, size = 0x4000, scoped, tag = 'output window, operand 0']
    %30 = vsyncpa [#allocation4], 0
    %31 = vsyncpa [#allocation3], 0
    %s32 = scalar_lea.sflag [#allocation3], 1
    %33 = vsyncpa %s32, 0
    loop: start=0, step=1, limit=4
    $region2: #{prodiff_teacher_forward.3} parent=1 // loop_pre_header
      _
    $region3: #{prodiff_teacher_forward.3} parent=1 // loop_header
      %s35 = sphi 0, %s39
      %p36 = scmp.ge.s32.totalorder %s35, 4
      %s43 = sphi 0, %s43
      %s45 = sphi 0, %s43
      %s46 = sphi 0, %s45
      %s60 = sphi 0, %s46
      %s66 = sphi 0, %s68
      %s69 = sphi 0, %s66
      %s70 = sphi 0, %s69
      %s86 = sphi 0, %s70
      %s92 = sphi 0, %s94
      %s95 = sphi 0, %s92
      %s96 = sphi 0, %s95
      %s112 = sphi 0, %s96
      %s118 = sphi 0, %s120
      %s121 = sphi 0, %s118
      %s122 = sphi 0, %s121
      %s138 = sphi 0, %s122
      %s142 = sphi 0, %s142
      %s144 = sphi 0, %s142
      %s145 = sphi 0, %s144
      %s159 = sphi 0, %s145
      %s163 = sphi 0, %s163
      %s165 = sphi 0, %s163
      %s166 = sphi 0, %s165
      %s180 = sphi 0, %s166
      %s184 = sphi 0, %s184
      %s186 = sphi 0, %s184
      %s187 = sphi 0, %s186
      %s201 = sphi 0, %s187
      %s205 = sphi 0, %s205
      %s207 = sphi 0, %s205
      %s208 = sphi 0, %s207
      %s222 = sphi 0, %s208
      %s226 = sphi 0, %s226
      %s228 = sphi 0, %s226
      %s229 = sphi 0, %s228
      %s243 = sphi 0, %s229
      %s247 = sphi 0, %s247
      %s249 = sphi 0, %s247
      %s250 = sphi 0, %s249
      %s264 = sphi 0, %s250
      %s268 = sphi 0, %s268
      %s270 = sphi 0, %s268
      %s271 = sphi 0, %s270
      %s285 = sphi 0, %s271
      %s289 = sphi 0, %s289
      %s291 = sphi 0, %s289
      %s292 = sphi 0, %s291
      %s306 = sphi 0, %s292
      %s310 = sphi 0, %s310
      %s312 = sphi 0, %s310
      %s313 = sphi 0, %s312
      %s327 = sphi 0, %s313
      %s331 = sphi 0, %s331
      %s333 = sphi 0, %s331
      %s334 = sphi 0, %s333
      %s348 = sphi 0, %s334
      %s352 = sphi 0, %s352
      %s354 = sphi 0, %s352
      %s355 = sphi 0, %s354
      %s369 = sphi 0, %s355
      %s373 = sphi 0, %s373
      %s375 = sphi 0, %s373
      %s376 = sphi 0, %s375
      %s390 = sphi 0, %s376
      %s394 = sphi 0, %s394
      %s396 = sphi 0, %s394
      %s397 = sphi 0, %s396
      %s411 = sphi 0, %s397
      %s415 = sphi 0, %s415
      %s417 = sphi 0, %s415
      %s418 = sphi 0, %s417
      %s432 = sphi 0, %s418
      %s436 = sphi 0, %s436
      %s438 = sphi 0, %s436
      %s439 = sphi 0, %s438
      %s453 = sphi 0, %s439
      %s457 = sphi 0, %s457
      %s459 = sphi 0, %s457
      %s460 = sphi 0, %s459
      %s474 = sphi 0, %s460
      %s478 = sphi 0, %s478
      %s480 = sphi 0, %s478
      %s481 = sphi 0, %s480
      %s495 = sphi 0, %s481
      %s499 = sphi 0, %s499
      %s501 = sphi 0, %s499
      %s502 = sphi 0, %s501
      %s516 = sphi 0, %s502
      %s520 = sphi 0, %s520
      %s522 = sphi 0, %s520
      %s523 = sphi 0, %s522
      %s537 = sphi 0, %s523
      %s541 = sphi 0, %s541
      %s543 = sphi 0, %s541
      %s544 = sphi 0, %s543
      %s558 = sphi 0, %s544
      %s562 = sphi 0, %s562
      %s564 = sphi 0, %s562
      %s565 = sphi 0, %s564
      %s579 = sphi 0, %s565
      %s585 = sphi 0, %s587
      %s588 = sphi 0, %s585
      %s589 = sphi 0, %s588
      %s605 = sphi 0, %s589
    $region4: #{prodiff_teacher_forward.3} parent=1 // loop_header_branch
      %38 = sbr.rel (%p36) target = $region8
    $region5: #{prodiff_teacher_forward.3} parent=1 // loop_body
      %s40 = ssub.s32 %s35, 1
      %s41 = ssub.s32 %s35, 2
      %s42 = sadd.s32 %s35, 1
      %s44 = sadd.s32 %s43, 1
      %p47 = scmp.eq.s32.totalorder %s35, 1
      %p48 = scmp.ne.s32.totalorder %s43, %s45
      %p49 = scmp.eq.s32.totalorder %s35, 0
      %p50 = por %p48, %p49
      %p51 = scmp.ne.s32.totalorder %s43, %s45
      %p52 = scmp.eq.s32.totalorder %s40, 1
      %p53 = por %p51, %p52
      %p54 = scmp.ne.s32.totalorder %s45, %s46
      %p55 = scmp.eq.s32.totalorder %s40, 0
      %p56 = por %p54, %p55
      %p57 = scmp.ne.s32.totalorder %s45, %s46
      %p58 = scmp.eq.s32.totalorder %s41, 1
      %p59 = por %p57, %p58
      %p61 = scmp.ne.s32.totalorder %s46, %s60
      %p62 = scmp.eq.s32.totalorder %s41, 0
      %p63 = por %p61, %p62
      %s64 = ssub.s32 %s35, %s42
      %p65 = scmp.eq.s32.totalorder %s64, 0
      %s67 = sadd.s32 %s66, 1
      %s68 = scalar_select %p65, %s66, %s67
      %p71 = pneg %p65
      %p72 = scmp.eq.s32.totalorder %s35, 1
      %p73 = por %p71, %p72
      %p74 = scmp.ne.s32.totalorder %s66, %s69
      %p75 = scmp.eq.s32.totalorder %s35, 0
      %p76 = por %p74, %p75
      %p77 = scmp.ne.s32.totalorder %s66, %s69
      %p78 = scmp.eq.s32.totalorder %s40, 1
      %p79 = por %p77, %p78
      %p80 = scmp.ne.s32.totalorder %s69, %s70
      %p81 = scmp.eq.s32.totalorder %s40, 0
      %p82 = por %p80, %p81
      %p83 = scmp.ne.s32.totalorder %s69, %s70
      %p84 = scmp.eq.s32.totalorder %s41, 1
      %p85 = por %p83, %p84
      %p87 = scmp.ne.s32.totalorder %s70, %s86
      %p88 = scmp.eq.s32.totalorder %s41, 0
      %p89 = por %p87, %p88
      %s90 = ssub.s32 %s35, %s42
      %p91 = scmp.eq.s32.totalorder %s90, 0
      %s93 = sadd.s32 %s92, 1
      %s94 = scalar_select %p91, %s92, %s93
      %p97 = pneg %p91
      %p98 = scmp.eq.s32.totalorder %s35, 1
      %p99 = por %p97, %p98
      %p100 = scmp.ne.s32.totalorder %s92, %s95
      %p101 = scmp.eq.s32.totalorder %s35, 0
      %p102 = por %p100, %p101
      %p103 = scmp.ne.s32.totalorder %s92, %s95
      %p104 = scmp.eq.s32.totalorder %s40, 1
      %p105 = por %p103, %p104
      %p106 = scmp.ne.s32.totalorder %s95, %s96
      %p107 = scmp.eq.s32.totalorder %s40, 0
      %p108 = por %p106, %p107
      %p109 = scmp.ne.s32.totalorder %s95, %s96
      %p110 = scmp.eq.s32.totalorder %s41, 1
      %p111 = por %p109, %p110
      %p113 = scmp.ne.s32.totalorder %s96, %s112
      %p114 = scmp.eq.s32.totalorder %s41, 0
      %p115 = por %p113, %p114
      %s116 = ssub.s32 %s35, %s42
      %p117 = scmp.eq.s32.totalorder %s116, 0
      %s119 = sadd.s32 %s118, 1
      %s120 = scalar_select %p117, %s118, %s119
      %p123 = pneg %p117
      %p124 = scmp.eq.s32.totalorder %s35, 1
      %p125 = por %p123, %p124
      %p126 = scmp.ne.s32.totalorder %s118, %s121
      %p127 = scmp.eq.s32.totalorder %s35, 0
      %p128 = por %p126, %p127
      %p129 = scmp.ne.s32.totalorder %s118, %s121
      %p130 = scmp.eq.s32.totalorder %s40, 1
      %p131 = por %p129, %p130
      %p132 = scmp.ne.s32.totalorder %s121, %s122
      %p133 = scmp.eq.s32.totalorder %s40, 0
      %p134 = por %p132, %p133
      %p135 = scmp.ne.s32.totalorder %s121, %s122
      %p136 = scmp.eq.s32.totalorder %s41, 1
      %p137 = por %p135, %p136
      %p139 = scmp.ne.s32.totalorder %s122, %s138
      %p140 = scmp.eq.s32.totalorder %s41, 0
      %p141 = por %p139, %p140
      %s143 = sadd.s32 %s142, 1
      %p146 = scmp.eq.s32.totalorder %s35, 1
      %p147 = scmp.ne.s32.totalorder %s142, %s144
      %p148 = scmp.eq.s32.totalorder %s35, 0
      %p149 = por %p147, %p148
      %p150 = scmp.ne.s32.totalorder %s142, %s144
      %p151 = scmp.eq.s32.totalorder %s40, 1
      %p152 = por %p150, %p151
      %p153 = scmp.ne.s32.totalorder %s144, %s145
      %p154 = scmp.eq.s32.totalorder %s40, 0
      %p155 = por %p153, %p154
      %p156 = scmp.ne.s32.totalorder %s144, %s145
      %p157 = scmp.eq.s32.totalorder %s41, 1
      %p158 = por %p156, %p157
      %p160 = scmp.ne.s32.totalorder %s145, %s159
      %p161 = scmp.eq.s32.totalorder %s41, 0
      %p162 = por %p160, %p161
      %s164 = sadd.s32 %s163, 1
      %p167 = scmp.eq.s32.totalorder %s35, 1
      %p168 = scmp.ne.s32.totalorder %s163, %s165
      %p169 = scmp.eq.s32.totalorder %s35, 0
      %p170 = por %p168, %p169
      %p171 = scmp.ne.s32.totalorder %s163, %s165
      %p172 = scmp.eq.s32.totalorder %s40, 1
      %p173 = por %p171, %p172
      %p174 = scmp.ne.s32.totalorder %s165, %s166
      %p175 = scmp.eq.s32.totalorder %s40, 0
      %p176 = por %p174, %p175
      %p177 = scmp.ne.s32.totalorder %s165, %s166
      %p178 = scmp.eq.s32.totalorder %s41, 1
      %p179 = por %p177, %p178
      %p181 = scmp.ne.s32.totalorder %s166, %s180
      %p182 = scmp.eq.s32.totalorder %s41, 0
      %p183 = por %p181, %p182
      %s185 = sadd.s32 %s184, 1
      %p188 = scmp.eq.s32.totalorder %s35, 1
      %p189 = scmp.ne.s32.totalorder %s184, %s186
      %p190 = scmp.eq.s32.totalorder %s35, 0
      %p191 = por %p189, %p190
      %p192 = scmp.ne.s32.totalorder %s184, %s186
      %p193 = scmp.eq.s32.totalorder %s40, 1
      %p194 = por %p192, %p193
      %p195 = scmp.ne.s32.totalorder %s186, %s187
      %p196 = scmp.eq.s32.totalorder %s40, 0
      %p197 = por %p195, %p196
      %p198 = scmp.ne.s32.totalorder %s186, %s187
      %p199 = scmp.eq.s32.totalorder %s41, 1
      %p200 = por %p198, %p199
      %p202 = scmp.ne.s32.totalorder %s187, %s201
      %p203 = scmp.eq.s32.totalorder %s41, 0
      %p204 = por %p202, %p203
      %s206 = sadd.s32 %s205, 1
      %p209 = scmp.eq.s32.totalorder %s35, 1
      %p210 = scmp.ne.s32.totalorder %s205, %s207
      %p211 = scmp.eq.s32.totalorder %s35, 0
      %p212 = por %p210, %p211
      %p213 = scmp.ne.s32.totalorder %s205, %s207
      %p214 = scmp.eq.s32.totalorder %s40, 1
      %p215 = por %p213, %p214
      %p216 = scmp.ne.s32.totalorder %s207, %s208
      %p217 = scmp.eq.s32.totalorder %s40, 0
      %p218 = por %p216, %p217
      %p219 = scmp.ne.s32.totalorder %s207, %s208
      %p220 = scmp.eq.s32.totalorder %s41, 1
      %p221 = por %p219, %p220
      %p223 = scmp.ne.s32.totalorder %s208, %s222
      %p224 = scmp.eq.s32.totalorder %s41, 0
      %p225 = por %p223, %p224
      %s227 = sadd.s32 %s226, 1
      %p230 = scmp.eq.s32.totalorder %s35, 1
      %p231 = scmp.ne.s32.totalorder %s226, %s228
      %p232 = scmp.eq.s32.totalorder %s35, 0
      %p233 = por %p231, %p232
      %p234 = scmp.ne.s32.totalorder %s226, %s228
      %p235 = scmp.eq.s32.totalorder %s40, 1
      %p236 = por %p234, %p235
      %p237 = scmp.ne.s32.totalorder %s228, %s229
      %p238 = scmp.eq.s32.totalorder %s40, 0
      %p239 = por %p237, %p238
      %p240 = scmp.ne.s32.totalorder %s228, %s229
      %p241 = scmp.eq.s32.totalorder %s41, 1
      %p242 = por %p240, %p241
      %p244 = scmp.ne.s32.totalorder %s229, %s243
      %p245 = scmp.eq.s32.totalorder %s41, 0
      %p246 = por %p244, %p245
      %s248 = sadd.s32 %s247, 1
      %p251 = scmp.eq.s32.totalorder %s35, 1
      %p252 = scmp.ne.s32.totalorder %s247, %s249
      %p253 = scmp.eq.s32.totalorder %s35, 0
      %p254 = por %p252, %p253
      %p255 = scmp.ne.s32.totalorder %s247, %s249
      %p256 = scmp.eq.s32.totalorder %s40, 1
      %p257 = por %p255, %p256
      %p258 = scmp.ne.s32.totalorder %s249, %s250
      %p259 = scmp.eq.s32.totalorder %s40, 0
      %p260 = por %p258, %p259
      %p261 = scmp.ne.s32.totalorder %s249, %s250
      %p262 = scmp.eq.s32.totalorder %s41, 1
      %p263 = por %p261, %p262
      %p265 = scmp.ne.s32.totalorder %s250, %s264
      %p266 = scmp.eq.s32.totalorder %s41, 0
      %p267 = por %p265, %p266
      %s269 = sadd.s32 %s268, 1
      %p272 = scmp.eq.s32.totalorder %s35, 1
      %p273 = scmp.ne.s32.totalorder %s268, %s270
      %p274 = scmp.eq.s32.totalorder %s35, 0
      %p275 = por %p273, %p274
      %p276 = scmp.ne.s32.totalorder %s268, %s270
      %p277 = scmp.eq.s32.totalorder %s40, 1
      %p278 = por %p276, %p277
      %p279 = scmp.ne.s32.totalorder %s270, %s271
      %p280 = scmp.eq.s32.totalorder %s40, 0
      %p281 = por %p279, %p280
      %p282 = scmp.ne.s32.totalorder %s270, %s271
      %p283 = scmp.eq.s32.totalorder %s41, 1
      %p284 = por %p282, %p283
      %p286 = scmp.ne.s32.totalorder %s271, %s285
      %p287 = scmp.eq.s32.totalorder %s41, 0
      %p288 = por %p286, %p287
      %s290 = sadd.s32 %s289, 1
      %p293 = scmp.eq.s32.totalorder %s35, 1
      %p294 = scmp.ne.s32.totalorder %s289, %s291
      %p295 = scmp.eq.s32.totalorder %s35, 0
      %p296 = por %p294, %p295
      %p297 = scmp.ne.s32.totalorder %s289, %s291
      %p298 = scmp.eq.s32.totalorder %s40, 1
      %p299 = por %p297, %p298
      %p300 = scmp.ne.s32.totalorder %s291, %s292
      %p301 = scmp.eq.s32.totalorder %s40, 0
      %p302 = por %p300, %p301
      %p303 = scmp.ne.s32.totalorder %s291, %s292
      %p304 = scmp.eq.s32.totalorder %s41, 1
      %p305 = por %p303, %p304
      %p307 = scmp.ne.s32.totalorder %s292, %s306
      %p308 = scmp.eq.s32.totalorder %s41, 0
      %p309 = por %p307, %p308
      %s311 = sadd.s32 %s310, 1
      %p314 = scmp.eq.s32.totalorder %s35, 1
      %p315 = scmp.ne.s32.totalorder %s310, %s312
      %p316 = scmp.eq.s32.totalorder %s35, 0
      %p317 = por %p315, %p316
      %p318 = scmp.ne.s32.totalorder %s310, %s312
      %p319 = scmp.eq.s32.totalorder %s40, 1
      %p320 = por %p318, %p319
      %p321 = scmp.ne.s32.totalorder %s312, %s313
      %p322 = scmp.eq.s32.totalorder %s40, 0
      %p323 = por %p321, %p322
      %p324 = scmp.ne.s32.totalorder %s312, %s313
      %p325 = scmp.eq.s32.totalorder %s41, 1
      %p326 = por %p324, %p325
      %p328 = scmp.ne.s32.totalorder %s313, %s327
      %p329 = scmp.eq.s32.totalorder %s41, 0
      %p330 = por %p328, %p329
      %s332 = sadd.s32 %s331, 1
      %p335 = scmp.eq.s32.totalorder %s35, 1
      %p336 = scmp.ne.s32.totalorder %s331, %s333
      %p337 = scmp.eq.s32.totalorder %s35, 0
      %p338 = por %p336, %p337
      %p339 = scmp.ne.s32.totalorder %s331, %s333
      %p340 = scmp.eq.s32.totalorder %s40, 1
      %p341 = por %p339, %p340
      %p342 = scmp.ne.s32.totalorder %s333, %s334
      %p343 = scmp.eq.s32.totalorder %s40, 0
      %p344 = por %p342, %p343
      %p345 = scmp.ne.s32.totalorder %s333, %s334
      %p346 = scmp.eq.s32.totalorder %s41, 1
      %p347 = por %p345, %p346
      %p349 = scmp.ne.s32.totalorder %s334, %s348
      %p350 = scmp.eq.s32.totalorder %s41, 0
      %p351 = por %p349, %p350
      %s353 = sadd.s32 %s352, 1
      %p356 = scmp.eq.s32.totalorder %s35, 1
      %p357 = scmp.ne.s32.totalorder %s352, %s354
      %p358 = scmp.eq.s32.totalorder %s35, 0
      %p359 = por %p357, %p358
      %p360 = scmp.ne.s32.totalorder %s352, %s354
      %p361 = scmp.eq.s32.totalorder %s40, 1
      %p362 = por %p360, %p361
      %p363 = scmp.ne.s32.totalorder %s354, %s355
      %p364 = scmp.eq.s32.totalorder %s40, 0
      %p365 = por %p363, %p364
      %p366 = scmp.ne.s32.totalorder %s354, %s355
      %p367 = scmp.eq.s32.totalorder %s41, 1
      %p368 = por %p366, %p367
      %p370 = scmp.ne.s32.totalorder %s355, %s369
      %p371 = scmp.eq.s32.totalorder %s41, 0
      %p372 = por %p370, %p371
      %s374 = sadd.s32 %s373, 1
      %p377 = scmp.eq.s32.totalorder %s35, 1
      %p378 = scmp.ne.s32.totalorder %s373, %s375
      %p379 = scmp.eq.s32.totalorder %s35, 0
      %p380 = por %p378, %p379
      %p381 = scmp.ne.s32.totalorder %s373, %s375
      %p382 = scmp.eq.s32.totalorder %s40, 1
      %p383 = por %p381, %p382
      %p384 = scmp.ne.s32.totalorder %s375, %s376
      %p385 = scmp.eq.s32.totalorder %s40, 0
      %p386 = por %p384, %p385
      %p387 = scmp.ne.s32.totalorder %s375, %s376
      %p388 = scmp.eq.s32.totalorder %s41, 1
      %p389 = por %p387, %p388
      %p391 = scmp.ne.s32.totalorder %s376, %s390
      %p392 = scmp.eq.s32.totalorder %s41, 0
      %p393 = por %p391, %p392
      %s395 = sadd.s32 %s394, 1
      %p398 = scmp.eq.s32.totalorder %s35, 1
      %p399 = scmp.ne.s32.totalorder %s394, %s396
      %p400 = scmp.eq.s32.totalorder %s35, 0
      %p401 = por %p399, %p400
      %p402 = scmp.ne.s32.totalorder %s394, %s396
      %p403 = scmp.eq.s32.totalorder %s40, 1
      %p404 = por %p402, %p403
      %p405 = scmp.ne.s32.totalorder %s396, %s397
      %p406 = scmp.eq.s32.totalorder %s40, 0
      %p407 = por %p405, %p406
      %p408 = scmp.ne.s32.totalorder %s396, %s397
      %p409 = scmp.eq.s32.totalorder %s41, 1
      %p410 = por %p408, %p409
      %p412 = scmp.ne.s32.totalorder %s397, %s411
      %p413 = scmp.eq.s32.totalorder %s41, 0
      %p414 = por %p412, %p413
      %s416 = sadd.s32 %s415, 1
      %p419 = scmp.eq.s32.totalorder %s35, 1
      %p420 = scmp.ne.s32.totalorder %s415, %s417
      %p421 = scmp.eq.s32.totalorder %s35, 0
      %p422 = por %p420, %p421
      %p423 = scmp.ne.s32.totalorder %s415, %s417
      %p424 = scmp.eq.s32.totalorder %s40, 1
      %p425 = por %p423, %p424
      %p426 = scmp.ne.s32.totalorder %s417, %s418
      %p427 = scmp.eq.s32.totalorder %s40, 0
      %p428 = por %p426, %p427
      %p429 = scmp.ne.s32.totalorder %s417, %s418
      %p430 = scmp.eq.s32.totalorder %s41, 1
      %p431 = por %p429, %p430
      %p433 = scmp.ne.s32.totalorder %s418, %s432
      %p434 = scmp.eq.s32.totalorder %s41, 0
      %p435 = por %p433, %p434
      %s437 = sadd.s32 %s436, 1
      %p440 = scmp.eq.s32.totalorder %s35, 1
      %p441 = scmp.ne.s32.totalorder %s436, %s438
      %p442 = scmp.eq.s32.totalorder %s35, 0
      %p443 = por %p441, %p442
      %p444 = scmp.ne.s32.totalorder %s436, %s438
      %p445 = scmp.eq.s32.totalorder %s40, 1
      %p446 = por %p444, %p445
      %p447 = scmp.ne.s32.totalorder %s438, %s439
      %p448 = scmp.eq.s32.totalorder %s40, 0
      %p449 = por %p447, %p448
      %p450 = scmp.ne.s32.totalorder %s438, %s439
      %p451 = scmp.eq.s32.totalorder %s41, 1
      %p452 = por %p450, %p451
      %p454 = scmp.ne.s32.totalorder %s439, %s453
      %p455 = scmp.eq.s32.totalorder %s41, 0
      %p456 = por %p454, %p455
      %s458 = sadd.s32 %s457, 1
      %p461 = scmp.eq.s32.totalorder %s35, 1
      %p462 = scmp.ne.s32.totalorder %s457, %s459
      %p463 = scmp.eq.s32.totalorder %s35, 0
      %p464 = por %p462, %p463
      %p465 = scmp.ne.s32.totalorder %s457, %s459
      %p466 = scmp.eq.s32.totalorder %s40, 1
      %p467 = por %p465, %p466
      %p468 = scmp.ne.s32.totalorder %s459, %s460
      %p469 = scmp.eq.s32.totalorder %s40, 0
      %p470 = por %p468, %p469
      %p471 = scmp.ne.s32.totalorder %s459, %s460
      %p472 = scmp.eq.s32.totalorder %s41, 1
      %p473 = por %p471, %p472
      %p475 = scmp.ne.s32.totalorder %s460, %s474
      %p476 = scmp.eq.s32.totalorder %s41, 0
      %p477 = por %p475, %p476
      %s479 = sadd.s32 %s478, 1
      %p482 = scmp.eq.s32.totalorder %s35, 1
      %p483 = scmp.ne.s32.totalorder %s478, %s480
      %p484 = scmp.eq.s32.totalorder %s35, 0
      %p485 = por %p483, %p484
      %p486 = scmp.ne.s32.totalorder %s478, %s480
      %p487 = scmp.eq.s32.totalorder %s40, 1
      %p488 = por %p486, %p487
      %p489 = scmp.ne.s32.totalorder %s480, %s481
      %p490 = scmp.eq.s32.totalorder %s40, 0
      %p491 = por %p489, %p490
      %p492 = scmp.ne.s32.totalorder %s480, %s481
      %p493 = scmp.eq.s32.totalorder %s41, 1
      %p494 = por %p492, %p493
      %p496 = scmp.ne.s32.totalorder %s481, %s495
      %p497 = scmp.eq.s32.totalorder %s41, 0
      %p498 = por %p496, %p497
      %s500 = sadd.s32 %s499, 1
      %p503 = scmp.eq.s32.totalorder %s35, 1
      %p504 = scmp.ne.s32.totalorder %s499, %s501
      %p505 = scmp.eq.s32.totalorder %s35, 0
      %p506 = por %p504, %p505
      %p507 = scmp.ne.s32.totalorder %s499, %s501
      %p508 = scmp.eq.s32.totalorder %s40, 1
      %p509 = por %p507, %p508
      %p510 = scmp.ne.s32.totalorder %s501, %s502
      %p511 = scmp.eq.s32.totalorder %s40, 0
      %p512 = por %p510, %p511
      %p513 = scmp.ne.s32.totalorder %s501, %s502
      %p514 = scmp.eq.s32.totalorder %s41, 1
      %p515 = por %p513, %p514
      %p517 = scmp.ne.s32.totalorder %s502, %s516
      %p518 = scmp.eq.s32.totalorder %s41, 0
      %p519 = por %p517, %p518
      %s521 = sadd.s32 %s520, 1
      %p524 = scmp.eq.s32.totalorder %s35, 1
      %p525 = scmp.ne.s32.totalorder %s520, %s522
      %p526 = scmp.eq.s32.totalorder %s35, 0
      %p527 = por %p525, %p526
      %p528 = scmp.ne.s32.totalorder %s520, %s522
      %p529 = scmp.eq.s32.totalorder %s40, 1
      %p530 = por %p528, %p529
      %p531 = scmp.ne.s32.totalorder %s522, %s523
      %p532 = scmp.eq.s32.totalorder %s40, 0
      %p533 = por %p531, %p532
      %p534 = scmp.ne.s32.totalorder %s522, %s523
      %p535 = scmp.eq.s32.totalorder %s41, 1
      %p536 = por %p534, %p535
      %p538 = scmp.ne.s32.totalorder %s523, %s537
      %p539 = scmp.eq.s32.totalorder %s41, 0
      %p540 = por %p538, %p539
      %s542 = sadd.s32 %s541, 1
      %p545 = scmp.eq.s32.totalorder %s35, 1
      %p546 = scmp.ne.s32.totalorder %s541, %s543
      %p547 = scmp.eq.s32.totalorder %s35, 0
      %p548 = por %p546, %p547
      %p549 = scmp.ne.s32.totalorder %s541, %s543
      %p550 = scmp.eq.s32.totalorder %s40, 1
      %p551 = por %p549, %p550
      %p552 = scmp.ne.s32.totalorder %s543, %s544
      %p553 = scmp.eq.s32.totalorder %s40, 0
      %p554 = por %p552, %p553
      %p555 = scmp.ne.s32.totalorder %s543, %s544
      %p556 = scmp.eq.s32.totalorder %s41, 1
      %p557 = por %p555, %p556
      %p559 = scmp.ne.s32.totalorder %s544, %s558
      %p560 = scmp.eq.s32.totalorder %s41, 0
      %p561 = por %p559, %p560
      %s563 = sadd.s32 %s562, 1
      %p566 = scmp.eq.s32.totalorder %s35, 1
      %p567 = scmp.ne.s32.totalorder %s562, %s564
      %p568 = scmp.eq.s32.totalorder %s35, 0
      %p569 = por %p567, %p568
      %p570 = scmp.ne.s32.totalorder %s562, %s564
      %p571 = scmp.eq.s32.totalorder %s40, 1
      %p572 = por %p570, %p571
      %p573 = scmp.ne.s32.totalorder %s564, %s565
      %p574 = scmp.eq.s32.totalorder %s40, 0
      %p575 = por %p573, %p574
      %p576 = scmp.ne.s32.totalorder %s564, %s565
      %p577 = scmp.eq.s32.totalorder %s41, 1
      %p578 = por %p576, %p577
      %p580 = scmp.ne.s32.totalorder %s565, %s579
      %p581 = scmp.eq.s32.totalorder %s41, 0
      %p582 = por %p580, %p581
      %s583 = ssub.s32 %s35, %s42
      %p584 = scmp.eq.s32.totalorder %s583, 0
      %s586 = sadd.s32 %s585, 1
      %s587 = scalar_select %p584, %s585, %s586
      %p590 = pneg %p584
      %p591 = scmp.eq.s32.totalorder %s35, 1
      %p592 = por %p590, %p591
      %p593 = scmp.ne.s32.totalorder %s585, %s588
      %p594 = scmp.eq.s32.totalorder %s35, 0
      %p595 = por %p593, %p594
      %p596 = scmp.ne.s32.totalorder %s585, %s588
      %p597 = scmp.eq.s32.totalorder %s40, 1
      %p598 = por %p596, %p597
      %p599 = scmp.ne.s32.totalorder %s588, %s589
      %p600 = scmp.eq.s32.totalorder %s40, 0
      %p601 = por %p599, %p600
      %p602 = scmp.ne.s32.totalorder %s588, %s589
      %p603 = scmp.eq.s32.totalorder %s41, 1
      %p604 = por %p602, %p603
      %p606 = scmp.ne.s32.totalorder %s589, %s605
      %p607 = scmp.eq.s32.totalorder %s41, 0
      %p608 = por %p606, %p607
      %p609 = scmp.le.s32.totalorder 1, %s35
      %p610 = scmp.lt.s32.totalorder %s35, 3
      %p611 = pnand %p609, %p610
      %p612 = pneg %p611
      // Predicated region
      $region9: #{prodiff_teacher_forward.3} parent=5 // pred_check
        _
      $region10: #{prodiff_teacher_forward.3} parent=5 // pred_check_branch
        %614 = sbr.rel (%p611) target = $region12
      $region11: #{prodiff_teacher_forward.3} parent=5 // pred_region
        %s615 = ssub.s32 %s35, 1
        // Predicated region
        $region13: #{prodiff_teacher_forward.3} parent=11 // pred_check
          %p616 = pneg %p56
        $region14: #{prodiff_teacher_forward.3} parent=11 // pred_check_branch
          %618 = sbr.rel (%p616) target = $region16
        $region15: #{prodiff_teacher_forward.3} parent=11 // pred_region
          %s620 = ssub.s32 128, 128
          %621 = vsyncadd [#allocation4], %s620
          %s623 = sshll.u32 %s0, 4
          %s624 = int_to_ptr.vmem [resolvable:$true] %s623
          %626 = dma.vmem_to_smem %s624, 128, [#allocation2], [#allocation4]
        $region16: #{prodiff_teacher_forward.3} parent=11 // pred_fallthru
          _
        // Predicated region
        $region17: #{prodiff_teacher_forward.3} parent=11 // pred_check
          %p627 = pneg %p155
        $region18: #{prodiff_teacher_forward.3} parent=11 // pred_check_branch
          %629 = sbr.rel (%p627) target = $region20
        $region19: #{prodiff_teacher_forward.3} parent=11 // pred_region
          _
        $region20: #{prodiff_teacher_forward.3} parent=11 // pred_fallthru
          _
        // Predicated region
        $region21: #{prodiff_teacher_forward.3} parent=11 // pred_check
          %p630 = pneg %p176
        $region22: #{prodiff_teacher_forward.3} parent=11 // pred_check_branch
          %632 = sbr.rel (%p630) target = $region24
        $region23: #{prodiff_teacher_forward.3} parent=11 // pred_region
          _
        $region24: #{prodiff_teacher_forward.3} parent=11 // pred_fallthru
          _
        // Predicated region
        $region25: #{prodiff_teacher_forward.3} parent=11 // pred_check
          %p633 = pneg %p197
        $region26: #{prodiff_teacher_forward.3} parent=11 // pred_check_branch
          %635 = sbr.rel (%p633) target = $region28
        $region27: #{prodiff_teacher_forward.3} parent=11 // pred_region
          _
        $region28: #{prodiff_teacher_forward.3} parent=11 // pred_fallthru
          _
        // Predicated region
        $region29: #{prodiff_teacher_forward.3} parent=11 // pred_check
          %p636 = pneg %p218
        $region30: #{prodiff_teacher_forward.3} parent=11 // pred_check_branch
          %638 = sbr.rel (%p636) target = $region32
        $region31: #{prodiff_teacher_forward.3} parent=11 // pred_region
          _
        $region32: #{prodiff_teacher_forward.3} parent=11 // pred_fallthru
          _
        // Predicated region
        $region33: #{prodiff_teacher_forward.3} parent=11 // pred_check
          %p639 = pneg %p239
        $region34: #{prodiff_teacher_forward.3} parent=11 // pred_check_branch
          %641 = sbr.rel (%p639) target = $region36
        $region35: #{prodiff_teacher_forward.3} parent=11 // pred_region
          _
        $region36: #{prodiff_teacher_forward.3} parent=11 // pred_fallthru
          _
        // Predicated region
        $region37: #{prodiff_teacher_forward.3} parent=11 // pred_check
          %p642 = pneg %p260
        $region38: #{prodiff_teacher_forward.3} parent=11 // pred_check_branch
          %644 = sbr.rel (%p642) target = $region40
        $region39: #{prodiff_teacher_forward.3} parent=11 // pred_region
          _
        $region40: #{prodiff_teacher_forward.3} parent=11 // pred_fallthru
          _
        // Predicated region
        $region41: #{prodiff_teacher_forward.3} parent=11 // pred_check
          %p645 = pneg %p281
        $region42: #{prodiff_teacher_forward.3} parent=11 // pred_check_branch
          %647 = sbr.rel (%p645) target = $region44
        $region43: #{prodiff_teacher_forward.3} parent=11 // pred_region
          _
        $region44: #{prodiff_teacher_forward.3} parent=11 // pred_fallthru
          _
        // Predicated region
        $region45: #{prodiff_teacher_forward.3} parent=11 // pred_check
          %p648 = pneg %p302
        $region46: #{prodiff_teacher_forward.3} parent=11 // pred_check_branch
          %650 = sbr.rel (%p648) target = $region48
        $region47: #{prodiff_teacher_forward.3} parent=11 // pred_region
          _
        $region48: #{prodiff_teacher_forward.3} parent=11 // pred_fallthru
          _
        // Predicated region
        $region49: #{prodiff_teacher_forward.3} parent=11 // pred_check
          %p651 = pneg %p323
        $region50: #{prodiff_teacher_forward.3} parent=11 // pred_check_branch
          %653 = sbr.rel (%p651) target = $region52
        $region51: #{prodiff_teacher_forward.3} parent=11 // pred_region
          _
        $region52: #{prodiff_teacher_forward.3} parent=11 // pred_fallthru
          _
        // Predicated region
        $region53: #{prodiff_teacher_forward.3} parent=11 // pred_check
          %p654 = pneg %p344
        $region54: #{prodiff_teacher_forward.3} parent=11 // pred_check_branch
          %656 = sbr.rel (%p654) target = $region56
        $region55: #{prodiff_teacher_forward.3} parent=11 // pred_region
          _
        $region56: #{prodiff_teacher_forward.3} parent=11 // pred_fallthru
          _
        // Predicated region
        $region57: #{prodiff_teacher_forward.3} parent=11 // pred_check
          %p657 = pneg %p365
        $region58: #{prodiff_teacher_forward.3} parent=11 // pred_check_branch
          %659 = sbr.rel (%p657) target = $region60
        $region59: #{prodiff_teacher_forward.3} parent=11 // pred_region
          _
        $region60: #{prodiff_teacher_forward.3} parent=11 // pred_fallthru
          _
        // Predicated region
        $region61: #{prodiff_teacher_forward.3} parent=11 // pred_check
          %p660 = pneg %p386
        $region62: #{prodiff_teacher_forward.3} parent=11 // pred_check_branch
          %662 = sbr.rel (%p660) target = $region64
        $region63: #{prodiff_teacher_forward.3} parent=11 // pred_region
          _
        $region64: #{prodiff_teacher_forward.3} parent=11 // pred_fallthru
          _
        // Predicated region
        $region65: #{prodiff_teacher_forward.3} parent=11 // pred_check
          %p663 = pneg %p407
        $region66: #{prodiff_teacher_forward.3} parent=11 // pred_check_branch
          %665 = sbr.rel (%p663) target = $region68
        $region67: #{prodiff_teacher_forward.3} parent=11 // pred_region
          _
        $region68: #{prodiff_teacher_forward.3} parent=11 // pred_fallthru
          _
        // Predicated region
        $region69: #{prodiff_teacher_forward.3} parent=11 // pred_check
          %p666 = pneg %p428
        $region70: #{prodiff_teacher_forward.3} parent=11 // pred_check_branch
          %668 = sbr.rel (%p666) target = $region72
        $region71: #{prodiff_teacher_forward.3} parent=11 // pred_region
          _
        $region72: #{prodiff_teacher_forward.3} parent=11 // pred_fallthru
          _
        // Predicated region
        $region73: #{prodiff_teacher_forward.3} parent=11 // pred_check
          %p669 = pneg %p449
        $region74: #{prodiff_teacher_forward.3} parent=11 // pred_check_branch
          %671 = sbr.rel (%p669) target = $region76
        $region75: #{prodiff_teacher_forward.3} parent=11 // pred_region
          _
        $region76: #{prodiff_teacher_forward.3} parent=11 // pred_fallthru
          _
        // Predicated region
        $region77: #{prodiff_teacher_forward.3} parent=11 // pred_check
          %p672 = pneg %p470
        $region78: #{prodiff_teacher_forward.3} parent=11 // pred_check_branch
          %674 = sbr.rel (%p672) target = $region80
        $region79: #{prodiff_teacher_forward.3} parent=11 // pred_region
          _
        $region80: #{prodiff_teacher_forward.3} parent=11 // pred_fallthru
          _
        // Predicated region
        $region81: #{prodiff_teacher_forward.3} parent=11 // pred_check
          %p675 = pneg %p491
        $region82: #{prodiff_teacher_forward.3} parent=11 // pred_check_branch
          %677 = sbr.rel (%p675) target = $region84
        $region83: #{prodiff_teacher_forward.3} parent=11 // pred_region
          _
        $region84: #{prodiff_teacher_forward.3} parent=11 // pred_fallthru
          _
        // Predicated region
        $region85: #{prodiff_teacher_forward.3} parent=11 // pred_check
          %p678 = pneg %p512
        $region86: #{prodiff_teacher_forward.3} parent=11 // pred_check_branch
          %680 = sbr.rel (%p678) target = $region88
        $region87: #{prodiff_teacher_forward.3} parent=11 // pred_region
          _
        $region88: #{prodiff_teacher_forward.3} parent=11 // pred_fallthru
          _
        // Predicated region
        $region89: #{prodiff_teacher_forward.3} parent=11 // pred_check
          %p681 = pneg %p533
        $region90: #{prodiff_teacher_forward.3} parent=11 // pred_check_branch
          %683 = sbr.rel (%p681) target = $region92
        $region91: #{prodiff_teacher_forward.3} parent=11 // pred_region
          _
        $region92: #{prodiff_teacher_forward.3} parent=11 // pred_fallthru
          _
        // Predicated region
        $region93: #{prodiff_teacher_forward.3} parent=11 // pred_check
          %p684 = pneg %p554
        $region94: #{prodiff_teacher_forward.3} parent=11 // pred_check_branch
          %686 = sbr.rel (%p684) target = $region96
        $region95: #{prodiff_teacher_forward.3} parent=11 // pred_region
          _
        $region96: #{prodiff_teacher_forward.3} parent=11 // pred_fallthru
          _
        // Predicated region
        $region97: #{prodiff_teacher_forward.3} parent=11 // pred_check
          %p687 = pneg %p575
        $region98: #{prodiff_teacher_forward.3} parent=11 // pred_check_branch
          %689 = sbr.rel (%p687) target = $region100
        $region99: #{prodiff_teacher_forward.3} parent=11 // pred_region
          _
        $region100: #{prodiff_teacher_forward.3} parent=11 // pred_fallthru
          _
      $region12: #{prodiff_teacher_forward.3} parent=5 // pred_fallthru
        _
      %p690 = scmp.lt.s32.totalorder %s35, 2
      // Predicated region
      $region101: #{prodiff_teacher_forward.3} parent=5 // pred_check
        %p691 = pneg %p690
      $region102: #{prodiff_teacher_forward.3} parent=5 // pred_check_branch
        %693 = sbr.rel (%p691) target = $region104
      $region103: #{prodiff_teacher_forward.3} parent=5 // pred_region
        // Predicated region
        $region105: #{prodiff_teacher_forward.3} parent=103 // pred_check
          %p694 = pneg %p76
        $region106: #{prodiff_teacher_forward.3} parent=103 // pred_check_branch
          %696 = sbr.rel (%p694) target = $region108
        $region107: #{prodiff_teacher_forward.3} parent=103 // pred_region
          %p697 = scmp.lt.s32.totalorder %s35, 1
          %s698 = scalar_select %p697, %s35, 1
          %s699 = smul.addr %s698, 2
          %s700 = smul.addr %s699, 8
          %s701 = scalar_lea.vmem %s1, %s700
        $region108: #{prodiff_teacher_forward.3} parent=103 // pred_fallthru
          _
        // Predicated region
        $region109: #{prodiff_teacher_forward.3} parent=103 // pred_check
          %p702 = pneg %p102
        $region110: #{prodiff_teacher_forward.3} parent=103 // pred_check_branch
          %704 = sbr.rel (%p702) target = $region112
        $region111: #{prodiff_teacher_forward.3} parent=103 // pred_region
          %p705 = scmp.lt.s32.totalorder %s35, 1
          %s706 = scalar_select %p705, %s35, 1
          %s707 = smul.addr %s706, 2
          %s708 = smul.addr %s707, 8
          %s709 = scalar_lea.vmem %s2, %s708
        $region112: #{prodiff_teacher_forward.3} parent=103 // pred_fallthru
          _
        // Predicated region
        $region113: #{prodiff_teacher_forward.3} parent=103 // pred_check
          %p710 = pneg %p128
        $region114: #{prodiff_teacher_forward.3} parent=103 // pred_check_branch
          %712 = sbr.rel (%p710) target = $region116
        $region115: #{prodiff_teacher_forward.3} parent=103 // pred_region
          %s713 = sand.u32 %s118, 1
          %s714 = sand.u32 %s118, 1
          %s715 = smul.addr %s714, 64
          %s716 = scalar_lea.vmem [#allocation5], %s715
          %s717 = smul.addr %s35, 2
          %s718 = smul.addr %s717, 8
          %s719 = scalar_lea.vmem %s3, %s718
          // Predicated region
          $region117: #{prodiff_teacher_forward.3} parent=115 // pred_check
            _
          $region118: #{prodiff_teacher_forward.3} parent=115 // pred_check_branch
            %721 = sbr.rel (0) target = $region120
          $region119: #{prodiff_teacher_forward.3} parent=115 // pred_region
            // Predicated region
            $region121: #{prodiff_teacher_forward.3} parent=119 // pred_check
              _
            $region122: #{prodiff_teacher_forward.3} parent=119 // pred_check_branch
              %723 = sbr.rel (0) target = $region124
            $region123: #{prodiff_teacher_forward.3} parent=119 // pred_region
              // Predicated region
              $region136: #{prodiff_teacher_forward.3} parent=123 // pred_check
                _
              $region137: #{prodiff_teacher_forward.3} parent=123 // pred_check_branch
                %752 = sbr.rel (0) target = $region139
              $region138: #{prodiff_teacher_forward.3} parent=123 // pred_region
                loop: start=0, step=1, limit=1
                $region140: #{prodiff_teacher_forward.3} parent=138 // loop_pre_header
                  _
                $region141: #{prodiff_teacher_forward.3} parent=138 // loop_header
                  %s754 = sphi 0, %s758
                  %p755 = scmp.ge.s32.totalorder %s754, 1
                  %s759 = sphi %s719, %s719
                  %s760 = sphi %s716, %s716
                $region142: #{prodiff_teacher_forward.3} parent=138 // loop_header_branch
                  %757 = sbr.rel (%p755) target = $region146
                $region143: #{prodiff_teacher_forward.3} parent=138 // loop_body
                  %v761 = vld [vmem:[%s759] sm:$0xff]
                  %762 = vst [vmem:[%s760] sm:$0xff] %v761
                  %v763 = vld [vmem:[%s759 + $0x8] sm:$0xff]
                  %764 = vst [vmem:[%s760 + $0x8] sm:$0xff] %v763
                  %v765 = vld [vmem:[%s759 + $0x20] sm:$0xff]
                  %766 = vst [vmem:[%s760 + $0x10] sm:$0xff] %v765
                  %v767 = vld [vmem:[%s759 + $0x28] sm:$0xff]
                  %768 = vst [vmem:[%s760 + $0x18] sm:$0xff] %v767
                  %v769 = vld [vmem:[%s759 + $0x40] sm:$0xff]
                  %770 = vst [vmem:[%s760 + $0x20] sm:$0xff] %v769
                  %v771 = vld [vmem:[%s759 + $0x48] sm:$0xff]
                  %772 = vst [vmem:[%s760 + $0x28] sm:$0xff] %v771
                  %v773 = vld [vmem:[%s759 + $0x60] sm:$0xff]
                  %774 = vst [vmem:[%s760 + $0x30] sm:$0xff] %v773
                  %v775 = vld [vmem:[%s759 + $0x68] sm:$0xff]
                  %776 = vst [vmem:[%s760 + $0x38] sm:$0xff] %v775
                $region144: #{prodiff_teacher_forward.3} parent=138 // loop_footer
                  %s758 = sadd.s32 1, %s754
                $region145: #{prodiff_teacher_forward.3} parent=138 // loop_footer_branch
                  %753 = sbr.rel target = $region141
                $region146: #{prodiff_teacher_forward.3} parent=138 // loop_exit
                  _
              $region139: #{prodiff_teacher_forward.3} parent=123 // pred_fallthru
                _
              // Predicated region
              $region147: #{prodiff_teacher_forward.3} parent=123 // pred_check
                _
              $region148: #{prodiff_teacher_forward.3} parent=123 // pred_check_branch
                %778 = sbr.rel target = $region150
              $region149: #{prodiff_teacher_forward.3} parent=123 // pred_region
                _
              $region150: #{prodiff_teacher_forward.3} parent=123 // pred_fallthru
                _
            $region124: #{prodiff_teacher_forward.3} parent=119 // pred_fallthru
              _
            // Predicated region
            $region125: #{prodiff_teacher_forward.3} parent=119 // pred_check
              _
            $region126: #{prodiff_teacher_forward.3} parent=119 // pred_check_branch
              %725 = sbr.rel target = $region128
            $region127: #{prodiff_teacher_forward.3} parent=119 // pred_region
              loop: start=0, step=1, limit=1
              $region129: #{prodiff_teacher_forward.3} parent=127 // loop_pre_header
                _
              $region130: #{prodiff_teacher_forward.3} parent=127 // loop_header
                %s728 = sphi 0, %s732
                %p729 = scmp.ge.s32.totalorder %s728, 1
                %s733 = sphi %s719, %s719
                %s734 = sphi %s716, %s716
              $region131: #{prodiff_teacher_forward.3} parent=127 // loop_header_branch
                %731 = sbr.rel (%p729) target = $region135
              $region132: #{prodiff_teacher_forward.3} parent=127 // loop_body
                %v735 = vld [vmem:[%s733] sm:$0xff]
                %736 = vst [vmem:[%s734] sm:$0xff] %v735
                %v737 = vld [vmem:[%s733 + $0x8] sm:$0xff]
                %738 = vst [vmem:[%s734 + $0x8] sm:$0xff] %v737
                %v739 = vld [vmem:[%s733 + $0x20] sm:$0xff]
                %740 = vst [vmem:[%s734 + $0x10] sm:$0xff] %v739
                %v741 = vld [vmem:[%s733 + $0x28] sm:$0xff]
                %742 = vst [vmem:[%s734 + $0x18] sm:$0xff] %v741
                %v743 = vld [vmem:[%s733 + $0x40] sm:$0xff]
                %744 = vst [vmem:[%s734 + $0x20] sm:$0xff] %v743
                %v745 = vld [vmem:[%s733 + $0x48] sm:$0xff]
                %746 = vst [vmem:[%s734 + $0x28] sm:$0xff] %v745
                %v747 = vld [vmem:[%s733 + $0x60] sm:$0xff]
                %748 = vst [vmem:[%s734 + $0x30] sm:$0xff] %v747
                %v749 = vld [vmem:[%s733 + $0x68] sm:$0xff]
                %750 = vst [vmem:[%s734 + $0x38] sm:$0xff] %v749
              $region133: #{prodiff_teacher_forward.3} parent=127 // loop_footer
                %s732 = sadd.s32 1, %s728
              $region134: #{prodiff_teacher_forward.3} parent=127 // loop_footer_branch
                %727 = sbr.rel target = $region130
              $region135: #{prodiff_teacher_forward.3} parent=127 // loop_exit
                _
            $region128: #{prodiff_teacher_forward.3} parent=119 // pred_fallthru
              _
          $region120: #{prodiff_teacher_forward.3} parent=115 // pred_fallthru
            _
          %779 = vnop
        $region116: #{prodiff_teacher_forward.3} parent=103 // pred_fallthru
          _
      $region104: #{prodiff_teacher_forward.3} parent=5 // pred_fallthru
        _
      %p780 = scmp.le.s32.totalorder 1, %s35
      %p781 = scmp.lt.s32.totalorder %s35, 3
      %p782 = pnand %p780, %p781
      %p783 = pneg %p782
      // Predicated region
      $region151: #{prodiff_teacher_forward.3} parent=5 // pred_check
        _
      $region152: #{prodiff_teacher_forward.3} parent=5 // pred_check_branch
        %785 = sbr.rel (%p782) target = $region154
      $region153: #{prodiff_teacher_forward.3} parent=5 // pred_region
        %s786 = ssub.s32 %s35, 1
        // Predicated region
        $region155: #{prodiff_teacher_forward.3} parent=153 // pred_check
          %p787 = pneg %p56
        $region156: #{prodiff_teacher_forward.3} parent=153 // pred_check_branch
          %789 = sbr.rel (%p787) target = $region158
        $region157: #{prodiff_teacher_forward.3} parent=153 // pred_region
          %790 = dma.done [#allocation4], 128
        $region158: #{prodiff_teacher_forward.3} parent=153 // pred_fallthru
          _
        %s791 = sand.u32 %s121, 1
        %s792 = sand.u32 %s121, 1
        %s793 = smul.addr %s792, 64
        %s794 = scalar_lea.vmem [#allocation5], %s793
        // Predicated region
        $region159: #{prodiff_teacher_forward.3} parent=153 // pred_check
          %p795 = pneg %p134
        $region160: #{prodiff_teacher_forward.3} parent=153 // pred_check_branch
          %797 = sbr.rel (%p795) target = $region162
        $region161: #{prodiff_teacher_forward.3} parent=153 // pred_region
          _
        $region162: #{prodiff_teacher_forward.3} parent=153 // pred_fallthru
          _
        %798 = sfence
        %p799 = pneg %p56
        %p800 = pneg %p53
        %p801 = scmp.lt.s32.totalorder %s40, 1
        %s802 = scalar_select %p801, %s40, 1
        %s803 = smul.addr %s802, 2
        %s804 = smul.addr %s803, 8
        %s805 = scalar_lea.vmem %s1, %s804
        %p806 = pneg %p82
        %p807 = pneg %p79
        %p808 = scmp.lt.s32.totalorder %s40, 1
        %s809 = scalar_select %p808, %s40, 1
        %s810 = smul.addr %s809, 2
        %s811 = smul.addr %s810, 8
        %s812 = scalar_lea.vmem %s2, %s811
        %p813 = pneg %p108
        %p814 = pneg %p105
        %s815 = sand.u32 %s121, 1
        %s816 = sand.u32 %s121, 1
        %s817 = smul.addr %s816, 64
        %s818 = scalar_lea.vmem [#allocation5], %s817
        %p819 = pneg %p134
        %p820 = pneg %p131
        %p821 = pneg %p155
        %p822 = pneg %p152
        %p823 = pneg %p176
        %p824 = pneg %p173
        %p825 = pneg %p197
        %p826 = pneg %p194
        %p827 = pneg %p218
        %p828 = pneg %p215
        %p829 = pneg %p239
        %p830 = pneg %p236
        %p831 = pneg %p260
        %p832 = pneg %p257
        %p833 = pneg %p281
        %p834 = pneg %p278
        %p835 = pneg %p302
        %p836 = pneg %p299
        %p837 = pneg %p323
        %p838 = pneg %p320
        %p839 = pneg %p344
        %p840 = pneg %p341
        %p841 = pneg %p365
        %p842 = pneg %p362
        %p843 = pneg %p386
        %p844 = pneg %p383
        %p845 = pneg %p407
        %p846 = pneg %p404
        %p847 = pneg %p428
        %p848 = pneg %p425
        %p849 = pneg %p449
        %p850 = pneg %p446
        %p851 = pneg %p470
        %p852 = pneg %p467
        %p853 = pneg %p491
        %p854 = pneg %p488
        %p855 = pneg %p512
        %p856 = pneg %p509
        %p857 = pneg %p533
        %p858 = pneg %p530
        %p859 = pneg %p554
        %p860 = pneg %p551
        %p861 = pneg %p575
        %p862 = pneg %p572
        %p863 = pneg %p601
        %p864 = pneg %p598
        %s865 = sand.u32 %s588, 1
        %s866 = scalar_lea.sflag [#allocation3], %s865
        %s867 = sand.u32 %s588, 1
        %s868 = smul.addr %s867, 16
        %s869 = scalar_lea.vmem [#allocation6], %s868
        %p870 = scmp.lt.s32.totalorder %s40, 1
        %s871 = scalar_select %p870, %s40, 1
        %s872 = smul.addr %s871, 2
        %s873 = smul.addr %s872, 8
        %s874 = scalar_lea.vmem %s1, %s873
        %p875 = scmp.lt.s32.totalorder %s40, 1
        %s876 = scalar_select %p875, %s40, 1
        %s877 = smul.addr %s876, 2
        %s878 = smul.addr %s877, 8
        %s879 = scalar_lea.vmem %s2, %s878
        %v881 = vld [vmem:[%s874] sm:$0xff]
        %v882 = vld [vmem:[%s874 + $0x8] sm:$0xff]
        %v883 = vld [vmem:[%s13] sm:$0xff]
        %v884 = vld [vmem:[%s13 + $0x8] sm:$0xff]
        %v885 = vld [vmem:[%s13 + $0x10] sm:$0xff]
        %v886 = vld [vmem:[%s13 + $0x18] sm:$0xff]
        %v887 = vpack.c.bf16 %v882, %v881
        %v888 = vpack.c.bf16 %v884, %v883
        %v889 = vpack.c.bf16 %v886, %v885
        %v890 = vld [vmem:[%s14] sm:$0x1]
        %v892 = vlaneseq
        %v893 = vshrl.u32 %v892, 7
        %v894 = vsub.s32 0, %v893
        %v895 = vrot.slane %v890, %v894
        %vm897 = vcmask 261120
        %v899 = vsel %vm897, %v887, 0
        %901 = vmatprep.subr.bf16.mxu0 0
        %902 = vmatpush1.bf16.msra.mxu0 %v888
        %903 = vmatprep.subr.bf16.mxu0 0
        %904 = vmatpush1.bf16.msra.mxu0 %v889
        %905 = vmatprep.subr.bf16.mxu0 0
        %906 = vmatpush1.bf16.msra.mxu0 0
        %907 = vmatprep.subr.bf16.mxu0 0
        %908 = vmatpush1.bf16.msra.mxu0 0
        %909 = vmatprep.subr.bf16.mxu0 0
        %910 = vmatpush1.bf16.msra.mxu0 0
        %911 = vmatprep.subr.bf16.mxu0 0
        %912 = vmatpush1.bf16.msra.mxu0 0
        %913 = vmatprep.subr.bf16.mxu0 0
        %914 = vmatpush1.bf16.msra.mxu0 0
        %915 = vmatprep.subr.bf16.mxu0 0
        %916 = vmatpush1.bf16.msra.mxu0 0
        %917 = vmatprep.subr.bf16.mxu0 0
        %918 = vmatpush1.bf16.msra.mxu0 0
        %919 = vmatprep.subr.bf16.mxu0 0
        %920 = vmatpush1.bf16.msra.mxu0 0
        %921 = vmatprep.subr.bf16.mxu0 0
        %922 = vmatpush1.bf16.msra.mxu0 0
        %923 = vmatprep.subr.bf16.mxu0 0
        %924 = vmatpush1.bf16.msra.mxu0 0
        %925 = vmatprep.subr.bf16.mxu0 0
        %926 = vmatpush1.bf16.msra.mxu0 0
        %927 = vmatprep.subr.bf16.mxu0 0
        %928 = vmatpush1.bf16.msra.mxu0 0
        %929 = vmatprep.subr.bf16.mxu0 0
        %930 = vmatpush1.bf16.msra.mxu0 0
        %931 = vmatprep.subr.bf16.mxu0 0
        %932 = vmatpush1.bf16.msra.mxu0 0
        %933 = vmatprep.mubr.bf16.mxu0 0
        %934 = vmatmul.mubr.bf16.gmra.mrb[0].mxu0 %v899
        %v935 = vpop.f32.mrb[0].mxu0
        %v936 = vadd.f32 %v895, %v935
        %v937 = vpop.f32.mrb[0].mxu0
        %v938 = vpop.f32.mrb[0].mxu0
        %v939 = vadd.f32 %v895, %v938
        %v940 = vpop.f32.mrb[0].mxu0
        %941 = vdwg.mxu0
        %v942 = vld [vmem:[%s4] sm:$0xf]
        %v943 = vld [vmem:[%s5] sm:$0xff]
        %v944 = vld [vmem:[%s5 + $0x8] sm:$0xff]
        %v945 = vld [vmem:[%s5 + $0x10] sm:$0xff]
        %v946 = vld [vmem:[%s5 + $0x18] sm:$0xff]
        %v947 = vpack.c.bf16 %v942, %v942
        %v948 = vpack.c.bf16 %v944, %v943
        %v949 = vpack.c.bf16 %v946, %v945
        %v950 = vld [vmem:[%s6] sm:$0x1]
        %v952 = vlaneseq
        %v953 = vshrl.u32 %v952, 7
        %v954 = vsub.s32 0, %v953
        %v955 = vrot.slane %v950, %v954
        %v958 = vsel %vm897, %v947, 0
        %960 = vmatprep.subr.bf16.mxu0 0
        %961 = vmatpush1.bf16.msra.mxu0 %v948
        %962 = vmatprep.subr.bf16.mxu0 0
        %963 = vmatpush1.bf16.msra.mxu0 %v949
        %964 = vmatprep.subr.bf16.mxu0 0
        %965 = vmatpush1.bf16.msra.mxu0 0
        %966 = vmatprep.subr.bf16.mxu0 0
        %967 = vmatpush1.bf16.msra.mxu0 0
        %968 = vmatprep.subr.bf16.mxu0 0
        %969 = vmatpush1.bf16.msra.mxu0 0
        %970 = vmatprep.subr.bf16.mxu0 0
        %971 = vmatpush1.bf16.msra.mxu0 0
        %972 = vmatprep.subr.bf16.mxu0 0
        %973 = vmatpush1.bf16.msra.mxu0 0
        %974 = vmatprep.subr.bf16.mxu0 0
        %975 = vmatpush1.bf16.msra.mxu0 0
        %976 = vmatprep.subr.bf16.mxu0 0
        %977 = vmatpush1.bf16.msra.mxu0 0
        %978 = vmatprep.subr.bf16.mxu0 0
        %979 = vmatpush1.bf16.msra.mxu0 0
        %980 = vmatprep.subr.bf16.mxu0 0
        %981 = vmatpush1.bf16.msra.mxu0 0
        %982 = vmatprep.subr.bf16.mxu0 0
        %983 = vmatpush1.bf16.msra.mxu0 0
        %984 = vmatprep.subr.bf16.mxu0 0
        %985 = vmatpush1.bf16.msra.mxu0 0
        %986 = vmatprep.subr.bf16.mxu0 0
        %987 = vmatpush1.bf16.msra.mxu0 0
        %988 = vmatprep.subr.bf16.mxu0 0
        %989 = vmatpush1.bf16.msra.mxu0 0
        %990 = vmatprep.subr.bf16.mxu0 0
        %991 = vmatpush1.bf16.msra.mxu0 0
        %992 = vmatprep.mubr.bf16.mxu0 0
        %993 = vmatmul.mubr.bf16.gmra.mrb[0].mxu0 %v958
        %v994 = vpop.f32.mrb[0].mxu0
        %v995 = vadd.f32 %v955, %v994
        %v996 = vpop.f32.mrb[0].mxu0
        %v997 = vpop.f32.mrb[0].mxu0
        %v998 = vpop.f32.mrb[0].mxu0
        %999 = vdwg.mxu0
        %v1000 = vmax.f32 %v995, 0.0
        %v1001 = vand.u32 2147483647, %v995
        %v1002 = vsub.f32 0.0, %v1001
        %v1003 = vmul.f32 %v1002, 1.442695
        %v1004 = vpow.pop %v1003
        %v1005 = vadd.f32 %v1004, 1.0
        %v1006 = vlog2.pop %v1005
        %v1007 = vmul.f32 %v1006, 0.6931472
        %v1008 = vadd.f32 %v1000, %v1007
        %v1009 = vtanh.pop %v1008
        %v1010 = vmul.f32 %v995, %v1009
        %v1011 = vld [vmem:[%s7] sm:$0xff]
        %v1012 = vld [vmem:[%s7 + $0x8] sm:$0xff]
        %v1013 = vld [vmem:[%s7 + $0x10] sm:$0xff]
        %v1014 = vld [vmem:[%s7 + $0x18] sm:$0xff]
        %v1015 = vld [vmem:[%s7 + $0x20] sm:$0xff]
        %v1016 = vld [vmem:[%s7 + $0x28] sm:$0xff]
        %v1017 = vld [vmem:[%s7 + $0x30] sm:$0xff]
        %v1018 = vld [vmem:[%s7 + $0x38] sm:$0xff]
        %v1019 = vld [vmem:[%s7 + $0x40] sm:$0xff]
        %v1020 = vld [vmem:[%s7 + $0x48] sm:$0xff]
        %v1021 = vld [vmem:[%s7 + $0x50] sm:$0xff]
        %v1022 = vld [vmem:[%s7 + $0x58] sm:$0xff]
        %v1023 = vld [vmem:[%s7 + $0x60] sm:$0xff]
        %v1024 = vld [vmem:[%s7 + $0x68] sm:$0xff]
        %v1025 = vld [vmem:[%s7 + $0x70] sm:$0xff]
        %v1026 = vld [vmem:[%s7 + $0x78] sm:$0xff]
        %v1027 = vpack.c.bf16 %v1010, %v1010
        %v1028 = vpack.c.bf16 %v1012, %v1011
        %v1029 = vpack.c.bf16 %v1014, %v1013
        %v1030 = vpack.c.bf16 %v1016, %v1015
        %v1031 = vpack.c.bf16 %v1018, %v1017
        %v1032 = vpack.c.bf16 %v1020, %v1019
        %v1033 = vpack.c.bf16 %v1022, %v1021
        %v1034 = vpack.c.bf16 %v1024, %v1023
        %v1035 = vpack.c.bf16 %v1026, %v1025
        %v1036 = vld [vmem:[%s8] sm:$0x1]
        %v1038 = vlaneseq
        %v1039 = vshrl.u32 %v1038, 7
        %v1040 = vsub.s32 0, %v1039
        %v1041 = vrot.slane %v1036, %v1040
        %1043 = vmatprep.subr.bf16.mxu0 0
        %1044 = vmatpush1.bf16.msra.mxu0 %v1028
        %1045 = vmatprep.subr.bf16.mxu0 0
        %1046 = vmatpush1.bf16.msra.mxu0 %v1029
        %1047 = vmatprep.subr.bf16.mxu0 0
        %1048 = vmatpush1.bf16.msra.mxu0 %v1030
        %1049 = vmatprep.subr.bf16.mxu0 0
        %1050 = vmatpush1.bf16.msra.mxu0 %v1031
        %1051 = vmatprep.subr.bf16.mxu0 0
        %1052 = vmatpush1.bf16.msra.mxu0 %v1032
        %1053 = vmatprep.subr.bf16.mxu0 0
        %1054 = vmatpush1.bf16.msra.mxu0 %v1033
        %1055 = vmatprep.subr.bf16.mxu0 0
        %1056 = vmatpush1.bf16.msra.mxu0 %v1034
        %1057 = vmatprep.subr.bf16.mxu0 0
        %1058 = vmatpush1.bf16.msra.mxu0 %v1035
        %1059 = vmatprep.subr.bf16.mxu0 0
        %1060 = vmatpush1.bf16.msra.mxu0 0
        %1061 = vmatprep.subr.bf16.mxu0 0
        %1062 = vmatpush1.bf16.msra.mxu0 0
        %1063 = vmatprep.subr.bf16.mxu0 0
        %1064 = vmatpush1.bf16.msra.mxu0 0
        %1065 = vmatprep.subr.bf16.mxu0 0
        %1066 = vmatpush1.bf16.msra.mxu0 0
        %1067 = vmatprep.subr.bf16.mxu0 0
        %1068 = vmatpush1.bf16.msra.mxu0 0
        %1069 = vmatprep.subr.bf16.mxu0 0
        %1070 = vmatpush1.bf16.msra.mxu0 0
        %1071 = vmatprep.subr.bf16.mxu0 0
        %1072 = vmatpush1.bf16.msra.mxu0 0
        %1073 = vmatprep.subr.bf16.mxu0 0
        %1074 = vmatpush1.bf16.msra.mxu0 0
        %1075 = vmatprep.mubr.bf16.mxu0 0
        %1076 = vmatmul.mubr.bf16.gmra.mrb[0].mxu0 %v1027
        %v1077 = vpop.f32.mrb[0].mxu0
        %v1078 = vadd.f32 %v1041, %v1077
        %v1079 = vpop.f32.mrb[0].mxu0
        %v1080 = vpop.f32.mrb[0].mxu0
        %v1081 = vpop.f32.mrb[0].mxu0
        %1082 = vdwg.mxu0
        %v1083 = vld [vmem:[%s9] sm:$0xff]
        %v1084 = vld [vmem:[%s9 + $0x8] sm:$0xff]
        %v1085 = vld [vmem:[%s9 + $0x10] sm:$0xff]
        %v1086 = vld [vmem:[%s9 + $0x18] sm:$0xff]
        %v1087 = vpack.c.bf16 %v1078, %v1078
        %v1088 = vpack.c.bf16 %v1084, %v1083
        %v1089 = vpack.c.bf16 %v1086, %v1085
        %v1090 = vld [vmem:[%s10] sm:$0x1]
        %v1092 = vlaneseq
        %v1093 = vshrl.u32 %v1092, 7
        %v1094 = vsub.s32 0, %v1093
        %v1095 = vrot.slane %v1090, %v1094
        %v1098 = vsel %vm897, %v1087, 0
        %1100 = vmatprep.subr.bf16.mxu0 0
        %1101 = vmatpush1.bf16.msra.mxu0 %v1088
        %1102 = vmatprep.subr.bf16.mxu0 0
        %1103 = vmatpush1.bf16.msra.mxu0 %v1089
        %1104 = vmatprep.subr.bf16.mxu0 0
        %1105 = vmatpush1.bf16.msra.mxu0 0
        %1106 = vmatprep.subr.bf16.mxu0 0
        %1107 = vmatpush1.bf16.msra.mxu0 0
        %1108 = vmatprep.subr.bf16.mxu0 0
        %1109 = vmatpush1.bf16.msra.mxu0 0
        %1110 = vmatprep.subr.bf16.mxu0 0
        %1111 = vmatpush1.bf16.msra.mxu0 0
        %1112 = vmatprep.subr.bf16.mxu0 0
        %1113 = vmatpush1.bf16.msra.mxu0 0
        %1114 = vmatprep.subr.bf16.mxu0 0
        %1115 = vmatpush1.bf16.msra.mxu0 0
        %1116 = vmatprep.subr.bf16.mxu0 0
        %1117 = vmatpush1.bf16.msra.mxu0 0
        %1118 = vmatprep.subr.bf16.mxu0 0
        %1119 = vmatpush1.bf16.msra.mxu0 0
        %1120 = vmatprep.subr.bf16.mxu0 0
        %1121 = vmatpush1.bf16.msra.mxu0 0
        %1122 = vmatprep.subr.bf16.mxu0 0
        %1123 = vmatpush1.bf16.msra.mxu0 0
        %1124 = vmatprep.subr.bf16.mxu0 0
        %1125 = vmatpush1.bf16.msra.mxu0 0
        %1126 = vmatprep.subr.bf16.mxu0 0
        %1127 = vmatpush1.bf16.msra.mxu0 0
        %1128 = vmatprep.subr.bf16.mxu0 0
        %1129 = vmatpush1.bf16.msra.mxu0 0
        %1130 = vmatprep.subr.bf16.mxu0 0
        %1131 = vmatpush1.bf16.msra.mxu0 0
        %1132 = vmatprep.mubr.bf16.mxu0 0
        %1133 = vmatmul.mubr.bf16.gmra.mrb[0].mxu0 %v1098
        %v1134 = vpop.f32.mrb[0].mxu0
        %v1135 = vadd.f32 %v1095, %v1134
        %v1136 = vpop.f32.mrb[0].mxu0
        %v1137 = vpop.f32.mrb[0].mxu0
        %v1138 = vpop.f32.mrb[0].mxu0
        %1139 = vdwg.mxu0
        %s1140 = scalar_lea.vmem %s9, 32
        %v1141 = vld [vmem:[%s1140] sm:$0xff]
        %v1142 = vld [vmem:[%s1140 + $0x8] sm:$0xff]
        %v1143 = vld [vmem:[%s1140 + $0x10] sm:$0xff]
        %v1144 = vld [vmem:[%s1140 + $0x18] sm:$0xff]
        %v1145 = vpack.c.bf16 %v1142, %v1141
        %v1146 = vpack.c.bf16 %v1144, %v1143
        %s1147 = scalar_lea.vmem %s10, 1
        %v1148 = vld [vmem:[%s1147] sm:$0x1]
        %v1150 = vlaneseq
        %v1151 = vshrl.u32 %v1150, 7
        %v1152 = vsub.s32 0, %v1151
        %v1153 = vrot.slane %v1148, %v1152
        %1155 = vmatprep.subr.bf16.mxu0 0
        %1156 = vmatpush1.bf16.msra.mxu0 %v1145
        %1157 = vmatprep.subr.bf16.mxu0 0
        %1158 = vmatpush1.bf16.msra.mxu0 %v1146
        %1159 = vmatprep.subr.bf16.mxu0 0
        %1160 = vmatpush1.bf16.msra.mxu0 0
        %1161 = vmatprep.subr.bf16.mxu0 0
        %1162 = vmatpush1.bf16.msra.mxu0 0
        %1163 = vmatprep.subr.bf16.mxu0 0
        %1164 = vmatpush1.bf16.msra.mxu0 0
        %1165 = vmatprep.subr.bf16.mxu0 0
        %1166 = vmatpush1.bf16.msra.mxu0 0
        %1167 = vmatprep.subr.bf16.mxu0 0
        %1168 = vmatpush1.bf16.msra.mxu0 0
        %1169 = vmatprep.subr.bf16.mxu0 0
        %1170 = vmatpush1.bf16.msra.mxu0 0
        %1171 = vmatprep.subr.bf16.mxu0 0
        %1172 = vmatpush1.bf16.msra.mxu0 0
        %1173 = vmatprep.subr.bf16.mxu0 0
        %1174 = vmatpush1.bf16.msra.mxu0 0
        %1175 = vmatprep.subr.bf16.mxu0 0
        %1176 = vmatpush1.bf16.msra.mxu0 0
        %1177 = vmatprep.subr.bf16.mxu0 0
        %1178 = vmatpush1.bf16.msra.mxu0 0
        %1179 = vmatprep.subr.bf16.mxu0 0
        %1180 = vmatpush1.bf16.msra.mxu0 0
        %1181 = vmatprep.subr.bf16.mxu0 0
        %1182 = vmatpush1.bf16.msra.mxu0 0
        %1183 = vmatprep.subr.bf16.mxu0 0
        %1184 = vmatpush1.bf16.msra.mxu0 0
        %1185 = vmatprep.subr.bf16.mxu0 0
        %1186 = vmatpush1.bf16.msra.mxu0 0
        %1187 = vmatprep.mubr.bf16.mxu0 0
        %1188 = vmatmul.mubr.bf16.gmra.mrb[0].mxu0 %v1098
        %v1189 = vpop.f32.mrb[0].mxu0
        %v1190 = vadd.f32 %v1153, %v1189
        %v1191 = vpop.f32.mrb[0].mxu0
        %v1192 = vpop.f32.mrb[0].mxu0
        %v1193 = vpop.f32.mrb[0].mxu0
        %1194 = vdwg.mxu0
        %v1195 = vlaneseq
        %v1196 = vshrl.u32 %v1195, 7
        %v1197 = vadd.s32 %v1196, 8
        %v1198 = vlaneseq
        %v1199 = vand.u32 %v1198, 127
        %v1200 = vld [vmem:[%s879] sm:$0xff]
        %v1201 = vld [vmem:[%s879 + $0x8] sm:$0xff]
        %v1202 = vld [vmem:[%s11] sm:$0xff]
        %v1203 = vld [vmem:[%s11 + $0x8] sm:$0xff]
        %v1204 = vpack.c.bf16 %v1201, %v1200
        %v1205 = vpack.c.bf16 %v1203, %v1202
        %v1206 = vld [vmem:[%s12] sm:$0x1]
        %v1208 = vlaneseq
        %v1209 = vshrl.u32 %v1208, 7
        %v1210 = vsub.s32 0, %v1209
        %v1211 = vrot.slane %v1206, %v1210
        %vm1213 = vcmask 130048
        %v1215 = vsel %vm1213, %v1204, 0
        %1217 = vmatprep.subr.bf16.mxu0 0
        %1218 = vmatpush1.bf16.msra.mxu0 %v1205
        %1219 = vmatprep.subr.bf16.mxu0 0
        %1220 = vmatpush1.bf16.msra.mxu0 0
        %1221 = vmatprep.subr.bf16.mxu0 0
        %1222 = vmatpush1.bf16.msra.mxu0 0
        %1223 = vmatprep.subr.bf16.mxu0 0
        %1224 = vmatpush1.bf16.msra.mxu0 0
        %1225 = vmatprep.subr.bf16.mxu0 0
        %1226 = vmatpush1.bf16.msra.mxu0 0
        %1227 = vmatprep.subr.bf16.mxu0 0
        %1228 = vmatpush1.bf16.msra.mxu0 0
        %1229 = vmatprep.subr.bf16.mxu0 0
        %1230 = vmatpush1.bf16.msra.mxu0 0
        %1231 = vmatprep.subr.bf16.mxu0 0
        %1232 = vmatpush1.bf16.msra.mxu0 0
        %1233 = vmatprep.subr.bf16.mxu0 0
        %1234 = vmatpush1.bf16.msra.mxu0 0
        %1235 = vmatprep.subr.bf16.mxu0 0
        %1236 = vmatpush1.bf16.msra.mxu0 0
        %1237 = vmatprep.subr.bf16.mxu0 0
        %1238 = vmatpush1.bf16.msra.mxu0 0
        %1239 = vmatprep.subr.bf16.mxu0 0
        %1240 = vmatpush1.bf16.msra.mxu0 0
        %1241 = vmatprep.subr.bf16.mxu0 0
        %1242 = vmatpush1.bf16.msra.mxu0 0
        %1243 = vmatprep.subr.bf16.mxu0 0
        %1244 = vmatpush1.bf16.msra.mxu0 0
        %1245 = vmatprep.subr.bf16.mxu0 0
        %1246 = vmatpush1.bf16.msra.mxu0 0
        %1247 = vmatprep.subr.bf16.mxu0 0
        %1248 = vmatpush1.bf16.msra.mxu0 0
        %1249 = vmatprep.mubr.bf16.mxu0 0
        %1250 = vmatmul.mubr.bf16.gmra.mrb[0].mxu0 %v1215
        %v1251 = vpop.f32.mrb[0].mxu0
        %v1252 = vadd.f32 %v1211, %v1251
        %v1253 = vpop.f32.mrb[0].mxu0
        %v1254 = vpop.f32.mrb[0].mxu0
        %v1255 = vadd.f32 %v1211, %v1254
        %v1256 = vpop.f32.mrb[0].mxu0
        %1257 = vdwg.mxu0
        %v1258 = vmax.f32 %v1252, 0.0
        %v1259 = vmax.f32 %v1255, 0.0
        %v1260 = vlaneseq
        %v1261 = vshrl.u32 %v1260, 7
        %v1262 = vsub.s32 3, %v1261
        %v1263 = vrot.slane %v1135, %v1262
        %v1264 = vadd.f32 %v1258, %v1263
        %v1265 = vadd.f32 %v1259, %v1263
        %s1266 = scalar_lea.vmem %s15, 32
        %v1267 = vld [vmem:[%s1266] sm:$0xff]
        %v1268 = vld [vmem:[%s1266 + $0x8] sm:$0xff]
        %v1269 = vld [vmem:[%s1266 + $0x10] sm:$0xff]
        %v1270 = vld [vmem:[%s1266 + $0x18] sm:$0xff]
        %v1271 = vpack.c.bf16 %v1265, %v1264
        %v1272 = vpack.c.bf16 %v1268, %v1267
        %v1273 = vpack.c.bf16 %v1270, %v1269
        %v1274 = vld [vmem:[%s16] sm:$0x1]
        %v1276 = vlaneseq
        %v1277 = vshrl.u32 %v1276, 7
        %v1278 = vsub.s32 0, %v1277
        %v1279 = vrot.slane %v1274, %v1278
        %v1282 = vsel %vm897, %v1271, 0
        %1284 = vmatprep.subr.bf16.mxu0 0
        %1285 = vmatpush1.bf16.msra.mxu0 %v1272
        %1286 = vmatprep.subr.bf16.mxu0 0
        %1287 = vmatpush1.bf16.msra.mxu0 %v1273
        %1288 = vmatprep.subr.bf16.mxu0 0
        %1289 = vmatpush1.bf16.msra.mxu0 0
        %1290 = vmatprep.subr.bf16.mxu0 0
        %1291 = vmatpush1.bf16.msra.mxu0 0
        %1292 = vmatprep.subr.bf16.mxu0 0
        %1293 = vmatpush1.bf16.msra.mxu0 0
        %1294 = vmatprep.subr.bf16.mxu0 0
        %1295 = vmatpush1.bf16.msra.mxu0 0
        %1296 = vmatprep.subr.bf16.mxu0 0
        %1297 = vmatpush1.bf16.msra.mxu0 0
        %1298 = vmatprep.subr.bf16.mxu0 0
        %1299 = vmatpush1.bf16.msra.mxu0 0
        %1300 = vmatprep.subr.bf16.mxu0 0
        %1301 = vmatpush1.bf16.msra.mxu0 0
        %1302 = vmatprep.subr.bf16.mxu0 0
        %1303 = vmatpush1.bf16.msra.mxu0 0
        %1304 = vmatprep.subr.bf16.mxu0 0
        %1305 = vmatpush1.bf16.msra.mxu0 0
        %1306 = vmatprep.subr.bf16.mxu0 0
        %1307 = vmatpush1.bf16.msra.mxu0 0
        %1308 = vmatprep.subr.bf16.mxu0 0
        %1309 = vmatpush1.bf16.msra.mxu0 0
        %1310 = vmatprep.subr.bf16.mxu0 0
        %1311 = vmatpush1.bf16.msra.mxu0 0
        %1312 = vmatprep.subr.bf16.mxu0 0
        %1313 = vmatpush1.bf16.msra.mxu0 0
        %1314 = vmatprep.subr.bf16.mxu0 0
        %1315 = vmatpush1.bf16.msra.mxu0 0
        %1316 = vmatprep.mubr.bf16.mxu0 0
        %1317 = vmatmul.mubr.bf16.gmra.mrb[0].mxu0 %v1282
        %v1318 = vpop.f32.mrb[0].mxu0
        %v1319 = vadd.f32 %v1279, %v1318
        %v1320 = vpop.f32.mrb[0].mxu0
        %v1321 = vpop.f32.mrb[0].mxu0
        %v1322 = vadd.f32 %v1279, %v1321
        %v1323 = vpop.f32.mrb[0].mxu0
        %1324 = vdwg.mxu0
        %v1325 = vadd.s32 %v1196, 4294967295
        %v1326 = vadd.s32 %v1197, 4294967295
        %vm1327 = vcmp.eq.s32.totalorder %v1199, %v1325
        %vm1328 = vcmp.eq.s32.totalorder %v1199, %v1326
        %v1329 = vsel %vm1327, 1, 0
        %v1330 = vsel %vm1328, 1, 0
        %v1331 = vcvt.s32.f32 %v1329
        %v1332 = vcvt.s32.f32 %v1330
        %v1334 = vsel %vm1213, %v1331, 0
        %v1337 = vsel %vm1213, %v1332, 0
        %1339 = vmatprep.subr.mxu0 0.0
        %1340 = vmatpush1.msra.mxu0 %v1264
        %1341 = vmatprep.subr.mxu0 0.0
        %1342 = vmatpush1.msra.mxu0 %v1265
        %1343 = vmatprep.subr.mxu0 0.0
        %1344 = vmatpush1.msra.mxu0 0.0
        %1345 = vmatprep.subr.mxu0 0.0
        %1346 = vmatpush1.msra.mxu0 0.0
        %1347 = vmatprep.subr.mxu0 0.0
        %1348 = vmatpush1.msra.mxu0 0.0
        %1349 = vmatprep.subr.mxu0 0.0
        %1350 = vmatpush1.msra.mxu0 0.0
        %1351 = vmatprep.subr.mxu0 0.0
        %1352 = vmatpush1.msra.mxu0 0.0
        %1353 = vmatprep.subr.mxu0 0.0
        %1354 = vmatpush1.msra.mxu0 0.0
        %1355 = vmatprep.subr.mxu0 0.0
        %1356 = vmatpush1.msra.mxu0 0.0
        %1357 = vmatprep.subr.mxu0 0.0
        %1358 = vmatpush1.msra.mxu0 0.0
        %1359 = vmatprep.subr.mxu0 0.0
        %1360 = vmatpush1.msra.mxu0 0.0
        %1361 = vmatprep.subr.mxu0 0.0
        %1362 = vmatpush1.msra.mxu0 0.0
        %1363 = vmatprep.subr.mxu0 0.0
        %1364 = vmatpush1.msra.mxu0 0.0
        %1365 = vmatprep.subr.mxu0 0.0
        %1366 = vmatpush1.msra.mxu0 0.0
        %1367 = vmatprep.subr.mxu0 0.0
        %1368 = vmatpush1.msra.mxu0 0.0
        %1369 = vmatprep.subr.mxu0 0.0
        %1370 = vmatpush1.msra.mxu0 0.0
        %1371 = vmatprep.subr.mxu0 0.0
        %1372 = vmatpush1.msra.mxu0 0.0
        %1373 = vmatprep.subr.mxu0 0.0
        %1374 = vmatpush1.msra.mxu0 0.0
        %1375 = vmatprep.subr.mxu0 0.0
        %1376 = vmatpush1.msra.mxu0 0.0
        %1377 = vmatprep.subr.mxu0 0.0
        %1378 = vmatpush1.msra.mxu0 0.0
        %1379 = vmatprep.subr.mxu0 0.0
        %1380 = vmatpush1.msra.mxu0 0.0
        %1381 = vmatprep.subr.mxu0 0.0
        %1382 = vmatpush1.msra.mxu0 0.0
        %1383 = vmatprep.subr.mxu0 0.0
        %1384 = vmatpush1.msra.mxu0 0.0
        %1385 = vmatprep.subr.mxu0 0.0
        %1386 = vmatpush1.msra.mxu0 0.0
        %1387 = vmatprep.subr.mxu0 0.0
        %1388 = vmatpush1.msra.mxu0 0.0
        %1389 = vmatprep.subr.mxu0 0.0
        %1390 = vmatpush1.msra.mxu0 0.0
        %1391 = vmatprep.subr.mxu0 0.0
        %1392 = vmatpush1.msra.mxu0 0.0
        %1393 = vmatprep.subr.mxu0 0.0
        %1394 = vmatpush1.msra.mxu0 0.0
        %1395 = vmatprep.subr.mxu0 0.0
        %1396 = vmatpush1.msra.mxu0 0.0
        %1397 = vmatprep.subr.mxu0 0.0
        %1398 = vmatpush1.msra.mxu0 0.0
        %1399 = vmatprep.subr.mxu0 0.0
        %1400 = vmatpush1.msra.mxu0 0.0
        %1401 = vmatprep.subr.mxu0 0.0
        %1402 = vmatpush1.msra.mxu0 0.0
        %1403 = vmatprep.mubr.f32.mxu0 0.0
        %1404 = vmatmul.mubr.f32.gmra.mrb[0].mxu0 %v1334
        %v1405 = vpop.f32.mrb[0].mxu0
        %v1406 = vadd.f32 0.0, %v1405
        %v1407 = vpop.f32.mrb[0].mxu0
        %1408 = vmatprep.mubr.f32.mxu0 0.0
        %1409 = vmatmul.mubr.f32.gmra.mrb[0].mxu0 %v1337
        %v1410 = vpop.f32.mrb[0].mxu0
        %v1411 = vadd.f32 0.0, %v1410
        %v1412 = vpop.f32.mrb[0].mxu0
        %1413 = vdwg.mxu0
        %v1414 = vld [vmem:[%s15] sm:$0xff]
        %v1415 = vld [vmem:[%s15 + $0x8] sm:$0xff]
        %v1416 = vld [vmem:[%s15 + $0x10] sm:$0xff]
        %v1417 = vld [vmem:[%s15 + $0x18] sm:$0xff]
        %v1418 = vpack.c.bf16 %v1411, %v1406
        %v1419 = vpack.c.bf16 %v1415, %v1414
        %v1420 = vpack.c.bf16 %v1417, %v1416
        %v1422 = vsel %vm897, %v1418, 0
        %1424 = vmatprep.subr.bf16.mxu0 0
        %1425 = vmatpush1.bf16.msra.mxu0 %v1419
        %1426 = vmatprep.subr.bf16.mxu0 0
        %1427 = vmatpush1.bf16.msra.mxu0 %v1420
        %1428 = vmatprep.subr.bf16.mxu0 0
        %1429 = vmatpush1.bf16.msra.mxu0 0
        %1430 = vmatprep.subr.bf16.mxu0 0
        %1431 = vmatpush1.bf16.msra.mxu0 0
        %1432 = vmatprep.subr.bf16.mxu0 0
        %1433 = vmatpush1.bf16.msra.mxu0 0
        %1434 = vmatprep.subr.bf16.mxu0 0
        %1435 = vmatpush1.bf16.msra.mxu0 0
        %1436 = vmatprep.subr.bf16.mxu0 0
        %1437 = vmatpush1.bf16.msra.mxu0 0
        %1438 = vmatprep.subr.bf16.mxu0 0
        %1439 = vmatpush1.bf16.msra.mxu0 0
        %1440 = vmatprep.subr.bf16.mxu0 0
        %1441 = vmatpush1.bf16.msra.mxu0 0
        %1442 = vmatprep.subr.bf16.mxu0 0
        %1443 = vmatpush1.bf16.msra.mxu0 0
        %1444 = vmatprep.subr.bf16.mxu0 0
        %1445 = vmatpush1.bf16.msra.mxu0 0
        %1446 = vmatprep.subr.bf16.mxu0 0
        %1447 = vmatpush1.bf16.msra.mxu0 0
        %1448 = vmatprep.subr.bf16.mxu0 0
        %1449 = vmatpush1.bf16.msra.mxu0 0
        %1450 = vmatprep.subr.bf16.mxu0 0
        %1451 = vmatpush1.bf16.msra.mxu0 0
        %1452 = vmatprep.subr.bf16.mxu0 0
        %1453 = vmatpush1.bf16.msra.mxu0 0
        %1454 = vmatprep.subr.bf16.mxu0 0
        %1455 = vmatpush1.bf16.msra.mxu0 0
        %1456 = vmatprep.mubr.bf16.mxu0 0
        %1457 = vmatmul.mubr.bf16.gmra.mrb[0].mxu0 %v1422
        %v1458 = vpop.f32.mrb[0].mxu0
        %v1459 = vadd.f32 0.0, %v1458
        %v1460 = vpop.f32.mrb[0].mxu0
        %v1461 = vpop.f32.mrb[0].mxu0
        %v1462 = vadd.f32 0.0, %v1461
        %v1463 = vpop.f32.mrb[0].mxu0
        %1464 = vdwg.mxu0
        %v1465 = vadd.f32 %v1319, %v1459
        %v1466 = vadd.f32 %v1322, %v1462
        %v1467 = vadd.s32 %v1196, 1
        %v1468 = vadd.s32 %v1197, 1
        %vm1469 = vcmp.eq.s32.totalorder %v1199, %v1467
        %vm1470 = vcmp.eq.s32.totalorder %v1199, %v1468
        %v1471 = vsel %vm1469, 1, 0
        %v1472 = vsel %vm1470, 1, 0
        %v1473 = vcvt.s32.f32 %v1471
        %v1474 = vcvt.s32.f32 %v1472
        %v1476 = vsel %vm1213, %v1473, 0
        %v1479 = vsel %vm1213, %v1474, 0
        %1481 = vmatprep.subr.mxu0 0.0
        %1482 = vmatpush1.msra.mxu0 %v1264
        %1483 = vmatprep.subr.mxu0 0.0
        %1484 = vmatpush1.msra.mxu0 %v1265
        %1485 = vmatprep.subr.mxu0 0.0
        %1486 = vmatpush1.msra.mxu0 0.0
        %1487 = vmatprep.subr.mxu0 0.0
        %1488 = vmatpush1.msra.mxu0 0.0
        %1489 = vmatprep.subr.mxu0 0.0
        %1490 = vmatpush1.msra.mxu0 0.0
        %1491 = vmatprep.subr.mxu0 0.0
        %1492 = vmatpush1.msra.mxu0 0.0
        %1493 = vmatprep.subr.mxu0 0.0
        %1494 = vmatpush1.msra.mxu0 0.0
        %1495 = vmatprep.subr.mxu0 0.0
        %1496 = vmatpush1.msra.mxu0 0.0
        %1497 = vmatprep.subr.mxu0 0.0
        %1498 = vmatpush1.msra.mxu0 0.0
        %1499 = vmatprep.subr.mxu0 0.0
        %1500 = vmatpush1.msra.mxu0 0.0
        %1501 = vmatprep.subr.mxu0 0.0
        %1502 = vmatpush1.msra.mxu0 0.0
        %1503 = vmatprep.subr.mxu0 0.0
        %1504 = vmatpush1.msra.mxu0 0.0
        %1505 = vmatprep.subr.mxu0 0.0
        %1506 = vmatpush1.msra.mxu0 0.0
        %1507 = vmatprep.subr.mxu0 0.0
        %1508 = vmatpush1.msra.mxu0 0.0
        %1509 = vmatprep.subr.mxu0 0.0
        %1510 = vmatpush1.msra.mxu0 0.0
        %1511 = vmatprep.subr.mxu0 0.0
        %1512 = vmatpush1.msra.mxu0 0.0
        %1513 = vmatprep.subr.mxu0 0.0
        %1514 = vmatpush1.msra.mxu0 0.0
        %1515 = vmatprep.subr.mxu0 0.0
        %1516 = vmatpush1.msra.mxu0 0.0
        %1517 = vmatprep.subr.mxu0 0.0
        %1518 = vmatpush1.msra.mxu0 0.0
        %1519 = vmatprep.subr.mxu0 0.0
        %1520 = vmatpush1.msra.mxu0 0.0
        %1521 = vmatprep.subr.mxu0 0.0
        %1522 = vmatpush1.msra.mxu0 0.0
        %1523 = vmatprep.subr.mxu0 0.0
        %1524 = vmatpush1.msra.mxu0 0.0
        %1525 = vmatprep.subr.mxu0 0.0
        %1526 = vmatpush1.msra.mxu0 0.0
        %1527 = vmatprep.subr.mxu0 0.0
        %1528 = vmatpush1.msra.mxu0 0.0
        %1529 = vmatprep.subr.mxu0 0.0
        %1530 = vmatpush1.msra.mxu0 0.0
        %1531 = vmatprep.subr.mxu0 0.0
        %1532 = vmatpush1.msra.mxu0 0.0
        %1533 = vmatprep.subr.mxu0 0.0
        %1534 = vmatpush1.msra.mxu0 0.0
        %1535 = vmatprep.subr.mxu0 0.0
        %1536 = vmatpush1.msra.mxu0 0.0
        %1537 = vmatprep.subr.mxu0 0.0
        %1538 = vmatpush1.msra.mxu0 0.0
        %1539 = vmatprep.subr.mxu0 0.0
        %1540 = vmatpush1.msra.mxu0 0.0
        %1541 = vmatprep.subr.mxu0 0.0
        %1542 = vmatpush1.msra.mxu0 0.0
        %1543 = vmatprep.subr.mxu0 0.0
        %1544 = vmatpush1.msra.mxu0 0.0
        %1545 = vmatprep.mubr.f32.mxu0 0.0
        %1546 = vmatmul.mubr.f32.gmra.mrb[0].mxu0 %v1476
        %v1547 = vpop.f32.mrb[0].mxu0
        %v1548 = vadd.f32 0.0, %v1547
        %v1549 = vpop.f32.mrb[0].mxu0
        %1550 = vmatprep.mubr.f32.mxu0 0.0
        %1551 = vmatmul.mubr.f32.gmra.mrb[0].mxu0 %v1479
        %v1552 = vpop.f32.mrb[0].mxu0
        %v1553 = vadd.f32 0.0, %v1552
        %v1554 = vpop.f32.mrb[0].mxu0
        %1555 = vdwg.mxu0
        %s1556 = scalar_lea.vmem %s15, 64
        %v1557 = vld [vmem:[%s1556] sm:$0xff]
        %v1558 = vld [vmem:[%s1556 + $0x8] sm:$0xff]
        %v1559 = vld [vmem:[%s1556 + $0x10] sm:$0xff]
        %v1560 = vld [vmem:[%s1556 + $0x18] sm:$0xff]
        %v1561 = vpack.c.bf16 %v1553, %v1548
        %v1562 = vpack.c.bf16 %v1558, %v1557
        %v1563 = vpack.c.bf16 %v1560, %v1559
        %v1565 = vsel %vm897, %v1561, 0
        %1567 = vmatprep.subr.bf16.mxu0 0
        %1568 = vmatpush1.bf16.msra.mxu0 %v1562
        %1569 = vmatprep.subr.bf16.mxu0 0
        %1570 = vmatpush1.bf16.msra.mxu0 %v1563
        %1571 = vmatprep.subr.bf16.mxu0 0
        %1572 = vmatpush1.bf16.msra.mxu0 0
        %1573 = vmatprep.subr.bf16.mxu0 0
        %1574 = vmatpush1.bf16.msra.mxu0 0
        %1575 = vmatprep.subr.bf16.mxu0 0
        %1576 = vmatpush1.bf16.msra.mxu0 0
        %1577 = vmatprep.subr.bf16.mxu0 0
        %1578 = vmatpush1.bf16.msra.mxu0 0
        %1579 = vmatprep.subr.bf16.mxu0 0
        %1580 = vmatpush1.bf16.msra.mxu0 0
        %1581 = vmatprep.subr.bf16.mxu0 0
        %1582 = vmatpush1.bf16.msra.mxu0 0
        %1583 = vmatprep.subr.bf16.mxu0 0
        %1584 = vmatpush1.bf16.msra.mxu0 0
        %1585 = vmatprep.subr.bf16.mxu0 0
        %1586 = vmatpush1.bf16.msra.mxu0 0
        %1587 = vmatprep.subr.bf16.mxu0 0
        %1588 = vmatpush1.bf16.msra.mxu0 0
        %1589 = vmatprep.subr.bf16.mxu0 0
        %1590 = vmatpush1.bf16.msra.mxu0 0
        %1591 = vmatprep.subr.bf16.mxu0 0
        %1592 = vmatpush1.bf16.msra.mxu0 0
        %1593 = vmatprep.subr.bf16.mxu0 0
        %1594 = vmatpush1.bf16.msra.mxu0 0
        %1595 = vmatprep.subr.bf16.mxu0 0
        %1596 = vmatpush1.bf16.msra.mxu0 0
        %1597 = vmatprep.subr.bf16.mxu0 0
        %1598 = vmatpush1.bf16.msra.mxu0 0
        %1599 = vmatprep.mubr.bf16.mxu0 0
        %1600 = vmatmul.mubr.bf16.gmra.mrb[0].mxu0 %v1565
        %v1601 = vpop.f32.mrb[0].mxu0
        %v1602 = vadd.f32 0.0, %v1601
        %v1603 = vpop.f32.mrb[0].mxu0
        %v1604 = vpop.f32.mrb[0].mxu0
        %v1605 = vadd.f32 0.0, %v1604
        %v1606 = vpop.f32.mrb[0].mxu0
        %1607 = vdwg.mxu0
        %v1608 = vadd.f32 %v1465, %v1602
        %v1609 = vadd.f32 %v1466, %v1605
        %v1610 = vadd.f32 %v1608, %v936
        %v1611 = vadd.f32 %v1609, %v939
        %v1612 = vxor.u32 %v1610, 2147483648
        %v1613 = vxor.u32 %v1611, 2147483648
        %v1614 = vmul.f32 %v1612, 1.442695
        %v1615 = vpow.pop %v1614
        %v1616 = vmul.f32 %v1613, 1.442695
        %v1617 = vpow.pop %v1616
        %v1618 = vadd.f32 %v1615, 1.0
        %v1619 = vadd.f32 %v1617, 1.0
        %v1620 = vrcp.pop %v1618
        %v1621 = vmul.f32 1.0, %v1620
        %v1622 = vrcp.pop %v1619
        %v1623 = vmul.f32 1.0, %v1622
        %v1624 = vtanh.pop %v1610
        %v1625 = vtanh.pop %v1611
        %1628 = vrot.lane.b32.xlu0 %v1624, 96
        %v1629 = vpop.permute.xlu0 %1628
        %1630 = vrot.lane.b32.xlu0 %v1625, 96
        %v1631 = vpop.permute.xlu0 %1630
        %v1634 = vmul.f32 %v1621, %v1629
        %v1635 = vmul.f32 %v1623, %v1631
        %v1636 = vld [vmem:[%s17] sm:$0xff]
        %v1637 = vld [vmem:[%s17 + $0x8] sm:$0xff]
        %v1638 = vld [vmem:[%s17 + $0x10] sm:$0xff]
        %v1639 = vld [vmem:[%s17 + $0x18] sm:$0xff]
        %v1640 = vpack.c.bf16 %v1635, %v1634
        %v1641 = vpack.c.bf16 %v1637, %v1636
        %v1642 = vpack.c.bf16 %v1639, %v1638
        %v1643 = vld [vmem:[%s18] sm:$0x1]
        %v1645 = vlaneseq
        %v1646 = vshrl.u32 %v1645, 7
        %v1647 = vsub.s32 0, %v1646
        %v1648 = vrot.slane %v1643, %v1647
        %v1651 = vsel %vm897, %v1640, 0
        %1653 = vmatprep.subr.bf16.mxu0 0
        %1654 = vmatpush1.bf16.msra.mxu0 %v1641
        %1655 = vmatprep.subr.bf16.mxu0 0
        %1656 = vmatpush1.bf16.msra.mxu0 %v1642
        %1657 = vmatprep.subr.bf16.mxu0 0
        %1658 = vmatpush1.bf16.msra.mxu0 0
        %1659 = vmatprep.subr.bf16.mxu0 0
        %1660 = vmatpush1.bf16.msra.mxu0 0
        %1661 = vmatprep.subr.bf16.mxu0 0
        %1662 = vmatpush1.bf16.msra.mxu0 0
        %1663 = vmatprep.subr.bf16.mxu0 0
        %1664 = vmatpush1.bf16.msra.mxu0 0
        %1665 = vmatprep.subr.bf16.mxu0 0
        %1666 = vmatpush1.bf16.msra.mxu0 0
        %1667 = vmatprep.subr.bf16.mxu0 0
        %1668 = vmatpush1.bf16.msra.mxu0 0
        %1669 = vmatprep.subr.bf16.mxu0 0
        %1670 = vmatpush1.bf16.msra.mxu0 0
        %1671 = vmatprep.subr.bf16.mxu0 0
        %1672 = vmatpush1.bf16.msra.mxu0 0
        %1673 = vmatprep.subr.bf16.mxu0 0
        %1674 = vmatpush1.bf16.msra.mxu0 0
        %1675 = vmatprep.subr.bf16.mxu0 0
        %1676 = vmatpush1.bf16.msra.mxu0 0
        %1677 = vmatprep.subr.bf16.mxu0 0
        %1678 = vmatpush1.bf16.msra.mxu0 0
        %1679 = vmatprep.subr.bf16.mxu0 0
        %1680 = vmatpush1.bf16.msra.mxu0 0
        %1681 = vmatprep.subr.bf16.mxu0 0
        %1682 = vmatpush1.bf16.msra.mxu0 0
        %1683 = vmatprep.subr.bf16.mxu0 0
        %1684 = vmatpush1.bf16.msra.mxu0 0
        %1685 = vmatprep.mubr.bf16.mxu0 0
        %1686 = vmatmul.mubr.bf16.gmra.mrb[0].mxu0 %v1651
        %v1687 = vpop.f32.mrb[0].mxu0
        %v1688 = vadd.f32 %v1648, %v1687
        %v1689 = vpop.f32.mrb[0].mxu0
        %v1690 = vpop.f32.mrb[0].mxu0
        %v1691 = vadd.f32 %v1648, %v1690
        %v1692 = vpop.f32.mrb[0].mxu0
        %1693 = vdwg.mxu0
        %v1694 = vadd.f32 %v1258, %v1688
        %v1695 = vadd.f32 %v1259, %v1691
        %v1696 = vmul.f32 %v1694, 0.70710677
        %v1697 = vmul.f32 %v1695, 0.70710677
        %v1698 = vadd.f32 %v1688, 0.0
        %v1699 = vadd.f32 %v1691, 0.0
        %v1700 = vlaneseq
        %v1701 = vshrl.u32 %v1700, 7
        %v1702 = vsub.s32 3, %v1701
        %v1703 = vrot.slane %v1190, %v1702
        %v1704 = vadd.f32 %v1696, %v1703
        %v1705 = vadd.f32 %v1697, %v1703
        %s1706 = scalar_lea.vmem %s15, 128
        %v1707 = vld [vmem:[%s1706] sm:$0xff]
        %v1708 = vld [vmem:[%s1706 + $0x8] sm:$0xff]
        %v1709 = vld [vmem:[%s1706 + $0x10] sm:$0xff]
        %v1710 = vld [vmem:[%s1706 + $0x18] sm:$0xff]
        %v1711 = vpack.c.bf16 %v1705, %v1704
        %v1712 = vpack.c.bf16 %v1708, %v1707
        %v1713 = vpack.c.bf16 %v1710, %v1709
        %s1714 = scalar_lea.vmem %s16, 1
        %v1715 = vld [vmem:[%s1714] sm:$0x1]
        %v1717 = vlaneseq
        %v1718 = vshrl.u32 %v1717, 7
        %v1719 = vsub.s32 0, %v1718
        %v1720 = vrot.slane %v1715, %v1719
        %v1723 = vsel %vm897, %v1711, 0
        %1725 = vmatprep.subr.bf16.mxu0 0
        %1726 = vmatpush1.bf16.msra.mxu0 %v1712
        %1727 = vmatprep.subr.bf16.mxu0 0
        %1728 = vmatpush1.bf16.msra.mxu0 %v1713
        %1729 = vmatprep.subr.bf16.mxu0 0
        %1730 = vmatpush1.bf16.msra.mxu0 0
        %1731 = vmatprep.subr.bf16.mxu0 0
        %1732 = vmatpush1.bf16.msra.mxu0 0
        %1733 = vmatprep.subr.bf16.mxu0 0
        %1734 = vmatpush1.bf16.msra.mxu0 0
        %1735 = vmatprep.subr.bf16.mxu0 0
        %1736 = vmatpush1.bf16.msra.mxu0 0
        %1737 = vmatprep.subr.bf16.mxu0 0
        %1738 = vmatpush1.bf16.msra.mxu0 0
        %1739 = vmatprep.subr.bf16.mxu0 0
        %1740 = vmatpush1.bf16.msra.mxu0 0
        %1741 = vmatprep.subr.bf16.mxu0 0
        %1742 = vmatpush1.bf16.msra.mxu0 0
        %1743 = vmatprep.subr.bf16.mxu0 0
        %1744 = vmatpush1.bf16.msra.mxu0 0
        %1745 = vmatprep.subr.bf16.mxu0 0
        %1746 = vmatpush1.bf16.msra.mxu0 0
        %1747 = vmatprep.subr.bf16.mxu0 0
        %1748 = vmatpush1.bf16.msra.mxu0 0
        %1749 = vmatprep.subr.bf16.mxu0 0
        %1750 = vmatpush1.bf16.msra.mxu0 0
        %1751 = vmatprep.subr.bf16.mxu0 0
        %1752 = vmatpush1.bf16.msra.mxu0 0
        %1753 = vmatprep.subr.bf16.mxu0 0
        %1754 = vmatpush1.bf16.msra.mxu0 0
        %1755 = vmatprep.subr.bf16.mxu0 0
        %1756 = vmatpush1.bf16.msra.mxu0 0
        %1757 = vmatprep.mubr.bf16.mxu0 0
        %1758 = vmatmul.mubr.bf16.gmra.mrb[0].mxu0 %v1723
        %v1759 = vpop.f32.mrb[0].mxu0
        %v1760 = vadd.f32 %v1720, %v1759
        %v1761 = vpop.f32.mrb[0].mxu0
        %v1762 = vpop.f32.mrb[0].mxu0
        %v1763 = vadd.f32 %v1720, %v1762
        %v1764 = vpop.f32.mrb[0].mxu0
        %1765 = vdwg.mxu0
        %1766 = vmatprep.subr.mxu0 0.0
        %1767 = vmatpush1.msra.mxu0 %v1704
        %1768 = vmatprep.subr.mxu0 0.0
        %1769 = vmatpush1.msra.mxu0 %v1705
        %1770 = vmatprep.subr.mxu0 0.0
        %1771 = vmatpush1.msra.mxu0 0.0
        %1772 = vmatprep.subr.mxu0 0.0
        %1773 = vmatpush1.msra.mxu0 0.0
        %1774 = vmatprep.subr.mxu0 0.0
        %1775 = vmatpush1.msra.mxu0 0.0
        %1776 = vmatprep.subr.mxu0 0.0
        %1777 = vmatpush1.msra.mxu0 0.0
        %1778 = vmatprep.subr.mxu0 0.0
        %1779 = vmatpush1.msra.mxu0 0.0
        %1780 = vmatprep.subr.mxu0 0.0
        %1781 = vmatpush1.msra.mxu0 0.0
        %1782 = vmatprep.subr.mxu0 0.0
        %1783 = vmatpush1.msra.mxu0 0.0
        %1784 = vmatprep.subr.mxu0 0.0
        %1785 = vmatpush1.msra.mxu0 0.0
        %1786 = vmatprep.subr.mxu0 0.0
        %1787 = vmatpush1.msra.mxu0 0.0
        %1788 = vmatprep.subr.mxu0 0.0
        %1789 = vmatpush1.msra.mxu0 0.0
        %1790 = vmatprep.subr.mxu0 0.0
        %1791 = vmatpush1.msra.mxu0 0.0
        %1792 = vmatprep.subr.mxu0 0.0
        %1793 = vmatpush1.msra.mxu0 0.0
        %1794 = vmatprep.subr.mxu0 0.0
        %1795 = vmatpush1.msra.mxu0 0.0
        %1796 = vmatprep.subr.mxu0 0.0
        %1797 = vmatpush1.msra.mxu0 0.0
        %1798 = vmatprep.subr.mxu0 0.0
        %1799 = vmatpush1.msra.mxu0 0.0
        %1800 = vmatprep.subr.mxu0 0.0
        %1801 = vmatpush1.msra.mxu0 0.0
        %1802 = vmatprep.subr.mxu0 0.0
        %1803 = vmatpush1.msra.mxu0 0.0
        %1804 = vmatprep.subr.mxu0 0.0
        %1805 = vmatpush1.msra.mxu0 0.0
        %1806 = vmatprep.subr.mxu0 0.0
        %1807 = vmatpush1.msra.mxu0 0.0
        %1808 = vmatprep.subr.mxu0 0.0
        %1809 = vmatpush1.msra.mxu0 0.0
        %1810 = vmatprep.subr.mxu0 0.0
        %1811 = vmatpush1.msra.mxu0 0.0
        %1812 = vmatprep.subr.mxu0 0.0
        %1813 = vmatpush1.msra.mxu0 0.0
        %1814 = vmatprep.subr.mxu0 0.0
        %1815 = vmatpush1.msra.mxu0 0.0
        %1816 = vmatprep.subr.mxu0 0.0
        %1817 = vmatpush1.msra.mxu0 0.0
        %1818 = vmatprep.subr.mxu0 0.0
        %1819 = vmatpush1.msra.mxu0 0.0
        %1820 = vmatprep.subr.mxu0 0.0
        %1821 = vmatpush1.msra.mxu0 0.0
        %1822 = vmatprep.subr.mxu0 0.0
        %1823 = vmatpush1.msra.mxu0 0.0
        %1824 = vmatprep.subr.mxu0 0.0
        %1825 = vmatpush1.msra.mxu0 0.0
        %1826 = vmatprep.subr.mxu0 0.0
        %1827 = vmatpush1.msra.mxu0 0.0
        %1828 = vmatprep.subr.mxu0 0.0
        %1829 = vmatpush1.msra.mxu0 0.0
        %1830 = vmatprep.mubr.f32.mxu0 0.0
        %1831 = vmatmul.mubr.f32.gmra.mrb[0].mxu0 %v1334
        %v1832 = vpop.f32.mrb[0].mxu0
        %v1833 = vadd.f32 0.0, %v1832
        %v1834 = vpop.f32.mrb[0].mxu0
        %1835 = vmatprep.mubr.f32.mxu0 0.0
        %1836 = vmatmul.mubr.f32.gmra.mrb[0].mxu0 %v1337
        %v1837 = vpop.f32.mrb[0].mxu0
        %v1838 = vadd.f32 0.0, %v1837
        %v1839 = vpop.f32.mrb[0].mxu0
        %1840 = vdwg.mxu0
        %s1841 = scalar_lea.vmem %s15, 96
        %v1842 = vld [vmem:[%s1841] sm:$0xff]
        %v1843 = vld [vmem:[%s1841 + $0x8] sm:$0xff]
        %v1844 = vld [vmem:[%s1841 + $0x10] sm:$0xff]
        %v1845 = vld [vmem:[%s1841 + $0x18] sm:$0xff]
        %v1846 = vpack.c.bf16 %v1838, %v1833
        %v1847 = vpack.c.bf16 %v1843, %v1842
        %v1848 = vpack.c.bf16 %v1845, %v1844
        %v1850 = vsel %vm897, %v1846, 0
        %1852 = vmatprep.subr.bf16.mxu0 0
        %1853 = vmatpush1.bf16.msra.mxu0 %v1847
        %1854 = vmatprep.subr.bf16.mxu0 0
        %1855 = vmatpush1.bf16.msra.mxu0 %v1848
        %1856 = vmatprep.subr.bf16.mxu0 0
        %1857 = vmatpush1.bf16.msra.mxu0 0
        %1858 = vmatprep.subr.bf16.mxu0 0
        %1859 = vmatpush1.bf16.msra.mxu0 0
        %1860 = vmatprep.subr.bf16.mxu0 0
        %1861 = vmatpush1.bf16.msra.mxu0 0
        %1862 = vmatprep.subr.bf16.mxu0 0
        %1863 = vmatpush1.bf16.msra.mxu0 0
        %1864 = vmatprep.subr.bf16.mxu0 0
        %1865 = vmatpush1.bf16.msra.mxu0 0
        %1866 = vmatprep.subr.bf16.mxu0 0
        %1867 = vmatpush1.bf16.msra.mxu0 0
        %1868 = vmatprep.subr.bf16.mxu0 0
        %1869 = vmatpush1.bf16.msra.mxu0 0
        %1870 = vmatprep.subr.bf16.mxu0 0
        %1871 = vmatpush1.bf16.msra.mxu0 0
        %1872 = vmatprep.subr.bf16.mxu0 0
        %1873 = vmatpush1.bf16.msra.mxu0 0
        %1874 = vmatprep.subr.bf16.mxu0 0
        %1875 = vmatpush1.bf16.msra.mxu0 0
        %1876 = vmatprep.subr.bf16.mxu0 0
        %1877 = vmatpush1.bf16.msra.mxu0 0
        %1878 = vmatprep.subr.bf16.mxu0 0
        %1879 = vmatpush1.bf16.msra.mxu0 0
        %1880 = vmatprep.subr.bf16.mxu0 0
        %1881 = vmatpush1.bf16.msra.mxu0 0
        %1882 = vmatprep.subr.bf16.mxu0 0
        %1883 = vmatpush1.bf16.msra.mxu0 0
        %1884 = vmatprep.mubr.bf16.mxu0 0
        %1885 = vmatmul.mubr.bf16.gmra.mrb[0].mxu0 %v1850
        %v1886 = vpop.f32.mrb[0].mxu0
        %v1887 = vadd.f32 0.0, %v1886
        %v1888 = vpop.f32.mrb[0].mxu0
        %v1889 = vpop.f32.mrb[0].mxu0
        %v1890 = vadd.f32 0.0, %v1889
        %v1891 = vpop.f32.mrb[0].mxu0
        %1892 = vdwg.mxu0
        %v1893 = vadd.f32 %v1760, %v1887
        %v1894 = vadd.f32 %v1763, %v1890
        %1895 = vmatprep.subr.mxu0 0.0
        %1896 = vmatpush1.msra.mxu0 %v1704
        %1897 = vmatprep.subr.mxu0 0.0
        %1898 = vmatpush1.msra.mxu0 %v1705
        %1899 = vmatprep.subr.mxu0 0.0
        %1900 = vmatpush1.msra.mxu0 0.0
        %1901 = vmatprep.subr.mxu0 0.0
        %1902 = vmatpush1.msra.mxu0 0.0
        %1903 = vmatprep.subr.mxu0 0.0
        %1904 = vmatpush1.msra.mxu0 0.0
        %1905 = vmatprep.subr.mxu0 0.0
        %1906 = vmatpush1.msra.mxu0 0.0
        %1907 = vmatprep.subr.mxu0 0.0
        %1908 = vmatpush1.msra.mxu0 0.0
        %1909 = vmatprep.subr.mxu0 0.0
        %1910 = vmatpush1.msra.mxu0 0.0
        %1911 = vmatprep.subr.mxu0 0.0
        %1912 = vmatpush1.msra.mxu0 0.0
        %1913 = vmatprep.subr.mxu0 0.0
        %1914 = vmatpush1.msra.mxu0 0.0
        %1915 = vmatprep.subr.mxu0 0.0
        %1916 = vmatpush1.msra.mxu0 0.0
        %1917 = vmatprep.subr.mxu0 0.0
        %1918 = vmatpush1.msra.mxu0 0.0
        %1919 = vmatprep.subr.mxu0 0.0
        %1920 = vmatpush1.msra.mxu0 0.0
        %1921 = vmatprep.subr.mxu0 0.0
        %1922 = vmatpush1.msra.mxu0 0.0
        %1923 = vmatprep.subr.mxu0 0.0
        %1924 = vmatpush1.msra.mxu0 0.0
        %1925 = vmatprep.subr.mxu0 0.0
        %1926 = vmatpush1.msra.mxu0 0.0
        %1927 = vmatprep.subr.mxu0 0.0
        %1928 = vmatpush1.msra.mxu0 0.0
        %1929 = vmatprep.subr.mxu0 0.0
        %1930 = vmatpush1.msra.mxu0 0.0
        %1931 = vmatprep.subr.mxu0 0.0
        %1932 = vmatpush1.msra.mxu0 0.0
        %1933 = vmatprep.subr.mxu0 0.0
        %1934 = vmatpush1.msra.mxu0 0.0
        %1935 = vmatprep.subr.mxu0 0.0
        %1936 = vmatpush1.msra.mxu0 0.0
        %1937 = vmatprep.subr.mxu0 0.0
        %1938 = vmatpush1.msra.mxu0 0.0
        %1939 = vmatprep.subr.mxu0 0.0
        %1940 = vmatpush1.msra.mxu0 0.0
        %1941 = vmatprep.subr.mxu0 0.0
        %1942 = vmatpush1.msra.mxu0 0.0
        %1943 = vmatprep.subr.mxu0 0.0
        %1944 = vmatpush1.msra.mxu0 0.0
        %1945 = vmatprep.subr.mxu0 0.0
        %1946 = vmatpush1.msra.mxu0 0.0
        %1947 = vmatprep.subr.mxu0 0.0
        %1948 = vmatpush1.msra.mxu0 0.0
        %1949 = vmatprep.subr.mxu0 0.0
        %1950 = vmatpush1.msra.mxu0 0.0
        %1951 = vmatprep.subr.mxu0 0.0
        %1952 = vmatpush1.msra.mxu0 0.0
        %1953 = vmatprep.subr.mxu0 0.0
        %1954 = vmatpush1.msra.mxu0 0.0
        %1955 = vmatprep.subr.mxu0 0.0
        %1956 = vmatpush1.msra.mxu0 0.0
        %1957 = vmatprep.subr.mxu0 0.0
        %1958 = vmatpush1.msra.mxu0 0.0
        %1959 = vmatprep.mubr.f32.mxu0 0.0
        %1960 = vmatmul.mubr.f32.gmra.mrb[0].mxu0 %v1476
        %v1961 = vpop.f32.mrb[0].mxu0
        %v1962 = vadd.f32 0.0, %v1961
        %v1963 = vpop.f32.mrb[0].mxu0
        %1964 = vmatprep.mubr.f32.mxu0 0.0
        %1965 = vmatmul.mubr.f32.gmra.mrb[0].mxu0 %v1479
        %v1966 = vpop.f32.mrb[0].mxu0
        %v1967 = vadd.f32 0.0, %v1966
        %v1968 = vpop.f32.mrb[0].mxu0
        %1969 = vdwg.mxu0
        %s1970 = scalar_lea.vmem %s15, 160
        %v1971 = vld [vmem:[%s1970] sm:$0xff]
        %v1972 = vld [vmem:[%s1970 + $0x8] sm:$0xff]
        %v1973 = vld [vmem:[%s1970 + $0x10] sm:$0xff]
        %v1974 = vld [vmem:[%s1970 + $0x18] sm:$0xff]
        %v1975 = vpack.c.bf16 %v1967, %v1962
        %v1976 = vpack.c.bf16 %v1972, %v1971
        %v1977 = vpack.c.bf16 %v1974, %v1973
        %v1979 = vsel %vm897, %v1975, 0
        %1981 = vmatprep.subr.bf16.mxu0 0
        %1982 = vmatpush1.bf16.msra.mxu0 %v1976
        %1983 = vmatprep.subr.bf16.mxu0 0
        %1984 = vmatpush1.bf16.msra.mxu0 %v1977
        %1985 = vmatprep.subr.bf16.mxu0 0
        %1986 = vmatpush1.bf16.msra.mxu0 0
        %1987 = vmatprep.subr.bf16.mxu0 0
        %1988 = vmatpush1.bf16.msra.mxu0 0
        %1989 = vmatprep.subr.bf16.mxu0 0
        %1990 = vmatpush1.bf16.msra.mxu0 0
        %1991 = vmatprep.subr.bf16.mxu0 0
        %1992 = vmatpush1.bf16.msra.mxu0 0
        %1993 = vmatprep.subr.bf16.mxu0 0
        %1994 = vmatpush1.bf16.msra.mxu0 0
        %1995 = vmatprep.subr.bf16.mxu0 0
        %1996 = vmatpush1.bf16.msra.mxu0 0
        %1997 = vmatprep.subr.bf16.mxu0 0
        %1998 = vmatpush1.bf16.msra.mxu0 0
        %1999 = vmatprep.subr.bf16.mxu0 0
        %2000 = vmatpush1.bf16.msra.mxu0 0
        %2001 = vmatprep.subr.bf16.mxu0 0
        %2002 = vmatpush1.bf16.msra.mxu0 0
        %2003 = vmatprep.subr.bf16.mxu0 0
        %2004 = vmatpush1.bf16.msra.mxu0 0
        %2005 = vmatprep.subr.bf16.mxu0 0
        %2006 = vmatpush1.bf16.msra.mxu0 0
        %2007 = vmatprep.subr.bf16.mxu0 0
        %2008 = vmatpush1.bf16.msra.mxu0 0
        %2009 = vmatprep.subr.bf16.mxu0 0
        %2010 = vmatpush1.bf16.msra.mxu0 0
        %2011 = vmatprep.subr.bf16.mxu0 0
        %2012 = vmatpush1.bf16.msra.mxu0 0
        %2013 = vmatprep.mubr.bf16.mxu0 0
        %2014 = vmatmul.mubr.bf16.gmra.mrb[0].mxu0 %v1979
        %v2015 = vpop.f32.mrb[0].mxu0
        %v2016 = vadd.f32 0.0, %v2015
        %v2017 = vpop.f32.mrb[0].mxu0
        %v2018 = vpop.f32.mrb[0].mxu0
        %v2019 = vadd.f32 0.0, %v2018
        %v2020 = vpop.f32.mrb[0].mxu0
        %2021 = vdwg.mxu0
        %v2022 = vadd.f32 %v1893, %v2016
        %v2023 = vadd.f32 %v1894, %v2019
        %2026 = vrot.lane.b32.xlu0 %v936, 64
        %v2027 = vpop.permute.xlu0 %2026
        %2028 = vrot.lane.b32.xlu0 %v939, 64
        %v2029 = vpop.permute.xlu0 %2028
        %v2032 = vadd.f32 %v2022, %v2027
        %v2033 = vadd.f32 %v2023, %v2029
        %v2034 = vxor.u32 %v2032, 2147483648
        %v2035 = vxor.u32 %v2033, 2147483648
        %v2036 = vmul.f32 %v2034, 1.442695
        %v2037 = vpow.pop %v2036
        %v2038 = vmul.f32 %v2035, 1.442695
        %v2039 = vpow.pop %v2038
        %v2040 = vadd.f32 %v2037, 1.0
        %v2041 = vadd.f32 %v2039, 1.0
        %v2042 = vrcp.pop %v2040
        %v2043 = vmul.f32 1.0, %v2042
        %v2044 = vrcp.pop %v2041
        %v2045 = vmul.f32 1.0, %v2044
        %v2046 = vtanh.pop %v2032
        %v2047 = vtanh.pop %v2033
        %2050 = vrot.lane.b32.xlu0 %v2046, 96
        %v2051 = vpop.permute.xlu0 %2050
        %2052 = vrot.lane.b32.xlu0 %v2047, 96
        %v2053 = vpop.permute.xlu0 %2052
        %v2056 = vmul.f32 %v2043, %v2051
        %v2057 = vmul.f32 %v2045, %v2053
        %s2058 = scalar_lea.vmem %s17, 32
        %v2059 = vld [vmem:[%s2058] sm:$0xff]
        %v2060 = vld [vmem:[%s2058 + $0x8] sm:$0xff]
        %v2061 = vld [vmem:[%s2058 + $0x10] sm:$0xff]
        %v2062 = vld [vmem:[%s2058 + $0x18] sm:$0xff]
        %v2063 = vpack.c.bf16 %v2057, %v2056
        %v2064 = vpack.c.bf16 %v2060, %v2059
        %v2065 = vpack.c.bf16 %v2062, %v2061
        %s2066 = scalar_lea.vmem %s18, 1
        %v2067 = vld [vmem:[%s2066] sm:$0x1]
        %v2069 = vlaneseq
        %v2070 = vshrl.u32 %v2069, 7
        %v2071 = vsub.s32 0, %v2070
        %v2072 = vrot.slane %v2067, %v2071
        %v2075 = vsel %vm897, %v2063, 0
        %2077 = vmatprep.subr.bf16.mxu0 0
        %2078 = vmatpush1.bf16.msra.mxu0 %v2064
        %2079 = vmatprep.subr.bf16.mxu0 0
        %2080 = vmatpush1.bf16.msra.mxu0 %v2065
        %2081 = vmatprep.subr.bf16.mxu0 0
        %2082 = vmatpush1.bf16.msra.mxu0 0
        %2083 = vmatprep.subr.bf16.mxu0 0
        %2084 = vmatpush1.bf16.msra.mxu0 0
        %2085 = vmatprep.subr.bf16.mxu0 0
        %2086 = vmatpush1.bf16.msra.mxu0 0
        %2087 = vmatprep.subr.bf16.mxu0 0
        %2088 = vmatpush1.bf16.msra.mxu0 0
        %2089 = vmatprep.subr.bf16.mxu0 0
        %2090 = vmatpush1.bf16.msra.mxu0 0
        %2091 = vmatprep.subr.bf16.mxu0 0
        %2092 = vmatpush1.bf16.msra.mxu0 0
        %2093 = vmatprep.subr.bf16.mxu0 0
        %2094 = vmatpush1.bf16.msra.mxu0 0
        %2095 = vmatprep.subr.bf16.mxu0 0
        %2096 = vmatpush1.bf16.msra.mxu0 0
        %2097 = vmatprep.subr.bf16.mxu0 0
        %2098 = vmatpush1.bf16.msra.mxu0 0
        %2099 = vmatprep.subr.bf16.mxu0 0
        %2100 = vmatpush1.bf16.msra.mxu0 0
        %2101 = vmatprep.subr.bf16.mxu0 0
        %2102 = vmatpush1.bf16.msra.mxu0 0
        %2103 = vmatprep.subr.bf16.mxu0 0
        %2104 = vmatpush1.bf16.msra.mxu0 0
        %2105 = vmatprep.subr.bf16.mxu0 0
        %2106 = vmatpush1.bf16.msra.mxu0 0
        %2107 = vmatprep.subr.bf16.mxu0 0
        %2108 = vmatpush1.bf16.msra.mxu0 0
        %2109 = vmatprep.mubr.bf16.mxu0 0
        %2110 = vmatmul.mubr.bf16.gmra.mrb[0].mxu0 %v2075
        %v2111 = vpop.f32.mrb[0].mxu0
        %v2112 = vadd.f32 %v2072, %v2111
        %v2113 = vpop.f32.mrb[0].mxu0
        %v2114 = vpop.f32.mrb[0].mxu0
        %v2115 = vadd.f32 %v2072, %v2114
        %v2116 = vpop.f32.mrb[0].mxu0
        %2117 = vdwg.mxu0
        %v2118 = vadd.f32 %v1698, %v2112
        %v2119 = vadd.f32 %v1699, %v2115
        %v2120 = vmul.f32 %v2118, 0.70710677
        %v2121 = vmul.f32 %v2119, 0.70710677
        %v2122 = vld [vmem:[%s19] sm:$0xff]
        %v2123 = vld [vmem:[%s19 + $0x8] sm:$0xff]
        %v2124 = vld [vmem:[%s19 + $0x10] sm:$0xff]
        %v2125 = vld [vmem:[%s19 + $0x18] sm:$0xff]
        %v2126 = vpack.c.bf16 %v2121, %v2120
        %v2127 = vpack.c.bf16 %v2123, %v2122
        %v2128 = vpack.c.bf16 %v2125, %v2124
        %v2129 = vld [vmem:[%s20] sm:$0x1]
        %v2131 = vlaneseq
        %v2132 = vshrl.u32 %v2131, 7
        %v2133 = vsub.s32 0, %v2132
        %v2134 = vrot.slane %v2129, %v2133
        %2137 = vrot.lane.b32.xlu0 %v2126, 96
        %v2138 = vpop.permute.xlu0 %2137
        %v2140 = vsel %vm897, %v2138, 0
        %2142 = vmatprep.subr.bf16.mxu0 0
        %2143 = vmatpush1.bf16.msra.mxu0 %v2127
        %2144 = vmatprep.subr.bf16.mxu0 0
        %2145 = vmatpush1.bf16.msra.mxu0 %v2128
        %2146 = vmatprep.subr.bf16.mxu0 0
        %2147 = vmatpush1.bf16.msra.mxu0 0
        %2148 = vmatprep.subr.bf16.mxu0 0
        %2149 = vmatpush1.bf16.msra.mxu0 0
        %2150 = vmatprep.subr.bf16.mxu0 0
        %2151 = vmatpush1.bf16.msra.mxu0 0
        %2152 = vmatprep.subr.bf16.mxu0 0
        %2153 = vmatpush1.bf16.msra.mxu0 0
        %2154 = vmatprep.subr.bf16.mxu0 0
        %2155 = vmatpush1.bf16.msra.mxu0 0
        %2156 = vmatprep.subr.bf16.mxu0 0
        %2157 = vmatpush1.bf16.msra.mxu0 0
        %2158 = vmatprep.subr.bf16.mxu0 0
        %2159 = vmatpush1.bf16.msra.mxu0 0
        %2160 = vmatprep.subr.bf16.mxu0 0
        %2161 = vmatpush1.bf16.msra.mxu0 0
        %2162 = vmatprep.subr.bf16.mxu0 0
        %2163 = vmatpush1.bf16.msra.mxu0 0
        %2164 = vmatprep.subr.bf16.mxu0 0
        %2165 = vmatpush1.bf16.msra.mxu0 0
        %2166 = vmatprep.subr.bf16.mxu0 0
        %2167 = vmatpush1.bf16.msra.mxu0 0
        %2168 = vmatprep.subr.bf16.mxu0 0
        %2169 = vmatpush1.bf16.msra.mxu0 0
        %2170 = vmatprep.subr.bf16.mxu0 0
        %2171 = vmatpush1.bf16.msra.mxu0 0
        %2172 = vmatprep.subr.bf16.mxu0 0
        %2173 = vmatpush1.bf16.msra.mxu0 0
        %2174 = vmatprep.mubr.bf16.mxu0 0
        %2175 = vmatmul.mubr.bf16.gmra.mrb[0].mxu0 %v2140
        %v2176 = vpop.f32.mrb[0].mxu0
        %v2177 = vadd.f32 %v2134, %v2176
        %v2178 = vpop.f32.mrb[0].mxu0
        %v2179 = vpop.f32.mrb[0].mxu0
        %v2180 = vadd.f32 %v2134, %v2179
        %v2181 = vpop.f32.mrb[0].mxu0
        %2182 = vdwg.mxu0
        %v2183 = vmax.f32 %v2177, 0.0
        %v2184 = vmax.f32 %v2180, 0.0
        %v2185 = vld [vmem:[%s21] sm:$0xff]
        %v2186 = vld [vmem:[%s21 + $0x8] sm:$0xff]
        %v2187 = vld [vmem:[%s21 + $0x10] sm:$0xff]
        %v2188 = vld [vmem:[%s21 + $0x18] sm:$0xff]
        %v2189 = vpack.c.bf16 %v2184, %v2183
        %v2190 = vpack.c.bf16 %v2186, %v2185
        %v2191 = vpack.c.bf16 %v2188, %v2187
        %v2192 = vld [vmem:[%s22] sm:$0x1]
        %v2194 = vlaneseq
        %v2195 = vshrl.u32 %v2194, 7
        %v2196 = vsub.s32 0, %v2195
        %v2197 = vrot.slane %v2192, %v2196
        %v2200 = vsel %vm897, %v2189, 0
        %2202 = vmatprep.subr.bf16.mxu0 0
        %2203 = vmatpush1.bf16.msra.mxu0 %v2190
        %2204 = vmatprep.subr.bf16.mxu0 0
        %2205 = vmatpush1.bf16.msra.mxu0 %v2191
        %2206 = vmatprep.subr.bf16.mxu0 0
        %2207 = vmatpush1.bf16.msra.mxu0 0
        %2208 = vmatprep.subr.bf16.mxu0 0
        %2209 = vmatpush1.bf16.msra.mxu0 0
        %2210 = vmatprep.subr.bf16.mxu0 0
        %2211 = vmatpush1.bf16.msra.mxu0 0
        %2212 = vmatprep.subr.bf16.mxu0 0
        %2213 = vmatpush1.bf16.msra.mxu0 0
        %2214 = vmatprep.subr.bf16.mxu0 0
        %2215 = vmatpush1.bf16.msra.mxu0 0
        %2216 = vmatprep.subr.bf16.mxu0 0
        %2217 = vmatpush1.bf16.msra.mxu0 0
        %2218 = vmatprep.subr.bf16.mxu0 0
        %2219 = vmatpush1.bf16.msra.mxu0 0
        %2220 = vmatprep.subr.bf16.mxu0 0
        %2221 = vmatpush1.bf16.msra.mxu0 0
        %2222 = vmatprep.subr.bf16.mxu0 0
        %2223 = vmatpush1.bf16.msra.mxu0 0
        %2224 = vmatprep.subr.bf16.mxu0 0
        %2225 = vmatpush1.bf16.msra.mxu0 0
        %2226 = vmatprep.subr.bf16.mxu0 0
        %2227 = vmatpush1.bf16.msra.mxu0 0
        %2228 = vmatprep.subr.bf16.mxu0 0
        %2229 = vmatpush1.bf16.msra.mxu0 0
        %2230 = vmatprep.subr.bf16.mxu0 0
        %2231 = vmatpush1.bf16.msra.mxu0 0
        %2232 = vmatprep.subr.bf16.mxu0 0
        %2233 = vmatpush1.bf16.msra.mxu0 0
        %2234 = vmatprep.mubr.bf16.mxu0 0
        %2235 = vmatmul.mubr.bf16.gmra.mrb[0].mxu0 %v2200
        %v2236 = vpop.f32.mrb[0].mxu0
        %v2237 = vadd.f32 %v2197, %v2236
        %v2238 = vpop.f32.mrb[0].mxu0
        %v2239 = vpop.f32.mrb[0].mxu0
        %v2240 = vadd.f32 %v2197, %v2239
        %v2241 = vpop.f32.mrb[0].mxu0
        %2242 = vdwg.mxu0
        %s2243 = sld [smem:[#allocation2 + $0x3]]
        %s2244 = sld [smem:[#allocation2 + $0x83]]
        %s2245 = sld [smem:[#allocation2 + $0x103]]
        %s2246 = sld [smem:[#allocation2 + $0x183]]
        %s2247 = sld [smem:[#allocation2 + $0x203]]
        %v2248 = vstv %s2243
        %v2249 = vmul.f32 %v2248, %v1200
        %v2250 = vmul.f32 %v2248, %v1201
        %v2251 = vstv %s2244
        %v2252 = vmul.f32 %v2251, %v2237
        %v2253 = vmul.f32 %v2251, %v2240
        %v2254 = vsub.f32 %v2249, %v2252
        %v2255 = vsub.f32 %v2250, %v2253
        %v2256 = vmax.f32 %v2254, -1.0
        %v2257 = vmax.f32 %v2255, -1.0
        %v2258 = vmin.f32 %v2256, 1.0
        %v2259 = vmin.f32 %v2257, 1.0
        %v2260 = vstv %s2245
        %v2261 = vmul.f32 %v2260, %v2258
        %v2262 = vmul.f32 %v2260, %v2259
        %v2263 = vstv %s2246
        %v2264 = vmul.f32 %v2263, %v1200
        %v2265 = vmul.f32 %v2263, %v1201
        %v2266 = vadd.f32 %v2261, %v2264
        %v2267 = vadd.f32 %v2262, %v2265
        %s2268 = scalar_lea.vmem %s794, 48 [#allocation5]
        %v2269 = vld [vmem:[%s2268] sm:$0xff]
        %v2270 = vld [vmem:[%s2268 + $0x8] sm:$0xff]
        %v2271 = vstv %s2247
        %v2272 = vmul.f32 %v2271, %v2269
        %v2273 = vmul.f32 %v2271, %v2270
        %v2274 = vadd.f32 %v2266, %v2272
        %v2275 = vadd.f32 %v2267, %v2273
        %v2276 = vpack.c.bf16 %v2275, %v2274
        %v2278 = vsel %vm1213, %v2276, 0
        %2280 = vmatprep.subr.bf16.mxu0 0
        %2281 = vmatpush1.bf16.msra.mxu0 %v1205
        %2282 = vmatprep.subr.bf16.mxu0 0
        %2283 = vmatpush1.bf16.msra.mxu0 0
        %2284 = vmatprep.subr.bf16.mxu0 0
        %2285 = vmatpush1.bf16.msra.mxu0 0
        %2286 = vmatprep.subr.bf16.mxu0 0
        %2287 = vmatpush1.bf16.msra.mxu0 0
        %2288 = vmatprep.subr.bf16.mxu0 0
        %2289 = vmatpush1.bf16.msra.mxu0 0
        %2290 = vmatprep.subr.bf16.mxu0 0
        %2291 = vmatpush1.bf16.msra.mxu0 0
        %2292 = vmatprep.subr.bf16.mxu0 0
        %2293 = vmatpush1.bf16.msra.mxu0 0
        %2294 = vmatprep.subr.bf16.mxu0 0
        %2295 = vmatpush1.bf16.msra.mxu0 0
        %2296 = vmatprep.subr.bf16.mxu0 0
        %2297 = vmatpush1.bf16.msra.mxu0 0
        %2298 = vmatprep.subr.bf16.mxu0 0
        %2299 = vmatpush1.bf16.msra.mxu0 0
        %2300 = vmatprep.subr.bf16.mxu0 0
        %2301 = vmatpush1.bf16.msra.mxu0 0
        %2302 = vmatprep.subr.bf16.mxu0 0
        %2303 = vmatpush1.bf16.msra.mxu0 0
        %2304 = vmatprep.subr.bf16.mxu0 0
        %2305 = vmatpush1.bf16.msra.mxu0 0
        %2306 = vmatprep.subr.bf16.mxu0 0
        %2307 = vmatpush1.bf16.msra.mxu0 0
        %2308 = vmatprep.subr.bf16.mxu0 0
        %2309 = vmatpush1.bf16.msra.mxu0 0
        %2310 = vmatprep.subr.bf16.mxu0 0
        %2311 = vmatpush1.bf16.msra.mxu0 0
        %2312 = vmatprep.mubr.bf16.mxu0 0
        %2313 = vmatmul.mubr.bf16.gmra.mrb[0].mxu0 %v2278
        %v2314 = vpop.f32.mrb[0].mxu0
        %v2315 = vadd.f32 %v1211, %v2314
        %v2316 = vpop.f32.mrb[0].mxu0
        %v2317 = vpop.f32.mrb[0].mxu0
        %v2318 = vadd.f32 %v1211, %v2317
        %v2319 = vpop.f32.mrb[0].mxu0
        %2320 = vdwg.mxu0
        %v2321 = vmax.f32 %v2315, 0.0
        %v2322 = vmax.f32 %v2318, 0.0
        %v2323 = vlaneseq
        %v2324 = vshrl.u32 %v2323, 7
        %v2325 = vsub.s32 2, %v2324
        %v2326 = vrot.slane %v1135, %v2325
        %v2327 = vadd.f32 %v2321, %v2326
        %v2328 = vadd.f32 %v2322, %v2326
        %v2329 = vpack.c.bf16 %v2328, %v2327
        %v2331 = vsel %vm897, %v2329, 0
        %2333 = vmatprep.subr.bf16.mxu0 0
        %2334 = vmatpush1.bf16.msra.mxu0 %v1272
        %2335 = vmatprep.subr.bf16.mxu0 0
        %2336 = vmatpush1.bf16.msra.mxu0 %v1273
        %2337 = vmatprep.subr.bf16.mxu0 0
        %2338 = vmatpush1.bf16.msra.mxu0 0
        %2339 = vmatprep.subr.bf16.mxu0 0
        %2340 = vmatpush1.bf16.msra.mxu0 0
        %2341 = vmatprep.subr.bf16.mxu0 0
        %2342 = vmatpush1.bf16.msra.mxu0 0
        %2343 = vmatprep.subr.bf16.mxu0 0
        %2344 = vmatpush1.bf16.msra.mxu0 0
        %2345 = vmatprep.subr.bf16.mxu0 0
        %2346 = vmatpush1.bf16.msra.mxu0 0
        %2347 = vmatprep.subr.bf16.mxu0 0
        %2348 = vmatpush1.bf16.msra.mxu0 0
        %2349 = vmatprep.subr.bf16.mxu0 0
        %2350 = vmatpush1.bf16.msra.mxu0 0
        %2351 = vmatprep.subr.bf16.mxu0 0
        %2352 = vmatpush1.bf16.msra.mxu0 0
        %2353 = vmatprep.subr.bf16.mxu0 0
        %2354 = vmatpush1.bf16.msra.mxu0 0
        %2355 = vmatprep.subr.bf16.mxu0 0
        %2356 = vmatpush1.bf16.msra.mxu0 0
        %2357 = vmatprep.subr.bf16.mxu0 0
        %2358 = vmatpush1.bf16.msra.mxu0 0
        %2359 = vmatprep.subr.bf16.mxu0 0
        %2360 = vmatpush1.bf16.msra.mxu0 0
        %2361 = vmatprep.subr.bf16.mxu0 0
        %2362 = vmatpush1.bf16.msra.mxu0 0
        %2363 = vmatprep.subr.bf16.mxu0 0
        %2364 = vmatpush1.bf16.msra.mxu0 0
        %2365 = vmatprep.mubr.bf16.mxu0 0
        %2366 = vmatmul.mubr.bf16.gmra.mrb[0].mxu0 %v2331
        %v2367 = vpop.f32.mrb[0].mxu0
        %v2368 = vadd.f32 %v1279, %v2367
        %v2369 = vpop.f32.mrb[0].mxu0
        %v2370 = vpop.f32.mrb[0].mxu0
        %v2371 = vadd.f32 %v1279, %v2370
        %v2372 = vpop.f32.mrb[0].mxu0
        %2373 = vdwg.mxu0
        %2374 = vmatprep.subr.mxu0 0.0
        %2375 = vmatpush1.msra.mxu0 %v2327
        %2376 = vmatprep.subr.mxu0 0.0
        %2377 = vmatpush1.msra.mxu0 %v2328
        %2378 = vmatprep.subr.mxu0 0.0
        %2379 = vmatpush1.msra.mxu0 0.0
        %2380 = vmatprep.subr.mxu0 0.0
        %2381 = vmatpush1.msra.mxu0 0.0
        %2382 = vmatprep.subr.mxu0 0.0
        %2383 = vmatpush1.msra.mxu0 0.0
        %2384 = vmatprep.subr.mxu0 0.0
        %2385 = vmatpush1.msra.mxu0 0.0
        %2386 = vmatprep.subr.mxu0 0.0
        %2387 = vmatpush1.msra.mxu0 0.0
        %2388 = vmatprep.subr.mxu0 0.0
        %2389 = vmatpush1.msra.mxu0 0.0
        %2390 = vmatprep.subr.mxu0 0.0
        %2391 = vmatpush1.msra.mxu0 0.0
        %2392 = vmatprep.subr.mxu0 0.0
        %2393 = vmatpush1.msra.mxu0 0.0
        %2394 = vmatprep.subr.mxu0 0.0
        %2395 = vmatpush1.msra.mxu0 0.0
        %2396 = vmatprep.subr.mxu0 0.0
        %2397 = vmatpush1.msra.mxu0 0.0
        %2398 = vmatprep.subr.mxu0 0.0
        %2399 = vmatpush1.msra.mxu0 0.0
        %2400 = vmatprep.subr.mxu0 0.0
        %2401 = vmatpush1.msra.mxu0 0.0
        %2402 = vmatprep.subr.mxu0 0.0
        %2403 = vmatpush1.msra.mxu0 0.0
        %2404 = vmatprep.subr.mxu0 0.0
        %2405 = vmatpush1.msra.mxu0 0.0
        %2406 = vmatprep.subr.mxu0 0.0
        %2407 = vmatpush1.msra.mxu0 0.0
        %2408 = vmatprep.subr.mxu0 0.0
        %2409 = vmatpush1.msra.mxu0 0.0
        %2410 = vmatprep.subr.mxu0 0.0
        %2411 = vmatpush1.msra.mxu0 0.0
        %2412 = vmatprep.subr.mxu0 0.0
        %2413 = vmatpush1.msra.mxu0 0.0
        %2414 = vmatprep.subr.mxu0 0.0
        %2415 = vmatpush1.msra.mxu0 0.0
        %2416 = vmatprep.subr.mxu0 0.0
        %2417 = vmatpush1.msra.mxu0 0.0
        %2418 = vmatprep.subr.mxu0 0.0
        %2419 = vmatpush1.msra.mxu0 0.0
        %2420 = vmatprep.subr.mxu0 0.0
        %2421 = vmatpush1.msra.mxu0 0.0
        %2422 = vmatprep.subr.mxu0 0.0
        %2423 = vmatpush1.msra.mxu0 0.0
        %2424 = vmatprep.subr.mxu0 0.0
        %2425 = vmatpush1.msra.mxu0 0.0
        %2426 = vmatprep.subr.mxu0 0.0
        %2427 = vmatpush1.msra.mxu0 0.0
        %2428 = vmatprep.subr.mxu0 0.0
        %2429 = vmatpush1.msra.mxu0 0.0
        %2430 = vmatprep.subr.mxu0 0.0
        %2431 = vmatpush1.msra.mxu0 0.0
        %2432 = vmatprep.subr.mxu0 0.0
        %2433 = vmatpush1.msra.mxu0 0.0
        %2434 = vmatprep.subr.mxu0 0.0
        %2435 = vmatpush1.msra.mxu0 0.0
        %2436 = vmatprep.subr.mxu0 0.0
        %2437 = vmatpush1.msra.mxu0 0.0
        %2438 = vmatprep.mubr.f32.mxu0 0.0
        %2439 = vmatmul.mubr.f32.gmra.mrb[0].mxu0 %v1334
        %v2440 = vpop.f32.mrb[0].mxu0
        %v2441 = vadd.f32 0.0, %v2440
        %v2442 = vpop.f32.mrb[0].mxu0
        %2443 = vmatprep.mubr.f32.mxu0 0.0
        %2444 = vmatmul.mubr.f32.gmra.mrb[0].mxu0 %v1337
        %v2445 = vpop.f32.mrb[0].mxu0
        %v2446 = vadd.f32 0.0, %v2445
        %v2447 = vpop.f32.mrb[0].mxu0
        %2448 = vdwg.mxu0
        %v2449 = vpack.c.bf16 %v2446, %v2441
        %v2451 = vsel %vm897, %v2449, 0
        %2453 = vmatprep.subr.bf16.mxu0 0
        %2454 = vmatpush1.bf16.msra.mxu0 %v1419
        %2455 = vmatprep.subr.bf16.mxu0 0
        %2456 = vmatpush1.bf16.msra.mxu0 %v1420
        %2457 = vmatprep.subr.bf16.mxu0 0
        %2458 = vmatpush1.bf16.msra.mxu0 0
        %2459 = vmatprep.subr.bf16.mxu0 0
        %2460 = vmatpush1.bf16.msra.mxu0 0
        %2461 = vmatprep.subr.bf16.mxu0 0
        %2462 = vmatpush1.bf16.msra.mxu0 0
        %2463 = vmatprep.subr.bf16.mxu0 0
        %2464 = vmatpush1.bf16.msra.mxu0 0
        %2465 = vmatprep.subr.bf16.mxu0 0
        %2466 = vmatpush1.bf16.msra.mxu0 0
        %2467 = vmatprep.subr.bf16.mxu0 0
        %2468 = vmatpush1.bf16.msra.mxu0 0
        %2469 = vmatprep.subr.bf16.mxu0 0
        %2470 = vmatpush1.bf16.msra.mxu0 0
        %2471 = vmatprep.subr.bf16.mxu0 0
        %2472 = vmatpush1.bf16.msra.mxu0 0
        %2473 = vmatprep.subr.bf16.mxu0 0
        %2474 = vmatpush1.bf16.msra.mxu0 0
        %2475 = vmatprep.subr.bf16.mxu0 0
        %2476 = vmatpush1.bf16.msra.mxu0 0
        %2477 = vmatprep.subr.bf16.mxu0 0
        %2478 = vmatpush1.bf16.msra.mxu0 0
        %2479 = vmatprep.subr.bf16.mxu0 0
        %2480 = vmatpush1.bf16.msra.mxu0 0
        %2481 = vmatprep.subr.bf16.mxu0 0
        %2482 = vmatpush1.bf16.msra.mxu0 0
        %2483 = vmatprep.subr.bf16.mxu0 0
        %2484 = vmatpush1.bf16.msra.mxu0 0
        %2485 = vmatprep.mubr.bf16.mxu0 0
        %2486 = vmatmul.mubr.bf16.gmra.mrb[0].mxu0 %v2451
        %v2487 = vpop.f32.mrb[0].mxu0
        %v2488 = vadd.f32 0.0, %v2487
        %v2489 = vpop.f32.mrb[0].mxu0
        %v2490 = vpop.f32.mrb[0].mxu0
        %v2491 = vadd.f32 0.0, %v2490
        %v2492 = vpop.f32.mrb[0].mxu0
        %2493 = vdwg.mxu0
        %v2494 = vadd.f32 %v2368, %v2488
        %v2495 = vadd.f32 %v2371, %v2491
        %2496 = vmatprep.subr.mxu0 0.0
        %2497 = vmatpush1.msra.mxu0 %v2327
        %2498 = vmatprep.subr.mxu0 0.0
        %2499 = vmatpush1.msra.mxu0 %v2328
        %2500 = vmatprep.subr.mxu0 0.0
        %2501 = vmatpush1.msra.mxu0 0.0
        %2502 = vmatprep.subr.mxu0 0.0
        %2503 = vmatpush1.msra.mxu0 0.0
        %2504 = vmatprep.subr.mxu0 0.0
        %2505 = vmatpush1.msra.mxu0 0.0
        %2506 = vmatprep.subr.mxu0 0.0
        %2507 = vmatpush1.msra.mxu0 0.0
        %2508 = vmatprep.subr.mxu0 0.0
        %2509 = vmatpush1.msra.mxu0 0.0
        %2510 = vmatprep.subr.mxu0 0.0
        %2511 = vmatpush1.msra.mxu0 0.0
        %2512 = vmatprep.subr.mxu0 0.0
        %2513 = vmatpush1.msra.mxu0 0.0
        %2514 = vmatprep.subr.mxu0 0.0
        %2515 = vmatpush1.msra.mxu0 0.0
        %2516 = vmatprep.subr.mxu0 0.0
        %2517 = vmatpush1.msra.mxu0 0.0
        %2518 = vmatprep.subr.mxu0 0.0
        %2519 = vmatpush1.msra.mxu0 0.0
        %2520 = vmatprep.subr.mxu0 0.0
        %2521 = vmatpush1.msra.mxu0 0.0
        %2522 = vmatprep.subr.mxu0 0.0
        %2523 = vmatpush1.msra.mxu0 0.0
        %2524 = vmatprep.subr.mxu0 0.0
        %2525 = vmatpush1.msra.mxu0 0.0
        %2526 = vmatprep.subr.mxu0 0.0
        %2527 = vmatpush1.msra.mxu0 0.0
        %2528 = vmatprep.subr.mxu0 0.0
        %2529 = vmatpush1.msra.mxu0 0.0
        %2530 = vmatprep.subr.mxu0 0.0
        %2531 = vmatpush1.msra.mxu0 0.0
        %2532 = vmatprep.subr.mxu0 0.0
        %2533 = vmatpush1.msra.mxu0 0.0
        %2534 = vmatprep.subr.mxu0 0.0
        %2535 = vmatpush1.msra.mxu0 0.0
        %2536 = vmatprep.subr.mxu0 0.0
        %2537 = vmatpush1.msra.mxu0 0.0
        %2538 = vmatprep.subr.mxu0 0.0
        %2539 = vmatpush1.msra.mxu0 0.0
        %2540 = vmatprep.subr.mxu0 0.0
        %2541 = vmatpush1.msra.mxu0 0.0
        %2542 = vmatprep.subr.mxu0 0.0
        %2543 = vmatpush1.msra.mxu0 0.0
        %2544 = vmatprep.subr.mxu0 0.0
        %2545 = vmatpush1.msra.mxu0 0.0
        %2546 = vmatprep.subr.mxu0 0.0
        %2547 = vmatpush1.msra.mxu0 0.0
        %2548 = vmatprep.subr.mxu0 0.0
        %2549 = vmatpush1.msra.mxu0 0.0
        %2550 = vmatprep.subr.mxu0 0.0
        %2551 = vmatpush1.msra.mxu0 0.0
        %2552 = vmatprep.subr.mxu0 0.0
        %2553 = vmatpush1.msra.mxu0 0.0
        %2554 = vmatprep.subr.mxu0 0.0
        %2555 = vmatpush1.msra.mxu0 0.0
        %2556 = vmatprep.subr.mxu0 0.0
        %2557 = vmatpush1.msra.mxu0 0.0
        %2558 = vmatprep.subr.mxu0 0.0
        %2559 = vmatpush1.msra.mxu0 0.0
        %2560 = vmatprep.mubr.f32.mxu0 0.0
        %2561 = vmatmul.mubr.f32.gmra.mrb[0].mxu0 %v1476
        %v2562 = vpop.f32.mrb[0].mxu0
        %v2563 = vadd.f32 0.0, %v2562
        %v2564 = vpop.f32.mrb[0].mxu0
        %2565 = vmatprep.mubr.f32.mxu0 0.0
        %2566 = vmatmul.mubr.f32.gmra.mrb[0].mxu0 %v1479
        %v2567 = vpop.f32.mrb[0].mxu0
        %v2568 = vadd.f32 0.0, %v2567
        %v2569 = vpop.f32.mrb[0].mxu0
        %2570 = vdwg.mxu0
        %v2571 = vpack.c.bf16 %v2568, %v2563
        %v2573 = vsel %vm897, %v2571, 0
        %2575 = vmatprep.subr.bf16.mxu0 0
        %2576 = vmatpush1.bf16.msra.mxu0 %v1562
        %2577 = vmatprep.subr.bf16.mxu0 0
        %2578 = vmatpush1.bf16.msra.mxu0 %v1563
        %2579 = vmatprep.subr.bf16.mxu0 0
        %2580 = vmatpush1.bf16.msra.mxu0 0
        %2581 = vmatprep.subr.bf16.mxu0 0
        %2582 = vmatpush1.bf16.msra.mxu0 0
        %2583 = vmatprep.subr.bf16.mxu0 0
        %2584 = vmatpush1.bf16.msra.mxu0 0
        %2585 = vmatprep.subr.bf16.mxu0 0
        %2586 = vmatpush1.bf16.msra.mxu0 0
        %2587 = vmatprep.subr.bf16.mxu0 0
        %2588 = vmatpush1.bf16.msra.mxu0 0
        %2589 = vmatprep.subr.bf16.mxu0 0
        %2590 = vmatpush1.bf16.msra.mxu0 0
        %2591 = vmatprep.subr.bf16.mxu0 0
        %2592 = vmatpush1.bf16.msra.mxu0 0
        %2593 = vmatprep.subr.bf16.mxu0 0
        %2594 = vmatpush1.bf16.msra.mxu0 0
        %2595 = vmatprep.subr.bf16.mxu0 0
        %2596 = vmatpush1.bf16.msra.mxu0 0
        %2597 = vmatprep.subr.bf16.mxu0 0
        %2598 = vmatpush1.bf16.msra.mxu0 0
        %2599 = vmatprep.subr.bf16.mxu0 0
        %2600 = vmatpush1.bf16.msra.mxu0 0
        %2601 = vmatprep.subr.bf16.mxu0 0
        %2602 = vmatpush1.bf16.msra.mxu0 0
        %2603 = vmatprep.subr.bf16.mxu0 0
        %2604 = vmatpush1.bf16.msra.mxu0 0
        %2605 = vmatprep.subr.bf16.mxu0 0
        %2606 = vmatpush1.bf16.msra.mxu0 0
        %2607 = vmatprep.mubr.bf16.mxu0 0
        %2608 = vmatmul.mubr.bf16.gmra.mrb[0].mxu0 %v2573
        %v2609 = vpop.f32.mrb[0].mxu0
        %v2610 = vadd.f32 0.0, %v2609
        %v2611 = vpop.f32.mrb[0].mxu0
        %v2612 = vpop.f32.mrb[0].mxu0
        %v2613 = vadd.f32 0.0, %v2612
        %v2614 = vpop.f32.mrb[0].mxu0
        %2615 = vdwg.mxu0
        %v2616 = vadd.f32 %v2494, %v2610
        %v2617 = vadd.f32 %v2495, %v2613
        %v2618 = vadd.f32 %v2616, %v936
        %v2619 = vadd.f32 %v2617, %v939
        %v2620 = vxor.u32 %v2618, 2147483648
        %v2621 = vxor.u32 %v2619, 2147483648
        %v2622 = vmul.f32 %v2620, 1.442695
        %v2623 = vpow.pop %v2622
        %v2624 = vmul.f32 %v2621, 1.442695
        %v2625 = vpow.pop %v2624
        %v2626 = vadd.f32 %v2623, 1.0
        %v2627 = vadd.f32 %v2625, 1.0
        %v2628 = vrcp.pop %v2626
        %v2629 = vmul.f32 1.0, %v2628
        %v2630 = vrcp.pop %v2627
        %v2631 = vmul.f32 1.0, %v2630
        %v2632 = vtanh.pop %v2618
        %v2633 = vtanh.pop %v2619
        %2636 = vrot.lane.b32.xlu0 %v2632, 96
        %v2637 = vpop.permute.xlu0 %2636
        %2638 = vrot.lane.b32.xlu0 %v2633, 96
        %v2639 = vpop.permute.xlu0 %2638
        %v2642 = vmul.f32 %v2629, %v2637
        %v2643 = vmul.f32 %v2631, %v2639
        %v2644 = vpack.c.bf16 %v2643, %v2642
        %v2646 = vsel %vm897, %v2644, 0
        %2648 = vmatprep.subr.bf16.mxu0 0
        %2649 = vmatpush1.bf16.msra.mxu0 %v1641
        %2650 = vmatprep.subr.bf16.mxu0 0
        %2651 = vmatpush1.bf16.msra.mxu0 %v1642
        %2652 = vmatprep.subr.bf16.mxu0 0
        %2653 = vmatpush1.bf16.msra.mxu0 0
        %2654 = vmatprep.subr.bf16.mxu0 0
        %2655 = vmatpush1.bf16.msra.mxu0 0
        %2656 = vmatprep.subr.bf16.mxu0 0
        %2657 = vmatpush1.bf16.msra.mxu0 0
        %2658 = vmatprep.subr.bf16.mxu0 0
        %2659 = vmatpush1.bf16.msra.mxu0 0
        %2660 = vmatprep.subr.bf16.mxu0 0
        %2661 = vmatpush1.bf16.msra.mxu0 0
        %2662 = vmatprep.subr.bf16.mxu0 0
        %2663 = vmatpush1.bf16.msra.mxu0 0
        %2664 = vmatprep.subr.bf16.mxu0 0
        %2665 = vmatpush1.bf16.msra.mxu0 0
        %2666 = vmatprep.subr.bf16.mxu0 0
        %2667 = vmatpush1.bf16.msra.mxu0 0
        %2668 = vmatprep.subr.bf16.mxu0 0
        %2669 = vmatpush1.bf16.msra.mxu0 0
        %2670 = vmatprep.subr.bf16.mxu0 0
        %2671 = vmatpush1.bf16.msra.mxu0 0
        %2672 = vmatprep.subr.bf16.mxu0 0
        %2673 = vmatpush1.bf16.msra.mxu0 0
        %2674 = vmatprep.subr.bf16.mxu0 0
        %2675 = vmatpush1.bf16.msra.mxu0 0
        %2676 = vmatprep.subr.bf16.mxu0 0
        %2677 = vmatpush1.bf16.msra.mxu0 0
        %2678 = vmatprep.subr.bf16.mxu0 0
        %2679 = vmatpush1.bf16.msra.mxu0 0
        %2680 = vmatprep.mubr.bf16.mxu0 0
        %2681 = vmatmul.mubr.bf16.gmra.mrb[0].mxu0 %v2646
        %v2682 = vpop.f32.mrb[0].mxu0
        %v2683 = vadd.f32 %v1648, %v2682
        %v2684 = vpop.f32.mrb[0].mxu0
        %v2685 = vpop.f32.mrb[0].mxu0
        %v2686 = vadd.f32 %v1648, %v2685
        %v2687 = vpop.f32.mrb[0].mxu0
        %2688 = vdwg.mxu0
        %v2689 = vadd.f32 %v2321, %v2683
        %v2690 = vadd.f32 %v2322, %v2686
        %v2691 = vmul.f32 %v2689, 0.70710677
        %v2692 = vmul.f32 %v2690, 0.70710677
        %v2693 = vadd.f32 %v2683, 0.0
        %v2694 = vadd.f32 %v2686, 0.0
        %v2695 = vlaneseq
        %v2696 = vshrl.u32 %v2695, 7
        %v2697 = vsub.s32 2, %v2696
        %v2698 = vrot.slane %v1190, %v2697
        %v2699 = vadd.f32 %v2691, %v2698
        %v2700 = vadd.f32 %v2692, %v2698
        %v2701 = vpack.c.bf16 %v2700, %v2699
        %v2703 = vsel %vm897, %v2701, 0
        %2705 = vmatprep.subr.bf16.mxu0 0
        %2706 = vmatpush1.bf16.msra.mxu0 %v1712
        %2707 = vmatprep.subr.bf16.mxu0 0
        %2708 = vmatpush1.bf16.msra.mxu0 %v1713
        %2709 = vmatprep.subr.bf16.mxu0 0
        %2710 = vmatpush1.bf16.msra.mxu0 0
        %2711 = vmatprep.subr.bf16.mxu0 0
        %2712 = vmatpush1.bf16.msra.mxu0 0
        %2713 = vmatprep.subr.bf16.mxu0 0
        %2714 = vmatpush1.bf16.msra.mxu0 0
        %2715 = vmatprep.subr.bf16.mxu0 0
        %2716 = vmatpush1.bf16.msra.mxu0 0
        %2717 = vmatprep.subr.bf16.mxu0 0
        %2718 = vmatpush1.bf16.msra.mxu0 0
        %2719 = vmatprep.subr.bf16.mxu0 0
        %2720 = vmatpush1.bf16.msra.mxu0 0
        %2721 = vmatprep.subr.bf16.mxu0 0
        %2722 = vmatpush1.bf16.msra.mxu0 0
        %2723 = vmatprep.subr.bf16.mxu0 0
        %2724 = vmatpush1.bf16.msra.mxu0 0
        %2725 = vmatprep.subr.bf16.mxu0 0
        %2726 = vmatpush1.bf16.msra.mxu0 0
        %2727 = vmatprep.subr.bf16.mxu0 0
        %2728 = vmatpush1.bf16.msra.mxu0 0
        %2729 = vmatprep.subr.bf16.mxu0 0
        %2730 = vmatpush1.bf16.msra.mxu0 0
        %2731 = vmatprep.subr.bf16.mxu0 0
        %2732 = vmatpush1.bf16.msra.mxu0 0
        %2733 = vmatprep.subr.bf16.mxu0 0
        %2734 = vmatpush1.bf16.msra.mxu0 0
        %2735 = vmatprep.subr.bf16.mxu0 0
        %2736 = vmatpush1.bf16.msra.mxu0 0
        %2737 = vmatprep.mubr.bf16.mxu0 0
        %2738 = vmatmul.mubr.bf16.gmra.mrb[0].mxu0 %v2703
        %v2739 = vpop.f32.mrb[0].mxu0
        %v2740 = vadd.f32 %v1720, %v2739
        %v2741 = vpop.f32.mrb[0].mxu0
        %v2742 = vpop.f32.mrb[0].mxu0
        %v2743 = vadd.f32 %v1720, %v2742
        %v2744 = vpop.f32.mrb[0].mxu0
        %2745 = vdwg.mxu0
        %2746 = vmatprep.subr.mxu0 0.0
        %2747 = vmatpush1.msra.mxu0 %v2699
        %2748 = vmatprep.subr.mxu0 0.0
        %2749 = vmatpush1.msra.mxu0 %v2700
        %2750 = vmatprep.subr.mxu0 0.0
        %2751 = vmatpush1.msra.mxu0 0.0
        %2752 = vmatprep.subr.mxu0 0.0
        %2753 = vmatpush1.msra.mxu0 0.0
        %2754 = vmatprep.subr.mxu0 0.0
        %2755 = vmatpush1.msra.mxu0 0.0
        %2756 = vmatprep.subr.mxu0 0.0
        %2757 = vmatpush1.msra.mxu0 0.0
        %2758 = vmatprep.subr.mxu0 0.0
        %2759 = vmatpush1.msra.mxu0 0.0
        %2760 = vmatprep.subr.mxu0 0.0
        %2761 = vmatpush1.msra.mxu0 0.0
        %2762 = vmatprep.subr.mxu0 0.0
        %2763 = vmatpush1.msra.mxu0 0.0
        %2764 = vmatprep.subr.mxu0 0.0
        %2765 = vmatpush1.msra.mxu0 0.0
        %2766 = vmatprep.subr.mxu0 0.0
        %2767 = vmatpush1.msra.mxu0 0.0
        %2768 = vmatprep.subr.mxu0 0.0
        %2769 = vmatpush1.msra.mxu0 0.0
        %2770 = vmatprep.subr.mxu0 0.0
        %2771 = vmatpush1.msra.mxu0 0.0
        %2772 = vmatprep.subr.mxu0 0.0
        %2773 = vmatpush1.msra.mxu0 0.0
        %2774 = vmatprep.subr.mxu0 0.0
        %2775 = vmatpush1.msra.mxu0 0.0
        %2776 = vmatprep.subr.mxu0 0.0
        %2777 = vmatpush1.msra.mxu0 0.0
        %2778 = vmatprep.subr.mxu0 0.0
        %2779 = vmatpush1.msra.mxu0 0.0
        %2780 = vmatprep.subr.mxu0 0.0
        %2781 = vmatpush1.msra.mxu0 0.0
        %2782 = vmatprep.subr.mxu0 0.0
        %2783 = vmatpush1.msra.mxu0 0.0
        %2784 = vmatprep.subr.mxu0 0.0
        %2785 = vmatpush1.msra.mxu0 0.0
        %2786 = vmatprep.subr.mxu0 0.0
        %2787 = vmatpush1.msra.mxu0 0.0
        %2788 = vmatprep.subr.mxu0 0.0
        %2789 = vmatpush1.msra.mxu0 0.0
        %2790 = vmatprep.subr.mxu0 0.0
        %2791 = vmatpush1.msra.mxu0 0.0
        %2792 = vmatprep.subr.mxu0 0.0
        %2793 = vmatpush1.msra.mxu0 0.0
        %2794 = vmatprep.subr.mxu0 0.0
        %2795 = vmatpush1.msra.mxu0 0.0
        %2796 = vmatprep.subr.mxu0 0.0
        %2797 = vmatpush1.msra.mxu0 0.0
        %2798 = vmatprep.subr.mxu0 0.0
        %2799 = vmatpush1.msra.mxu0 0.0
        %2800 = vmatprep.subr.mxu0 0.0
        %2801 = vmatpush1.msra.mxu0 0.0
        %2802 = vmatprep.subr.mxu0 0.0
        %2803 = vmatpush1.msra.mxu0 0.0
        %2804 = vmatprep.subr.mxu0 0.0
        %2805 = vmatpush1.msra.mxu0 0.0
        %2806 = vmatprep.subr.mxu0 0.0
        %2807 = vmatpush1.msra.mxu0 0.0
        %2808 = vmatprep.subr.mxu0 0.0
        %2809 = vmatpush1.msra.mxu0 0.0
        %2810 = vmatprep.mubr.f32.mxu0 0.0
        %2811 = vmatmul.mubr.f32.gmra.mrb[0].mxu0 %v1334
        %v2812 = vpop.f32.mrb[0].mxu0
        %v2813 = vadd.f32 0.0, %v2812
        %v2814 = vpop.f32.mrb[0].mxu0
        %2815 = vmatprep.mubr.f32.mxu0 0.0
        %2816 = vmatmul.mubr.f32.gmra.mrb[0].mxu0 %v1337
        %v2817 = vpop.f32.mrb[0].mxu0
        %v2818 = vadd.f32 0.0, %v2817
        %v2819 = vpop.f32.mrb[0].mxu0
        %2820 = vdwg.mxu0
        %v2821 = vpack.c.bf16 %v2818, %v2813
        %v2823 = vsel %vm897, %v2821, 0
        %2825 = vmatprep.subr.bf16.mxu0 0
        %2826 = vmatpush1.bf16.msra.mxu0 %v1847
        %2827 = vmatprep.subr.bf16.mxu0 0
        %2828 = vmatpush1.bf16.msra.mxu0 %v1848
        %2829 = vmatprep.subr.bf16.mxu0 0
        %2830 = vmatpush1.bf16.msra.mxu0 0
        %2831 = vmatprep.subr.bf16.mxu0 0
        %2832 = vmatpush1.bf16.msra.mxu0 0
        %2833 = vmatprep.subr.bf16.mxu0 0
        %2834 = vmatpush1.bf16.msra.mxu0 0
        %2835 = vmatprep.subr.bf16.mxu0 0
        %2836 = vmatpush1.bf16.msra.mxu0 0
        %2837 = vmatprep.subr.bf16.mxu0 0
        %2838 = vmatpush1.bf16.msra.mxu0 0
        %2839 = vmatprep.subr.bf16.mxu0 0
        %2840 = vmatpush1.bf16.msra.mxu0 0
        %2841 = vmatprep.subr.bf16.mxu0 0
        %2842 = vmatpush1.bf16.msra.mxu0 0
        %2843 = vmatprep.subr.bf16.mxu0 0
        %2844 = vmatpush1.bf16.msra.mxu0 0
        %2845 = vmatprep.subr.bf16.mxu0 0
        %2846 = vmatpush1.bf16.msra.mxu0 0
        %2847 = vmatprep.subr.bf16.mxu0 0
        %2848 = vmatpush1.bf16.msra.mxu0 0
        %2849 = vmatprep.subr.bf16.mxu0 0
        %2850 = vmatpush1.bf16.msra.mxu0 0
        %2851 = vmatprep.subr.bf16.mxu0 0
        %2852 = vmatpush1.bf16.msra.mxu0 0
        %2853 = vmatprep.subr.bf16.mxu0 0
        %2854 = vmatpush1.bf16.msra.mxu0 0
        %2855 = vmatprep.subr.bf16.mxu0 0
        %2856 = vmatpush1.bf16.msra.mxu0 0
        %2857 = vmatprep.mubr.bf16.mxu0 0
        %2858 = vmatmul.mubr.bf16.gmra.mrb[0].mxu0 %v2823
        %v2859 = vpop.f32.mrb[0].mxu0
        %v2860 = vadd.f32 0.0, %v2859
        %v2861 = vpop.f32.mrb[0].mxu0
        %v2862 = vpop.f32.mrb[0].mxu0
        %v2863 = vadd.f32 0.0, %v2862
        %v2864 = vpop.f32.mrb[0].mxu0
        %2865 = vdwg.mxu0
        %v2866 = vadd.f32 %v2740, %v2860
        %v2867 = vadd.f32 %v2743, %v2863
        %2868 = vmatprep.subr.mxu0 0.0
        %2869 = vmatpush1.msra.mxu0 %v2699
        %2870 = vmatprep.subr.mxu0 0.0
        %2871 = vmatpush1.msra.mxu0 %v2700
        %2872 = vmatprep.subr.mxu0 0.0
        %2873 = vmatpush1.msra.mxu0 0.0
        %2874 = vmatprep.subr.mxu0 0.0
        %2875 = vmatpush1.msra.mxu0 0.0
        %2876 = vmatprep.subr.mxu0 0.0
        %2877 = vmatpush1.msra.mxu0 0.0
        %2878 = vmatprep.subr.mxu0 0.0
        %2879 = vmatpush1.msra.mxu0 0.0
        %2880 = vmatprep.subr.mxu0 0.0
        %2881 = vmatpush1.msra.mxu0 0.0
        %2882 = vmatprep.subr.mxu0 0.0
        %2883 = vmatpush1.msra.mxu0 0.0
        %2884 = vmatprep.subr.mxu0 0.0
        %2885 = vmatpush1.msra.mxu0 0.0
        %2886 = vmatprep.subr.mxu0 0.0
        %2887 = vmatpush1.msra.mxu0 0.0
        %2888 = vmatprep.subr.mxu0 0.0
        %2889 = vmatpush1.msra.mxu0 0.0
        %2890 = vmatprep.subr.mxu0 0.0
        %2891 = vmatpush1.msra.mxu0 0.0
        %2892 = vmatprep.subr.mxu0 0.0
        %2893 = vmatpush1.msra.mxu0 0.0
        %2894 = vmatprep.subr.mxu0 0.0
        %2895 = vmatpush1.msra.mxu0 0.0
        %2896 = vmatprep.subr.mxu0 0.0
        %2897 = vmatpush1.msra.mxu0 0.0
        %2898 = vmatprep.subr.mxu0 0.0
        %2899 = vmatpush1.msra.mxu0 0.0
        %2900 = vmatprep.subr.mxu0 0.0
        %2901 = vmatpush1.msra.mxu0 0.0
        %2902 = vmatprep.subr.mxu0 0.0
        %2903 = vmatpush1.msra.mxu0 0.0
        %2904 = vmatprep.subr.mxu0 0.0
        %2905 = vmatpush1.msra.mxu0 0.0
        %2906 = vmatprep.subr.mxu0 0.0
        %2907 = vmatpush1.msra.mxu0 0.0
        %2908 = vmatprep.subr.mxu0 0.0
        %2909 = vmatpush1.msra.mxu0 0.0
        %2910 = vmatprep.subr.mxu0 0.0
        %2911 = vmatpush1.msra.mxu0 0.0
        %2912 = vmatprep.subr.mxu0 0.0
        %2913 = vmatpush1.msra.mxu0 0.0
        %2914 = vmatprep.subr.mxu0 0.0
        %2915 = vmatpush1.msra.mxu0 0.0
        %2916 = vmatprep.subr.mxu0 0.0
        %2917 = vmatpush1.msra.mxu0 0.0
        %2918 = vmatprep.subr.mxu0 0.0
        %2919 = vmatpush1.msra.mxu0 0.0
        %2920 = vmatprep.subr.mxu0 0.0
        %2921 = vmatpush1.msra.mxu0 0.0
        %2922 = vmatprep.subr.mxu0 0.0
        %2923 = vmatpush1.msra.mxu0 0.0
        %2924 = vmatprep.subr.mxu0 0.0
        %2925 = vmatpush1.msra.mxu0 0.0
        %2926 = vmatprep.subr.mxu0 0.0
        %2927 = vmatpush1.msra.mxu0 0.0
        %2928 = vmatprep.subr.mxu0 0.0
        %2929 = vmatpush1.msra.mxu0 0.0
        %2930 = vmatprep.subr.mxu0 0.0
        %2931 = vmatpush1.msra.mxu0 0.0
        %2932 = vmatprep.mubr.f32.mxu0 0.0
        %2933 = vmatmul.mubr.f32.gmra.mrb[0].mxu0 %v1476
        %v2934 = vpop.f32.mrb[0].mxu0
        %v2935 = vadd.f32 0.0, %v2934
        %v2936 = vpop.f32.mrb[0].mxu0
        %2937 = vmatprep.mubr.f32.mxu0 0.0
        %2938 = vmatmul.mubr.f32.gmra.mrb[0].mxu0 %v1479
        %v2939 = vpop.f32.mrb[0].mxu0
        %v2940 = vadd.f32 0.0, %v2939
        %v2941 = vpop.f32.mrb[0].mxu0
        %2942 = vdwg.mxu0
        %v2943 = vpack.c.bf16 %v2940, %v2935
        %v2945 = vsel %vm897, %v2943, 0
        %2947 = vmatprep.subr.bf16.mxu0 0
        %2948 = vmatpush1.bf16.msra.mxu0 %v1976
        %2949 = vmatprep.subr.bf16.mxu0 0
        %2950 = vmatpush1.bf16.msra.mxu0 %v1977
        %2951 = vmatprep.subr.bf16.mxu0 0
        %2952 = vmatpush1.bf16.msra.mxu0 0
        %2953 = vmatprep.subr.bf16.mxu0 0
        %2954 = vmatpush1.bf16.msra.mxu0 0
        %2955 = vmatprep.subr.bf16.mxu0 0
        %2956 = vmatpush1.bf16.msra.mxu0 0
        %2957 = vmatprep.subr.bf16.mxu0 0
        %2958 = vmatpush1.bf16.msra.mxu0 0
        %2959 = vmatprep.subr.bf16.mxu0 0
        %2960 = vmatpush1.bf16.msra.mxu0 0
        %2961 = vmatprep.subr.bf16.mxu0 0
        %2962 = vmatpush1.bf16.msra.mxu0 0
        %2963 = vmatprep.subr.bf16.mxu0 0
        %2964 = vmatpush1.bf16.msra.mxu0 0
        %2965 = vmatprep.subr.bf16.mxu0 0
        %2966 = vmatpush1.bf16.msra.mxu0 0
        %2967 = vmatprep.subr.bf16.mxu0 0
        %2968 = vmatpush1.bf16.msra.mxu0 0
        %2969 = vmatprep.subr.bf16.mxu0 0
        %2970 = vmatpush1.bf16.msra.mxu0 0
        %2971 = vmatprep.subr.bf16.mxu0 0
        %2972 = vmatpush1.bf16.msra.mxu0 0
        %2973 = vmatprep.subr.bf16.mxu0 0
        %2974 = vmatpush1.bf16.msra.mxu0 0
        %2975 = vmatprep.subr.bf16.mxu0 0
        %2976 = vmatpush1.bf16.msra.mxu0 0
        %2977 = vmatprep.subr.bf16.mxu0 0
        %2978 = vmatpush1.bf16.msra.mxu0 0
        %2979 = vmatprep.mubr.bf16.mxu0 0
        %2980 = vmatmul.mubr.bf16.gmra.mrb[0].mxu0 %v2945
        %v2981 = vpop.f32.mrb[0].mxu0
        %v2982 = vadd.f32 0.0, %v2981
        %v2983 = vpop.f32.mrb[0].mxu0
        %v2984 = vpop.f32.mrb[0].mxu0
        %v2985 = vadd.f32 0.0, %v2984
        %v2986 = vpop.f32.mrb[0].mxu0
        %2987 = vdwg.mxu0
        %v2988 = vadd.f32 %v2866, %v2982
        %v2989 = vadd.f32 %v2867, %v2985
        %v2990 = vadd.f32 %v2988, %v2027
        %v2991 = vadd.f32 %v2989, %v2029
        %v2992 = vxor.u32 %v2990, 2147483648
        %v2993 = vxor.u32 %v2991, 2147483648
        %v2994 = vmul.f32 %v2992, 1.442695
        %v2995 = vpow.pop %v2994
        %v2996 = vmul.f32 %v2993, 1.442695
        %v2997 = vpow.pop %v2996
        %v2998 = vadd.f32 %v2995, 1.0
        %v2999 = vadd.f32 %v2997, 1.0
        %v3000 = vrcp.pop %v2998
        %v3001 = vmul.f32 1.0, %v3000
        %v3002 = vrcp.pop %v2999
        %v3003 = vmul.f32 1.0, %v3002
        %v3004 = vtanh.pop %v2990
        %v3005 = vtanh.pop %v2991
        %3008 = vrot.lane.b32.xlu0 %v3004, 96
        %v3009 = vpop.permute.xlu0 %3008
        %3010 = vrot.lane.b32.xlu0 %v3005, 96
        %v3011 = vpop.permute.xlu0 %3010
        %v3014 = vmul.f32 %v3001, %v3009
        %v3015 = vmul.f32 %v3003, %v3011
        %v3016 = vpack.c.bf16 %v3015, %v3014
        %v3018 = vsel %vm897, %v3016, 0
        %3020 = vmatprep.subr.bf16.mxu0 0
        %3021 = vmatpush1.bf16.msra.mxu0 %v2064
        %3022 = vmatprep.subr.bf16.mxu0 0
        %3023 = vmatpush1.bf16.msra.mxu0 %v2065
        %3024 = vmatprep.subr.bf16.mxu0 0
        %3025 = vmatpush1.bf16.msra.mxu0 0
        %3026 = vmatprep.subr.bf16.mxu0 0
        %3027 = vmatpush1.bf16.msra.mxu0 0
        %3028 = vmatprep.subr.bf16.mxu0 0
        %3029 = vmatpush1.bf16.msra.mxu0 0
        %3030 = vmatprep.subr.bf16.mxu0 0
        %3031 = vmatpush1.bf16.msra.mxu0 0
        %3032 = vmatprep.subr.bf16.mxu0 0
        %3033 = vmatpush1.bf16.msra.mxu0 0
        %3034 = vmatprep.subr.bf16.mxu0 0
        %3035 = vmatpush1.bf16.msra.mxu0 0
        %3036 = vmatprep.subr.bf16.mxu0 0
        %3037 = vmatpush1.bf16.msra.mxu0 0
        %3038 = vmatprep.subr.bf16.mxu0 0
        %3039 = vmatpush1.bf16.msra.mxu0 0
        %3040 = vmatprep.subr.bf16.mxu0 0
        %3041 = vmatpush1.bf16.msra.mxu0 0
        %3042 = vmatprep.subr.bf16.mxu0 0
        %3043 = vmatpush1.bf16.msra.mxu0 0
        %3044 = vmatprep.subr.bf16.mxu0 0
        %3045 = vmatpush1.bf16.msra.mxu0 0
        %3046 = vmatprep.subr.bf16.mxu0 0
        %3047 = vmatpush1.bf16.msra.mxu0 0
        %3048 = vmatprep.subr.bf16.mxu0 0
        %3049 = vmatpush1.bf16.msra.mxu0 0
        %3050 = vmatprep.subr.bf16.mxu0 0
        %3051 = vmatpush1.bf16.msra.mxu0 0
        %3052 = vmatprep.mubr.bf16.mxu0 0
        %3053 = vmatmul.mubr.bf16.gmra.mrb[0].mxu0 %v3018
        %v3054 = vpop.f32.mrb[0].mxu0
        %v3055 = vadd.f32 %v2072, %v3054
        %v3056 = vpop.f32.mrb[0].mxu0
        %v3057 = vpop.f32.mrb[0].mxu0
        %v3058 = vadd.f32 %v2072, %v3057
        %v3059 = vpop.f32.mrb[0].mxu0
        %3060 = vdwg.mxu0
        %v3061 = vadd.f32 %v2693, %v3055
        %v3062 = vadd.f32 %v2694, %v3058
        %v3063 = vmul.f32 %v3061, 0.70710677
        %v3064 = vmul.f32 %v3062, 0.70710677
        %v3065 = vpack.c.bf16 %v3064, %v3063
        %3067 = vrot.lane.b32.xlu0 %v3065, 96
        %v3068 = vpop.permute.xlu0 %3067
        %v3070 = vsel %vm897, %v3068, 0
        %3072 = vmatprep.subr.bf16.mxu0 0
        %3073 = vmatpush1.bf16.msra.mxu0 %v2127
        %3074 = vmatprep.subr.bf16.mxu0 0
        %3075 = vmatpush1.bf16.msra.mxu0 %v2128
        %3076 = vmatprep.subr.bf16.mxu0 0
        %3077 = vmatpush1.bf16.msra.mxu0 0
        %3078 = vmatprep.subr.bf16.mxu0 0
        %3079 = vmatpush1.bf16.msra.mxu0 0
        %3080 = vmatprep.subr.bf16.mxu0 0
        %3081 = vmatpush1.bf16.msra.mxu0 0
        %3082 = vmatprep.subr.bf16.mxu0 0
        %3083 = vmatpush1.bf16.msra.mxu0 0
        %3084 = vmatprep.subr.bf16.mxu0 0
        %3085 = vmatpush1.bf16.msra.mxu0 0
        %3086 = vmatprep.subr.bf16.mxu0 0
        %3087 = vmatpush1.bf16.msra.mxu0 0
        %3088 = vmatprep.subr.bf16.mxu0 0
        %3089 = vmatpush1.bf16.msra.mxu0 0
        %3090 = vmatprep.subr.bf16.mxu0 0
        %3091 = vmatpush1.bf16.msra.mxu0 0
        %3092 = vmatprep.subr.bf16.mxu0 0
        %3093 = vmatpush1.bf16.msra.mxu0 0
        %3094 = vmatprep.subr.bf16.mxu0 0
        %3095 = vmatpush1.bf16.msra.mxu0 0
        %3096 = vmatprep.subr.bf16.mxu0 0
        %3097 = vmatpush1.bf16.msra.mxu0 0
        %3098 = vmatprep.subr.bf16.mxu0 0
        %3099 = vmatpush1.bf16.msra.mxu0 0
        %3100 = vmatprep.subr.bf16.mxu0 0
        %3101 = vmatpush1.bf16.msra.mxu0 0
        %3102 = vmatprep.subr.bf16.mxu0 0
        %3103 = vmatpush1.bf16.msra.mxu0 0
        %3104 = vmatprep.mubr.bf16.mxu0 0
        %3105 = vmatmul.mubr.bf16.gmra.mrb[0].mxu0 %v3070
        %v3106 = vpop.f32.mrb[0].mxu0
        %v3107 = vadd.f32 %v2134, %v3106
        %v3108 = vpop.f32.mrb[0].mxu0
        %v3109 = vpop.f32.mrb[0].mxu0
        %v3110 = vadd.f32 %v2134, %v3109
        %v3111 = vpop.f32.mrb[0].mxu0
        %3112 = vdwg.mxu0
        %v3113 = vmax.f32 %v3107, 0.0
        %v3114 = vmax.f32 %v3110, 0.0
        %v3115 = vpack.c.bf16 %v3114, %v3113
        %v3117 = vsel %vm897, %v3115, 0
        %3119 = vmatprep.subr.bf16.mxu0 0
        %3120 = vmatpush1.bf16.msra.mxu0 %v2190
        %3121 = vmatprep.subr.bf16.mxu0 0
        %3122 = vmatpush1.bf16.msra.mxu0 %v2191
        %3123 = vmatprep.subr.bf16.mxu0 0
        %3124 = vmatpush1.bf16.msra.mxu0 0
        %3125 = vmatprep.subr.bf16.mxu0 0
        %3126 = vmatpush1.bf16.msra.mxu0 0
        %3127 = vmatprep.subr.bf16.mxu0 0
        %3128 = vmatpush1.bf16.msra.mxu0 0
        %3129 = vmatprep.subr.bf16.mxu0 0
        %3130 = vmatpush1.bf16.msra.mxu0 0
        %3131 = vmatprep.subr.bf16.mxu0 0
        %3132 = vmatpush1.bf16.msra.mxu0 0
        %3133 = vmatprep.subr.bf16.mxu0 0
        %3134 = vmatpush1.bf16.msra.mxu0 0
        %3135 = vmatprep.subr.bf16.mxu0 0
        %3136 = vmatpush1.bf16.msra.mxu0 0
        %3137 = vmatprep.subr.bf16.mxu0 0
        %3138 = vmatpush1.bf16.msra.mxu0 0
        %3139 = vmatprep.subr.bf16.mxu0 0
        %3140 = vmatpush1.bf16.msra.mxu0 0
        %3141 = vmatprep.subr.bf16.mxu0 0
        %3142 = vmatpush1.bf16.msra.mxu0 0
        %3143 = vmatprep.subr.bf16.mxu0 0
        %3144 = vmatpush1.bf16.msra.mxu0 0
        %3145 = vmatprep.subr.bf16.mxu0 0
        %3146 = vmatpush1.bf16.msra.mxu0 0
        %3147 = vmatprep.subr.bf16.mxu0 0
        %3148 = vmatpush1.bf16.msra.mxu0 0
        %3149 = vmatprep.subr.bf16.mxu0 0
        %3150 = vmatpush1.bf16.msra.mxu0 0
        %3151 = vmatprep.mubr.bf16.mxu0 0
        %3152 = vmatmul.mubr.bf16.gmra.mrb[0].mxu0 %v3117
        %v3153 = vpop.f32.mrb[0].mxu0
        %v3154 = vadd.f32 %v2197, %v3153
        %v3155 = vpop.f32.mrb[0].mxu0
        %v3156 = vpop.f32.mrb[0].mxu0
        %v3157 = vadd.f32 %v2197, %v3156
        %v3158 = vpop.f32.mrb[0].mxu0
        %3159 = vdwg.mxu0
        %s3160 = sld [smem:[#allocation2 + $0x2]]
        %s3161 = sld [smem:[#allocation2 + $0x82]]
        %s3162 = sld [smem:[#allocation2 + $0x102]]
        %s3163 = sld [smem:[#allocation2 + $0x182]]
        %s3164 = sld [smem:[#allocation2 + $0x202]]
        %v3165 = vstv %s3160
        %v3166 = vmul.f32 %v3165, %v2274
        %v3167 = vmul.f32 %v3165, %v2275
        %v3168 = vstv %s3161
        %v3169 = vmul.f32 %v3168, %v3154
        %v3170 = vmul.f32 %v3168, %v3157
        %v3171 = vsub.f32 %v3166, %v3169
        %v3172 = vsub.f32 %v3167, %v3170
        %v3173 = vmax.f32 %v3171, -1.0
        %v3174 = vmax.f32 %v3172, -1.0
        %v3175 = vmin.f32 %v3173, 1.0
        %v3176 = vmin.f32 %v3174, 1.0
        %v3177 = vstv %s3162
        %v3178 = vmul.f32 %v3177, %v3175
        %v3179 = vmul.f32 %v3177, %v3176
        %v3180 = vstv %s3163
        %v3181 = vmul.f32 %v3180, %v2274
        %v3182 = vmul.f32 %v3180, %v2275
        %v3183 = vadd.f32 %v3178, %v3181
        %v3184 = vadd.f32 %v3179, %v3182
        %s3185 = scalar_lea.vmem %s794, 32 [#allocation5]
        %v3186 = vld [vmem:[%s3185] sm:$0xff]
        %v3187 = vld [vmem:[%s3185 + $0x8] sm:$0xff]
        %v3188 = vstv %s3164
        %v3189 = vmul.f32 %v3188, %v3186
        %v3190 = vmul.f32 %v3188, %v3187
        %v3191 = vadd.f32 %v3183, %v3189
        %v3192 = vadd.f32 %v3184, %v3190
        %v3193 = vpack.c.bf16 %v3192, %v3191
        %v3195 = vsel %vm1213, %v3193, 0
        %3197 = vmatprep.subr.bf16.mxu0 0
        %3198 = vmatpush1.bf16.msra.mxu0 %v1205
        %3199 = vmatprep.subr.bf16.mxu0 0
        %3200 = vmatpush1.bf16.msra.mxu0 0
        %3201 = vmatprep.subr.bf16.mxu0 0
        %3202 = vmatpush1.bf16.msra.mxu0 0
        %3203 = vmatprep.subr.bf16.mxu0 0
        %3204 = vmatpush1.bf16.msra.mxu0 0
        %3205 = vmatprep.subr.bf16.mxu0 0
        %3206 = vmatpush1.bf16.msra.mxu0 0
        %3207 = vmatprep.subr.bf16.mxu0 0
        %3208 = vmatpush1.bf16.msra.mxu0 0
        %3209 = vmatprep.subr.bf16.mxu0 0
        %3210 = vmatpush1.bf16.msra.mxu0 0
        %3211 = vmatprep.subr.bf16.mxu0 0
        %3212 = vmatpush1.bf16.msra.mxu0 0
        %3213 = vmatprep.subr.bf16.mxu0 0
        %3214 = vmatpush1.bf16.msra.mxu0 0
        %3215 = vmatprep.subr.bf16.mxu0 0
        %3216 = vmatpush1.bf16.msra.mxu0 0
        %3217 = vmatprep.subr.bf16.mxu0 0
        %3218 = vmatpush1.bf16.msra.mxu0 0
        %3219 = vmatprep.subr.bf16.mxu0 0
        %3220 = vmatpush1.bf16.msra.mxu0 0
        %3221 = vmatprep.subr.bf16.mxu0 0
        %3222 = vmatpush1.bf16.msra.mxu0 0
        %3223 = vmatprep.subr.bf16.mxu0 0
        %3224 = vmatpush1.bf16.msra.mxu0 0
        %3225 = vmatprep.subr.bf16.mxu0 0
        %3226 = vmatpush1.bf16.msra.mxu0 0
        %3227 = vmatprep.subr.bf16.mxu0 0
        %3228 = vmatpush1.bf16.msra.mxu0 0
        %3229 = vmatprep.mubr.bf16.mxu0 0
        %3230 = vmatmul.mubr.bf16.gmra.mrb[0].mxu0 %v3195
        %v3231 = vpop.f32.mrb[0].mxu0
        %v3232 = vadd.f32 %v1211, %v3231
        %v3233 = vpop.f32.mrb[0].mxu0
        %v3234 = vpop.f32.mrb[0].mxu0
        %v3235 = vadd.f32 %v1211, %v3234
        %v3236 = vpop.f32.mrb[0].mxu0
        %3237 = vdwg.mxu0
        %v3238 = vmax.f32 %v3232, 0.0
        %v3239 = vmax.f32 %v3235, 0.0
        %v3240 = vlaneseq
        %v3241 = vshrl.u32 %v3240, 7
        %v3242 = vsub.s32 1, %v3241
        %v3243 = vrot.slane %v1135, %v3242
        %v3244 = vadd.f32 %v3238, %v3243
        %v3245 = vadd.f32 %v3239, %v3243
        %v3246 = vpack.c.bf16 %v3245, %v3244
        %v3248 = vsel %vm897, %v3246, 0
        %3250 = vmatprep.subr.bf16.mxu0 0
        %3251 = vmatpush1.bf16.msra.mxu0 %v1272
        %3252 = vmatprep.subr.bf16.mxu0 0
        %3253 = vmatpush1.bf16.msra.mxu0 %v1273
        %3254 = vmatprep.subr.bf16.mxu0 0
        %3255 = vmatpush1.bf16.msra.mxu0 0
        %3256 = vmatprep.subr.bf16.mxu0 0
        %3257 = vmatpush1.bf16.msra.mxu0 0
        %3258 = vmatprep.subr.bf16.mxu0 0
        %3259 = vmatpush1.bf16.msra.mxu0 0
        %3260 = vmatprep.subr.bf16.mxu0 0
        %3261 = vmatpush1.bf16.msra.mxu0 0
        %3262 = vmatprep.subr.bf16.mxu0 0
        %3263 = vmatpush1.bf16.msra.mxu0 0
        %3264 = vmatprep.subr.bf16.mxu0 0
        %3265 = vmatpush1.bf16.msra.mxu0 0
        %3266 = vmatprep.subr.bf16.mxu0 0
        %3267 = vmatpush1.bf16.msra.mxu0 0
        %3268 = vmatprep.subr.bf16.mxu0 0
        %3269 = vmatpush1.bf16.msra.mxu0 0
        %3270 = vmatprep.subr.bf16.mxu0 0
        %3271 = vmatpush1.bf16.msra.mxu0 0
        %3272 = vmatprep.subr.bf16.mxu0 0
        %3273 = vmatpush1.bf16.msra.mxu0 0
        %3274 = vmatprep.subr.bf16.mxu0 0
        %3275 = vmatpush1.bf16.msra.mxu0 0
        %3276 = vmatprep.subr.bf16.mxu0 0
        %3277 = vmatpush1.bf16.msra.mxu0 0
        %3278 = vmatprep.subr.bf16.mxu0 0
        %3279 = vmatpush1.bf16.msra.mxu0 0
        %3280 = vmatprep.subr.bf16.mxu0 0
        %3281 = vmatpush1.bf16.msra.mxu0 0
        %3282 = vmatprep.mubr.bf16.mxu0 0
        %3283 = vmatmul.mubr.bf16.gmra.mrb[0].mxu0 %v3248
        %v3284 = vpop.f32.mrb[0].mxu0
        %v3285 = vadd.f32 %v1279, %v3284
        %v3286 = vpop.f32.mrb[0].mxu0
        %v3287 = vpop.f32.mrb[0].mxu0
        %v3288 = vadd.f32 %v1279, %v3287
        %v3289 = vpop.f32.mrb[0].mxu0
        %3290 = vdwg.mxu0
        %3291 = vmatprep.subr.mxu0 0.0
        %3292 = vmatpush1.msra.mxu0 %v3244
        %3293 = vmatprep.subr.mxu0 0.0
        %3294 = vmatpush1.msra.mxu0 %v3245
        %3295 = vmatprep.subr.mxu0 0.0
        %3296 = vmatpush1.msra.mxu0 0.0
        %3297 = vmatprep.subr.mxu0 0.0
        %3298 = vmatpush1.msra.mxu0 0.0
        %3299 = vmatprep.subr.mxu0 0.0
        %3300 = vmatpush1.msra.mxu0 0.0
        %3301 = vmatprep.subr.mxu0 0.0
        %3302 = vmatpush1.msra.mxu0 0.0
        %3303 = vmatprep.subr.mxu0 0.0
        %3304 = vmatpush1.msra.mxu0 0.0
        %3305 = vmatprep.subr.mxu0 0.0
        %3306 = vmatpush1.msra.mxu0 0.0
        %3307 = vmatprep.subr.mxu0 0.0
        %3308 = vmatpush1.msra.mxu0 0.0
        %3309 = vmatprep.subr.mxu0 0.0
        %3310 = vmatpush1.msra.mxu0 0.0
        %3311 = vmatprep.subr.mxu0 0.0
        %3312 = vmatpush1.msra.mxu0 0.0
        %3313 = vmatprep.subr.mxu0 0.0
        %3314 = vmatpush1.msra.mxu0 0.0
        %3315 = vmatprep.subr.mxu0 0.0
        %3316 = vmatpush1.msra.mxu0 0.0
        %3317 = vmatprep.subr.mxu0 0.0
        %3318 = vmatpush1.msra.mxu0 0.0
        %3319 = vmatprep.subr.mxu0 0.0
        %3320 = vmatpush1.msra.mxu0 0.0
        %3321 = vmatprep.subr.mxu0 0.0
        %3322 = vmatpush1.msra.mxu0 0.0
        %3323 = vmatprep.subr.mxu0 0.0
        %3324 = vmatpush1.msra.mxu0 0.0
        %3325 = vmatprep.subr.mxu0 0.0
        %3326 = vmatpush1.msra.mxu0 0.0
        %3327 = vmatprep.subr.mxu0 0.0
        %3328 = vmatpush1.msra.mxu0 0.0
        %3329 = vmatprep.subr.mxu0 0.0
        %3330 = vmatpush1.msra.mxu0 0.0
        %3331 = vmatprep.subr.mxu0 0.0
        %3332 = vmatpush1.msra.mxu0 0.0
        %3333 = vmatprep.subr.mxu0 0.0
        %3334 = vmatpush1.msra.mxu0 0.0
        %3335 = vmatprep.subr.mxu0 0.0
        %3336 = vmatpush1.msra.mxu0 0.0
        %3337 = vmatprep.subr.mxu0 0.0
        %3338 = vmatpush1.msra.mxu0 0.0
        %3339 = vmatprep.subr.mxu0 0.0
        %3340 = vmatpush1.msra.mxu0 0.0
        %3341 = vmatprep.subr.mxu0 0.0
        %3342 = vmatpush1.msra.mxu0 0.0
        %3343 = vmatprep.subr.mxu0 0.0
        %3344 = vmatpush1.msra.mxu0 0.0
        %3345 = vmatprep.subr.mxu0 0.0
        %3346 = vmatpush1.msra.mxu0 0.0
        %3347 = vmatprep.subr.mxu0 0.0
        %3348 = vmatpush1.msra.mxu0 0.0
        %3349 = vmatprep.subr.mxu0 0.0
        %3350 = vmatpush1.msra.mxu0 0.0
        %3351 = vmatprep.subr.mxu0 0.0
        %3352 = vmatpush1.msra.mxu0 0.0
        %3353 = vmatprep.subr.mxu0 0.0
        %3354 = vmatpush1.msra.mxu0 0.0
        %3355 = vmatprep.mubr.f32.mxu0 0.0
        %3356 = vmatmul.mubr.f32.gmra.mrb[0].mxu0 %v1334
        %v3357 = vpop.f32.mrb[0].mxu0
        %v3358 = vadd.f32 0.0, %v3357
        %v3359 = vpop.f32.mrb[0].mxu0
        %3360 = vmatprep.mubr.f32.mxu0 0.0
        %3361 = vmatmul.mubr.f32.gmra.mrb[0].mxu0 %v1337
        %v3362 = vpop.f32.mrb[0].mxu0
        %v3363 = vadd.f32 0.0, %v3362
        %v3364 = vpop.f32.mrb[0].mxu0
        %3365 = vdwg.mxu0
        %v3366 = vpack.c.bf16 %v3363, %v3358
        %v3368 = vsel %vm897, %v3366, 0
        %3370 = vmatprep.subr.bf16.mxu0 0
        %3371 = vmatpush1.bf16.msra.mxu0 %v1419
        %3372 = vmatprep.subr.bf16.mxu0 0
        %3373 = vmatpush1.bf16.msra.mxu0 %v1420
        %3374 = vmatprep.subr.bf16.mxu0 0
        %3375 = vmatpush1.bf16.msra.mxu0 0
        %3376 = vmatprep.subr.bf16.mxu0 0
        %3377 = vmatpush1.bf16.msra.mxu0 0
        %3378 = vmatprep.subr.bf16.mxu0 0
        %3379 = vmatpush1.bf16.msra.mxu0 0
        %3380 = vmatprep.subr.bf16.mxu0 0
        %3381 = vmatpush1.bf16.msra.mxu0 0
        %3382 = vmatprep.subr.bf16.mxu0 0
        %3383 = vmatpush1.bf16.msra.mxu0 0
        %3384 = vmatprep.subr.bf16.mxu0 0
        %3385 = vmatpush1.bf16.msra.mxu0 0
        %3386 = vmatprep.subr.bf16.mxu0 0
        %3387 = vmatpush1.bf16.msra.mxu0 0
        %3388 = vmatprep.subr.bf16.mxu0 0
        %3389 = vmatpush1.bf16.msra.mxu0 0
        %3390 = vmatprep.subr.bf16.mxu0 0
        %3391 = vmatpush1.bf16.msra.mxu0 0
        %3392 = vmatprep.subr.bf16.mxu0 0
        %3393 = vmatpush1.bf16.msra.mxu0 0
        %3394 = vmatprep.subr.bf16.mxu0 0
        %3395 = vmatpush1.bf16.msra.mxu0 0
        %3396 = vmatprep.subr.bf16.mxu0 0
        %3397 = vmatpush1.bf16.msra.mxu0 0
        %3398 = vmatprep.subr.bf16.mxu0 0
        %3399 = vmatpush1.bf16.msra.mxu0 0
        %3400 = vmatprep.subr.bf16.mxu0 0
        %3401 = vmatpush1.bf16.msra.mxu0 0
        %3402 = vmatprep.mubr.bf16.mxu0 0
        %3403 = vmatmul.mubr.bf16.gmra.mrb[0].mxu0 %v3368
        %v3404 = vpop.f32.mrb[0].mxu0
        %v3405 = vadd.f32 0.0, %v3404
        %v3406 = vpop.f32.mrb[0].mxu0
        %v3407 = vpop.f32.mrb[0].mxu0
        %v3408 = vadd.f32 0.0, %v3407
        %v3409 = vpop.f32.mrb[0].mxu0
        %3410 = vdwg.mxu0
        %v3411 = vadd.f32 %v3285, %v3405
        %v3412 = vadd.f32 %v3288, %v3408
        %3413 = vmatprep.subr.mxu0 0.0
        %3414 = vmatpush1.msra.mxu0 %v3244
        %3415 = vmatprep.subr.mxu0 0.0
        %3416 = vmatpush1.msra.mxu0 %v3245
        %3417 = vmatprep.subr.mxu0 0.0
        %3418 = vmatpush1.msra.mxu0 0.0
        %3419 = vmatprep.subr.mxu0 0.0
        %3420 = vmatpush1.msra.mxu0 0.0
        %3421 = vmatprep.subr.mxu0 0.0
        %3422 = vmatpush1.msra.mxu0 0.0
        %3423 = vmatprep.subr.mxu0 0.0
        %3424 = vmatpush1.msra.mxu0 0.0
        %3425 = vmatprep.subr.mxu0 0.0
        %3426 = vmatpush1.msra.mxu0 0.0
        %3427 = vmatprep.subr.mxu0 0.0
        %3428 = vmatpush1.msra.mxu0 0.0
        %3429 = vmatprep.subr.mxu0 0.0
        %3430 = vmatpush1.msra.mxu0 0.0
        %3431 = vmatprep.subr.mxu0 0.0
        %3432 = vmatpush1.msra.mxu0 0.0
        %3433 = vmatprep.subr.mxu0 0.0
        %3434 = vmatpush1.msra.mxu0 0.0
        %3435 = vmatprep.subr.mxu0 0.0
        %3436 = vmatpush1.msra.mxu0 0.0
        %3437 = vmatprep.subr.mxu0 0.0
        %3438 = vmatpush1.msra.mxu0 0.0
        %3439 = vmatprep.subr.mxu0 0.0
        %3440 = vmatpush1.msra.mxu0 0.0
        %3441 = vmatprep.subr.mxu0 0.0
        %3442 = vmatpush1.msra.mxu0 0.0
        %3443 = vmatprep.subr.mxu0 0.0
        %3444 = vmatpush1.msra.mxu0 0.0
        %3445 = vmatprep.subr.mxu0 0.0
        %3446 = vmatpush1.msra.mxu0 0.0
        %3447 = vmatprep.subr.mxu0 0.0
        %3448 = vmatpush1.msra.mxu0 0.0
        %3449 = vmatprep.subr.mxu0 0.0
        %3450 = vmatpush1.msra.mxu0 0.0
        %3451 = vmatprep.subr.mxu0 0.0
        %3452 = vmatpush1.msra.mxu0 0.0
        %3453 = vmatprep.subr.mxu0 0.0
        %3454 = vmatpush1.msra.mxu0 0.0
        %3455 = vmatprep.subr.mxu0 0.0
        %3456 = vmatpush1.msra.mxu0 0.0
        %3457 = vmatprep.subr.mxu0 0.0
        %3458 = vmatpush1.msra.mxu0 0.0
        %3459 = vmatprep.subr.mxu0 0.0
        %3460 = vmatpush1.msra.mxu0 0.0
        %3461 = vmatprep.subr.mxu0 0.0
        %3462 = vmatpush1.msra.mxu0 0.0
        %3463 = vmatprep.subr.mxu0 0.0
        %3464 = vmatpush1.msra.mxu0 0.0
        %3465 = vmatprep.subr.mxu0 0.0
        %3466 = vmatpush1.msra.mxu0 0.0
        %3467 = vmatprep.subr.mxu0 0.0
        %3468 = vmatpush1.msra.mxu0 0.0
        %3469 = vmatprep.subr.mxu0 0.0
        %3470 = vmatpush1.msra.mxu0 0.0
        %3471 = vmatprep.subr.mxu0 0.0
        %3472 = vmatpush1.msra.mxu0 0.0
        %3473 = vmatprep.subr.mxu0 0.0
        %3474 = vmatpush1.msra.mxu0 0.0
        %3475 = vmatprep.subr.mxu0 0.0
        %3476 = vmatpush1.msra.mxu0 0.0
        %3477 = vmatprep.mubr.f32.mxu0 0.0
        %3478 = vmatmul.mubr.f32.gmra.mrb[0].mxu0 %v1476
        %v3479 = vpop.f32.mrb[0].mxu0
        %v3480 = vadd.f32 0.0, %v3479
        %v3481 = vpop.f32.mrb[0].mxu0
        %3482 = vmatprep.mubr.f32.mxu0 0.0
        %3483 = vmatmul.mubr.f32.gmra.mrb[0].mxu0 %v1479
        %v3484 = vpop.f32.mrb[0].mxu0
        %v3485 = vadd.f32 0.0, %v3484
        %v3486 = vpop.f32.mrb[0].mxu0
        %3487 = vdwg.mxu0
        %v3488 = vpack.c.bf16 %v3485, %v3480
        %v3490 = vsel %vm897, %v3488, 0
        %3492 = vmatprep.subr.bf16.mxu0 0
        %3493 = vmatpush1.bf16.msra.mxu0 %v1562
        %3494 = vmatprep.subr.bf16.mxu0 0
        %3495 = vmatpush1.bf16.msra.mxu0 %v1563
        %3496 = vmatprep.subr.bf16.mxu0 0
        %3497 = vmatpush1.bf16.msra.mxu0 0
        %3498 = vmatprep.subr.bf16.mxu0 0
        %3499 = vmatpush1.bf16.msra.mxu0 0
        %3500 = vmatprep.subr.bf16.mxu0 0
        %3501 = vmatpush1.bf16.msra.mxu0 0
        %3502 = vmatprep.subr.bf16.mxu0 0
        %3503 = vmatpush1.bf16.msra.mxu0 0
        %3504 = vmatprep.subr.bf16.mxu0 0
        %3505 = vmatpush1.bf16.msra.mxu0 0
        %3506 = vmatprep.subr.bf16.mxu0 0
        %3507 = vmatpush1.bf16.msra.mxu0 0
        %3508 = vmatprep.subr.bf16.mxu0 0
        %3509 = vmatpush1.bf16.msra.mxu0 0
        %3510 = vmatprep.subr.bf16.mxu0 0
        %3511 = vmatpush1.bf16.msra.mxu0 0
        %3512 = vmatprep.subr.bf16.mxu0 0
        %3513 = vmatpush1.bf16.msra.mxu0 0
        %3514 = vmatprep.subr.bf16.mxu0 0
        %3515 = vmatpush1.bf16.msra.mxu0 0
        %3516 = vmatprep.subr.bf16.mxu0 0
        %3517 = vmatpush1.bf16.msra.mxu0 0
        %3518 = vmatprep.subr.bf16.mxu0 0
        %3519 = vmatpush1.bf16.msra.mxu0 0
        %3520 = vmatprep.subr.bf16.mxu0 0
        %3521 = vmatpush1.bf16.msra.mxu0 0
        %3522 = vmatprep.subr.bf16.mxu0 0
        %3523 = vmatpush1.bf16.msra.mxu0 0
        %3524 = vmatprep.mubr.bf16.mxu0 0
        %3525 = vmatmul.mubr.bf16.gmra.mrb[0].mxu0 %v3490
        %v3526 = vpop.f32.mrb[0].mxu0
        %v3527 = vadd.f32 0.0, %v3526
        %v3528 = vpop.f32.mrb[0].mxu0
        %v3529 = vpop.f32.mrb[0].mxu0
        %v3530 = vadd.f32 0.0, %v3529
        %v3531 = vpop.f32.mrb[0].mxu0
        %3532 = vdwg.mxu0
        %v3533 = vadd.f32 %v3411, %v3527
        %v3534 = vadd.f32 %v3412, %v3530
        %v3535 = vadd.f32 %v3533, %v936
        %v3536 = vadd.f32 %v3534, %v939
        %v3537 = vxor.u32 %v3535, 2147483648
        %v3538 = vxor.u32 %v3536, 2147483648
        %v3539 = vmul.f32 %v3537, 1.442695
        %v3540 = vpow.pop %v3539
        %v3541 = vmul.f32 %v3538, 1.442695
        %v3542 = vpow.pop %v3541
        %v3543 = vadd.f32 %v3540, 1.0
        %v3544 = vadd.f32 %v3542, 1.0
        %v3545 = vrcp.pop %v3543
        %v3546 = vmul.f32 1.0, %v3545
        %v3547 = vrcp.pop %v3544
        %v3548 = vmul.f32 1.0, %v3547
        %v3549 = vtanh.pop %v3535
        %v3550 = vtanh.pop %v3536
        %3553 = vrot.lane.b32.xlu0 %v3549, 96
        %v3554 = vpop.permute.xlu0 %3553
        %3555 = vrot.lane.b32.xlu0 %v3550, 96
        %v3556 = vpop.permute.xlu0 %3555
        %v3559 = vmul.f32 %v3546, %v3554
        %v3560 = vmul.f32 %v3548, %v3556
        %v3561 = vpack.c.bf16 %v3560, %v3559
        %v3563 = vsel %vm897, %v3561, 0
        %3565 = vmatprep.subr.bf16.mxu0 0
        %3566 = vmatpush1.bf16.msra.mxu0 %v1641
        %3567 = vmatprep.subr.bf16.mxu0 0
        %3568 = vmatpush1.bf16.msra.mxu0 %v1642
        %3569 = vmatprep.subr.bf16.mxu0 0
        %3570 = vmatpush1.bf16.msra.mxu0 0
        %3571 = vmatprep.subr.bf16.mxu0 0
        %3572 = vmatpush1.bf16.msra.mxu0 0
        %3573 = vmatprep.subr.bf16.mxu0 0
        %3574 = vmatpush1.bf16.msra.mxu0 0
        %3575 = vmatprep.subr.bf16.mxu0 0
        %3576 = vmatpush1.bf16.msra.mxu0 0
        %3577 = vmatprep.subr.bf16.mxu0 0
        %3578 = vmatpush1.bf16.msra.mxu0 0
        %3579 = vmatprep.subr.bf16.mxu0 0
        %3580 = vmatpush1.bf16.msra.mxu0 0
        %3581 = vmatprep.subr.bf16.mxu0 0
        %3582 = vmatpush1.bf16.msra.mxu0 0
        %3583 = vmatprep.subr.bf16.mxu0 0
        %3584 = vmatpush1.bf16.msra.mxu0 0
        %3585 = vmatprep.subr.bf16.mxu0 0
        %3586 = vmatpush1.bf16.msra.mxu0 0
        %3587 = vmatprep.subr.bf16.mxu0 0
        %3588 = vmatpush1.bf16.msra.mxu0 0
        %3589 = vmatprep.subr.bf16.mxu0 0
        %3590 = vmatpush1.bf16.msra.mxu0 0
        %3591 = vmatprep.subr.bf16.mxu0 0
        %3592 = vmatpush1.bf16.msra.mxu0 0
        %3593 = vmatprep.subr.bf16.mxu0 0
        %3594 = vmatpush1.bf16.msra.mxu0 0
        %3595 = vmatprep.subr.bf16.mxu0 0
        %3596 = vmatpush1.bf16.msra.mxu0 0
        %3597 = vmatprep.mubr.bf16.mxu0 0
        %3598 = vmatmul.mubr.bf16.gmra.mrb[0].mxu0 %v3563
        %v3599 = vpop.f32.mrb[0].mxu0
        %v3600 = vadd.f32 %v1648, %v3599
        %v3601 = vpop.f32.mrb[0].mxu0
        %v3602 = vpop.f32.mrb[0].mxu0
        %v3603 = vadd.f32 %v1648, %v3602
        %v3604 = vpop.f32.mrb[0].mxu0
        %3605 = vdwg.mxu0
        %v3606 = vadd.f32 %v3238, %v3600
        %v3607 = vadd.f32 %v3239, %v3603
        %v3608 = vmul.f32 %v3606, 0.70710677
        %v3609 = vmul.f32 %v3607, 0.70710677
        %v3610 = vadd.f32 %v3600, 0.0
        %v3611 = vadd.f32 %v3603, 0.0
        %v3612 = vlaneseq
        %v3613 = vshrl.u32 %v3612, 7
        %v3614 = vsub.s32 1, %v3613
        %v3615 = vrot.slane %v1190, %v3614
        %v3616 = vadd.f32 %v3608, %v3615
        %v3617 = vadd.f32 %v3609, %v3615
        %v3618 = vpack.c.bf16 %v3617, %v3616
        %v3620 = vsel %vm897, %v3618, 0
        %3622 = vmatprep.subr.bf16.mxu0 0
        %3623 = vmatpush1.bf16.msra.mxu0 %v1712
        %3624 = vmatprep.subr.bf16.mxu0 0
        %3625 = vmatpush1.bf16.msra.mxu0 %v1713
        %3626 = vmatprep.subr.bf16.mxu0 0
        %3627 = vmatpush1.bf16.msra.mxu0 0
        %3628 = vmatprep.subr.bf16.mxu0 0
        %3629 = vmatpush1.bf16.msra.mxu0 0
        %3630 = vmatprep.subr.bf16.mxu0 0
        %3631 = vmatpush1.bf16.msra.mxu0 0
        %3632 = vmatprep.subr.bf16.mxu0 0
        %3633 = vmatpush1.bf16.msra.mxu0 0
        %3634 = vmatprep.subr.bf16.mxu0 0
        %3635 = vmatpush1.bf16.msra.mxu0 0
        %3636 = vmatprep.subr.bf16.mxu0 0
        %3637 = vmatpush1.bf16.msra.mxu0 0
        %3638 = vmatprep.subr.bf16.mxu0 0
        %3639 = vmatpush1.bf16.msra.mxu0 0
        %3640 = vmatprep.subr.bf16.mxu0 0
        %3641 = vmatpush1.bf16.msra.mxu0 0
        %3642 = vmatprep.subr.bf16.mxu0 0
        %3643 = vmatpush1.bf16.msra.mxu0 0
        %3644 = vmatprep.subr.bf16.mxu0 0
        %3645 = vmatpush1.bf16.msra.mxu0 0
        %3646 = vmatprep.subr.bf16.mxu0 0
        %3647 = vmatpush1.bf16.msra.mxu0 0
        %3648 = vmatprep.subr.bf16.mxu0 0
        %3649 = vmatpush1.bf16.msra.mxu0 0
        %3650 = vmatprep.subr.bf16.mxu0 0
        %3651 = vmatpush1.bf16.msra.mxu0 0
        %3652 = vmatprep.subr.bf16.mxu0 0
        %3653 = vmatpush1.bf16.msra.mxu0 0
        %3654 = vmatprep.mubr.bf16.mxu0 0
        %3655 = vmatmul.mubr.bf16.gmra.mrb[0].mxu0 %v3620
        %v3656 = vpop.f32.mrb[0].mxu0
        %v3657 = vadd.f32 %v1720, %v3656
        %v3658 = vpop.f32.mrb[0].mxu0
        %v3659 = vpop.f32.mrb[0].mxu0
        %v3660 = vadd.f32 %v1720, %v3659
        %v3661 = vpop.f32.mrb[0].mxu0
        %3662 = vdwg.mxu0
        %3663 = vmatprep.subr.mxu0 0.0
        %3664 = vmatpush1.msra.mxu0 %v3616
        %3665 = vmatprep.subr.mxu0 0.0
        %3666 = vmatpush1.msra.mxu0 %v3617
        %3667 = vmatprep.subr.mxu0 0.0
        %3668 = vmatpush1.msra.mxu0 0.0
        %3669 = vmatprep.subr.mxu0 0.0
        %3670 = vmatpush1.msra.mxu0 0.0
        %3671 = vmatprep.subr.mxu0 0.0
        %3672 = vmatpush1.msra.mxu0 0.0
        %3673 = vmatprep.subr.mxu0 0.0
        %3674 = vmatpush1.msra.mxu0 0.0
        %3675 = vmatprep.subr.mxu0 0.0
        %3676 = vmatpush1.msra.mxu0 0.0
        %3677 = vmatprep.subr.mxu0 0.0
        %3678 = vmatpush1.msra.mxu0 0.0
        %3679 = vmatprep.subr.mxu0 0.0
        %3680 = vmatpush1.msra.mxu0 0.0
        %3681 = vmatprep.subr.mxu0 0.0
        %3682 = vmatpush1.msra.mxu0 0.0
        %3683 = vmatprep.subr.mxu0 0.0
        %3684 = vmatpush1.msra.mxu0 0.0
        %3685 = vmatprep.subr.mxu0 0.0
        %3686 = vmatpush1.msra.mxu0 0.0
        %3687 = vmatprep.subr.mxu0 0.0
        %3688 = vmatpush1.msra.mxu0 0.0
        %3689 = vmatprep.subr.mxu0 0.0
        %3690 = vmatpush1.msra.mxu0 0.0
        %3691 = vmatprep.subr.mxu0 0.0
        %3692 = vmatpush1.msra.mxu0 0.0
        %3693 = vmatprep.subr.mxu0 0.0
        %3694 = vmatpush1.msra.mxu0 0.0
        %3695 = vmatprep.subr.mxu0 0.0
        %3696 = vmatpush1.msra.mxu0 0.0
        %3697 = vmatprep.subr.mxu0 0.0
        %3698 = vmatpush1.msra.mxu0 0.0
        %3699 = vmatprep.subr.mxu0 0.0
        %3700 = vmatpush1.msra.mxu0 0.0
        %3701 = vmatprep.subr.mxu0 0.0
        %3702 = vmatpush1.msra.mxu0 0.0
        %3703 = vmatprep.subr.mxu0 0.0
        %3704 = vmatpush1.msra.mxu0 0.0
        %3705 = vmatprep.subr.mxu0 0.0
        %3706 = vmatpush1.msra.mxu0 0.0
        %3707 = vmatprep.subr.mxu0 0.0
        %3708 = vmatpush1.msra.mxu0 0.0
        %3709 = vmatprep.subr.mxu0 0.0
        %3710 = vmatpush1.msra.mxu0 0.0
        %3711 = vmatprep.subr.mxu0 0.0
        %3712 = vmatpush1.msra.mxu0 0.0
        %3713 = vmatprep.subr.mxu0 0.0
        %3714 = vmatpush1.msra.mxu0 0.0
        %3715 = vmatprep.subr.mxu0 0.0
        %3716 = vmatpush1.msra.mxu0 0.0
        %3717 = vmatprep.subr.mxu0 0.0
        %3718 = vmatpush1.msra.mxu0 0.0
        %3719 = vmatprep.subr.mxu0 0.0
        %3720 = vmatpush1.msra.mxu0 0.0
        %3721 = vmatprep.subr.mxu0 0.0
        %3722 = vmatpush1.msra.mxu0 0.0
        %3723 = vmatprep.subr.mxu0 0.0
        %3724 = vmatpush1.msra.mxu0 0.0
        %3725 = vmatprep.subr.mxu0 0.0
        %3726 = vmatpush1.msra.mxu0 0.0
        %3727 = vmatprep.mubr.f32.mxu0 0.0
        %3728 = vmatmul.mubr.f32.gmra.mrb[0].mxu0 %v1334
        %v3729 = vpop.f32.mrb[0].mxu0
        %v3730 = vadd.f32 0.0, %v3729
        %v3731 = vpop.f32.mrb[0].mxu0
        %3732 = vmatprep.mubr.f32.mxu0 0.0
        %3733 = vmatmul.mubr.f32.gmra.mrb[0].mxu0 %v1337
        %v3734 = vpop.f32.mrb[0].mxu0
        %v3735 = vadd.f32 0.0, %v3734
        %v3736 = vpop.f32.mrb[0].mxu0
        %3737 = vdwg.mxu0
        %v3738 = vpack.c.bf16 %v3735, %v3730
        %v3740 = vsel %vm897, %v3738, 0
        %3742 = vmatprep.subr.bf16.mxu0 0
        %3743 = vmatpush1.bf16.msra.mxu0 %v1847
        %3744 = vmatprep.subr.bf16.mxu0 0
        %3745 = vmatpush1.bf16.msra.mxu0 %v1848
        %3746 = vmatprep.subr.bf16.mxu0 0
        %3747 = vmatpush1.bf16.msra.mxu0 0
        %3748 = vmatprep.subr.bf16.mxu0 0
        %3749 = vmatpush1.bf16.msra.mxu0 0
        %3750 = vmatprep.subr.bf16.mxu0 0
        %3751 = vmatpush1.bf16.msra.mxu0 0
        %3752 = vmatprep.subr.bf16.mxu0 0
        %3753 = vmatpush1.bf16.msra.mxu0 0
        %3754 = vmatprep.subr.bf16.mxu0 0
        %3755 = vmatpush1.bf16.msra.mxu0 0
        %3756 = vmatprep.subr.bf16.mxu0 0
        %3757 = vmatpush1.bf16.msra.mxu0 0
        %3758 = vmatprep.subr.bf16.mxu0 0
        %3759 = vmatpush1.bf16.msra.mxu0 0
        %3760 = vmatprep.subr.bf16.mxu0 0
        %3761 = vmatpush1.bf16.msra.mxu0 0
        %3762 = vmatprep.subr.bf16.mxu0 0
        %3763 = vmatpush1.bf16.msra.mxu0 0
        %3764 = vmatprep.subr.bf16.mxu0 0
        %3765 = vmatpush1.bf16.msra.mxu0 0
        %3766 = vmatprep.subr.bf16.mxu0 0
        %3767 = vmatpush1.bf16.msra.mxu0 0
        %3768 = vmatprep.subr.bf16.mxu0 0
        %3769 = vmatpush1.bf16.msra.mxu0 0
        %3770 = vmatprep.subr.bf16.mxu0 0
        %3771 = vmatpush1.bf16.msra.mxu0 0
        %3772 = vmatprep.subr.bf16.mxu0 0
        %3773 = vmatpush1.bf16.msra.mxu0 0
        %3774 = vmatprep.mubr.bf16.mxu0 0
        %3775 = vmatmul.mubr.bf16.gmra.mrb[0].mxu0 %v3740
        %v3776 = vpop.f32.mrb[0].mxu0
        %v3777 = vadd.f32 0.0, %v3776
        %v3778 = vpop.f32.mrb[0].mxu0
        %v3779 = vpop.f32.mrb[0].mxu0
        %v3780 = vadd.f32 0.0, %v3779
        %v3781 = vpop.f32.mrb[0].mxu0
        %3782 = vdwg.mxu0
        %v3783 = vadd.f32 %v3657, %v3777
        %v3784 = vadd.f32 %v3660, %v3780
        %3785 = vmatprep.subr.mxu0 0.0
        %3786 = vmatpush1.msra.mxu0 %v3616
        %3787 = vmatprep.subr.mxu0 0.0
        %3788 = vmatpush1.msra.mxu0 %v3617
        %3789 = vmatprep.subr.mxu0 0.0
        %3790 = vmatpush1.msra.mxu0 0.0
        %3791 = vmatprep.subr.mxu0 0.0
        %3792 = vmatpush1.msra.mxu0 0.0
        %3793 = vmatprep.subr.mxu0 0.0
        %3794 = vmatpush1.msra.mxu0 0.0
        %3795 = vmatprep.subr.mxu0 0.0
        %3796 = vmatpush1.msra.mxu0 0.0
        %3797 = vmatprep.subr.mxu0 0.0
        %3798 = vmatpush1.msra.mxu0 0.0
        %3799 = vmatprep.subr.mxu0 0.0
        %3800 = vmatpush1.msra.mxu0 0.0
        %3801 = vmatprep.subr.mxu0 0.0
        %3802 = vmatpush1.msra.mxu0 0.0
        %3803 = vmatprep.subr.mxu0 0.0
        %3804 = vmatpush1.msra.mxu0 0.0
        %3805 = vmatprep.subr.mxu0 0.0
        %3806 = vmatpush1.msra.mxu0 0.0
        %3807 = vmatprep.subr.mxu0 0.0
        %3808 = vmatpush1.msra.mxu0 0.0
        %3809 = vmatprep.subr.mxu0 0.0
        %3810 = vmatpush1.msra.mxu0 0.0
        %3811 = vmatprep.subr.mxu0 0.0
        %3812 = vmatpush1.msra.mxu0 0.0
        %3813 = vmatprep.subr.mxu0 0.0
        %3814 = vmatpush1.msra.mxu0 0.0
        %3815 = vmatprep.subr.mxu0 0.0
        %3816 = vmatpush1.msra.mxu0 0.0
        %3817 = vmatprep.subr.mxu0 0.0
        %3818 = vmatpush1.msra.mxu0 0.0
        %3819 = vmatprep.subr.mxu0 0.0
        %3820 = vmatpush1.msra.mxu0 0.0
        %3821 = vmatprep.subr.mxu0 0.0
        %3822 = vmatpush1.msra.mxu0 0.0
        %3823 = vmatprep.subr.mxu0 0.0
        %3824 = vmatpush1.msra.mxu0 0.0
        %3825 = vmatprep.subr.mxu0 0.0
        %3826 = vmatpush1.msra.mxu0 0.0
        %3827 = vmatprep.subr.mxu0 0.0
        %3828 = vmatpush1.msra.mxu0 0.0
        %3829 = vmatprep.subr.mxu0 0.0
        %3830 = vmatpush1.msra.mxu0 0.0
        %3831 = vmatprep.subr.mxu0 0.0
        %3832 = vmatpush1.msra.mxu0 0.0
        %3833 = vmatprep.subr.mxu0 0.0
        %3834 = vmatpush1.msra.mxu0 0.0
        %3835 = vmatprep.subr.mxu0 0.0
        %3836 = vmatpush1.msra.mxu0 0.0
        %3837 = vmatprep.subr.mxu0 0.0
        %3838 = vmatpush1.msra.mxu0 0.0
        %3839 = vmatprep.subr.mxu0 0.0
        %3840 = vmatpush1.msra.mxu0 0.0
        %3841 = vmatprep.subr.mxu0 0.0
        %3842 = vmatpush1.msra.mxu0 0.0
        %3843 = vmatprep.subr.mxu0 0.0
        %3844 = vmatpush1.msra.mxu0 0.0
        %3845 = vmatprep.subr.mxu0 0.0
        %3846 = vmatpush1.msra.mxu0 0.0
        %3847 = vmatprep.subr.mxu0 0.0
        %3848 = vmatpush1.msra.mxu0 0.0
        %3849 = vmatprep.mubr.f32.mxu0 0.0
        %3850 = vmatmul.mubr.f32.gmra.mrb[0].mxu0 %v1476
        %v3851 = vpop.f32.mrb[0].mxu0
        %v3852 = vadd.f32 0.0, %v3851
        %v3853 = vpop.f32.mrb[0].mxu0
        %3854 = vmatprep.mubr.f32.mxu0 0.0
        %3855 = vmatmul.mubr.f32.gmra.mrb[0].mxu0 %v1479
        %v3856 = vpop.f32.mrb[0].mxu0
        %v3857 = vadd.f32 0.0, %v3856
        %v3858 = vpop.f32.mrb[0].mxu0
        %3859 = vdwg.mxu0
        %v3860 = vpack.c.bf16 %v3857, %v3852
        %v3862 = vsel %vm897, %v3860, 0
        %3864 = vmatprep.subr.bf16.mxu0 0
        %3865 = vmatpush1.bf16.msra.mxu0 %v1976
        %3866 = vmatprep.subr.bf16.mxu0 0
        %3867 = vmatpush1.bf16.msra.mxu0 %v1977
        %3868 = vmatprep.subr.bf16.mxu0 0
        %3869 = vmatpush1.bf16.msra.mxu0 0
        %3870 = vmatprep.subr.bf16.mxu0 0
        %3871 = vmatpush1.bf16.msra.mxu0 0
        %3872 = vmatprep.subr.bf16.mxu0 0
        %3873 = vmatpush1.bf16.msra.mxu0 0
        %3874 = vmatprep.subr.bf16.mxu0 0
        %3875 = vmatpush1.bf16.msra.mxu0 0
        %3876 = vmatprep.subr.bf16.mxu0 0
        %3877 = vmatpush1.bf16.msra.mxu0 0
        %3878 = vmatprep.subr.bf16.mxu0 0
        %3879 = vmatpush1.bf16.msra.mxu0 0
        %3880 = vmatprep.subr.bf16.mxu0 0
        %3881 = vmatpush1.bf16.msra.mxu0 0
        %3882 = vmatprep.subr.bf16.mxu0 0
        %3883 = vmatpush1.bf16.msra.mxu0 0
        %3884 = vmatprep.subr.bf16.mxu0 0
        %3885 = vmatpush1.bf16.msra.mxu0 0
        %3886 = vmatprep.subr.bf16.mxu0 0
        %3887 = vmatpush1.bf16.msra.mxu0 0
        %3888 = vmatprep.subr.bf16.mxu0 0
        %3889 = vmatpush1.bf16.msra.mxu0 0
        %3890 = vmatprep.subr.bf16.mxu0 0
        %3891 = vmatpush1.bf16.msra.mxu0 0
        %3892 = vmatprep.subr.bf16.mxu0 0
        %3893 = vmatpush1.bf16.msra.mxu0 0
        %3894 = vmatprep.subr.bf16.mxu0 0
        %3895 = vmatpush1.bf16.msra.mxu0 0
        %3896 = vmatprep.mubr.bf16.mxu0 0
        %3897 = vmatmul.mubr.bf16.gmra.mrb[0].mxu0 %v3862
        %v3898 = vpop.f32.mrb[0].mxu0
        %v3899 = vadd.f32 0.0, %v3898
        %v3900 = vpop.f32.mrb[0].mxu0
        %v3901 = vpop.f32.mrb[0].mxu0
        %v3902 = vadd.f32 0.0, %v3901
        %v3903 = vpop.f32.mrb[0].mxu0
        %3904 = vdwg.mxu0
        %v3905 = vadd.f32 %v3783, %v3899
        %v3906 = vadd.f32 %v3784, %v3902
        %v3907 = vadd.f32 %v3905, %v2027
        %v3908 = vadd.f32 %v3906, %v2029
        %v3909 = vxor.u32 %v3907, 2147483648
        %v3910 = vxor.u32 %v3908, 2147483648
        %v3911 = vmul.f32 %v3909, 1.442695
        %v3912 = vpow.pop %v3911
        %v3913 = vmul.f32 %v3910, 1.442695
        %v3914 = vpow.pop %v3913
        %v3915 = vadd.f32 %v3912, 1.0
        %v3916 = vadd.f32 %v3914, 1.0
        %v3917 = vrcp.pop %v3915
        %v3918 = vmul.f32 1.0, %v3917
        %v3919 = vrcp.pop %v3916
        %v3920 = vmul.f32 1.0, %v3919
        %v3921 = vtanh.pop %v3907
        %v3922 = vtanh.pop %v3908
        %3925 = vrot.lane.b32.xlu0 %v3921, 96
        %v3926 = vpop.permute.xlu0 %3925
        %3927 = vrot.lane.b32.xlu0 %v3922, 96
        %v3928 = vpop.permute.xlu0 %3927
        %v3931 = vmul.f32 %v3918, %v3926
        %v3932 = vmul.f32 %v3920, %v3928
        %v3933 = vpack.c.bf16 %v3932, %v3931
        %v3935 = vsel %vm897, %v3933, 0
        %3937 = vmatprep.subr.bf16.mxu0 0
        %3938 = vmatpush1.bf16.msra.mxu0 %v2064
        %3939 = vmatprep.subr.bf16.mxu0 0
        %3940 = vmatpush1.bf16.msra.mxu0 %v2065
        %3941 = vmatprep.subr.bf16.mxu0 0
        %3942 = vmatpush1.bf16.msra.mxu0 0
        %3943 = vmatprep.subr.bf16.mxu0 0
        %3944 = vmatpush1.bf16.msra.mxu0 0
        %3945 = vmatprep.subr.bf16.mxu0 0
        %3946 = vmatpush1.bf16.msra.mxu0 0
        %3947 = vmatprep.subr.bf16.mxu0 0
        %3948 = vmatpush1.bf16.msra.mxu0 0
        %3949 = vmatprep.subr.bf16.mxu0 0
        %3950 = vmatpush1.bf16.msra.mxu0 0
        %3951 = vmatprep.subr.bf16.mxu0 0
        %3952 = vmatpush1.bf16.msra.mxu0 0
        %3953 = vmatprep.subr.bf16.mxu0 0
        %3954 = vmatpush1.bf16.msra.mxu0 0
        %3955 = vmatprep.subr.bf16.mxu0 0
        %3956 = vmatpush1.bf16.msra.mxu0 0
        %3957 = vmatprep.subr.bf16.mxu0 0
        %3958 = vmatpush1.bf16.msra.mxu0 0
        %3959 = vmatprep.subr.bf16.mxu0 0
        %3960 = vmatpush1.bf16.msra.mxu0 0
        %3961 = vmatprep.subr.bf16.mxu0 0
        %3962 = vmatpush1.bf16.msra.mxu0 0
        %3963 = vmatprep.subr.bf16.mxu0 0
        %3964 = vmatpush1.bf16.msra.mxu0 0
        %3965 = vmatprep.subr.bf16.mxu0 0
        %3966 = vmatpush1.bf16.msra.mxu0 0
        %3967 = vmatprep.subr.bf16.mxu0 0
        %3968 = vmatpush1.bf16.msra.mxu0 0
        %3969 = vmatprep.mubr.bf16.mxu0 0
        %3970 = vmatmul.mubr.bf16.gmra.mrb[0].mxu0 %v3935
        %v3971 = vpop.f32.mrb[0].mxu0
        %v3972 = vadd.f32 %v2072, %v3971
        %v3973 = vpop.f32.mrb[0].mxu0
        %v3974 = vpop.f32.mrb[0].mxu0
        %v3975 = vadd.f32 %v2072, %v3974
        %v3976 = vpop.f32.mrb[0].mxu0
        %3977 = vdwg.mxu0
        %v3978 = vadd.f32 %v3610, %v3972
        %v3979 = vadd.f32 %v3611, %v3975
        %v3980 = vmul.f32 %v3978, 0.70710677
        %v3981 = vmul.f32 %v3979, 0.70710677
        %v3982 = vpack.c.bf16 %v3981, %v3980
        %3984 = vrot.lane.b32.xlu0 %v3982, 96
        %v3985 = vpop.permute.xlu0 %3984
        %v3987 = vsel %vm897, %v3985, 0
        %3989 = vmatprep.subr.bf16.mxu0 0
        %3990 = vmatpush1.bf16.msra.mxu0 %v2127
        %3991 = vmatprep.subr.bf16.mxu0 0
        %3992 = vmatpush1.bf16.msra.mxu0 %v2128
        %3993 = vmatprep.subr.bf16.mxu0 0
        %3994 = vmatpush1.bf16.msra.mxu0 0
        %3995 = vmatprep.subr.bf16.mxu0 0
        %3996 = vmatpush1.bf16.msra.mxu0 0
        %3997 = vmatprep.subr.bf16.mxu0 0
        %3998 = vmatpush1.bf16.msra.mxu0 0
        %3999 = vmatprep.subr.bf16.mxu0 0
        %4000 = vmatpush1.bf16.msra.mxu0 0
        %4001 = vmatprep.subr.bf16.mxu0 0
        %4002 = vmatpush1.bf16.msra.mxu0 0
        %4003 = vmatprep.subr.bf16.mxu0 0
        %4004 = vmatpush1.bf16.msra.mxu0 0
        %4005 = vmatprep.subr.bf16.mxu0 0
        %4006 = vmatpush1.bf16.msra.mxu0 0
        %4007 = vmatprep.subr.bf16.mxu0 0
        %4008 = vmatpush1.bf16.msra.mxu0 0
        %4009 = vmatprep.subr.bf16.mxu0 0
        %4010 = vmatpush1.bf16.msra.mxu0 0
        %4011 = vmatprep.subr.bf16.mxu0 0
        %4012 = vmatpush1.bf16.msra.mxu0 0
        %4013 = vmatprep.subr.bf16.mxu0 0
        %4014 = vmatpush1.bf16.msra.mxu0 0
        %4015 = vmatprep.subr.bf16.mxu0 0
        %4016 = vmatpush1.bf16.msra.mxu0 0
        %4017 = vmatprep.subr.bf16.mxu0 0
        %4018 = vmatpush1.bf16.msra.mxu0 0
        %4019 = vmatprep.subr.bf16.mxu0 0
        %4020 = vmatpush1.bf16.msra.mxu0 0
        %4021 = vmatprep.mubr.bf16.mxu0 0
        %4022 = vmatmul.mubr.bf16.gmra.mrb[0].mxu0 %v3987
        %v4023 = vpop.f32.mrb[0].mxu0
        %v4024 = vadd.f32 %v2134, %v4023
        %v4025 = vpop.f32.mrb[0].mxu0
        %v4026 = vpop.f32.mrb[0].mxu0
        %v4027 = vadd.f32 %v2134, %v4026
        %v4028 = vpop.f32.mrb[0].mxu0
        %4029 = vdwg.mxu0
        %v4030 = vmax.f32 %v4024, 0.0
        %v4031 = vmax.f32 %v4027, 0.0
        %v4032 = vpack.c.bf16 %v4031, %v4030
        %v4034 = vsel %vm897, %v4032, 0
        %4036 = vmatprep.subr.bf16.mxu0 0
        %4037 = vmatpush1.bf16.msra.mxu0 %v2190
        %4038 = vmatprep.subr.bf16.mxu0 0
        %4039 = vmatpush1.bf16.msra.mxu0 %v2191
        %4040 = vmatprep.subr.bf16.mxu0 0
        %4041 = vmatpush1.bf16.msra.mxu0 0
        %4042 = vmatprep.subr.bf16.mxu0 0
        %4043 = vmatpush1.bf16.msra.mxu0 0
        %4044 = vmatprep.subr.bf16.mxu0 0
        %4045 = vmatpush1.bf16.msra.mxu0 0
        %4046 = vmatprep.subr.bf16.mxu0 0
        %4047 = vmatpush1.bf16.msra.mxu0 0
        %4048 = vmatprep.subr.bf16.mxu0 0
        %4049 = vmatpush1.bf16.msra.mxu0 0
        %4050 = vmatprep.subr.bf16.mxu0 0
        %4051 = vmatpush1.bf16.msra.mxu0 0
        %4052 = vmatprep.subr.bf16.mxu0 0
        %4053 = vmatpush1.bf16.msra.mxu0 0
        %4054 = vmatprep.subr.bf16.mxu0 0
        %4055 = vmatpush1.bf16.msra.mxu0 0
        %4056 = vmatprep.subr.bf16.mxu0 0
        %4057 = vmatpush1.bf16.msra.mxu0 0
        %4058 = vmatprep.subr.bf16.mxu0 0
        %4059 = vmatpush1.bf16.msra.mxu0 0
        %4060 = vmatprep.subr.bf16.mxu0 0
        %4061 = vmatpush1.bf16.msra.mxu0 0
        %4062 = vmatprep.subr.bf16.mxu0 0
        %4063 = vmatpush1.bf16.msra.mxu0 0
        %4064 = vmatprep.subr.bf16.mxu0 0
        %4065 = vmatpush1.bf16.msra.mxu0 0
        %4066 = vmatprep.subr.bf16.mxu0 0
        %4067 = vmatpush1.bf16.msra.mxu0 0
        %4068 = vmatprep.mubr.bf16.mxu0 0
        %4069 = vmatmul.mubr.bf16.gmra.mrb[0].mxu0 %v4034
        %v4070 = vpop.f32.mrb[0].mxu0
        %v4071 = vadd.f32 %v2197, %v4070
        %v4072 = vpop.f32.mrb[0].mxu0
        %v4073 = vpop.f32.mrb[0].mxu0
        %v4074 = vadd.f32 %v2197, %v4073
        %v4075 = vpop.f32.mrb[0].mxu0
        %4076 = vdwg.mxu0
        %s4077 = sld [smem:[#allocation2 + $0x1]]
        %s4078 = sld [smem:[#allocation2 + $0x81]]
        %s4079 = sld [smem:[#allocation2 + $0x101]]
        %s4080 = sld [smem:[#allocation2 + $0x181]]
        %s4081 = sld [smem:[#allocation2 + $0x201]]
        %v4082 = vstv %s4077
        %v4083 = vmul.f32 %v4082, %v3191
        %v4084 = vmul.f32 %v4082, %v3192
        %v4085 = vstv %s4078
        %v4086 = vmul.f32 %v4085, %v4071
        %v4087 = vmul.f32 %v4085, %v4074
        %v4088 = vsub.f32 %v4083, %v4086
        %v4089 = vsub.f32 %v4084, %v4087
        %v4090 = vmax.f32 %v4088, -1.0
        %v4091 = vmax.f32 %v4089, -1.0
        %v4092 = vmin.f32 %v4090, 1.0
        %v4093 = vmin.f32 %v4091, 1.0
        %v4094 = vstv %s4079
        %v4095 = vmul.f32 %v4094, %v4092
        %v4096 = vmul.f32 %v4094, %v4093
        %v4097 = vstv %s4080
        %v4098 = vmul.f32 %v4097, %v3191
        %v4099 = vmul.f32 %v4097, %v3192
        %v4100 = vadd.f32 %v4095, %v4098
        %v4101 = vadd.f32 %v4096, %v4099
        %s4102 = scalar_lea.vmem %s794, 16 [#allocation5]
        %v4103 = vld [vmem:[%s4102] sm:$0xff]
        %v4104 = vld [vmem:[%s4102 + $0x8] sm:$0xff]
        %v4105 = vstv %s4081
        %v4106 = vmul.f32 %v4105, %v4103
        %v4107 = vmul.f32 %v4105, %v4104
        %v4108 = vadd.f32 %v4100, %v4106
        %v4109 = vadd.f32 %v4101, %v4107
        %v4110 = vpack.c.bf16 %v4109, %v4108
        %v4112 = vsel %vm1213, %v4110, 0
        %4114 = vmatprep.subr.bf16.mxu0 0
        %4115 = vmatpush1.bf16.msra.mxu0 %v1205
        %4116 = vmatprep.subr.bf16.mxu0 0
        %4117 = vmatpush1.bf16.msra.mxu0 0
        %4118 = vmatprep.subr.bf16.mxu0 0
        %4119 = vmatpush1.bf16.msra.mxu0 0
        %4120 = vmatprep.subr.bf16.mxu0 0
        %4121 = vmatpush1.bf16.msra.mxu0 0
        %4122 = vmatprep.subr.bf16.mxu0 0
        %4123 = vmatpush1.bf16.msra.mxu0 0
        %4124 = vmatprep.subr.bf16.mxu0 0
        %4125 = vmatpush1.bf16.msra.mxu0 0
        %4126 = vmatprep.subr.bf16.mxu0 0
        %4127 = vmatpush1.bf16.msra.mxu0 0
        %4128 = vmatprep.subr.bf16.mxu0 0
        %4129 = vmatpush1.bf16.msra.mxu0 0
        %4130 = vmatprep.subr.bf16.mxu0 0
        %4131 = vmatpush1.bf16.msra.mxu0 0
        %4132 = vmatprep.subr.bf16.mxu0 0
        %4133 = vmatpush1.bf16.msra.mxu0 0
        %4134 = vmatprep.subr.bf16.mxu0 0
        %4135 = vmatpush1.bf16.msra.mxu0 0
        %4136 = vmatprep.subr.bf16.mxu0 0
        %4137 = vmatpush1.bf16.msra.mxu0 0
        %4138 = vmatprep.subr.bf16.mxu0 0
        %4139 = vmatpush1.bf16.msra.mxu0 0
        %4140 = vmatprep.subr.bf16.mxu0 0
        %4141 = vmatpush1.bf16.msra.mxu0 0
        %4142 = vmatprep.subr.bf16.mxu0 0
        %4143 = vmatpush1.bf16.msra.mxu0 0
        %4144 = vmatprep.subr.bf16.mxu0 0
        %4145 = vmatpush1.bf16.msra.mxu0 0
        %4146 = vmatprep.mubr.bf16.mxu0 0
        %4147 = vmatmul.mubr.bf16.gmra.mrb[0].mxu0 %v4112
        %v4148 = vpop.f32.mrb[0].mxu0
        %v4149 = vadd.f32 %v1211, %v4148
        %v4150 = vpop.f32.mrb[0].mxu0
        %v4151 = vpop.f32.mrb[0].mxu0
        %v4152 = vadd.f32 %v1211, %v4151
        %v4153 = vpop.f32.mrb[0].mxu0
        %4154 = vdwg.mxu0
        %v4155 = vmax.f32 %v4149, 0.0
        %v4156 = vmax.f32 %v4152, 0.0
        %v4157 = vlaneseq
        %v4158 = vshrl.u32 %v4157, 7
        %v4159 = vsub.s32 0, %v4158
        %v4160 = vrot.slane %v1135, %v4159
        %v4161 = vadd.f32 %v4155, %v4160
        %v4162 = vadd.f32 %v4156, %v4160
        %v4163 = vpack.c.bf16 %v4162, %v4161
        %v4165 = vsel %vm897, %v4163, 0
        %4167 = vmatprep.subr.bf16.mxu0 0
        %4168 = vmatpush1.bf16.msra.mxu0 %v1272
        %4169 = vmatprep.subr.bf16.mxu0 0
        %4170 = vmatpush1.bf16.msra.mxu0 %v1273
        %4171 = vmatprep.subr.bf16.mxu0 0
        %4172 = vmatpush1.bf16.msra.mxu0 0
        %4173 = vmatprep.subr.bf16.mxu0 0
        %4174 = vmatpush1.bf16.msra.mxu0 0
        %4175 = vmatprep.subr.bf16.mxu0 0
        %4176 = vmatpush1.bf16.msra.mxu0 0
        %4177 = vmatprep.subr.bf16.mxu0 0
        %4178 = vmatpush1.bf16.msra.mxu0 0
        %4179 = vmatprep.subr.bf16.mxu0 0
        %4180 = vmatpush1.bf16.msra.mxu0 0
        %4181 = vmatprep.subr.bf16.mxu0 0
        %4182 = vmatpush1.bf16.msra.mxu0 0
        %4183 = vmatprep.subr.bf16.mxu0 0
        %4184 = vmatpush1.bf16.msra.mxu0 0
        %4185 = vmatprep.subr.bf16.mxu0 0
        %4186 = vmatpush1.bf16.msra.mxu0 0
        %4187 = vmatprep.subr.bf16.mxu0 0
        %4188 = vmatpush1.bf16.msra.mxu0 0
        %4189 = vmatprep.subr.bf16.mxu0 0
        %4190 = vmatpush1.bf16.msra.mxu0 0
        %4191 = vmatprep.subr.bf16.mxu0 0
        %4192 = vmatpush1.bf16.msra.mxu0 0
        %4193 = vmatprep.subr.bf16.mxu0 0
        %4194 = vmatpush1.bf16.msra.mxu0 0
        %4195 = vmatprep.subr.bf16.mxu0 0
        %4196 = vmatpush1.bf16.msra.mxu0 0
        %4197 = vmatprep.subr.bf16.mxu0 0
        %4198 = vmatpush1.bf16.msra.mxu0 0
        %4199 = vmatprep.mubr.bf16.mxu0 0
        %4200 = vmatmul.mubr.bf16.gmra.mrb[0].mxu0 %v4165
        %v4201 = vpop.f32.mrb[0].mxu0
        %v4202 = vadd.f32 %v1279, %v4201
        %v4203 = vpop.f32.mrb[0].mxu0
        %v4204 = vpop.f32.mrb[0].mxu0
        %v4205 = vadd.f32 %v1279, %v4204
        %v4206 = vpop.f32.mrb[0].mxu0
        %4207 = vdwg.mxu0
        %4208 = vmatprep.subr.mxu0 0.0
        %4209 = vmatpush1.msra.mxu0 %v4161
        %4210 = vmatprep.subr.mxu0 0.0
        %4211 = vmatpush1.msra.mxu0 %v4162
        %4212 = vmatprep.subr.mxu0 0.0
        %4213 = vmatpush1.msra.mxu0 0.0
        %4214 = vmatprep.subr.mxu0 0.0
        %4215 = vmatpush1.msra.mxu0 0.0
        %4216 = vmatprep.subr.mxu0 0.0
        %4217 = vmatpush1.msra.mxu0 0.0
        %4218 = vmatprep.subr.mxu0 0.0
        %4219 = vmatpush1.msra.mxu0 0.0
        %4220 = vmatprep.subr.mxu0 0.0
        %4221 = vmatpush1.msra.mxu0 0.0
        %4222 = vmatprep.subr.mxu0 0.0
        %4223 = vmatpush1.msra.mxu0 0.0
        %4224 = vmatprep.subr.mxu0 0.0
        %4225 = vmatpush1.msra.mxu0 0.0
        %4226 = vmatprep.subr.mxu0 0.0
        %4227 = vmatpush1.msra.mxu0 0.0
        %4228 = vmatprep.subr.mxu0 0.0
        %4229 = vmatpush1.msra.mxu0 0.0
        %4230 = vmatprep.subr.mxu0 0.0
        %4231 = vmatpush1.msra.mxu0 0.0
        %4232 = vmatprep.subr.mxu0 0.0
        %4233 = vmatpush1.msra.mxu0 0.0
        %4234 = vmatprep.subr.mxu0 0.0
        %4235 = vmatpush1.msra.mxu0 0.0
        %4236 = vmatprep.subr.mxu0 0.0
        %4237 = vmatpush1.msra.mxu0 0.0
        %4238 = vmatprep.subr.mxu0 0.0
        %4239 = vmatpush1.msra.mxu0 0.0
        %4240 = vmatprep.subr.mxu0 0.0
        %4241 = vmatpush1.msra.mxu0 0.0
        %4242 = vmatprep.subr.mxu0 0.0
        %4243 = vmatpush1.msra.mxu0 0.0
        %4244 = vmatprep.subr.mxu0 0.0
        %4245 = vmatpush1.msra.mxu0 0.0
        %4246 = vmatprep.subr.mxu0 0.0
        %4247 = vmatpush1.msra.mxu0 0.0
        %4248 = vmatprep.subr.mxu0 0.0
        %4249 = vmatpush1.msra.mxu0 0.0
        %4250 = vmatprep.subr.mxu0 0.0
        %4251 = vmatpush1.msra.mxu0 0.0
        %4252 = vmatprep.subr.mxu0 0.0
        %4253 = vmatpush1.msra.mxu0 0.0
        %4254 = vmatprep.subr.mxu0 0.0
        %4255 = vmatpush1.msra.mxu0 0.0
        %4256 = vmatprep.subr.mxu0 0.0
        %4257 = vmatpush1.msra.mxu0 0.0
        %4258 = vmatprep.subr.mxu0 0.0
        %4259 = vmatpush1.msra.mxu0 0.0
        %4260 = vmatprep.subr.mxu0 0.0
        %4261 = vmatpush1.msra.mxu0 0.0
        %4262 = vmatprep.subr.mxu0 0.0
        %4263 = vmatpush1.msra.mxu0 0.0
        %4264 = vmatprep.subr.mxu0 0.0
        %4265 = vmatpush1.msra.mxu0 0.0
        %4266 = vmatprep.subr.mxu0 0.0
        %4267 = vmatpush1.msra.mxu0 0.0
        %4268 = vmatprep.subr.mxu0 0.0
        %4269 = vmatpush1.msra.mxu0 0.0
        %4270 = vmatprep.subr.mxu0 0.0
        %4271 = vmatpush1.msra.mxu0 0.0
        %4272 = vmatprep.mubr.f32.mxu0 0.0
        %4273 = vmatmul.mubr.f32.gmra.mrb[0].mxu0 %v1334
        %v4274 = vpop.f32.mrb[0].mxu0
        %v4275 = vadd.f32 0.0, %v4274
        %v4276 = vpop.f32.mrb[0].mxu0
        %4277 = vmatprep.mubr.f32.mxu0 0.0
        %4278 = vmatmul.mubr.f32.gmra.mrb[0].mxu0 %v1337
        %v4279 = vpop.f32.mrb[0].mxu0
        %v4280 = vadd.f32 0.0, %v4279
        %v4281 = vpop.f32.mrb[0].mxu0
        %4282 = vdwg.mxu0
        %v4283 = vpack.c.bf16 %v4280, %v4275
        %v4285 = vsel %vm897, %v4283, 0
        %4287 = vmatprep.subr.bf16.mxu0 0
        %4288 = vmatpush1.bf16.msra.mxu0 %v1419
        %4289 = vmatprep.subr.bf16.mxu0 0
        %4290 = vmatpush1.bf16.msra.mxu0 %v1420
        %4291 = vmatprep.subr.bf16.mxu0 0
        %4292 = vmatpush1.bf16.msra.mxu0 0
        %4293 = vmatprep.subr.bf16.mxu0 0
        %4294 = vmatpush1.bf16.msra.mxu0 0
        %4295 = vmatprep.subr.bf16.mxu0 0
        %4296 = vmatpush1.bf16.msra.mxu0 0
        %4297 = vmatprep.subr.bf16.mxu0 0
        %4298 = vmatpush1.bf16.msra.mxu0 0
        %4299 = vmatprep.subr.bf16.mxu0 0
        %4300 = vmatpush1.bf16.msra.mxu0 0
        %4301 = vmatprep.subr.bf16.mxu0 0
        %4302 = vmatpush1.bf16.msra.mxu0 0
        %4303 = vmatprep.subr.bf16.mxu0 0
        %4304 = vmatpush1.bf16.msra.mxu0 0
        %4305 = vmatprep.subr.bf16.mxu0 0
        %4306 = vmatpush1.bf16.msra.mxu0 0
        %4307 = vmatprep.subr.bf16.mxu0 0
        %4308 = vmatpush1.bf16.msra.mxu0 0
        %4309 = vmatprep.subr.bf16.mxu0 0
        %4310 = vmatpush1.bf16.msra.mxu0 0
        %4311 = vmatprep.subr.bf16.mxu0 0
        %4312 = vmatpush1.bf16.msra.mxu0 0
        %4313 = vmatprep.subr.bf16.mxu0 0
        %4314 = vmatpush1.bf16.msra.mxu0 0
        %4315 = vmatprep.subr.bf16.mxu0 0
        %4316 = vmatpush1.bf16.msra.mxu0 0
        %4317 = vmatprep.subr.bf16.mxu0 0
        %4318 = vmatpush1.bf16.msra.mxu0 0
        %4319 = vmatprep.mubr.bf16.mxu0 0
        %4320 = vmatmul.mubr.bf16.gmra.mrb[0].mxu0 %v4285
        %v4321 = vpop.f32.mrb[0].mxu0
        %v4322 = vadd.f32 0.0, %v4321
        %v4323 = vpop.f32.mrb[0].mxu0
        %v4324 = vpop.f32.mrb[0].mxu0
        %v4325 = vadd.f32 0.0, %v4324
        %v4326 = vpop.f32.mrb[0].mxu0
        %4327 = vdwg.mxu0
        %v4328 = vadd.f32 %v4202, %v4322
        %v4329 = vadd.f32 %v4205, %v4325
        %4330 = vmatprep.subr.mxu0 0.0
        %4331 = vmatpush1.msra.mxu0 %v4161
        %4332 = vmatprep.subr.mxu0 0.0
        %4333 = vmatpush1.msra.mxu0 %v4162
        %4334 = vmatprep.subr.mxu0 0.0
        %4335 = vmatpush1.msra.mxu0 0.0
        %4336 = vmatprep.subr.mxu0 0.0
        %4337 = vmatpush1.msra.mxu0 0.0
        %4338 = vmatprep.subr.mxu0 0.0
        %4339 = vmatpush1.msra.mxu0 0.0
        %4340 = vmatprep.subr.mxu0 0.0
        %4341 = vmatpush1.msra.mxu0 0.0
        %4342 = vmatprep.subr.mxu0 0.0
        %4343 = vmatpush1.msra.mxu0 0.0
        %4344 = vmatprep.subr.mxu0 0.0
        %4345 = vmatpush1.msra.mxu0 0.0
        %4346 = vmatprep.subr.mxu0 0.0
        %4347 = vmatpush1.msra.mxu0 0.0
        %4348 = vmatprep.subr.mxu0 0.0
        %4349 = vmatpush1.msra.mxu0 0.0
        %4350 = vmatprep.subr.mxu0 0.0
        %4351 = vmatpush1.msra.mxu0 0.0
        %4352 = vmatprep.subr.mxu0 0.0
        %4353 = vmatpush1.msra.mxu0 0.0
        %4354 = vmatprep.subr.mxu0 0.0
        %4355 = vmatpush1.msra.mxu0 0.0
        %4356 = vmatprep.subr.mxu0 0.0
        %4357 = vmatpush1.msra.mxu0 0.0
        %4358 = vmatprep.subr.mxu0 0.0
        %4359 = vmatpush1.msra.mxu0 0.0
        %4360 = vmatprep.subr.mxu0 0.0
        %4361 = vmatpush1.msra.mxu0 0.0
        %4362 = vmatprep.subr.mxu0 0.0
        %4363 = vmatpush1.msra.mxu0 0.0
        %4364 = vmatprep.subr.mxu0 0.0
        %4365 = vmatpush1.msra.mxu0 0.0
        %4366 = vmatprep.subr.mxu0 0.0
        %4367 = vmatpush1.msra.mxu0 0.0
        %4368 = vmatprep.subr.mxu0 0.0
        %4369 = vmatpush1.msra.mxu0 0.0
        %4370 = vmatprep.subr.mxu0 0.0
        %4371 = vmatpush1.msra.mxu0 0.0
        %4372 = vmatprep.subr.mxu0 0.0
        %4373 = vmatpush1.msra.mxu0 0.0
        %4374 = vmatprep.subr.mxu0 0.0
        %4375 = vmatpush1.msra.mxu0 0.0
        %4376 = vmatprep.subr.mxu0 0.0
        %4377 = vmatpush1.msra.mxu0 0.0
        %4378 = vmatprep.subr.mxu0 0.0
        %4379 = vmatpush1.msra.mxu0 0.0
        %4380 = vmatprep.subr.mxu0 0.0
        %4381 = vmatpush1.msra.mxu0 0.0
        %4382 = vmatprep.subr.mxu0 0.0
        %4383 = vmatpush1.msra.mxu0 0.0
        %4384 = vmatprep.subr.mxu0 0.0
        %4385 = vmatpush1.msra.mxu0 0.0
        %4386 = vmatprep.subr.mxu0 0.0
        %4387 = vmatpush1.msra.mxu0 0.0
        %4388 = vmatprep.subr.mxu0 0.0
        %4389 = vmatpush1.msra.mxu0 0.0
        %4390 = vmatprep.subr.mxu0 0.0
        %4391 = vmatpush1.msra.mxu0 0.0
        %4392 = vmatprep.subr.mxu0 0.0
        %4393 = vmatpush1.msra.mxu0 0.0
        %4394 = vmatprep.mubr.f32.mxu0 0.0
        %4395 = vmatmul.mubr.f32.gmra.mrb[0].mxu0 %v1476
        %v4396 = vpop.f32.mrb[0].mxu0
        %v4397 = vadd.f32 0.0, %v4396
        %v4398 = vpop.f32.mrb[0].mxu0
        %4399 = vmatprep.mubr.f32.mxu0 0.0
        %4400 = vmatmul.mubr.f32.gmra.mrb[0].mxu0 %v1479
        %v4401 = vpop.f32.mrb[0].mxu0
        %v4402 = vadd.f32 0.0, %v4401
        %v4403 = vpop.f32.mrb[0].mxu0
        %4404 = vdwg.mxu0
        %v4405 = vpack.c.bf16 %v4402, %v4397
        %v4407 = vsel %vm897, %v4405, 0
        %4409 = vmatprep.subr.bf16.mxu0 0
        %4410 = vmatpush1.bf16.msra.mxu0 %v1562
        %4411 = vmatprep.subr.bf16.mxu0 0
        %4412 = vmatpush1.bf16.msra.mxu0 %v1563
        %4413 = vmatprep.subr.bf16.mxu0 0
        %4414 = vmatpush1.bf16.msra.mxu0 0
        %4415 = vmatprep.subr.bf16.mxu0 0
        %4416 = vmatpush1.bf16.msra.mxu0 0
        %4417 = vmatprep.subr.bf16.mxu0 0
        %4418 = vmatpush1.bf16.msra.mxu0 0
        %4419 = vmatprep.subr.bf16.mxu0 0
        %4420 = vmatpush1.bf16.msra.mxu0 0
        %4421 = vmatprep.subr.bf16.mxu0 0
        %4422 = vmatpush1.bf16.msra.mxu0 0
        %4423 = vmatprep.subr.bf16.mxu0 0
        %4424 = vmatpush1.bf16.msra.mxu0 0
        %4425 = vmatprep.subr.bf16.mxu0 0
        %4426 = vmatpush1.bf16.msra.mxu0 0
        %4427 = vmatprep.subr.bf16.mxu0 0
        %4428 = vmatpush1.bf16.msra.mxu0 0
        %4429 = vmatprep.subr.bf16.mxu0 0
        %4430 = vmatpush1.bf16.msra.mxu0 0
        %4431 = vmatprep.subr.bf16.mxu0 0
        %4432 = vmatpush1.bf16.msra.mxu0 0
        %4433 = vmatprep.subr.bf16.mxu0 0
        %4434 = vmatpush1.bf16.msra.mxu0 0
        %4435 = vmatprep.subr.bf16.mxu0 0
        %4436 = vmatpush1.bf16.msra.mxu0 0
        %4437 = vmatprep.subr.bf16.mxu0 0
        %4438 = vmatpush1.bf16.msra.mxu0 0
        %4439 = vmatprep.subr.bf16.mxu0 0
        %4440 = vmatpush1.bf16.msra.mxu0 0
        %4441 = vmatprep.mubr.bf16.mxu0 0
        %4442 = vmatmul.mubr.bf16.gmra.mrb[0].mxu0 %v4407
        %v4443 = vpop.f32.mrb[0].mxu0
        %v4444 = vadd.f32 0.0, %v4443
        %v4445 = vpop.f32.mrb[0].mxu0
        %v4446 = vpop.f32.mrb[0].mxu0
        %v4447 = vadd.f32 0.0, %v4446
        %v4448 = vpop.f32.mrb[0].mxu0
        %4449 = vdwg.mxu0
        %v4450 = vadd.f32 %v4328, %v4444
        %v4451 = vadd.f32 %v4329, %v4447
        %v4452 = vadd.f32 %v4450, %v936
        %v4453 = vadd.f32 %v4451, %v939
        %v4454 = vxor.u32 %v4452, 2147483648
        %v4455 = vxor.u32 %v4453, 2147483648
        %v4456 = vmul.f32 %v4454, 1.442695
        %v4457 = vpow.pop %v4456
        %v4458 = vmul.f32 %v4455, 1.442695
        %v4459 = vpow.pop %v4458
        %v4460 = vadd.f32 %v4457, 1.0
        %v4461 = vadd.f32 %v4459, 1.0
        %v4462 = vrcp.pop %v4460
        %v4463 = vmul.f32 1.0, %v4462
        %v4464 = vrcp.pop %v4461
        %v4465 = vmul.f32 1.0, %v4464
        %v4466 = vtanh.pop %v4452
        %v4467 = vtanh.pop %v4453
        %4470 = vrot.lane.b32.xlu0 %v4466, 96
        %v4471 = vpop.permute.xlu0 %4470
        %4472 = vrot.lane.b32.xlu0 %v4467, 96
        %v4473 = vpop.permute.xlu0 %4472
        %v4476 = vmul.f32 %v4463, %v4471
        %v4477 = vmul.f32 %v4465, %v4473
        %v4478 = vpack.c.bf16 %v4477, %v4476
        %v4480 = vsel %vm897, %v4478, 0
        %4482 = vmatprep.subr.bf16.mxu0 0
        %4483 = vmatpush1.bf16.msra.mxu0 %v1641
        %4484 = vmatprep.subr.bf16.mxu0 0
        %4485 = vmatpush1.bf16.msra.mxu0 %v1642
        %4486 = vmatprep.subr.bf16.mxu0 0
        %4487 = vmatpush1.bf16.msra.mxu0 0
        %4488 = vmatprep.subr.bf16.mxu0 0
        %4489 = vmatpush1.bf16.msra.mxu0 0
        %4490 = vmatprep.subr.bf16.mxu0 0
        %4491 = vmatpush1.bf16.msra.mxu0 0
        %4492 = vmatprep.subr.bf16.mxu0 0
        %4493 = vmatpush1.bf16.msra.mxu0 0
        %4494 = vmatprep.subr.bf16.mxu0 0
        %4495 = vmatpush1.bf16.msra.mxu0 0
        %4496 = vmatprep.subr.bf16.mxu0 0
        %4497 = vmatpush1.bf16.msra.mxu0 0
        %4498 = vmatprep.subr.bf16.mxu0 0
        %4499 = vmatpush1.bf16.msra.mxu0 0
        %4500 = vmatprep.subr.bf16.mxu0 0
        %4501 = vmatpush1.bf16.msra.mxu0 0
        %4502 = vmatprep.subr.bf16.mxu0 0
        %4503 = vmatpush1.bf16.msra.mxu0 0
        %4504 = vmatprep.subr.bf16.mxu0 0
        %4505 = vmatpush1.bf16.msra.mxu0 0
        %4506 = vmatprep.subr.bf16.mxu0 0
        %4507 = vmatpush1.bf16.msra.mxu0 0
        %4508 = vmatprep.subr.bf16.mxu0 0
        %4509 = vmatpush1.bf16.msra.mxu0 0
        %4510 = vmatprep.subr.bf16.mxu0 0
        %4511 = vmatpush1.bf16.msra.mxu0 0
        %4512 = vmatprep.subr.bf16.mxu0 0
        %4513 = vmatpush1.bf16.msra.mxu0 0
        %4514 = vmatprep.mubr.bf16.mxu0 0
        %4515 = vmatmul.mubr.bf16.gmra.mrb[0].mxu0 %v4480
        %v4516 = vpop.f32.mrb[0].mxu0
        %v4517 = vadd.f32 %v1648, %v4516
        %v4518 = vpop.f32.mrb[0].mxu0
        %v4519 = vpop.f32.mrb[0].mxu0
        %v4520 = vadd.f32 %v1648, %v4519
        %v4521 = vpop.f32.mrb[0].mxu0
        %4522 = vdwg.mxu0
        %v4523 = vadd.f32 %v4155, %v4517
        %v4524 = vadd.f32 %v4156, %v4520
        %v4525 = vmul.f32 %v4523, 0.70710677
        %v4526 = vmul.f32 %v4524, 0.70710677
        %v4527 = vadd.f32 %v4517, 0.0
        %v4528 = vadd.f32 %v4520, 0.0
        %v4529 = vlaneseq
        %v4530 = vshrl.u32 %v4529, 7
        %v4531 = vsub.s32 0, %v4530
        %v4532 = vrot.slane %v1190, %v4531
        %v4533 = vadd.f32 %v4525, %v4532
        %v4534 = vadd.f32 %v4526, %v4532
        %v4535 = vpack.c.bf16 %v4534, %v4533
        %v4537 = vsel %vm897, %v4535, 0
        %4539 = vmatprep.subr.bf16.mxu0 0
        %4540 = vmatpush1.bf16.msra.mxu0 %v1712
        %4541 = vmatprep.subr.bf16.mxu0 0
        %4542 = vmatpush1.bf16.msra.mxu0 %v1713
        %4543 = vmatprep.subr.bf16.mxu0 0
        %4544 = vmatpush1.bf16.msra.mxu0 0
        %4545 = vmatprep.subr.bf16.mxu0 0
        %4546 = vmatpush1.bf16.msra.mxu0 0
        %4547 = vmatprep.subr.bf16.mxu0 0
        %4548 = vmatpush1.bf16.msra.mxu0 0
        %4549 = vmatprep.subr.bf16.mxu0 0
        %4550 = vmatpush1.bf16.msra.mxu0 0
        %4551 = vmatprep.subr.bf16.mxu0 0
        %4552 = vmatpush1.bf16.msra.mxu0 0
        %4553 = vmatprep.subr.bf16.mxu0 0
        %4554 = vmatpush1.bf16.msra.mxu0 0
        %4555 = vmatprep.subr.bf16.mxu0 0
        %4556 = vmatpush1.bf16.msra.mxu0 0
        %4557 = vmatprep.subr.bf16.mxu0 0
        %4558 = vmatpush1.bf16.msra.mxu0 0
        %4559 = vmatprep.subr.bf16.mxu0 0
        %4560 = vmatpush1.bf16.msra.mxu0 0
        %4561 = vmatprep.subr.bf16.mxu0 0
        %4562 = vmatpush1.bf16.msra.mxu0 0
        %4563 = vmatprep.subr.bf16.mxu0 0
        %4564 = vmatpush1.bf16.msra.mxu0 0
        %4565 = vmatprep.subr.bf16.mxu0 0
        %4566 = vmatpush1.bf16.msra.mxu0 0
        %4567 = vmatprep.subr.bf16.mxu0 0
        %4568 = vmatpush1.bf16.msra.mxu0 0
        %4569 = vmatprep.subr.bf16.mxu0 0
        %4570 = vmatpush1.bf16.msra.mxu0 0
        %4571 = vmatprep.mubr.bf16.mxu0 0
        %4572 = vmatmul.mubr.bf16.gmra.mrb[0].mxu0 %v4537
        %v4573 = vpop.f32.mrb[0].mxu0
        %v4574 = vadd.f32 %v1720, %v4573
        %v4575 = vpop.f32.mrb[0].mxu0
        %v4576 = vpop.f32.mrb[0].mxu0
        %v4577 = vadd.f32 %v1720, %v4576
        %v4578 = vpop.f32.mrb[0].mxu0
        %4579 = vdwg.mxu0
        %4580 = vmatprep.subr.mxu0 0.0
        %4581 = vmatpush1.msra.mxu0 %v4533
        %4582 = vmatprep.subr.mxu0 0.0
        %4583 = vmatpush1.msra.mxu0 %v4534
        %4584 = vmatprep.subr.mxu0 0.0
        %4585 = vmatpush1.msra.mxu0 0.0
        %4586 = vmatprep.subr.mxu0 0.0
        %4587 = vmatpush1.msra.mxu0 0.0
        %4588 = vmatprep.subr.mxu0 0.0
        %4589 = vmatpush1.msra.mxu0 0.0
        %4590 = vmatprep.subr.mxu0 0.0
        %4591 = vmatpush1.msra.mxu0 0.0
        %4592 = vmatprep.subr.mxu0 0.0
        %4593 = vmatpush1.msra.mxu0 0.0
        %4594 = vmatprep.subr.mxu0 0.0
        %4595 = vmatpush1.msra.mxu0 0.0
        %4596 = vmatprep.subr.mxu0 0.0
        %4597 = vmatpush1.msra.mxu0 0.0
        %4598 = vmatprep.subr.mxu0 0.0
        %4599 = vmatpush1.msra.mxu0 0.0
        %4600 = vmatprep.subr.mxu0 0.0
        %4601 = vmatpush1.msra.mxu0 0.0
        %4602 = vmatprep.subr.mxu0 0.0
        %4603 = vmatpush1.msra.mxu0 0.0
        %4604 = vmatprep.subr.mxu0 0.0
        %4605 = vmatpush1.msra.mxu0 0.0
        %4606 = vmatprep.subr.mxu0 0.0
        %4607 = vmatpush1.msra.mxu0 0.0
        %4608 = vmatprep.subr.mxu0 0.0
        %4609 = vmatpush1.msra.mxu0 0.0
        %4610 = vmatprep.subr.mxu0 0.0
        %4611 = vmatpush1.msra.mxu0 0.0
        %4612 = vmatprep.subr.mxu0 0.0
        %4613 = vmatpush1.msra.mxu0 0.0
        %4614 = vmatprep.subr.mxu0 0.0
        %4615 = vmatpush1.msra.mxu0 0.0
        %4616 = vmatprep.subr.mxu0 0.0
        %4617 = vmatpush1.msra.mxu0 0.0
        %4618 = vmatprep.subr.mxu0 0.0
        %4619 = vmatpush1.msra.mxu0 0.0
        %4620 = vmatprep.subr.mxu0 0.0
        %4621 = vmatpush1.msra.mxu0 0.0
        %4622 = vmatprep.subr.mxu0 0.0
        %4623 = vmatpush1.msra.mxu0 0.0
        %4624 = vmatprep.subr.mxu0 0.0
        %4625 = vmatpush1.msra.mxu0 0.0
        %4626 = vmatprep.subr.mxu0 0.0
        %4627 = vmatpush1.msra.mxu0 0.0
        %4628 = vmatprep.subr.mxu0 0.0
        %4629 = vmatpush1.msra.mxu0 0.0
        %4630 = vmatprep.subr.mxu0 0.0
        %4631 = vmatpush1.msra.mxu0 0.0
        %4632 = vmatprep.subr.mxu0 0.0
        %4633 = vmatpush1.msra.mxu0 0.0
        %4634 = vmatprep.subr.mxu0 0.0
        %4635 = vmatpush1.msra.mxu0 0.0
        %4636 = vmatprep.subr.mxu0 0.0
        %4637 = vmatpush1.msra.mxu0 0.0
        %4638 = vmatprep.subr.mxu0 0.0
        %4639 = vmatpush1.msra.mxu0 0.0
        %4640 = vmatprep.subr.mxu0 0.0
        %4641 = vmatpush1.msra.mxu0 0.0
        %4642 = vmatprep.subr.mxu0 0.0
        %4643 = vmatpush1.msra.mxu0 0.0
        %4644 = vmatprep.mubr.f32.mxu0 0.0
        %4645 = vmatmul.mubr.f32.gmra.mrb[0].mxu0 %v1334
        %v4646 = vpop.f32.mrb[0].mxu0
        %v4647 = vadd.f32 0.0, %v4646
        %v4648 = vpop.f32.mrb[0].mxu0
        %4649 = vmatprep.mubr.f32.mxu0 0.0
        %4650 = vmatmul.mubr.f32.gmra.mrb[0].mxu0 %v1337
        %v4651 = vpop.f32.mrb[0].mxu0
        %v4652 = vadd.f32 0.0, %v4651
        %v4653 = vpop.f32.mrb[0].mxu0
        %4654 = vdwg.mxu0
        %v4655 = vpack.c.bf16 %v4652, %v4647
        %v4657 = vsel %vm897, %v4655, 0
        %4659 = vmatprep.subr.bf16.mxu0 0
        %4660 = vmatpush1.bf16.msra.mxu0 %v1847
        %4661 = vmatprep.subr.bf16.mxu0 0
        %4662 = vmatpush1.bf16.msra.mxu0 %v1848
        %4663 = vmatprep.subr.bf16.mxu0 0
        %4664 = vmatpush1.bf16.msra.mxu0 0
        %4665 = vmatprep.subr.bf16.mxu0 0
        %4666 = vmatpush1.bf16.msra.mxu0 0
        %4667 = vmatprep.subr.bf16.mxu0 0
        %4668 = vmatpush1.bf16.msra.mxu0 0
        %4669 = vmatprep.subr.bf16.mxu0 0
        %4670 = vmatpush1.bf16.msra.mxu0 0
        %4671 = vmatprep.subr.bf16.mxu0 0
        %4672 = vmatpush1.bf16.msra.mxu0 0
        %4673 = vmatprep.subr.bf16.mxu0 0
        %4674 = vmatpush1.bf16.msra.mxu0 0
        %4675 = vmatprep.subr.bf16.mxu0 0
        %4676 = vmatpush1.bf16.msra.mxu0 0
        %4677 = vmatprep.subr.bf16.mxu0 0
        %4678 = vmatpush1.bf16.msra.mxu0 0
        %4679 = vmatprep.subr.bf16.mxu0 0
        %4680 = vmatpush1.bf16.msra.mxu0 0
        %4681 = vmatprep.subr.bf16.mxu0 0
        %4682 = vmatpush1.bf16.msra.mxu0 0
        %4683 = vmatprep.subr.bf16.mxu0 0
        %4684 = vmatpush1.bf16.msra.mxu0 0
        %4685 = vmatprep.subr.bf16.mxu0 0
        %4686 = vmatpush1.bf16.msra.mxu0 0
        %4687 = vmatprep.subr.bf16.mxu0 0
        %4688 = vmatpush1.bf16.msra.mxu0 0
        %4689 = vmatprep.subr.bf16.mxu0 0
        %4690 = vmatpush1.bf16.msra.mxu0 0
        %4691 = vmatprep.mubr.bf16.mxu0 0
        %4692 = vmatmul.mubr.bf16.gmra.mrb[0].mxu0 %v4657
        %v4693 = vpop.f32.mrb[0].mxu0
        %v4694 = vadd.f32 0.0, %v4693
        %v4695 = vpop.f32.mrb[0].mxu0
        %v4696 = vpop.f32.mrb[0].mxu0
        %v4697 = vadd.f32 0.0, %v4696
        %v4698 = vpop.f32.mrb[0].mxu0
        %4699 = vdwg.mxu0
        %v4700 = vadd.f32 %v4574, %v4694
        %v4701 = vadd.f32 %v4577, %v4697
        %4702 = vmatprep.subr.mxu0 0.0
        %4703 = vmatpush1.msra.mxu0 %v4533
        %4704 = vmatprep.subr.mxu0 0.0
        %4705 = vmatpush1.msra.mxu0 %v4534
        %4706 = vmatprep.subr.mxu0 0.0
        %4707 = vmatpush1.msra.mxu0 0.0
        %4708 = vmatprep.subr.mxu0 0.0
        %4709 = vmatpush1.msra.mxu0 0.0
        %4710 = vmatprep.subr.mxu0 0.0
        %4711 = vmatpush1.msra.mxu0 0.0
        %4712 = vmatprep.subr.mxu0 0.0
        %4713 = vmatpush1.msra.mxu0 0.0
        %4714 = vmatprep.subr.mxu0 0.0
        %4715 = vmatpush1.msra.mxu0 0.0
        %4716 = vmatprep.subr.mxu0 0.0
        %4717 = vmatpush1.msra.mxu0 0.0
        %4718 = vmatprep.subr.mxu0 0.0
        %4719 = vmatpush1.msra.mxu0 0.0
        %4720 = vmatprep.subr.mxu0 0.0
        %4721 = vmatpush1.msra.mxu0 0.0
        %4722 = vmatprep.subr.mxu0 0.0
        %4723 = vmatpush1.msra.mxu0 0.0
        %4724 = vmatprep.subr.mxu0 0.0
        %4725 = vmatpush1.msra.mxu0 0.0
        %4726 = vmatprep.subr.mxu0 0.0
        %4727 = vmatpush1.msra.mxu0 0.0
        %4728 = vmatprep.subr.mxu0 0.0
        %4729 = vmatpush1.msra.mxu0 0.0
        %4730 = vmatprep.subr.mxu0 0.0
        %4731 = vmatpush1.msra.mxu0 0.0
        %4732 = vmatprep.subr.mxu0 0.0
        %4733 = vmatpush1.msra.mxu0 0.0
        %4734 = vmatprep.subr.mxu0 0.0
        %4735 = vmatpush1.msra.mxu0 0.0
        %4736 = vmatprep.subr.mxu0 0.0
        %4737 = vmatpush1.msra.mxu0 0.0
        %4738 = vmatprep.subr.mxu0 0.0
        %4739 = vmatpush1.msra.mxu0 0.0
        %4740 = vmatprep.subr.mxu0 0.0
        %4741 = vmatpush1.msra.mxu0 0.0
        %4742 = vmatprep.subr.mxu0 0.0
        %4743 = vmatpush1.msra.mxu0 0.0
        %4744 = vmatprep.subr.mxu0 0.0
        %4745 = vmatpush1.msra.mxu0 0.0
        %4746 = vmatprep.subr.mxu0 0.0
        %4747 = vmatpush1.msra.mxu0 0.0
        %4748 = vmatprep.subr.mxu0 0.0
        %4749 = vmatpush1.msra.mxu0 0.0
        %4750 = vmatprep.subr.mxu0 0.0
        %4751 = vmatpush1.msra.mxu0 0.0
        %4752 = vmatprep.subr.mxu0 0.0
        %4753 = vmatpush1.msra.mxu0 0.0
        %4754 = vmatprep.subr.mxu0 0.0
        %4755 = vmatpush1.msra.mxu0 0.0
        %4756 = vmatprep.subr.mxu0 0.0
        %4757 = vmatpush1.msra.mxu0 0.0
        %4758 = vmatprep.subr.mxu0 0.0
        %4759 = vmatpush1.msra.mxu0 0.0
        %4760 = vmatprep.subr.mxu0 0.0
        %4761 = vmatpush1.msra.mxu0 0.0
        %4762 = vmatprep.subr.mxu0 0.0
        %4763 = vmatpush1.msra.mxu0 0.0
        %4764 = vmatprep.subr.mxu0 0.0
        %4765 = vmatpush1.msra.mxu0 0.0
        %4766 = vmatprep.mubr.f32.mxu0 0.0
        %4767 = vmatmul.mubr.f32.gmra.mrb[0].mxu0 %v1476
        %v4768 = vpop.f32.mrb[0].mxu0
        %v4769 = vadd.f32 0.0, %v4768
        %v4770 = vpop.f32.mrb[0].mxu0
        %4771 = vmatprep.mubr.f32.mxu0 0.0
        %4772 = vmatmul.mubr.f32.gmra.mrb[0].mxu0 %v1479
        %v4773 = vpop.f32.mrb[0].mxu0
        %v4774 = vadd.f32 0.0, %v4773
        %v4775 = vpop.f32.mrb[0].mxu0
        %4776 = vdwg.mxu0
        %v4777 = vpack.c.bf16 %v4774, %v4769
        %v4779 = vsel %vm897, %v4777, 0
        %4781 = vmatprep.subr.bf16.mxu0 0
        %4782 = vmatpush1.bf16.msra.mxu0 %v1976
        %4783 = vmatprep.subr.bf16.mxu0 0
        %4784 = vmatpush1.bf16.msra.mxu0 %v1977
        %4785 = vmatprep.subr.bf16.mxu0 0
        %4786 = vmatpush1.bf16.msra.mxu0 0
        %4787 = vmatprep.subr.bf16.mxu0 0
        %4788 = vmatpush1.bf16.msra.mxu0 0
        %4789 = vmatprep.subr.bf16.mxu0 0
        %4790 = vmatpush1.bf16.msra.mxu0 0
        %4791 = vmatprep.subr.bf16.mxu0 0
        %4792 = vmatpush1.bf16.msra.mxu0 0
        %4793 = vmatprep.subr.bf16.mxu0 0
        %4794 = vmatpush1.bf16.msra.mxu0 0
        %4795 = vmatprep.subr.bf16.mxu0 0
        %4796 = vmatpush1.bf16.msra.mxu0 0
        %4797 = vmatprep.subr.bf16.mxu0 0
        %4798 = vmatpush1.bf16.msra.mxu0 0
        %4799 = vmatprep.subr.bf16.mxu0 0
        %4800 = vmatpush1.bf16.msra.mxu0 0
        %4801 = vmatprep.subr.bf16.mxu0 0
        %4802 = vmatpush1.bf16.msra.mxu0 0
        %4803 = vmatprep.subr.bf16.mxu0 0
        %4804 = vmatpush1.bf16.msra.mxu0 0
        %4805 = vmatprep.subr.bf16.mxu0 0
        %4806 = vmatpush1.bf16.msra.mxu0 0
        %4807 = vmatprep.subr.bf16.mxu0 0
        %4808 = vmatpush1.bf16.msra.mxu0 0
        %4809 = vmatprep.subr.bf16.mxu0 0
        %4810 = vmatpush1.bf16.msra.mxu0 0
        %4811 = vmatprep.subr.bf16.mxu0 0
        %4812 = vmatpush1.bf16.msra.mxu0 0
        %4813 = vmatprep.mubr.bf16.mxu0 0
        %4814 = vmatmul.mubr.bf16.gmra.mrb[0].mxu0 %v4779
        %v4815 = vpop.f32.mrb[0].mxu0
        %v4816 = vadd.f32 0.0, %v4815
        %v4817 = vpop.f32.mrb[0].mxu0
        %v4818 = vpop.f32.mrb[0].mxu0
        %v4819 = vadd.f32 0.0, %v4818
        %v4820 = vpop.f32.mrb[0].mxu0
        %4821 = vdwg.mxu0
        %v4822 = vadd.f32 %v4700, %v4816
        %v4823 = vadd.f32 %v4701, %v4819
        %v4824 = vadd.f32 %v4822, %v2027
        %v4825 = vadd.f32 %v4823, %v2029
        %v4826 = vxor.u32 %v4824, 2147483648
        %v4827 = vxor.u32 %v4825, 2147483648
        %v4828 = vmul.f32 %v4826, 1.442695
        %v4829 = vpow.pop %v4828
        %v4830 = vmul.f32 %v4827, 1.442695
        %v4831 = vpow.pop %v4830
        %v4832 = vadd.f32 %v4829, 1.0
        %v4833 = vadd.f32 %v4831, 1.0
        %v4834 = vrcp.pop %v4832
        %v4835 = vmul.f32 1.0, %v4834
        %v4836 = vrcp.pop %v4833
        %v4837 = vmul.f32 1.0, %v4836
        %v4838 = vtanh.pop %v4824
        %v4839 = vtanh.pop %v4825
        %4842 = vrot.lane.b32.xlu0 %v4838, 96
        %v4843 = vpop.permute.xlu0 %4842
        %4844 = vrot.lane.b32.xlu0 %v4839, 96
        %v4845 = vpop.permute.xlu0 %4844
        %v4848 = vmul.f32 %v4835, %v4843
        %v4849 = vmul.f32 %v4837, %v4845
        %v4850 = vpack.c.bf16 %v4849, %v4848
        %v4852 = vsel %vm897, %v4850, 0
        %4854 = vmatprep.subr.bf16.mxu0 0
        %4855 = vmatpush1.bf16.msra.mxu0 %v2064
        %4856 = vmatprep.subr.bf16.mxu0 0
        %4857 = vmatpush1.bf16.msra.mxu0 %v2065
        %4858 = vmatprep.subr.bf16.mxu0 0
        %4859 = vmatpush1.bf16.msra.mxu0 0
        %4860 = vmatprep.subr.bf16.mxu0 0
        %4861 = vmatpush1.bf16.msra.mxu0 0
        %4862 = vmatprep.subr.bf16.mxu0 0
        %4863 = vmatpush1.bf16.msra.mxu0 0
        %4864 = vmatprep.subr.bf16.mxu0 0
        %4865 = vmatpush1.bf16.msra.mxu0 0
        %4866 = vmatprep.subr.bf16.mxu0 0
        %4867 = vmatpush1.bf16.msra.mxu0 0
        %4868 = vmatprep.subr.bf16.mxu0 0
        %4869 = vmatpush1.bf16.msra.mxu0 0
        %4870 = vmatprep.subr.bf16.mxu0 0
        %4871 = vmatpush1.bf16.msra.mxu0 0
        %4872 = vmatprep.subr.bf16.mxu0 0
        %4873 = vmatpush1.bf16.msra.mxu0 0
        %4874 = vmatprep.subr.bf16.mxu0 0
        %4875 = vmatpush1.bf16.msra.mxu0 0
        %4876 = vmatprep.subr.bf16.mxu0 0
        %4877 = vmatpush1.bf16.msra.mxu0 0
        %4878 = vmatprep.subr.bf16.mxu0 0
        %4879 = vmatpush1.bf16.msra.mxu0 0
        %4880 = vmatprep.subr.bf16.mxu0 0
        %4881 = vmatpush1.bf16.msra.mxu0 0
        %4882 = vmatprep.subr.bf16.mxu0 0
        %4883 = vmatpush1.bf16.msra.mxu0 0
        %4884 = vmatprep.subr.bf16.mxu0 0
        %4885 = vmatpush1.bf16.msra.mxu0 0
        %4886 = vmatprep.mubr.bf16.mxu0 0
        %4887 = vmatmul.mubr.bf16.gmra.mrb[0].mxu0 %v4852
        %v4888 = vpop.f32.mrb[0].mxu0
        %v4889 = vadd.f32 %v2072, %v4888
        %v4890 = vpop.f32.mrb[0].mxu0
        %v4891 = vpop.f32.mrb[0].mxu0
        %v4892 = vadd.f32 %v2072, %v4891
        %v4893 = vpop.f32.mrb[0].mxu0
        %4894 = vdwg.mxu0
        %v4895 = vadd.f32 %v4527, %v4889
        %v4896 = vadd.f32 %v4528, %v4892
        %v4897 = vmul.f32 %v4895, 0.70710677
        %v4898 = vmul.f32 %v4896, 0.70710677
        %v4899 = vpack.c.bf16 %v4898, %v4897
        %4901 = vrot.lane.b32.xlu0 %v4899, 96
        %v4902 = vpop.permute.xlu0 %4901
        %v4904 = vsel %vm897, %v4902, 0
        %4906 = vmatprep.subr.bf16.mxu0 0
        %4907 = vmatpush1.bf16.msra.mxu0 %v2127
        %4908 = vmatprep.subr.bf16.mxu0 0
        %4909 = vmatpush1.bf16.msra.mxu0 %v2128
        %4910 = vmatprep.subr.bf16.mxu0 0
        %4911 = vmatpush1.bf16.msra.mxu0 0
        %4912 = vmatprep.subr.bf16.mxu0 0
        %4913 = vmatpush1.bf16.msra.mxu0 0
        %4914 = vmatprep.subr.bf16.mxu0 0
        %4915 = vmatpush1.bf16.msra.mxu0 0
        %4916 = vmatprep.subr.bf16.mxu0 0
        %4917 = vmatpush1.bf16.msra.mxu0 0
        %4918 = vmatprep.subr.bf16.mxu0 0
        %4919 = vmatpush1.bf16.msra.mxu0 0
        %4920 = vmatprep.subr.bf16.mxu0 0
        %4921 = vmatpush1.bf16.msra.mxu0 0
        %4922 = vmatprep.subr.bf16.mxu0 0
        %4923 = vmatpush1.bf16.msra.mxu0 0
        %4924 = vmatprep.subr.bf16.mxu0 0
        %4925 = vmatpush1.bf16.msra.mxu0 0
        %4926 = vmatprep.subr.bf16.mxu0 0
        %4927 = vmatpush1.bf16.msra.mxu0 0
        %4928 = vmatprep.subr.bf16.mxu0 0
        %4929 = vmatpush1.bf16.msra.mxu0 0
        %4930 = vmatprep.subr.bf16.mxu0 0
        %4931 = vmatpush1.bf16.msra.mxu0 0
        %4932 = vmatprep.subr.bf16.mxu0 0
        %4933 = vmatpush1.bf16.msra.mxu0 0
        %4934 = vmatprep.subr.bf16.mxu0 0
        %4935 = vmatpush1.bf16.msra.mxu0 0
        %4936 = vmatprep.subr.bf16.mxu0 0
        %4937 = vmatpush1.bf16.msra.mxu0 0
        %4938 = vmatprep.mubr.bf16.mxu0 0
        %4939 = vmatmul.mubr.bf16.gmra.mrb[0].mxu0 %v4904
        %v4940 = vpop.f32.mrb[0].mxu0
        %v4941 = vadd.f32 %v2134, %v4940
        %v4942 = vpop.f32.mrb[0].mxu0
        %v4943 = vpop.f32.mrb[0].mxu0
        %v4944 = vadd.f32 %v2134, %v4943
        %v4945 = vpop.f32.mrb[0].mxu0
        %4946 = vdwg.mxu0
        %v4947 = vmax.f32 %v4941, 0.0
        %v4948 = vmax.f32 %v4944, 0.0
        %v4949 = vpack.c.bf16 %v4948, %v4947
        %v4951 = vsel %vm897, %v4949, 0
        %4953 = vmatprep.subr.bf16.mxu0 0
        %4954 = vmatpush1.bf16.msra.mxu0 %v2190
        %4955 = vmatprep.subr.bf16.mxu0 0
        %4956 = vmatpush1.bf16.msra.mxu0 %v2191
        %4957 = vmatprep.subr.bf16.mxu0 0
        %4958 = vmatpush1.bf16.msra.mxu0 0
        %4959 = vmatprep.subr.bf16.mxu0 0
        %4960 = vmatpush1.bf16.msra.mxu0 0
        %4961 = vmatprep.subr.bf16.mxu0 0
        %4962 = vmatpush1.bf16.msra.mxu0 0
        %4963 = vmatprep.subr.bf16.mxu0 0
        %4964 = vmatpush1.bf16.msra.mxu0 0
        %4965 = vmatprep.subr.bf16.mxu0 0
        %4966 = vmatpush1.bf16.msra.mxu0 0
        %4967 = vmatprep.subr.bf16.mxu0 0
        %4968 = vmatpush1.bf16.msra.mxu0 0
        %4969 = vmatprep.subr.bf16.mxu0 0
        %4970 = vmatpush1.bf16.msra.mxu0 0
        %4971 = vmatprep.subr.bf16.mxu0 0
        %4972 = vmatpush1.bf16.msra.mxu0 0
        %4973 = vmatprep.subr.bf16.mxu0 0
        %4974 = vmatpush1.bf16.msra.mxu0 0
        %4975 = vmatprep.subr.bf16.mxu0 0
        %4976 = vmatpush1.bf16.msra.mxu0 0
        %4977 = vmatprep.subr.bf16.mxu0 0
        %4978 = vmatpush1.bf16.msra.mxu0 0
        %4979 = vmatprep.subr.bf16.mxu0 0
        %4980 = vmatpush1.bf16.msra.mxu0 0
        %4981 = vmatprep.subr.bf16.mxu0 0
        %4982 = vmatpush1.bf16.msra.mxu0 0
        %4983 = vmatprep.subr.bf16.mxu0 0
        %4984 = vmatpush1.bf16.msra.mxu0 0
        %4985 = vmatprep.mubr.bf16.mxu0 0
        %4986 = vmatmul.mubr.bf16.gmra.mrb[0].mxu0 %v4951
        %v4987 = vpop.f32.mrb[0].mxu0
        %v4988 = vadd.f32 %v2197, %v4987
        %v4989 = vpop.f32.mrb[0].mxu0
        %v4990 = vpop.f32.mrb[0].mxu0
        %v4991 = vadd.f32 %v2197, %v4990
        %v4992 = vpop.f32.mrb[0].mxu0
        %4993 = vdwg.mxu0
        %s4994 = sld [smem:[#allocation2]]
        %s4995 = sld [smem:[#allocation2 + $0x80]]
        %s4996 = sld [smem:[#allocation2 + $0x100]]
        %s4997 = sld [smem:[#allocation2 + $0x180]]
        %v4998 = vstv %s4994
        %v4999 = vmul.f32 %v4998, %v4108
        %v5000 = vmul.f32 %v4998, %v4109
        %v5001 = vstv %s4995
        %v5002 = vmul.f32 %v5001, %v4988
        %v5003 = vmul.f32 %v5001, %v4991
        %v5004 = vsub.f32 %v4999, %v5002
        %v5005 = vsub.f32 %v5000, %v5003
        %v5006 = vmax.f32 %v5004, -1.0
        %v5007 = vmax.f32 %v5005, -1.0
        %v5008 = vmin.f32 %v5006, 1.0
        %v5009 = vmin.f32 %v5007, 1.0
        %v5010 = vstv %s4996
        %v5011 = vmul.f32 %v5010, %v5008
        %v5012 = vmul.f32 %v5010, %v5009
        %v5013 = vstv %s4997
        %v5014 = vmul.f32 %v5013, %v4108
        %v5015 = vmul.f32 %v5013, %v4109
        %v5016 = vadd.f32 %v5011, %v5014
        %v5017 = vadd.f32 %v5012, %v5015
        %v5018 = vadd.f32 %v5016, 1.0
        %v5019 = vadd.f32 %v5017, 1.0
        %v5020 = vmul.f32 %v5018, 0.5
        %v5021 = vmul.f32 %v5019, 0.5
        %v5022 = vld [vmem:[%s24] sm:$0x1]
        %v5023 = vld [vmem:[%s23] sm:$0x1]
        %v5024 = vsub.f32 %v5022, %v5023
        %v5026 = vlaneseq
        %v5027 = vshrl.u32 %v5026, 7
        %v5028 = vsub.s32 0, %v5027
        %v5029 = vrot.slane %v5024, %v5028
        %v5031 = vmul.f32 %v5020, %v5029
        %v5032 = vmul.f32 %v5021, %v5029
        %v5034 = vlaneseq
        %v5035 = vshrl.u32 %v5034, 7
        %v5036 = vsub.s32 0, %v5035
        %v5037 = vrot.slane %v5023, %v5036
        %v5039 = vadd.f32 %v5031, %v5037
        %v5040 = vadd.f32 %v5032, %v5037
        %5041 = vst.msk [vmem:[%s869] sm:$0xff] %vm1213, %v5039
        %5042 = vst.msk [vmem:[%s869 + $0x8] sm:$0xff] %vm1213, %v5040
        %s5043 = sand.u32 %s588, 1
        %s5044 = scalar_lea.sflag [#allocation3], %s5043
        %s5045 = sand.u32 %s588, 1
        %s5046 = smul.addr %s5045, 16
        %s5047 = scalar_lea.vmem [#allocation6], %s5046
        // Predicated region
        $region163: #{prodiff_teacher_forward.3} parent=153 // pred_check
          %p5048 = pneg %p598
        $region164: #{prodiff_teacher_forward.3} parent=153 // pred_check_branch
          %5050 = sbr.rel (%p5048) target = $region166
        $region165: #{prodiff_teacher_forward.3} parent=153 // pred_region
          %s5052 = ssub.s32 256, 256
          %5053 = vsyncadd %s5044, %s5052
          %s5054 = smul.addr %s40, 2
          %s5055 = smul.addr %s5054, 128
          %s5056 = scalar_lea.hbm %s25, %s5055
          %s5057 = sshll.u32 %s5047, 4
          %s5058 = int_to_ptr.vmem [resolvable:$true] %s5057
          %5063 = dma.vmem_to_hbm [thread:$0]  %s5058, 256, %s5056, %s5044, 128, 128, 8
        $region166: #{prodiff_teacher_forward.3} parent=153 // pred_fallthru
          _
      $region154: #{prodiff_teacher_forward.3} parent=5 // pred_fallthru
        _
      %p5064 = scmp.le.s32.totalorder 2, %s35
      // Predicated region
      $region167: #{prodiff_teacher_forward.3} parent=5 // pred_check
        %p5065 = pneg %p5064
      $region168: #{prodiff_teacher_forward.3} parent=5 // pred_check_branch
        %5067 = sbr.rel (%p5065) target = $region170
      $region169: #{prodiff_teacher_forward.3} parent=5 // pred_region
        %s5068 = ssub.s32 %s35, 2
        // Predicated region
        $region171: #{prodiff_teacher_forward.3} parent=169 // pred_check
          %p5069 = pneg %p604
        $region172: #{prodiff_teacher_forward.3} parent=169 // pred_check_branch
          %5071 = sbr.rel (%p5069) target = $region174
        $region173: #{prodiff_teacher_forward.3} parent=169 // pred_region
          %s5072 = sand.u32 %s589, 1
          %s5073 = scalar_lea.sflag [#allocation3], %s5072
          %s5074 = sand.u32 %s589, 1
          %s5075 = smul.addr %s5074, 16
          %s5076 = scalar_lea.vmem [#allocation6], %s5075
          %5077 = dma.done %s5073, 256
        $region174: #{prodiff_teacher_forward.3} parent=169 // pred_fallthru
          _
      $region170: #{prodiff_teacher_forward.3} parent=5 // pred_fallthru
        _
    $region6: #{prodiff_teacher_forward.3} parent=1 // loop_footer
      %s39 = sadd.s32 1, %s35
    $region7: #{prodiff_teacher_forward.3} parent=1 // loop_footer_branch
      %34 = sbr.rel target = $region3
    $region8: #{prodiff_teacher_forward.3} parent=1 // loop_exit
      _
    %5078 = vsyncpa [#allocation3], 1
    %s5079 = scalar_lea.sflag [#allocation3], 1
    %5080 = vsyncpa %s5079, 1
    %5081 = vsyncpa [#allocation4], 1
    %s5082 = scalar_lea.sflag [#allocation4], 1
    %5083 = vsyncpa %s5082, 1

</llo_original>
